<compile_context>
chip_gen: v7x
topology: tpu7x:2x2x1
jax: 0.10.0
libtpu: 0.0.40
codegen_flags: <defaults>
</compile_context>

<pallas_src>
import math

import jax
import jax.numpy as jnp
from jax import lax
from jax.experimental import pallas as pl
from jax.experimental.pallas import tpu as pltpu


BE = 128  # edges processed per block (one lane group)


def _round_up(x, m):
    return (x + m - 1) // m * m


def _make_rgat_kernel(n_pad, e_real, e_pad, n_eblk, nrel, h_pad, mxu_dtype):
    """Fused two-layer RGAT kernel; static dims are closed over."""
    K1 = nrel * h_pad          # feature columns of the fused weight matrix
    KTOT = K1 + 128            # + one lane group holding the folded q/k columns
    f32 = jnp.float32

    def kernel(src_c_ref, dst_c_ref, rel_c_ref, dst_r_ref,   # edge indices
               x_ref, w1_ref, b1_ref, w2_ref, b2_ref,        # features + params
               out_ref, alpha_ref,                           # outputs
               xh_sc, h_sc, m_sc, l_sc, a_sc):               # scratch

        def block_masks(blk):
            """Per-block edge slices + one-hot node masks (bounds-safe)."""
            start = pl.multiple_of(blk * BE, BE)
            src_b = src_c_ref[pl.ds(start, BE), :]           # (BE,1) int32
            dst_b = dst_c_ref[pl.ds(start, BE), :]
            rel_b = rel_c_ref[pl.ds(start, BE), :]
            eid = lax.broadcasted_iota(jnp.int32, (BE, 1), 0) + start
            valid = eid < e_real                             # (BE,1) bool
            lane_node = lax.broadcasted_iota(jnp.int32, (BE, n_pad), 1)
            S = lane_node == src_b                           # (BE,n_pad) src one-hot
            D = lane_node == dst_b                           # (BE,n_pad) dst one-hot
            return start, rel_b, valid, S, D

        def layer(x_val, w_ref, b_ref, agg_ref, write_alpha):
            # ---- node-level transform: ONE wide MXU matmul; q/k terms are
            #      folded into the trailing 128 columns of w_ref -------------
            xh_sc[...] = jnp.dot(x_val, w_ref[...],
                                 preferred_element_type=f32).astype(mxu_dtype)
            qmat = xh_sc[:, K1:K1 + nrel]                    # (n_pad, nrel)
            kmat = xh_sc[:, K1 + nrel:K1 + 2 * nrel]         # (n_pad, nrel)

            # ---- init online segment-softmax state: only (1, n_pad) rows ---
            m_sc[...] = jnp.full((1, n_pad), -1e30, f32)
            l_sc[...] = jnp.zeros((1, n_pad), f32)
            agg_ref[...] = jnp.broadcast_to(b_ref[...], (n_pad, h_pad))

            # ---- pass 1: blocked logits + online per-destination max/sum ---
            def pass1(blk, carry):
                start, rel_b, valid, S, D = block_masks(blk)
                Sf = jnp.where(S, 1.0, 0.0).astype(mxu_dtype)
                Df = jnp.where(D, 1.0, 0.0).astype(mxu_dtype)
                kj_all = jnp.dot(Sf, kmat, preferred_element_type=f32)  # (BE,nrel)
                qi_all = jnp.dot(Df, qmat, preferred_element_type=f32)  # (BE,nrel)
                a = jnp.zeros((BE, 1), f32)
                for r in range(nrel):                        # static, nrel small
                    sel = rel_b == r
                    a = a + jnp.where(sel,
                                      qi_all[:, r:r + 1] + kj_all[:, r:r + 1],
                                      0.0)
                a = jnp.where(a > 0, a, 0.2 * a)             # leaky_relu(0.2)
                a = jnp.where(valid, a, -1e30)               # mask padded edges
                a_sc[pl.ds(start, BE), :] = a
                m_old = m_sc[...]
                m_new = jnp.maximum(
                    m_old,
                    jnp.max(jnp.where(D, a, -1e30), axis=0, keepdims=True))
                m_d = jnp.sum(jnp.where(D, m_new, 0.0), axis=1, keepdims=True)
                p = jnp.exp(a - m_d) * jnp.where(valid, 1.0, 0.0)
                l_sc[...] = (l_sc[...] * jnp.exp(m_old - m_new)
                             + jnp.sum(jnp.where(D, p, 0.0), axis=0,
                                       keepdims=True))
                m_sc[...] = m_new
                return carry

            lax.fori_loop(0, n_eblk, pass1, 0)

            # ---- pass 2: alpha + blocked MXU gather / scatter-add ----------
            def pass2(blk, carry):
                start, rel_b, valid, S, D = block_masks(blk)
                Sf = jnp.where(S, 1.0, 0.0).astype(mxu_dtype)
                a = a_sc[pl.ds(start, BE), :]
                m_d = jnp.sum(jnp.where(D, m_sc[...], 0.0), axis=1, keepdims=True)
                l_d = jnp.sum(jnp.where(D, l_sc[...], 0.0), axis=1, keepdims=True)
                alpha = (jnp.exp(a - m_d) / (l_d + 1e-16))
                alpha = alpha * jnp.where(valid, 1.0, 0.0)
                if write_alpha:
                    alpha_ref[pl.ds(start, BE), :] = alpha
                # blocked source-feature gather (MXU), then relation select
                G_all = jnp.dot(Sf, xh_sc[:, :K1],
                                preferred_element_type=f32)          # (BE, K1)
                G = jnp.zeros((BE, h_pad), f32)
                for r in range(nrel):
                    sel = rel_b == r
                    G = G + jnp.where(sel,
                                      G_all[:, r * h_pad:(r + 1) * h_pad], 0.0)
                msg = (alpha * G).astype(mxu_dtype)                  # (BE, h_pad)
                # scatter-add via a (n_pad, BE) dst one-hot built row-oriented
                dst_row = dst_r_ref[pl.ds(blk, 1), :]                # (1, BE)
                row_node = lax.broadcasted_iota(jnp.int32, (n_pad, BE), 0)
                DTf = jnp.where(row_node == dst_row, 1.0, 0.0).astype(mxu_dtype)
                agg_ref[...] = agg_ref[...] + jnp.dot(
                    DTf, msg, preferred_element_type=f32)
                return carry

            lax.fori_loop(0, n_eblk, pass2, 0)

        # layer 1 (attention weights are discarded -> not stored)
        layer(x_ref[...], w1_ref, b1_ref, h_sc, write_alpha=False)
        # layer 2 consumes relu(h1); final ReLU on the VPU in-kernel
        layer(jnp.maximum(h_sc[...], 0.0).astype(mxu_dtype),
              w2_ref, b2_ref, out_ref, write_alpha=True)
        out_ref[...] = jnp.maximum(out_ref[...], 0.0)

    return kernel


def rgat_forward(params, x, edge_index, edge_type, num_nodes, nrel,
                 mxu_dtype=jnp.float32):
    """Fused 2-layer RGAT forward. Returns (relu(h2), (edge_index, alpha2))."""
    N, Cin = x.shape
    E = edge_index.shape[1]
    H = params["W1"].shape[2]

    n_pad = _round_up(max(N, 8), 8)            # sublane alignment
    h_pad = _round_up(max(H, 128), 128)        # lane-dense features / MXU N-dim
    e_pad = _round_up(max(E, BE), BE)          # whole edge blocks
    n_eblk = e_pad // BE
    K1 = nrel * h_pad
    KTOT = K1 + 128
    assert 2 * nrel <= 128, "q/k fold assumes 2*nrel fits one lane group"

    src = edge_index[0].astype(jnp.int32)
    dst = edge_index[1].astype(jnp.int32)
    rel = edge_type.astype(jnp.int32)

    def pad_edges(v):
        # padded entries use index 0 and are masked in-kernel (eid >= E)
        return jnp.zeros((e_pad,), jnp.int32).at[:E].set(v)

    src_p, dst_p, rel_p = pad_edges(src), pad_edges(dst), pad_edges(rel)
    src_c = src_p.reshape(e_pad, 1)            # column (sublane) orientation
    dst_c = dst_p.reshape(e_pad, 1)
    rel_c = rel_p.reshape(e_pad, 1)
    dst_r = dst_p.reshape(n_eblk, BE)          # row (lane) orientation for scatter

    def build_wcat(W, q, k, cin_pad):
        """Concatenated per-relation weights with q/k folded into trailing lanes."""
        cin = W.shape[1]
        Wq = (W @ q)[..., 0]                   # (nrel, cin):  (x W[r]) q = x (W[r] q)
        Wk = (W @ k)[..., 0]
        Wcat = jnp.zeros((cin_pad, KTOT), jnp.float32)
        for r in range(nrel):
            Wcat = Wcat.at[:cin, r * h_pad:r * h_pad + H].set(W[r])
            Wcat = Wcat.at[:cin, K1 + r].set(Wq[r])
            Wcat = Wcat.at[:cin, K1 + nrel + r].set(Wk[r])
        return Wcat.astype(mxu_dtype)

    W1cat = build_wcat(params["W1"], params["q1"], params["k1"], Cin)
    W2cat = build_wcat(params["W2"], params["q2"], params["k2"], h_pad)
    b1p = jnp.zeros((1, h_pad), jnp.float32).at[:, :H].set(params["b1"])
    b2p = jnp.zeros((1, h_pad), jnp.float32).at[:, :H].set(params["b2"])
    x_p = jnp.zeros((n_pad, Cin), jnp.float32).at[:N].set(x).astype(mxu_dtype)

    kernel = _make_rgat_kernel(n_pad, E, e_pad, n_eblk, nrel, h_pad, mxu_dtype)

    vmem = pl.BlockSpec(memory_space=pltpu.MemorySpace.VMEM)

    # Derived VMEM budget: resident operands/outputs/scratch + per-block
    # temporaries, with 2x headroom (feedback: do not hardcode 64 MiB).
    itm = jnp.dtype(mxu_dtype).itemsize
    resident = (4 * (3 * e_pad + n_eblk * BE)                        # indices
                + itm * (n_pad * Cin + Cin * KTOT + h_pad * KTOT)    # x, W1, W2
                + itm * n_pad * KTOT                                 # xh scratch
                + 4 * (2 * h_pad + 2 * n_pad * h_pad + 2 * e_pad + 2 * n_pad))
    block_tmp = 4 * BE * (K1 + 3 * h_pad + 4 * n_pad)
    vmem_limit = int(min(120 * 2 ** 20, max(32 * 2 ** 20,
                                            2 * (resident + block_tmp))))

    flops = int(2 * n_pad * KTOT * (Cin + h_pad)
                + 2 * 2 * n_eblk * BE * n_pad * (K1 + h_pad + 4 * nrel))
    transcendentals = int(2 * (2 * e_pad + 2 * n_eblk * n_pad))
    bytes_accessed = int(resident + 8 * n_eblk * BE * (K1 + h_pad))

    out_p, alpha_p = pl.pallas_call(
        kernel,
        out_shape=(jax.ShapeDtypeStruct((n_pad, h_pad), jnp.float32),
                   jax.ShapeDtypeStruct((e_pad, 1), jnp.float32)),
        in_specs=[vmem] * 9,
        out_specs=(vmem, vmem),
        scratch_shapes=[
            pltpu.VMEM((n_pad, KTOT), mxu_dtype),     # per-(rel,node) feats + q/k
            pltpu.VMEM((n_pad, h_pad), jnp.float32),  # layer-1 hidden / agg
            pltpu.VMEM((1, n_pad), jnp.float32),      # online segment max
            pltpu.VMEM((1, n_pad), jnp.float32),      # online segment sum
            pltpu.VMEM((e_pad, 1), jnp.float32),      # edge logits
        ],
        compiler_params=pltpu.CompilerParams(vmem_limit_bytes=vmem_limit),
        cost_estimate=pl.CostEstimate(flops=flops,
                                      transcendentals=transcendentals,
                                      bytes_accessed=bytes_accessed),
    )(src_c, dst_c, rel_c, dst_r, x_p, W1cat, b1p, W2cat, b2p)

    out = out_p[:N, :H]
    alpha = alpha_p[:E, :]
    return out, (edge_index, alpha)


# ----------------------------------------------------------------------------
# parameter init + pure-JAX reference (same math as the original module)
# ----------------------------------------------------------------------------
def glorot(key, shape):
    fan_in, fan_out = shape[-2], shape[-1]
    limit = math.sqrt(6.0 / (fan_in + fan_out))
    return jax.random.uniform(key, shape, jnp.float32, -limit, limit)


def init_rgat_params(key, in_channels, hidden_channels, num_relations):
    nrel = num_relations + 1  # RGAT uses num_relations + 1 inside each conv
    ks = jax.random.split(key, 6)
    params = {
        "W1": glorot(ks[0], (nrel, in_channels, hidden_channels)),
        "q1": glorot(ks[1], (hidden_channels, 1)),
        "k1": glorot(ks[2], (hidden_channels, 1)),
        "b1": jnp.zeros((1, hidden_channels), jnp.float32),
        "W2": glorot(ks[3], (nrel, hidden_channels, hidden_channels)),
        "q2": glorot(ks[4], (hidden_channels, 1)),
        "k2": glorot(ks[5], (hidden_channels, 1)),
        "b2": jnp.zeros((1, hidden_channels), jnp.float32),
    }
    return params, nrel


def rgat_reference(params, x, edge_index, edge_type, num_nodes, nrel):
    src, dst = edge_index[0], edge_index[1]
    S = jax.nn.one_hot(src, num_nodes, dtype=jnp.float32)
    D = jax.nn.one_hot(dst, num_nodes, dtype=jnp.float32)
    R = jax.nn.one_hot(edge_type, nrel, dtype=jnp.float32)

    def layer(xn, W, q, k, b):
        xi = D @ xn
        xj = S @ xn
        outi = jnp.einsum("er,ec,rch->eh", R, xi, W)
        outj = jnp.einsum("er,ec,rch->eh", R, xj, W)
        a = outi @ q + outj @ k
        a = jnp.where(a > 0, a, 0.2 * a)
        masked = jnp.where(D > 0, a, -1e30)
        node_max = masked.max(axis=0, keepdims=True)
        edge_max = (D * node_max).sum(axis=1, keepdims=True)
        ex = jnp.exp(a - edge_max)
        node_sum = (D * ex).sum(axis=0, keepdims=True)
        edge_sum = (D * node_sum).sum(axis=1, keepdims=True)
        alpha = ex / (edge_sum + 1e-16)
        out = D.T @ (alpha * outj) + b
        return out, alpha

    h1, _ = layer(x, params["W1"], params["q1"], params["k1"], params["b1"])
    h1 = jax.nn.relu(h1)
    h2, alpha = layer(h1, params["W2"], params["q2"], params["k2"], params["b2"])
    return jax.nn.relu(h2), alpha


if __name__ == "__main__":
    # Small deterministic example.
    N = 16            # nodes
    E = 32            # edges
    IN_C = 8          # in_channels
    HID = 32          # hidden_channels
    NUM_REL = 3       # num_relations (conv uses num_relations + 1 = 4)

    key = jax.random.PRNGKey(0)
    k_x, k_src, k_dst, k_rel, k_par = jax.random.split(key, 5)

    x = jax.random.normal(k_x, (N, IN_C), jnp.float32)
    src = jax.random.randint(k_src, (E,), 0, N, dtype=jnp.int32)
    dst = jax.random.randint(k_dst, (E,), 0, N, dtype=jnp.int32)
    edge_index = jnp.stack([src, dst], axis=0)                 # (2, E)
    edge_type = jax.random.randint(k_rel, (E,), 0, NUM_REL + 1, dtype=jnp.int32)

    params, nrel = init_rgat_params(k_par, IN_C, HID, NUM_REL)

    ref_out, ref_alpha = rgat_reference(params, x, edge_index, edge_type, N, nrel)

    # f32 MXU operands: strict check against the pure-JAX reference.
    out, (adj, alpha) = rgat_forward(params, x, edge_index, edge_type, N, nrel)
    jax.block_until_ready((out, adj, alpha))
    assert out.shape == (N, HID)
    assert adj.shape == (2, E)
    assert alpha.shape == (E, 1)
    assert bool(jnp.allclose(out, ref_out, atol=5e-3, rtol=5e-3))
    assert bool(jnp.allclose(alpha, ref_alpha, atol=5e-3, rtol=5e-3))

    # bf16 MXU operands (v6e / v7x feedback): loose-tolerance smoke check,
    # softmax math stays f32 in-kernel.
    out_bf, (_, alpha_bf) = rgat_forward(params, x, edge_index, edge_type, N,
                                         nrel, mxu_dtype=jnp.bfloat16)
    jax.block_until_ready((out_bf, alpha_bf))
    assert bool(jnp.all(jnp.isfinite(out_bf)))
    assert bool(jnp.allclose(out_bf, ref_out, atol=0.3, rtol=0.3))
    assert bool(jnp.allclose(alpha_bf, ref_alpha, atol=0.3, rtol=0.3))

    print("KERNEL_OK")
</pallas_src>

<mosaic_0001>
module attributes {stable_mosaic.version = 11 : i64} {
  func.func @kernel(%arg0: memref<128x1xi32, #tpu.memory_space<vmem>>, %arg1: memref<128x1xi32, #tpu.memory_space<vmem>>, %arg2: memref<128x1xi32, #tpu.memory_space<vmem>>, %arg3: memref<1x128xi32, #tpu.memory_space<vmem>>, %arg4: memref<16x8xf32, #tpu.memory_space<vmem>>, %arg5: memref<8x640xf32, #tpu.memory_space<vmem>>, %arg6: memref<1x128xf32, #tpu.memory_space<vmem>>, %arg7: memref<128x640xf32, #tpu.memory_space<vmem>>, %arg8: memref<1x128xf32, #tpu.memory_space<vmem>>, %arg9: memref<16x128xf32, #tpu.memory_space<vmem>>, %arg10: memref<128x1xf32, #tpu.memory_space<vmem>>, %arg11: memref<16x640xf32, #tpu.memory_space<vmem>>, %arg12: memref<16x128xf32, #tpu.memory_space<vmem>>, %arg13: memref<1x16xf32, #tpu.memory_space<vmem>>, %arg14: memref<1x16xf32, #tpu.memory_space<vmem>>, %arg15: memref<128x1xf32, #tpu.memory_space<vmem>>) attributes {dimension_semantics = [], scalar_prefetch = 0 : i64, scratch_operands = 5 : i64, tpu.core_type = #tpu.core_type<tc>} {
    %c0 = arith.constant 0 : index
    %c0_0 = arith.constant 0 : index
    %0 = vector.load %arg4[%c0, %c0_0] : memref<16x8xf32, #tpu.memory_space<vmem>>, vector<16x8xf32>
    %c0_1 = arith.constant 0 : index
    %c0_2 = arith.constant 0 : index
    %1 = vector.load %arg5[%c0_1, %c0_2] : memref<8x640xf32, #tpu.memory_space<vmem>>, vector<8x640xf32>
    %cst = arith.constant dense<0.000000e+00> : vector<16x640xf32>
    %2 = tpu.matmul %0, %1, %cst {dimension_numbers = #tpu.dot_dimension_numbers<[1], [0], [0], [1], [0, 0, 1, 1], [], []>} : vector<16x8xf32>, vector<8x640xf32>, vector<16x640xf32> -> vector<16x640xf32>
    %c0_3 = arith.constant 0 : index
    %c0_4 = arith.constant 0 : index
    %3 = vector.load %arg11[%c0_3, %c0_4] : memref<16x640xf32, #tpu.memory_space<vmem>>, vector<16x640xf32>
    tpu.vector_store %arg11[%c0_3, %c0_4], %2 {strides = array<i32>} : memref<16x640xf32, #tpu.memory_space<vmem>>, vector<16x640xf32>,
    %c0_5 = arith.constant 0 : index
    %c512 = arith.constant 512 : index
    %4 = vector.load %arg11[%c0_5, %c512] : memref<16x640xf32, #tpu.memory_space<vmem>>, vector<16x4xf32>
    %c0_6 = arith.constant 0 : index
    %c516 = arith.constant 516 : index
    %5 = vector.load %arg11[%c0_6, %c516] : memref<16x640xf32, #tpu.memory_space<vmem>>, vector<16x4xf32>
    %cst_7 = arith.constant -1.000000e+30 : f32
    %6 = vector.broadcast %cst_7 : f32 to vector<1x16xf32>
    %c0_8 = arith.constant 0 : index
    %c0_9 = arith.constant 0 : index
    %7 = vector.load %arg13[%c0_8, %c0_9] : memref<1x16xf32, #tpu.memory_space<vmem>>, vector<1x16xf32>
    tpu.vector_store %arg13[%c0_8, %c0_9], %6 {strides = array<i32>} : memref<1x16xf32, #tpu.memory_space<vmem>>, vector<1x16xf32>,
    %cst_10 = arith.constant 0.000000e+00 : f32
    %8 = vector.broadcast %cst_10 : f32 to vector<1x16xf32>
    %c0_11 = arith.constant 0 : index
    %c0_12 = arith.constant 0 : index
    %9 = vector.load %arg14[%c0_11, %c0_12] : memref<1x16xf32, #tpu.memory_space<vmem>>, vector<1x16xf32>
    tpu.vector_store %arg14[%c0_11, %c0_12], %8 {strides = array<i32>} : memref<1x16xf32, #tpu.memory_space<vmem>>, vector<1x16xf32>,
    %c0_13 = arith.constant 0 : index
    %c0_14 = arith.constant 0 : index
    %10 = vector.load %arg6[%c0_13, %c0_14] : memref<1x128xf32, #tpu.memory_space<vmem>>, vector<1x128xf32>
    %11 = vector.shape_cast %10 : vector<1x128xf32> to vector<1x128xf32>
    %12 = vector.broadcast %11 : vector<1x128xf32> to vector<16x128xf32>
    %c0_15 = arith.constant 0 : index
    %c0_16 = arith.constant 0 : index
    %13 = vector.load %arg12[%c0_15, %c0_16] : memref<16x128xf32, #tpu.memory_space<vmem>>, vector<16x128xf32>
    tpu.vector_store %arg12[%c0_15, %c0_16], %12 {strides = array<i32>} : memref<16x128xf32, #tpu.memory_space<vmem>>, vector<16x128xf32>,
    %c0_i32 = arith.constant 0 : i32
    %c128_i32 = arith.constant 128 : i32
    %14 = arith.muli %c0_i32, %c128_i32 : i32
    %15 = tpu.assume_multiple %14, 128 : i32
    %16 = arith.index_cast %15 : i32 to index
    %c0_17 = arith.constant 0 : index
    %17 = vector.load %arg0[%16, %c0_17] : memref<128x1xi32, #tpu.memory_space<vmem>>, vector<128x1xi32>
    %18 = arith.index_cast %15 : i32 to index
    %c0_18 = arith.constant 0 : index
    %19 = vector.load %arg1[%18, %c0_18] : memref<128x1xi32, #tpu.memory_space<vmem>>, vector<128x1xi32>
    %20 = arith.index_cast %15 : i32 to index
    %c0_19 = arith.constant 0 : index
    %21 = vector.load %arg2[%20, %c0_19] : memref<128x1xi32, #tpu.memory_space<vmem>>, vector<128x1xi32>
    %22 = tpu.iota {dimensions = array<i32: 0>} : vector<128x1xi32>
    %23 = vector.broadcast %15 : i32 to vector<128x1xi32>
    %24 = arith.addi %22, %23 : vector<128x1xi32>
    %c32_i32 = arith.constant 32 : i32
    %25 = vector.broadcast %c32_i32 : i32 to vector<128x1xi32>
    %26 = arith.cmpi slt, %24, %25 : vector<128x1xi32>
    %27 = tpu.iota {dimensions = array<i32: 1>} : vector<128x16xi32>
    %28 = vector.broadcast %17 : vector<128x1xi32> to vector<128x16xi32>
    %29 = arith.cmpi eq, %27, %28 : vector<128x16xi32>
    %30 = vector.broadcast %19 : vector<128x1xi32> to vector<128x16xi32>
    %31 = arith.cmpi eq, %27, %30 : vector<128x16xi32>
    %cst_20 = arith.constant 1.000000e+00 : f32
    %cst_21 = arith.constant 0.000000e+00 : f32
    %32 = vector.broadcast %cst_20 : f32 to vector<128x16xf32>
    %33 = vector.broadcast %cst_21 : f32 to vector<128x16xf32>
    %34 = arith.select %29, %32, %33 : vector<128x16xi1>, vector<128x16xf32>
    %cst_22 = arith.constant 1.000000e+00 : f32
    %cst_23 = arith.constant 0.000000e+00 : f32
    %35 = vector.broadcast %cst_22 : f32 to vector<128x16xf32>
    %36 = vector.broadcast %cst_23 : f32 to vector<128x16xf32>
    %37 = arith.select %31, %35, %36 : vector<128x16xi1>, vector<128x16xf32>
    %cst_24 = arith.constant dense<0.000000e+00> : vector<128x4xf32>
    %38 = tpu.matmul %34, %5, %cst_24 {dimension_numbers = #tpu.dot_dimension_numbers<[1], [0], [0], [1], [0, 0, 1, 1], [], []>} : vector<128x16xf32>, vector<16x4xf32>, vector<128x4xf32> -> vector<128x4xf32>
    %cst_25 = arith.constant dense<0.000000e+00> : vector<128x4xf32>
    %39 = tpu.matmul %37, %4, %cst_25 {dimension_numbers = #tpu.dot_dimension_numbers<[1], [0], [0], [1], [0, 0, 1, 1], [], []>} : vector<128x16xf32>, vector<16x4xf32>, vector<128x4xf32> -> vector<128x4xf32>
    %cst_26 = arith.constant 0.000000e+00 : f32
    %40 = vector.broadcast %cst_26 : f32 to vector<128x1xf32>
    %c0_i32_27 = arith.constant 0 : i32
    %41 = vector.broadcast %c0_i32_27 : i32 to vector<128x1xi32>
    %42 = arith.cmpi eq, %21, %41 : vector<128x1xi32>
    %43 = vector.extract_strided_slice %39 {offsets = [0, 0], sizes = [128, 1], strides = [1, 1]} : vector<128x4xf32> to vector<128x1xf32>
    %44 = vector.extract_strided_slice %38 {offsets = [0, 0], sizes = [128, 1], strides = [1, 1]} : vector<128x4xf32> to vector<128x1xf32>
    %45 = arith.addf %43, %44 : vector<128x1xf32>
    %cst_28 = arith.constant 0.000000e+00 : f32
    %46 = vector.broadcast %cst_28 : f32 to vector<128x1xf32>
    %47 = arith.select %42, %45, %46 : vector<128x1xi1>, vector<128x1xf32>
    %48 = arith.addf %40, %47 : vector<128x1xf32>
    %c1_i32 = arith.constant 1 : i32
    %49 = vector.broadcast %c1_i32 : i32 to vector<128x1xi32>
    %50 = arith.cmpi eq, %21, %49 : vector<128x1xi32>
    %51 = vector.extract_strided_slice %39 {offsets = [0, 1], sizes = [128, 1], strides = [1, 1]} : vector<128x4xf32> to vector<128x1xf32>
    %52 = vector.extract_strided_slice %38 {offsets = [0, 1], sizes = [128, 1], strides = [1, 1]} : vector<128x4xf32> to vector<128x1xf32>
    %53 = arith.addf %51, %52 : vector<128x1xf32>
    %cst_29 = arith.constant 0.000000e+00 : f32
    %54 = vector.broadcast %cst_29 : f32 to vector<128x1xf32>
    %55 = arith.select %50, %53, %54 : vector<128x1xi1>, vector<128x1xf32>
    %56 = arith.addf %48, %55 : vector<128x1xf32>
    %c2_i32 = arith.constant 2 : i32
    %57 = vector.broadcast %c2_i32 : i32 to vector<128x1xi32>
    %58 = arith.cmpi eq, %21, %57 : vector<128x1xi32>
    %59 = vector.extract_strided_slice %39 {offsets = [0, 2], sizes = [128, 1], strides = [1, 1]} : vector<128x4xf32> to vector<128x1xf32>
    %60 = vector.extract_strided_slice %38 {offsets = [0, 2], sizes = [128, 1], strides = [1, 1]} : vector<128x4xf32> to vector<128x1xf32>
    %61 = arith.addf %59, %60 : vector<128x1xf32>
    %cst_30 = arith.constant 0.000000e+00 : f32
    %62 = vector.broadcast %cst_30 : f32 to vector<128x1xf32>
    %63 = arith.select %58, %61, %62 : vector<128x1xi1>, vector<128x1xf32>
    %64 = arith.addf %56, %63 : vector<128x1xf32>
    %c3_i32 = arith.constant 3 : i32
    %65 = vector.broadcast %c3_i32 : i32 to vector<128x1xi32>
    %66 = arith.cmpi eq, %21, %65 : vector<128x1xi32>
    %67 = vector.extract_strided_slice %39 {offsets = [0, 3], sizes = [128, 1], strides = [1, 1]} : vector<128x4xf32> to vector<128x1xf32>
    %68 = vector.extract_strided_slice %38 {offsets = [0, 3], sizes = [128, 1], strides = [1, 1]} : vector<128x4xf32> to vector<128x1xf32>
    %69 = arith.addf %67, %68 : vector<128x1xf32>
    %cst_31 = arith.constant 0.000000e+00 : f32
    %70 = vector.broadcast %cst_31 : f32 to vector<128x1xf32>
    %71 = arith.select %66, %69, %70 : vector<128x1xi1>, vector<128x1xf32>
    %72 = arith.addf %64, %71 : vector<128x1xf32>
    %cst_32 = arith.constant 0.000000e+00 : f32
    %73 = vector.broadcast %cst_32 : f32 to vector<128x1xf32>
    %74 = arith.cmpf ogt, %72, %73 : vector<128x1xf32>
    %cst_33 = arith.constant 2.000000e-01 : f32
    %75 = vector.broadcast %cst_33 : f32 to vector<128x1xf32>
    %76 = arith.mulf %75, %72 : vector<128x1xf32>
    %77 = arith.select %74, %72, %76 : vector<128x1xi1>, vector<128x1xf32>
    %cst_34 = arith.constant -1.000000e+30 : f32
    %78 = vector.broadcast %cst_34 : f32 to vector<128x1xf32>
    %79 = arith.select %26, %77, %78 : vector<128x1xi1>, vector<128x1xf32>
    %80 = arith.index_cast %15 : i32 to index
    %c0_35 = arith.constant 0 : index
    %81 = vector.load %arg15[%80, %c0_35] : memref<128x1xf32, #tpu.memory_space<vmem>>, vector<128x1xf32>
    tpu.vector_store %arg15[%80, %c0_35], %79 {strides = array<i32>} : memref<128x1xf32, #tpu.memory_space<vmem>>, vector<128x1xf32>,
    %c0_36 = arith.constant 0 : index
    %c0_37 = arith.constant 0 : index
    %82 = vector.load %arg13[%c0_36, %c0_37] : memref<1x16xf32, #tpu.memory_space<vmem>>, vector<1x16xf32>
    %cst_38 = arith.constant -1.000000e+30 : f32
    %83 = vector.shape_cast %79 : vector<128x1xf32> to vector<128x1xf32>
    %84 = vector.broadcast %83 : vector<128x1xf32> to vector<128x16xf32>
    %85 = vector.broadcast %cst_38 : f32 to vector<128x16xf32>
    %86 = arith.select %31, %84, %85 : vector<128x16xi1>, vector<128x16xf32>
    %cst_39 = arith.constant dense<0xFF800000> : vector<16xf32>
    %87 = vector.multi_reduction <maximumf>, %86, %cst_39 [0] : vector<128x16xf32> to vector<16xf32>
    %88 = vector.shape_cast %87 : vector<16xf32> to vector<1x16xf32>
    %89 = arith.maximumf %82, %88 : vector<1x16xf32>
    %cst_40 = arith.constant 0.000000e+00 : f32
    %90 = vector.shape_cast %89 : vector<1x16xf32> to vector<1x16xf32>
    %91 = vector.broadcast %90 : vector<1x16xf32> to vector<128x16xf32>
    %92 = vector.broadcast %cst_40 : f32 to vector<128x16xf32>
    %93 = arith.select %31, %91, %92 : vector<128x16xi1>, vector<128x16xf32>
    %cst_41 = arith.constant dense<0.000000e+00> : vector<128xf32>
    %94 = vector.multi_reduction <add>, %93, %cst_41 [1] : vector<128x16xf32> to vector<128xf32>
    %95 = vector.shape_cast %94 : vector<128xf32> to vector<128x1xf32>
    %96 = arith.subf %79, %95 : vector<128x1xf32>
    %97 = math.exp %96 : vector<128x1xf32>
    %cst_42 = arith.constant 1.000000e+00 : f32
    %cst_43 = arith.constant 0.000000e+00 : f32
    %98 = vector.broadcast %cst_42 : f32 to vector<128x1xf32>
    %99 = vector.broadcast %cst_43 : f32 to vector<128x1xf32>
    %100 = arith.select %26, %98, %99 : vector<128x1xi1>, vector<128x1xf32>
    %101 = arith.mulf %97, %100 : vector<128x1xf32>
    %c0_44 = arith.constant 0 : index
    %c0_45 = arith.constant 0 : index
    %102 = vector.load %arg14[%c0_44, %c0_45] : memref<1x16xf32, #tpu.memory_space<vmem>>, vector<1x16xf32>
    %103 = arith.subf %82, %89 : vector<1x16xf32>
    %104 = math.exp %103 : vector<1x16xf32>
    %105 = arith.mulf %102, %104 : vector<1x16xf32>
    %cst_46 = arith.constant 0.000000e+00 : f32
    %106 = vector.shape_cast %101 : vector<128x1xf32> to vector<128x1xf32>
    %107 = vector.broadcast %106 : vector<128x1xf32> to vector<128x16xf32>
    %108 = vector.broadcast %cst_46 : f32 to vector<128x16xf32>
    %109 = arith.select %31, %107, %108 : vector<128x16xi1>, vector<128x16xf32>
    %cst_47 = arith.constant dense<0.000000e+00> : vector<16xf32>
    %110 = vector.multi_reduction <add>, %109, %cst_47 [0] : vector<128x16xf32> to vector<16xf32>
    %111 = vector.shape_cast %110 : vector<16xf32> to vector<1x16xf32>
    %112 = arith.addf %105, %111 : vector<1x16xf32>
    %c0_48 = arith.constant 0 : index
    %c0_49 = arith.constant 0 : index
    %113 = vector.load %arg14[%c0_48, %c0_49] : memref<1x16xf32, #tpu.memory_space<vmem>>, vector<1x16xf32>
    tpu.vector_store %arg14[%c0_48, %c0_49], %112 {strides = array<i32>} : memref<1x16xf32, #tpu.memory_space<vmem>>, vector<1x16xf32>,
    %c0_50 = arith.constant 0 : index
    %c0_51 = arith.constant 0 : index
    %114 = vector.load %arg13[%c0_50, %c0_51] : memref<1x16xf32, #tpu.memory_space<vmem>>, vector<1x16xf32>
    tpu.vector_store %arg13[%c0_50, %c0_51], %89 {strides = array<i32>} : memref<1x16xf32, #tpu.memory_space<vmem>>, vector<1x16xf32>,
    %c1_i32_52 = arith.constant 1 : i32
    %c0_i32_53 = arith.constant 0 : i32
    %c128_i32_54 = arith.constant 128 : i32
    %115 = arith.muli %c0_i32_53, %c128_i32_54 : i32
    %116 = tpu.assume_multiple %115, 128 : i32
    %117 = arith.index_cast %116 : i32 to index
    %c0_55 = arith.constant 0 : index
    %118 = vector.load %arg0[%117, %c0_55] : memref<128x1xi32, #tpu.memory_space<vmem>>, vector<128x1xi32>
    %119 = arith.index_cast %116 : i32 to index
    %c0_56 = arith.constant 0 : index
    %120 = vector.load %arg1[%119, %c0_56] : memref<128x1xi32, #tpu.memory_space<vmem>>, vector<128x1xi32>
    %121 = arith.index_cast %116 : i32 to index
    %c0_57 = arith.constant 0 : index
    %122 = vector.load %arg2[%121, %c0_57] : memref<128x1xi32, #tpu.memory_space<vmem>>, vector<128x1xi32>
    %123 = tpu.iota {dimensions = array<i32: 0>} : vector<128x1xi32>
    %124 = vector.broadcast %116 : i32 to vector<128x1xi32>
    %125 = arith.addi %123, %124 : vector<128x1xi32>
    %c32_i32_58 = arith.constant 32 : i32
    %126 = vector.broadcast %c32_i32_58 : i32 to vector<128x1xi32>
    %127 = arith.cmpi slt, %125, %126 : vector<128x1xi32>
    %128 = tpu.iota {dimensions = array<i32: 1>} : vector<128x16xi32>
    %129 = vector.broadcast %118 : vector<128x1xi32> to vector<128x16xi32>
    %130 = arith.cmpi eq, %128, %129 : vector<128x16xi32>
    %131 = vector.broadcast %120 : vector<128x1xi32> to vector<128x16xi32>
    %132 = arith.cmpi eq, %128, %131 : vector<128x16xi32>
    %cst_59 = arith.constant 1.000000e+00 : f32
    %cst_60 = arith.constant 0.000000e+00 : f32
    %133 = vector.broadcast %cst_59 : f32 to vector<128x16xf32>
    %134 = vector.broadcast %cst_60 : f32 to vector<128x16xf32>
    %135 = arith.select %130, %133, %134 : vector<128x16xi1>, vector<128x16xf32>
    %136 = arith.index_cast %116 : i32 to index
    %c0_61 = arith.constant 0 : index
    %137 = vector.load %arg15[%136, %c0_61] : memref<128x1xf32, #tpu.memory_space<vmem>>, vector<128x1xf32>
    %c0_62 = arith.constant 0 : index
    %c0_63 = arith.constant 0 : index
    %138 = vector.load %arg13[%c0_62, %c0_63] : memref<1x16xf32, #tpu.memory_space<vmem>>, vector<1x16xf32>
    %cst_64 = arith.constant 0.000000e+00 : f32
    %139 = vector.shape_cast %138 : vector<1x16xf32> to vector<1x16xf32>
    %140 = vector.broadcast %139 : vector<1x16xf32> to vector<128x16xf32>
    %141 = vector.broadcast %cst_64 : f32 to vector<128x16xf32>
    %142 = arith.select %132, %140, %141 : vector<128x16xi1>, vector<128x16xf32>
    %cst_65 = arith.constant dense<0.000000e+00> : vector<128xf32>
    %143 = vector.multi_reduction <add>, %142, %cst_65 [1] : vector<128x16xf32> to vector<128xf32>
    %144 = vector.shape_cast %143 : vector<128xf32> to vector<128x1xf32>
    %c0_66 = arith.constant 0 : index
    %c0_67 = arith.constant 0 : index
    %145 = vector.load %arg14[%c0_66, %c0_67] : memref<1x16xf32, #tpu.memory_space<vmem>>, vector<1x16xf32>
    %cst_68 = arith.constant 0.000000e+00 : f32
    %146 = vector.shape_cast %145 : vector<1x16xf32> to vector<1x16xf32>
    %147 = vector.broadcast %146 : vector<1x16xf32> to vector<128x16xf32>
    %148 = vector.broadcast %cst_68 : f32 to vector<128x16xf32>
    %149 = arith.select %132, %147, %148 : vector<128x16xi1>, vector<128x16xf32>
    %cst_69 = arith.constant dense<0.000000e+00> : vector<128xf32>
    %150 = vector.multi_reduction <add>, %149, %cst_69 [1] : vector<128x16xf32> to vector<128xf32>
    %151 = vector.shape_cast %150 : vector<128xf32> to vector<128x1xf32>
    %152 = arith.subf %137, %144 : vector<128x1xf32>
    %153 = math.exp %152 : vector<128x1xf32>
    %cst_70 = arith.constant 1.000000e-16 : f32
    %154 = vector.broadcast %cst_70 : f32 to vector<128x1xf32>
    %155 = arith.addf %151, %154 : vector<128x1xf32>
    %156 = arith.divf %153, %155 : vector<128x1xf32>
    %cst_71 = arith.constant 1.000000e+00 : f32
    %cst_72 = arith.constant 0.000000e+00 : f32
    %157 = vector.broadcast %cst_71 : f32 to vector<128x1xf32>
    %158 = vector.broadcast %cst_72 : f32 to vector<128x1xf32>
    %159 = arith.select %127, %157, %158 : vector<128x1xi1>, vector<128x1xf32>
    %160 = arith.mulf %156, %159 : vector<128x1xf32>
    %c0_73 = arith.constant 0 : index
    %c0_74 = arith.constant 0 : index
    %161 = vector.load %arg11[%c0_73, %c0_74] : memref<16x640xf32, #tpu.memory_space<vmem>>, vector<16x512xf32>
    %cst_75 = arith.constant dense<0.000000e+00> : vector<128x512xf32>
    %162 = tpu.matmul %135, %161, %cst_75 {dimension_numbers = #tpu.dot_dimension_numbers<[1], [0], [0], [1], [0, 0, 1, 1], [], []>} : vector<128x16xf32>, vector<16x512xf32>, vector<128x512xf32> -> vector<128x512xf32>
    %cst_76 = arith.constant 0.000000e+00 : f32
    %163 = vector.broadcast %cst_76 : f32 to vector<128x128xf32>
    %c0_i32_77 = arith.constant 0 : i32
    %164 = vector.broadcast %c0_i32_77 : i32 to vector<128x1xi32>
    %165 = arith.cmpi eq, %122, %164 : vector<128x1xi32>
    %166 = vector.extract_strided_slice %162 {offsets = [0, 0], sizes = [128, 128], strides = [1, 1]} : vector<128x512xf32> to vector<128x128xf32>
    %cst_78 = arith.constant 0.000000e+00 : f32
    %167 = vector.shape_cast %165 : vector<128x1xi1> to vector<128x1xi1>
    %168 = vector.broadcast %167 : vector<128x1xi1> to vector<128x128xi1>
    %169 = vector.broadcast %cst_78 : f32 to vector<128x128xf32>
    %170 = arith.select %168, %166, %169 : vector<128x128xi1>, vector<128x128xf32>
    %171 = arith.addf %163, %170 : vector<128x128xf32>
    %c1_i32_79 = arith.constant 1 : i32
    %172 = vector.broadcast %c1_i32_79 : i32 to vector<128x1xi32>
    %173 = arith.cmpi eq, %122, %172 : vector<128x1xi32>
    %174 = vector.extract_strided_slice %162 {offsets = [0, 128], sizes = [128, 128], strides = [1, 1]} : vector<128x512xf32> to vector<128x128xf32>
    %cst_80 = arith.constant 0.000000e+00 : f32
    %175 = vector.shape_cast %173 : vector<128x1xi1> to vector<128x1xi1>
    %176 = vector.broadcast %175 : vector<128x1xi1> to vector<128x128xi1>
    %177 = vector.broadcast %cst_80 : f32 to vector<128x128xf32>
    %178 = arith.select %176, %174, %177 : vector<128x128xi1>, vector<128x128xf32>
    %179 = arith.addf %171, %178 : vector<128x128xf32>
    %c2_i32_81 = arith.constant 2 : i32
    %180 = vector.broadcast %c2_i32_81 : i32 to vector<128x1xi32>
    %181 = arith.cmpi eq, %122, %180 : vector<128x1xi32>
    %182 = vector.extract_strided_slice %162 {offsets = [0, 256], sizes = [128, 128], strides = [1, 1]} : vector<128x512xf32> to vector<128x128xf32>
    %cst_82 = arith.constant 0.000000e+00 : f32
    %183 = vector.shape_cast %181 : vector<128x1xi1> to vector<128x1xi1>
    %184 = vector.broadcast %183 : vector<128x1xi1> to vector<128x128xi1>
    %185 = vector.broadcast %cst_82 : f32 to vector<128x128xf32>
    %186 = arith.select %184, %182, %185 : vector<128x128xi1>, vector<128x128xf32>
    %187 = arith.addf %179, %186 : vector<128x128xf32>
    %c3_i32_83 = arith.constant 3 : i32
    %188 = vector.broadcast %c3_i32_83 : i32 to vector<128x1xi32>
    %189 = arith.cmpi eq, %122, %188 : vector<128x1xi32>
    %190 = vector.extract_strided_slice %162 {offsets = [0, 384], sizes = [128, 128], strides = [1, 1]} : vector<128x512xf32> to vector<128x128xf32>
    %cst_84 = arith.constant 0.000000e+00 : f32
    %191 = vector.shape_cast %189 : vector<128x1xi1> to vector<128x1xi1>
    %192 = vector.broadcast %191 : vector<128x1xi1> to vector<128x128xi1>
    %193 = vector.broadcast %cst_84 : f32 to vector<128x128xf32>
    %194 = arith.select %192, %190, %193 : vector<128x128xi1>, vector<128x128xf32>
    %195 = arith.addf %187, %194 : vector<128x128xf32>
    %196 = vector.broadcast %160 : vector<128x1xf32> to vector<128x128xf32>
    %197 = arith.mulf %196, %195 : vector<128x128xf32>
    %198 = arith.index_cast %c0_i32_53 : i32 to index
    %c0_85 = arith.constant 0 : index
    %199 = vector.load %arg3[%198, %c0_85] : memref<1x128xi32, #tpu.memory_space<vmem>>, vector<1x128xi32>
    %200 = tpu.iota {dimensions = array<i32: 0>} : vector<16x128xi32>
    %201 = vector.broadcast %199 : vector<1x128xi32> to vector<16x128xi32>
    %202 = arith.cmpi eq, %200, %201 : vector<16x128xi32>
    %cst_86 = arith.constant 1.000000e+00 : f32
    %cst_87 = arith.constant 0.000000e+00 : f32
    %203 = vector.broadcast %cst_86 : f32 to vector<16x128xf32>
    %204 = vector.broadcast %cst_87 : f32 to vector<16x128xf32>
    %205 = arith.select %202, %203, %204 : vector<16x128xi1>, vector<16x128xf32>
    %c0_88 = arith.constant 0 : index
    %c0_89 = arith.constant 0 : index
    %206 = vector.load %arg12[%c0_88, %c0_89] : memref<16x128xf32, #tpu.memory_space<vmem>>, vector<16x128xf32>
    %cst_90 = arith.constant dense<0.000000e+00> : vector<16x128xf32>
    %207 = tpu.matmul %205, %197, %cst_90 {dimension_numbers = #tpu.dot_dimension_numbers<[1], [0], [0], [1], [0, 0, 1, 1], [], []>} : vector<16x128xf32>, vector<128x128xf32>, vector<16x128xf32> -> vector<16x128xf32>
    %208 = arith.addf %206, %207 : vector<16x128xf32>
    %c0_91 = arith.constant 0 : index
    %c0_92 = arith.constant 0 : index
    %209 = vector.load %arg12[%c0_91, %c0_92] : memref<16x128xf32, #tpu.memory_space<vmem>>, vector<16x128xf32>
    tpu.vector_store %arg12[%c0_91, %c0_92], %208 {strides = array<i32>} : memref<16x128xf32, #tpu.memory_space<vmem>>, vector<16x128xf32>,
    %c1_i32_93 = arith.constant 1 : i32
    %c0_94 = arith.constant 0 : index
    %c0_95 = arith.constant 0 : index
    %210 = vector.load %arg12[%c0_94, %c0_95] : memref<16x128xf32, #tpu.memory_space<vmem>>, vector<16x128xf32>
    %cst_96 = arith.constant 0.000000e+00 : f32
    %211 = vector.broadcast %cst_96 : f32 to vector<16x128xf32>
    %212 = arith.maximumf %210, %211 : vector<16x128xf32>
    %c0_97 = arith.constant 0 : index
    %c0_98 = arith.constant 0 : index
    %213 = vector.load %arg7[%c0_97, %c0_98] : memref<128x640xf32, #tpu.memory_space<vmem>>, vector<128x640xf32>
    %cst_99 = arith.constant dense<0.000000e+00> : vector<16x640xf32>
    %214 = tpu.matmul %212, %213, %cst_99 {dimension_numbers = #tpu.dot_dimension_numbers<[1], [0], [0], [1], [0, 0, 1, 1], [], []>} : vector<16x128xf32>, vector<128x640xf32>, vector<16x640xf32> -> vector<16x640xf32>
    %c0_100 = arith.constant 0 : index
    %c0_101 = arith.constant 0 : index
    %215 = vector.load %arg11[%c0_100, %c0_101] : memref<16x640xf32, #tpu.memory_space<vmem>>, vector<16x640xf32>
    tpu.vector_store %arg11[%c0_100, %c0_101], %214 {strides = array<i32>} : memref<16x640xf32, #tpu.memory_space<vmem>>, vector<16x640xf32>,
    %c0_102 = arith.constant 0 : index
    %c512_103 = arith.constant 512 : index
    %216 = vector.load %arg11[%c0_102, %c512_103] : memref<16x640xf32, #tpu.memory_space<vmem>>, vector<16x4xf32>
    %c0_104 = arith.constant 0 : index
    %c516_105 = arith.constant 516 : index
    %217 = vector.load %arg11[%c0_104, %c516_105] : memref<16x640xf32, #tpu.memory_space<vmem>>, vector<16x4xf32>
    %cst_106 = arith.constant -1.000000e+30 : f32
    %218 = vector.broadcast %cst_106 : f32 to vector<1x16xf32>
    %c0_107 = arith.constant 0 : index
    %c0_108 = arith.constant 0 : index
    %219 = vector.load %arg13[%c0_107, %c0_108] : memref<1x16xf32, #tpu.memory_space<vmem>>, vector<1x16xf32>
    tpu.vector_store %arg13[%c0_107, %c0_108], %218 {strides = array<i32>} : memref<1x16xf32, #tpu.memory_space<vmem>>, vector<1x16xf32>,
    %cst_109 = arith.constant 0.000000e+00 : f32
    %220 = vector.broadcast %cst_109 : f32 to vector<1x16xf32>
    %c0_110 = arith.constant 0 : index
    %c0_111 = arith.constant 0 : index
    %221 = vector.load %arg14[%c0_110, %c0_111] : memref<1x16xf32, #tpu.memory_space<vmem>>, vector<1x16xf32>
    tpu.vector_store %arg14[%c0_110, %c0_111], %220 {strides = array<i32>} : memref<1x16xf32, #tpu.memory_space<vmem>>, vector<1x16xf32>,
    %c0_112 = arith.constant 0 : index
    %c0_113 = arith.constant 0 : index
    %222 = vector.load %arg8[%c0_112, %c0_113] : memref<1x128xf32, #tpu.memory_space<vmem>>, vector<1x128xf32>
    %223 = vector.shape_cast %222 : vector<1x128xf32> to vector<1x128xf32>
    %224 = vector.broadcast %223 : vector<1x128xf32> to vector<16x128xf32>
    %c0_114 = arith.constant 0 : index
    %c0_115 = arith.constant 0 : index
    %225 = vector.load %arg9[%c0_114, %c0_115] : memref<16x128xf32, #tpu.memory_space<vmem>>, vector<16x128xf32>
    tpu.vector_store %arg9[%c0_114, %c0_115], %224 {strides = array<i32>} : memref<16x128xf32, #tpu.memory_space<vmem>>, vector<16x128xf32>,
    %c0_i32_116 = arith.constant 0 : i32
    %c128_i32_117 = arith.constant 128 : i32
    %226 = arith.muli %c0_i32_116, %c128_i32_117 : i32
    %227 = tpu.assume_multiple %226, 128 : i32
    %228 = arith.index_cast %227 : i32 to index
    %c0_118 = arith.constant 0 : index
    %229 = vector.load %arg0[%228, %c0_118] : memref<128x1xi32, #tpu.memory_space<vmem>>, vector<128x1xi32>
    %230 = arith.index_cast %227 : i32 to index
    %c0_119 = arith.constant 0 : index
    %231 = vector.load %arg1[%230, %c0_119] : memref<128x1xi32, #tpu.memory_space<vmem>>, vector<128x1xi32>
    %232 = arith.index_cast %227 : i32 to index
    %c0_120 = arith.constant 0 : index
    %233 = vector.load %arg2[%232, %c0_120] : memref<128x1xi32, #tpu.memory_space<vmem>>, vector<128x1xi32>
    %234 = tpu.iota {dimensions = array<i32: 0>} : vector<128x1xi32>
    %235 = vector.broadcast %227 : i32 to vector<128x1xi32>
    %236 = arith.addi %234, %235 : vector<128x1xi32>
    %c32_i32_121 = arith.constant 32 : i32
    %237 = vector.broadcast %c32_i32_121 : i32 to vector<128x1xi32>
    %238 = arith.cmpi slt, %236, %237 : vector<128x1xi32>
    %239 = tpu.iota {dimensions = array<i32: 1>} : vector<128x16xi32>
    %240 = vector.broadcast %229 : vector<128x1xi32> to vector<128x16xi32>
    %241 = arith.cmpi eq, %239, %240 : vector<128x16xi32>
    %242 = vector.broadcast %231 : vector<128x1xi32> to vector<128x16xi32>
    %243 = arith.cmpi eq, %239, %242 : vector<128x16xi32>
    %cst_122 = arith.constant 1.000000e+00 : f32
    %cst_123 = arith.constant 0.000000e+00 : f32
    %244 = vector.broadcast %cst_122 : f32 to vector<128x16xf32>
    %245 = vector.broadcast %cst_123 : f32 to vector<128x16xf32>
    %246 = arith.select %241, %244, %245 : vector<128x16xi1>, vector<128x16xf32>
    %cst_124 = arith.constant 1.000000e+00 : f32
    %cst_125 = arith.constant 0.000000e+00 : f32
    %247 = vector.broadcast %cst_124 : f32 to vector<128x16xf32>
    %248 = vector.broadcast %cst_125 : f32 to vector<128x16xf32>
    %249 = arith.select %243, %247, %248 : vector<128x16xi1>, vector<128x16xf32>
    %cst_126 = arith.constant dense<0.000000e+00> : vector<128x4xf32>
    %250 = tpu.matmul %246, %217, %cst_126 {dimension_numbers = #tpu.dot_dimension_numbers<[1], [0], [0], [1], [0, 0, 1, 1], [], []>} : vector<128x16xf32>, vector<16x4xf32>, vector<128x4xf32> -> vector<128x4xf32>
    %cst_127 = arith.constant dense<0.000000e+00> : vector<128x4xf32>
    %251 = tpu.matmul %249, %216, %cst_127 {dimension_numbers = #tpu.dot_dimension_numbers<[1], [0], [0], [1], [0, 0, 1, 1], [], []>} : vector<128x16xf32>, vector<16x4xf32>, vector<128x4xf32> -> vector<128x4xf32>
    %cst_128 = arith.constant 0.000000e+00 : f32
    %252 = vector.broadcast %cst_128 : f32 to vector<128x1xf32>
    %c0_i32_129 = arith.constant 0 : i32
    %253 = vector.broadcast %c0_i32_129 : i32 to vector<128x1xi32>
    %254 = arith.cmpi eq, %233, %253 : vector<128x1xi32>
    %255 = vector.extract_strided_slice %251 {offsets = [0, 0], sizes = [128, 1], strides = [1, 1]} : vector<128x4xf32> to vector<128x1xf32>
    %256 = vector.extract_strided_slice %250 {offsets = [0, 0], sizes = [128, 1], strides = [1, 1]} : vector<128x4xf32> to vector<128x1xf32>
    %257 = arith.addf %255, %256 : vector<128x1xf32>
    %cst_130 = arith.constant 0.000000e+00 : f32
    %258 = vector.broadcast %cst_130 : f32 to vector<128x1xf32>
    %259 = arith.select %254, %257, %258 : vector<128x1xi1>, vector<128x1xf32>
    %260 = arith.addf %252, %259 : vector<128x1xf32>
    %c1_i32_131 = arith.constant 1 : i32
    %261 = vector.broadcast %c1_i32_131 : i32 to vector<128x1xi32>
    %262 = arith.cmpi eq, %233, %261 : vector<128x1xi32>
    %263 = vector.extract_strided_slice %251 {offsets = [0, 1], sizes = [128, 1], strides = [1, 1]} : vector<128x4xf32> to vector<128x1xf32>
    %264 = vector.extract_strided_slice %250 {offsets = [0, 1], sizes = [128, 1], strides = [1, 1]} : vector<128x4xf32> to vector<128x1xf32>
    %265 = arith.addf %263, %264 : vector<128x1xf32>
    %cst_132 = arith.constant 0.000000e+00 : f32
    %266 = vector.broadcast %cst_132 : f32 to vector<128x1xf32>
    %267 = arith.select %262, %265, %266 : vector<128x1xi1>, vector<128x1xf32>
    %268 = arith.addf %260, %267 : vector<128x1xf32>
    %c2_i32_133 = arith.constant 2 : i32
    %269 = vector.broadcast %c2_i32_133 : i32 to vector<128x1xi32>
    %270 = arith.cmpi eq, %233, %269 : vector<128x1xi32>
    %271 = vector.extract_strided_slice %251 {offsets = [0, 2], sizes = [128, 1], strides = [1, 1]} : vector<128x4xf32> to vector<128x1xf32>
    %272 = vector.extract_strided_slice %250 {offsets = [0, 2], sizes = [128, 1], strides = [1, 1]} : vector<128x4xf32> to vector<128x1xf32>
    %273 = arith.addf %271, %272 : vector<128x1xf32>
    %cst_134 = arith.constant 0.000000e+00 : f32
    %274 = vector.broadcast %cst_134 : f32 to vector<128x1xf32>
    %275 = arith.select %270, %273, %274 : vector<128x1xi1>, vector<128x1xf32>
    %276 = arith.addf %268, %275 : vector<128x1xf32>
    %c3_i32_135 = arith.constant 3 : i32
    %277 = vector.broadcast %c3_i32_135 : i32 to vector<128x1xi32>
    %278 = arith.cmpi eq, %233, %277 : vector<128x1xi32>
    %279 = vector.extract_strided_slice %251 {offsets = [0, 3], sizes = [128, 1], strides = [1, 1]} : vector<128x4xf32> to vector<128x1xf32>
    %280 = vector.extract_strided_slice %250 {offsets = [0, 3], sizes = [128, 1], strides = [1, 1]} : vector<128x4xf32> to vector<128x1xf32>
    %281 = arith.addf %279, %280 : vector<128x1xf32>
    %cst_136 = arith.constant 0.000000e+00 : f32
    %282 = vector.broadcast %cst_136 : f32 to vector<128x1xf32>
    %283 = arith.select %278, %281, %282 : vector<128x1xi1>, vector<128x1xf32>
    %284 = arith.addf %276, %283 : vector<128x1xf32>
    %cst_137 = arith.constant 0.000000e+00 : f32
    %285 = vector.broadcast %cst_137 : f32 to vector<128x1xf32>
    %286 = arith.cmpf ogt, %284, %285 : vector<128x1xf32>
    %cst_138 = arith.constant 2.000000e-01 : f32
    %287 = vector.broadcast %cst_138 : f32 to vector<128x1xf32>
    %288 = arith.mulf %287, %284 : vector<128x1xf32>
    %289 = arith.select %286, %284, %288 : vector<128x1xi1>, vector<128x1xf32>
    %cst_139 = arith.constant -1.000000e+30 : f32
    %290 = vector.broadcast %cst_139 : f32 to vector<128x1xf32>
    %291 = arith.select %238, %289, %290 : vector<128x1xi1>, vector<128x1xf32>
    %292 = arith.index_cast %227 : i32 to index
    %c0_140 = arith.constant 0 : index
    %293 = vector.load %arg15[%292, %c0_140] : memref<128x1xf32, #tpu.memory_space<vmem>>, vector<128x1xf32>
    tpu.vector_store %arg15[%292, %c0_140], %291 {strides = array<i32>} : memref<128x1xf32, #tpu.memory_space<vmem>>, vector<128x1xf32>,
    %c0_141 = arith.constant 0 : index
    %c0_142 = arith.constant 0 : index
    %294 = vector.load %arg13[%c0_141, %c0_142] : memref<1x16xf32, #tpu.memory_space<vmem>>, vector<1x16xf32>
    %cst_143 = arith.constant -1.000000e+30 : f32
    %295 = vector.shape_cast %291 : vector<128x1xf32> to vector<128x1xf32>
    %296 = vector.broadcast %295 : vector<128x1xf32> to vector<128x16xf32>
    %297 = vector.broadcast %cst_143 : f32 to vector<128x16xf32>
    %298 = arith.select %243, %296, %297 : vector<128x16xi1>, vector<128x16xf32>
    %cst_144 = arith.constant dense<0xFF800000> : vector<16xf32>
    %299 = vector.multi_reduction <maximumf>, %298, %cst_144 [0] : vector<128x16xf32> to vector<16xf32>
    %300 = vector.shape_cast %299 : vector<16xf32> to vector<1x16xf32>
    %301 = arith.maximumf %294, %300 : vector<1x16xf32>
    %cst_145 = arith.constant 0.000000e+00 : f32
    %302 = vector.shape_cast %301 : vector<1x16xf32> to vector<1x16xf32>
    %303 = vector.broadcast %302 : vector<1x16xf32> to vector<128x16xf32>
    %304 = vector.broadcast %cst_145 : f32 to vector<128x16xf32>
    %305 = arith.select %243, %303, %304 : vector<128x16xi1>, vector<128x16xf32>
    %cst_146 = arith.constant dense<0.000000e+00> : vector<128xf32>
    %306 = vector.multi_reduction <add>, %305, %cst_146 [1] : vector<128x16xf32> to vector<128xf32>
    %307 = vector.shape_cast %306 : vector<128xf32> to vector<128x1xf32>
    %308 = arith.subf %291, %307 : vector<128x1xf32>
    %309 = math.exp %308 : vector<128x1xf32>
    %cst_147 = arith.constant 1.000000e+00 : f32
    %cst_148 = arith.constant 0.000000e+00 : f32
    %310 = vector.broadcast %cst_147 : f32 to vector<128x1xf32>
    %311 = vector.broadcast %cst_148 : f32 to vector<128x1xf32>
    %312 = arith.select %238, %310, %311 : vector<128x1xi1>, vector<128x1xf32>
    %313 = arith.mulf %309, %312 : vector<128x1xf32>
    %c0_149 = arith.constant 0 : index
    %c0_150 = arith.constant 0 : index
    %314 = vector.load %arg14[%c0_149, %c0_150] : memref<1x16xf32, #tpu.memory_space<vmem>>, vector<1x16xf32>
    %315 = arith.subf %294, %301 : vector<1x16xf32>
    %316 = math.exp %315 : vector<1x16xf32>
    %317 = arith.mulf %314, %316 : vector<1x16xf32>
    %cst_151 = arith.constant 0.000000e+00 : f32
    %318 = vector.shape_cast %313 : vector<128x1xf32> to vector<128x1xf32>
    %319 = vector.broadcast %318 : vector<128x1xf32> to vector<128x16xf32>
    %320 = vector.broadcast %cst_151 : f32 to vector<128x16xf32>
    %321 = arith.select %243, %319, %320 : vector<128x16xi1>, vector<128x16xf32>
    %cst_152 = arith.constant dense<0.000000e+00> : vector<16xf32>
    %322 = vector.multi_reduction <add>, %321, %cst_152 [0] : vector<128x16xf32> to vector<16xf32>
    %323 = vector.shape_cast %322 : vector<16xf32> to vector<1x16xf32>
    %324 = arith.addf %317, %323 : vector<1x16xf32>
    %c0_153 = arith.constant 0 : index
    %c0_154 = arith.constant 0 : index
    %325 = vector.load %arg14[%c0_153, %c0_154] : memref<1x16xf32, #tpu.memory_space<vmem>>, vector<1x16xf32>
    tpu.vector_store %arg14[%c0_153, %c0_154], %324 {strides = array<i32>} : memref<1x16xf32, #tpu.memory_space<vmem>>, vector<1x16xf32>,
    %c0_155 = arith.constant 0 : index
    %c0_156 = arith.constant 0 : index
    %326 = vector.load %arg13[%c0_155, %c0_156] : memref<1x16xf32, #tpu.memory_space<vmem>>, vector<1x16xf32>
    tpu.vector_store %arg13[%c0_155, %c0_156], %301 {strides = array<i32>} : memref<1x16xf32, #tpu.memory_space<vmem>>, vector<1x16xf32>,
    %c1_i32_157 = arith.constant 1 : i32
    %c0_i32_158 = arith.constant 0 : i32
    %c128_i32_159 = arith.constant 128 : i32
    %327 = arith.muli %c0_i32_158, %c128_i32_159 : i32
    %328 = tpu.assume_multiple %327, 128 : i32
    %329 = arith.index_cast %328 : i32 to index
    %c0_160 = arith.constant 0 : index
    %330 = vector.load %arg0[%329, %c0_160] : memref<128x1xi32, #tpu.memory_space<vmem>>, vector<128x1xi32>
    %331 = arith.index_cast %328 : i32 to index
    %c0_161 = arith.constant 0 : index
    %332 = vector.load %arg1[%331, %c0_161] : memref<128x1xi32, #tpu.memory_space<vmem>>, vector<128x1xi32>
    %333 = arith.index_cast %328 : i32 to index
    %c0_162 = arith.constant 0 : index
    %334 = vector.load %arg2[%333, %c0_162] : memref<128x1xi32, #tpu.memory_space<vmem>>, vector<128x1xi32>
    %335 = tpu.iota {dimensions = array<i32: 0>} : vector<128x1xi32>
    %336 = vector.broadcast %328 : i32 to vector<128x1xi32>
    %337 = arith.addi %335, %336 : vector<128x1xi32>
    %c32_i32_163 = arith.constant 32 : i32
    %338 = vector.broadcast %c32_i32_163 : i32 to vector<128x1xi32>
    %339 = arith.cmpi slt, %337, %338 : vector<128x1xi32>
    %340 = tpu.iota {dimensions = array<i32: 1>} : vector<128x16xi32>
    %341 = vector.broadcast %330 : vector<128x1xi32> to vector<128x16xi32>
    %342 = arith.cmpi eq, %340, %341 : vector<128x16xi32>
    %343 = vector.broadcast %332 : vector<128x1xi32> to vector<128x16xi32>
    %344 = arith.cmpi eq, %340, %343 : vector<128x16xi32>
    %cst_164 = arith.constant 1.000000e+00 : f32
    %cst_165 = arith.constant 0.000000e+00 : f32
    %345 = vector.broadcast %cst_164 : f32 to vector<128x16xf32>
    %346 = vector.broadcast %cst_165 : f32 to vector<128x16xf32>
    %347 = arith.select %342, %345, %346 : vector<128x16xi1>, vector<128x16xf32>
    %348 = arith.index_cast %328 : i32 to index
    %c0_166 = arith.constant 0 : index
    %349 = vector.load %arg15[%348, %c0_166] : memref<128x1xf32, #tpu.memory_space<vmem>>, vector<128x1xf32>
    %c0_167 = arith.constant 0 : index
    %c0_168 = arith.constant 0 : index
    %350 = vector.load %arg13[%c0_167, %c0_168] : memref<1x16xf32, #tpu.memory_space<vmem>>, vector<1x16xf32>
    %cst_169 = arith.constant 0.000000e+00 : f32
    %351 = vector.shape_cast %350 : vector<1x16xf32> to vector<1x16xf32>
    %352 = vector.broadcast %351 : vector<1x16xf32> to vector<128x16xf32>
    %353 = vector.broadcast %cst_169 : f32 to vector<128x16xf32>
    %354 = arith.select %344, %352, %353 : vector<128x16xi1>, vector<128x16xf32>
    %cst_170 = arith.constant dense<0.000000e+00> : vector<128xf32>
    %355 = vector.multi_reduction <add>, %354, %cst_170 [1] : vector<128x16xf32> to vector<128xf32>
    %356 = vector.shape_cast %355 : vector<128xf32> to vector<128x1xf32>
    %c0_171 = arith.constant 0 : index
    %c0_172 = arith.constant 0 : index
    %357 = vector.load %arg14[%c0_171, %c0_172] : memref<1x16xf32, #tpu.memory_space<vmem>>, vector<1x16xf32>
    %cst_173 = arith.constant 0.000000e+00 : f32
    %358 = vector.shape_cast %357 : vector<1x16xf32> to vector<1x16xf32>
    %359 = vector.broadcast %358 : vector<1x16xf32> to vector<128x16xf32>
    %360 = vector.broadcast %cst_173 : f32 to vector<128x16xf32>
    %361 = arith.select %344, %359, %360 : vector<128x16xi1>, vector<128x16xf32>
    %cst_174 = arith.constant dense<0.000000e+00> : vector<128xf32>
    %362 = vector.multi_reduction <add>, %361, %cst_174 [1] : vector<128x16xf32> to vector<128xf32>
    %363 = vector.shape_cast %362 : vector<128xf32> to vector<128x1xf32>
    %364 = arith.subf %349, %356 : vector<128x1xf32>
    %365 = math.exp %364 : vector<128x1xf32>
    %cst_175 = arith.constant 1.000000e-16 : f32
    %366 = vector.broadcast %cst_175 : f32 to vector<128x1xf32>
    %367 = arith.addf %363, %366 : vector<128x1xf32>
    %368 = arith.divf %365, %367 : vector<128x1xf32>
    %cst_176 = arith.constant 1.000000e+00 : f32
    %cst_177 = arith.constant 0.000000e+00 : f32
    %369 = vector.broadcast %cst_176 : f32 to vector<128x1xf32>
    %370 = vector.broadcast %cst_177 : f32 to vector<128x1xf32>
    %371 = arith.select %339, %369, %370 : vector<128x1xi1>, vector<128x1xf32>
    %372 = arith.mulf %368, %371 : vector<128x1xf32>
    %373 = arith.index_cast %328 : i32 to index
    %c0_178 = arith.constant 0 : index
    %374 = vector.load %arg10[%373, %c0_178] : memref<128x1xf32, #tpu.memory_space<vmem>>, vector<128x1xf32>
    tpu.vector_store %arg10[%373, %c0_178], %372 {strides = array<i32>} : memref<128x1xf32, #tpu.memory_space<vmem>>, vector<128x1xf32>,
    %c0_179 = arith.constant 0 : index
    %c0_180 = arith.constant 0 : index
    %375 = vector.load %arg11[%c0_179, %c0_180] : memref<16x640xf32, #tpu.memory_space<vmem>>, vector<16x512xf32>
    %cst_181 = arith.constant dense<0.000000e+00> : vector<128x512xf32>
    %376 = tpu.matmul %347, %375, %cst_181 {dimension_numbers = #tpu.dot_dimension_numbers<[1], [0], [0], [1], [0, 0, 1, 1], [], []>} : vector<128x16xf32>, vector<16x512xf32>, vector<128x512xf32> -> vector<128x512xf32>
    %cst_182 = arith.constant 0.000000e+00 : f32
    %377 = vector.broadcast %cst_182 : f32 to vector<128x128xf32>
    %c0_i32_183 = arith.constant 0 : i32
    %378 = vector.broadcast %c0_i32_183 : i32 to vector<128x1xi32>
    %379 = arith.cmpi eq, %334, %378 : vector<128x1xi32>
    %380 = vector.extract_strided_slice %376 {offsets = [0, 0], sizes = [128, 128], strides = [1, 1]} : vector<128x512xf32> to vector<128x128xf32>
    %cst_184 = arith.constant 0.000000e+00 : f32
    %381 = vector.shape_cast %379 : vector<128x1xi1> to vector<128x1xi1>
    %382 = vector.broadcast %381 : vector<128x1xi1> to vector<128x128xi1>
    %383 = vector.broadcast %cst_184 : f32 to vector<128x128xf32>
    %384 = arith.select %382, %380, %383 : vector<128x128xi1>, vector<128x128xf32>
    %385 = arith.addf %377, %384 : vector<128x128xf32>
    %c1_i32_185 = arith.constant 1 : i32
    %386 = vector.broadcast %c1_i32_185 : i32 to vector<128x1xi32>
    %387 = arith.cmpi eq, %334, %386 : vector<128x1xi32>
    %388 = vector.extract_strided_slice %376 {offsets = [0, 128], sizes = [128, 128], strides = [1, 1]} : vector<128x512xf32> to vector<128x128xf32>
    %cst_186 = arith.constant 0.000000e+00 : f32
    %389 = vector.shape_cast %387 : vector<128x1xi1> to vector<128x1xi1>
    %390 = vector.broadcast %389 : vector<128x1xi1> to vector<128x128xi1>
    %391 = vector.broadcast %cst_186 : f32 to vector<128x128xf32>
    %392 = arith.select %390, %388, %391 : vector<128x128xi1>, vector<128x128xf32>
    %393 = arith.addf %385, %392 : vector<128x128xf32>
    %c2_i32_187 = arith.constant 2 : i32
    %394 = vector.broadcast %c2_i32_187 : i32 to vector<128x1xi32>
    %395 = arith.cmpi eq, %334, %394 : vector<128x1xi32>
    %396 = vector.extract_strided_slice %376 {offsets = [0, 256], sizes = [128, 128], strides = [1, 1]} : vector<128x512xf32> to vector<128x128xf32>
    %cst_188 = arith.constant 0.000000e+00 : f32
    %397 = vector.shape_cast %395 : vector<128x1xi1> to vector<128x1xi1>
    %398 = vector.broadcast %397 : vector<128x1xi1> to vector<128x128xi1>
    %399 = vector.broadcast %cst_188 : f32 to vector<128x128xf32>
    %400 = arith.select %398, %396, %399 : vector<128x128xi1>, vector<128x128xf32>
    %401 = arith.addf %393, %400 : vector<128x128xf32>
    %c3_i32_189 = arith.constant 3 : i32
    %402 = vector.broadcast %c3_i32_189 : i32 to vector<128x1xi32>
    %403 = arith.cmpi eq, %334, %402 : vector<128x1xi32>
    %404 = vector.extract_strided_slice %376 {offsets = [0, 384], sizes = [128, 128], strides = [1, 1]} : vector<128x512xf32> to vector<128x128xf32>
    %cst_190 = arith.constant 0.000000e+00 : f32
    %405 = vector.shape_cast %403 : vector<128x1xi1> to vector<128x1xi1>
    %406 = vector.broadcast %405 : vector<128x1xi1> to vector<128x128xi1>
    %407 = vector.broadcast %cst_190 : f32 to vector<128x128xf32>
    %408 = arith.select %406, %404, %407 : vector<128x128xi1>, vector<128x128xf32>
    %409 = arith.addf %401, %408 : vector<128x128xf32>
    %410 = vector.broadcast %372 : vector<128x1xf32> to vector<128x128xf32>
    %411 = arith.mulf %410, %409 : vector<128x128xf32>
    %412 = arith.index_cast %c0_i32_158 : i32 to index
    %c0_191 = arith.constant 0 : index
    %413 = vector.load %arg3[%412, %c0_191] : memref<1x128xi32, #tpu.memory_space<vmem>>, vector<1x128xi32>
    %414 = tpu.iota {dimensions = array<i32: 0>} : vector<16x128xi32>
    %415 = vector.broadcast %413 : vector<1x128xi32> to vector<16x128xi32>
    %416 = arith.cmpi eq, %414, %415 : vector<16x128xi32>
    %cst_192 = arith.constant 1.000000e+00 : f32
    %cst_193 = arith.constant 0.000000e+00 : f32
    %417 = vector.broadcast %cst_192 : f32 to vector<16x128xf32>
    %418 = vector.broadcast %cst_193 : f32 to vector<16x128xf32>
    %419 = arith.select %416, %417, %418 : vector<16x128xi1>, vector<16x128xf32>
    %c0_194 = arith.constant 0 : index
    %c0_195 = arith.constant 0 : index
    %420 = vector.load %arg9[%c0_194, %c0_195] : memref<16x128xf32, #tpu.memory_space<vmem>>, vector<16x128xf32>
    %cst_196 = arith.constant dense<0.000000e+00> : vector<16x128xf32>
    %421 = tpu.matmul %419, %411, %cst_196 {dimension_numbers = #tpu.dot_dimension_numbers<[1], [0], [0], [1], [0, 0, 1, 1], [], []>} : vector<16x128xf32>, vector<128x128xf32>, vector<16x128xf32> -> vector<16x128xf32>
    %422 = arith.addf %420, %421 : vector<16x128xf32>
    %c0_197 = arith.constant 0 : index
    %c0_198 = arith.constant 0 : index
    %423 = vector.load %arg9[%c0_197, %c0_198] : memref<16x128xf32, #tpu.memory_space<vmem>>, vector<16x128xf32>
    tpu.vector_store %arg9[%c0_197, %c0_198], %422 {strides = array<i32>} : memref<16x128xf32, #tpu.memory_space<vmem>>, vector<16x128xf32>,
    %c1_i32_199 = arith.constant 1 : i32
    %c0_200 = arith.constant 0 : index
    %c0_201 = arith.constant 0 : index
    %424 = vector.load %arg9[%c0_200, %c0_201] : memref<16x128xf32, #tpu.memory_space<vmem>>, vector<16x128xf32>
    %cst_202 = arith.constant 0.000000e+00 : f32
    %425 = vector.broadcast %cst_202 : f32 to vector<16x128xf32>
    %426 = arith.maximumf %424, %425 : vector<16x128xf32>
    %c0_203 = arith.constant 0 : index
    %c0_204 = arith.constant 0 : index
    %427 = vector.load %arg9[%c0_203, %c0_204] : memref<16x128xf32, #tpu.memory_space<vmem>>, vector<16x128xf32>
    tpu.vector_store %arg9[%c0_203, %c0_204], %426 {strides = array<i32>} : memref<16x128xf32, #tpu.memory_space<vmem>>, vector<16x128xf32>,
    return
  }
}

</mosaic_0001>

<llo_original>
// kernel: tpu_custom_call.1
$region0: #{tpu_custom_call.1}
  #allocation0 [shape = 'u32[]', space=smem, size = 0x4, offset = 0x4, fixed_abs, tag = 'smem constant byte address 0x4 - core index']
  #allocation1 [shape = 'u32[144,128]{1,0:T(1,128)}', space=vmem, size = 0x12000, scoped, tag = 'internal scratch']
  #allocation2 [shape = 'f32[16,640]{1,0:T(8,128)}', space=vmem, size = 0xa000, scoped, tag = 'scratch operand']
  #allocation3 [shape = 'f32[16,128]{1,0:T(8,128)}', space=vmem, size = 0x2000, scoped, tag = 'scratch operand']
  #allocation4 [shape = 'f32[1,16]{1,0:T(1,128)}', space=vmem, size = 0x200, scoped, tag = 'scratch operand']
  #allocation5 [shape = 'f32[1,16]{1,0:T(1,128)}', space=vmem, size = 0x200, scoped, tag = 'scratch operand']
  #allocation6 [shape = 'f32[128,1]{1,0:T(8,128)}', space=vmem, size = 0x10000, scoped, tag = 'scratch operand']
  %s0 = inlined_call_operand.vmem [shape: s32[128,1], index: 0, kind: input, shape index: {}]
  %s1 = inlined_call_operand.vmem [shape: s32[128,1], index: 1, kind: input, shape index: {}]
  %s2 = inlined_call_operand.vmem [shape: s32[128,1], index: 2, kind: input, shape index: {}]
  %s3 = inlined_call_operand.vmem [shape: s32[1,128], index: 3, kind: input, shape index: {}]
  %s4 = inlined_call_operand.vmem [shape: f32[16,8], index: 4, kind: input, shape index: {}]
  %s5 = inlined_call_operand.vmem [shape: f32[8,640], index: 5, kind: input, shape index: {}]
  %s6 = inlined_call_operand.vmem [shape: f32[1,128], index: 6, kind: input, shape index: {}]
  %s7 = inlined_call_operand.hbm [shape: f32[128,640], index: 7, kind: input, shape index: {}]
  %s8 = inlined_call_operand.vmem [shape: f32[1,128], index: 8, kind: input, shape index: {}]
  %s9 = inlined_call_operand.hbm [shape: f32[16,128], index: 9, kind: output, shape index: {0}]
  %s10 = inlined_call_operand.vmem [shape: f32[128,1], index: 10, kind: output, shape index: {1}]
  %11 = xla_tuple %s9, %s10
  %s12 = sld [smem:[#allocation0]]
  $region58: #{tpu_custom_call.1} parent=0
    _
  %s14 = ssub.s32 1, %s12
  %s15 = scalar_select 0, %s14, %s12
  $region1: #{tpu_custom_call.1} parent=0
    #allocation7 [shape = 'u8[327680]{0}', space=vmem, size = 0x50000, scoped, tag = 'input window, operand 7, single buffered']
    #allocation8 [shape = 's32[1]{0}', space=sflag, size = 0x4, scoped, tag = 'scoped memory for tpu_custom_call.1']
    #allocation9 [shape = 's32[1]{0}', space=sflag, size = 0x4, scoped, tag = 'scoped memory for tpu_custom_call.1']
    #allocation10 [shape = 'u8[8192]{0}', space=vmem, size = 0x2000, scoped, tag = 'output window, operand 0, single buffered']
    %16 = vsyncpa [#allocation8], 0
    %17 = vsyncpa [#allocation9], 0
    // Predicated region
    $region2: #{tpu_custom_call.1} parent=1 // pred_check
      _
    $region3: #{tpu_custom_call.1} parent=1 // pred_check_branch
      %19 = sbr.rel (0) target = $region5
    $region4: #{tpu_custom_call.1} parent=1 // pred_region
      _
    $region5: #{tpu_custom_call.1} parent=1 // pred_fallthru
      _
    // Predicated region
    $region6: #{tpu_custom_call.1} parent=1 // pred_check
      _
    $region7: #{tpu_custom_call.1} parent=1 // pred_check_branch
      %21 = sbr.rel (0) target = $region9
    $region8: #{tpu_custom_call.1} parent=1 // pred_region
      _
    $region9: #{tpu_custom_call.1} parent=1 // pred_fallthru
      _
    // Predicated region
    $region10: #{tpu_custom_call.1} parent=1 // pred_check
      _
    $region11: #{tpu_custom_call.1} parent=1 // pred_check_branch
      %23 = sbr.rel (0) target = $region13
    $region12: #{tpu_custom_call.1} parent=1 // pred_region
      _
    $region13: #{tpu_custom_call.1} parent=1 // pred_fallthru
      _
    // Predicated region
    $region14: #{tpu_custom_call.1} parent=1 // pred_check
      _
    $region15: #{tpu_custom_call.1} parent=1 // pred_check_branch
      %25 = sbr.rel (0) target = $region17
    $region16: #{tpu_custom_call.1} parent=1 // pred_region
      _
    $region17: #{tpu_custom_call.1} parent=1 // pred_fallthru
      _
    // Predicated region
    $region18: #{tpu_custom_call.1} parent=1 // pred_check
      _
    $region19: #{tpu_custom_call.1} parent=1 // pred_check_branch
      %27 = sbr.rel (0) target = $region21
    $region20: #{tpu_custom_call.1} parent=1 // pred_region
      _
    $region21: #{tpu_custom_call.1} parent=1 // pred_fallthru
      _
    // Predicated region
    $region22: #{tpu_custom_call.1} parent=1 // pred_check
      _
    $region23: #{tpu_custom_call.1} parent=1 // pred_check_branch
      %29 = sbr.rel (0) target = $region25
    $region24: #{tpu_custom_call.1} parent=1 // pred_region
      _
    $region25: #{tpu_custom_call.1} parent=1 // pred_fallthru
      _
    // Predicated region
    $region26: #{tpu_custom_call.1} parent=1 // pred_check
      _
    $region27: #{tpu_custom_call.1} parent=1 // pred_check_branch
      %31 = sbr.rel (0) target = $region29
    $region28: #{tpu_custom_call.1} parent=1 // pred_region
      _
    $region29: #{tpu_custom_call.1} parent=1 // pred_fallthru
      _
    // Predicated region
    $region30: #{tpu_custom_call.1} parent=1 // pred_check
      _
    $region31: #{tpu_custom_call.1} parent=1 // pred_check_branch
      %33 = sbr.rel (0) target = $region33
    $region32: #{tpu_custom_call.1} parent=1 // pred_region
      %s35 = ssub.s32 10240, 10240
      %36 = vsyncadd [#allocation8], %s35
      %s37 = sshll.u32 [#allocation7], 4
      %s38 = int_to_ptr.vmem [resolvable:$true] %s37
      %43 = dma.hbm_to_vmem [thread:$0]  %s7, 10240, %s38, [#allocation8], 640, 640, 40
    $region33: #{tpu_custom_call.1} parent=1 // pred_fallthru
      _
    // Predicated region
    $region34: #{tpu_custom_call.1} parent=1 // pred_check
      _
    $region35: #{tpu_custom_call.1} parent=1 // pred_check_branch
      %45 = sbr.rel (0) target = $region37
    $region36: #{tpu_custom_call.1} parent=1 // pred_region
      _
    $region37: #{tpu_custom_call.1} parent=1 // pred_fallthru
      _
    // Predicated region
    $region38: #{tpu_custom_call.1} parent=1 // pred_check
      _
    $region39: #{tpu_custom_call.1} parent=1 // pred_check_branch
      %47 = sbr.rel (0) target = $region41
    $region40: #{tpu_custom_call.1} parent=1 // pred_region
      %48 = dma.done [#allocation8], 10240
    $region41: #{tpu_custom_call.1} parent=1 // pred_fallthru
      _
    %v49 = vld [vmem:[%s4] sm:$0xff]
    %v50 = vld [vmem:[%s4 + $0x8] sm:$0xff]
    %v51 = vld [vmem:[%s5] sm:$0xff]
    %v52 = vld [vmem:[%s5 + $0x8] sm:$0xff]
    %v53 = vld [vmem:[%s5 + $0x10] sm:$0xff]
    %v54 = vld [vmem:[%s5 + $0x18] sm:$0xff]
    %v55 = vld [vmem:[%s5 + $0x20] sm:$0xff]
    %vm56 = vcmask 64512
    %v58 = vsel %vm56, %v49, 0
    %v61 = vsel %vm56, %v50, 0
    %63 = vmatprep.subr.mxu0 %v52
    %64 = vmatpush1.msra.mxu0 %v51
    %65 = vmatprep.subr.mxu0 0.0
    %66 = vmatpush1.msra.mxu0 0.0
    %67 = vmatprep.subr.mxu0 0.0
    %68 = vmatpush1.msra.mxu0 0.0
    %69 = vmatprep.subr.mxu0 0.0
    %70 = vmatpush1.msra.mxu0 0.0
    %71 = vmatprep.subr.mxu0 0.0
    %72 = vmatpush1.msra.mxu0 0.0
    %73 = vmatprep.subr.mxu0 0.0
    %74 = vmatpush1.msra.mxu0 0.0
    %75 = vmatprep.subr.mxu0 0.0
    %76 = vmatpush1.msra.mxu0 0.0
    %77 = vmatprep.subr.mxu0 0.0
    %78 = vmatpush1.msra.mxu0 0.0
    %79 = vmatprep.subr.mxu0 0.0
    %80 = vmatpush1.msra.mxu0 0.0
    %81 = vmatprep.subr.mxu0 0.0
    %82 = vmatpush1.msra.mxu0 0.0
    %83 = vmatprep.subr.mxu0 0.0
    %84 = vmatpush1.msra.mxu0 0.0
    %85 = vmatprep.subr.mxu0 0.0
    %86 = vmatpush1.msra.mxu0 0.0
    %87 = vmatprep.subr.mxu0 0.0
    %88 = vmatpush1.msra.mxu0 0.0
    %89 = vmatprep.subr.mxu0 0.0
    %90 = vmatpush1.msra.mxu0 0.0
    %91 = vmatprep.subr.mxu0 0.0
    %92 = vmatpush1.msra.mxu0 0.0
    %93 = vmatprep.subr.mxu0 0.0
    %94 = vmatpush1.msra.mxu0 0.0
    %95 = vmatprep.subr.mxu0 0.0
    %96 = vmatpush1.msra.mxu0 0.0
    %97 = vmatprep.subr.mxu0 0.0
    %98 = vmatpush1.msra.mxu0 0.0
    %99 = vmatprep.subr.mxu0 0.0
    %100 = vmatpush1.msra.mxu0 0.0
    %101 = vmatprep.subr.mxu0 0.0
    %102 = vmatpush1.msra.mxu0 0.0
    %103 = vmatprep.subr.mxu0 0.0
    %104 = vmatpush1.msra.mxu0 0.0
    %105 = vmatprep.subr.mxu0 0.0
    %106 = vmatpush1.msra.mxu0 0.0
    %107 = vmatprep.subr.mxu0 0.0
    %108 = vmatpush1.msra.mxu0 0.0
    %109 = vmatprep.subr.mxu0 0.0
    %110 = vmatpush1.msra.mxu0 0.0
    %111 = vmatprep.subr.mxu0 0.0
    %112 = vmatpush1.msra.mxu0 0.0
    %113 = vmatprep.subr.mxu0 0.0
    %114 = vmatpush1.msra.mxu0 0.0
    %115 = vmatprep.subr.mxu0 0.0
    %116 = vmatpush1.msra.mxu0 0.0
    %117 = vmatprep.subr.mxu0 0.0
    %118 = vmatpush1.msra.mxu0 0.0
    %119 = vmatprep.subr.mxu0 0.0
    %120 = vmatpush1.msra.mxu0 0.0
    %121 = vmatprep.subr.mxu0 0.0
    %122 = vmatpush1.msra.mxu0 0.0
    %123 = vmatprep.subr.mxu0 0.0
    %124 = vmatpush1.msra.mxu0 0.0
    %125 = vmatprep.subr.mxu0 0.0
    %126 = vmatpush1.msra.mxu0 0.0
    %127 = vmatprep.mubr.f32.mxu0 0.0
    %128 = vmatmul.mubr.f32.gmra.mrb[0].mxu0 %v58
    %v129 = vpop.f32.mrb[0].mxu0
    %v130 = vadd.f32 0.0, %v129
    %v131 = vpop.f32.mrb[0].mxu0
    %v132 = vadd.f32 0.0, %v131
    %133 = vmatprep.mubr.f32.mxu0 0.0
    %134 = vmatmul.mubr.f32.gmra.mrb[0].mxu0 %v61
    %v135 = vpop.f32.mrb[0].mxu0
    %v136 = vadd.f32 0.0, %v135
    %v137 = vpop.f32.mrb[0].mxu0
    %v138 = vadd.f32 0.0, %v137
    %139 = vdwg.mxu0
    %140 = vmatprep.subr.mxu0 %v54
    %141 = vmatpush1.msra.mxu0 %v53
    %142 = vmatprep.subr.mxu0 0.0
    %143 = vmatpush1.msra.mxu0 0.0
    %144 = vmatprep.subr.mxu0 0.0
    %145 = vmatpush1.msra.mxu0 0.0
    %146 = vmatprep.subr.mxu0 0.0
    %147 = vmatpush1.msra.mxu0 0.0
    %148 = vmatprep.subr.mxu0 0.0
    %149 = vmatpush1.msra.mxu0 0.0
    %150 = vmatprep.subr.mxu0 0.0
    %151 = vmatpush1.msra.mxu0 0.0
    %152 = vmatprep.subr.mxu0 0.0
    %153 = vmatpush1.msra.mxu0 0.0
    %154 = vmatprep.subr.mxu0 0.0
    %155 = vmatpush1.msra.mxu0 0.0
    %156 = vmatprep.subr.mxu0 0.0
    %157 = vmatpush1.msra.mxu0 0.0
    %158 = vmatprep.subr.mxu0 0.0
    %159 = vmatpush1.msra.mxu0 0.0
    %160 = vmatprep.subr.mxu0 0.0
    %161 = vmatpush1.msra.mxu0 0.0
    %162 = vmatprep.subr.mxu0 0.0
    %163 = vmatpush1.msra.mxu0 0.0
    %164 = vmatprep.subr.mxu0 0.0
    %165 = vmatpush1.msra.mxu0 0.0
    %166 = vmatprep.subr.mxu0 0.0
    %167 = vmatpush1.msra.mxu0 0.0
    %168 = vmatprep.subr.mxu0 0.0
    %169 = vmatpush1.msra.mxu0 0.0
    %170 = vmatprep.subr.mxu0 0.0
    %171 = vmatpush1.msra.mxu0 0.0
    %172 = vmatprep.subr.mxu0 0.0
    %173 = vmatpush1.msra.mxu0 0.0
    %174 = vmatprep.subr.mxu0 0.0
    %175 = vmatpush1.msra.mxu0 0.0
    %176 = vmatprep.subr.mxu0 0.0
    %177 = vmatpush1.msra.mxu0 0.0
    %178 = vmatprep.subr.mxu0 0.0
    %179 = vmatpush1.msra.mxu0 0.0
    %180 = vmatprep.subr.mxu0 0.0
    %181 = vmatpush1.msra.mxu0 0.0
    %182 = vmatprep.subr.mxu0 0.0
    %183 = vmatpush1.msra.mxu0 0.0
    %184 = vmatprep.subr.mxu0 0.0
    %185 = vmatpush1.msra.mxu0 0.0
    %186 = vmatprep.subr.mxu0 0.0
    %187 = vmatpush1.msra.mxu0 0.0
    %188 = vmatprep.subr.mxu0 0.0
    %189 = vmatpush1.msra.mxu0 0.0
    %190 = vmatprep.subr.mxu0 0.0
    %191 = vmatpush1.msra.mxu0 0.0
    %192 = vmatprep.subr.mxu0 0.0
    %193 = vmatpush1.msra.mxu0 0.0
    %194 = vmatprep.subr.mxu0 0.0
    %195 = vmatpush1.msra.mxu0 0.0
    %196 = vmatprep.subr.mxu0 0.0
    %197 = vmatpush1.msra.mxu0 0.0
    %198 = vmatprep.subr.mxu0 0.0
    %199 = vmatpush1.msra.mxu0 0.0
    %200 = vmatprep.subr.mxu0 0.0
    %201 = vmatpush1.msra.mxu0 0.0
    %202 = vmatprep.subr.mxu0 0.0
    %203 = vmatpush1.msra.mxu0 0.0
    %204 = vmatprep.mubr.f32.mxu0 0.0
    %205 = vmatmul.mubr.f32.gmra.mrb[0].mxu0 %v58
    %v206 = vpop.f32.mrb[0].mxu0
    %v207 = vadd.f32 0.0, %v206
    %v208 = vpop.f32.mrb[0].mxu0
    %v209 = vadd.f32 0.0, %v208
    %210 = vmatprep.mubr.f32.mxu0 0.0
    %211 = vmatmul.mubr.f32.gmra.mrb[0].mxu0 %v61
    %v212 = vpop.f32.mrb[0].mxu0
    %v213 = vadd.f32 0.0, %v212
    %v214 = vpop.f32.mrb[0].mxu0
    %v215 = vadd.f32 0.0, %v214
    %216 = vdwg.mxu0
    %217 = vmatprep.subr.mxu0 0.0
    %218 = vmatpush1.msra.mxu0 %v55
    %219 = vmatprep.subr.mxu0 0.0
    %220 = vmatpush1.msra.mxu0 0.0
    %221 = vmatprep.subr.mxu0 0.0
    %222 = vmatpush1.msra.mxu0 0.0
    %223 = vmatprep.subr.mxu0 0.0
    %224 = vmatpush1.msra.mxu0 0.0
    %225 = vmatprep.subr.mxu0 0.0
    %226 = vmatpush1.msra.mxu0 0.0
    %227 = vmatprep.subr.mxu0 0.0
    %228 = vmatpush1.msra.mxu0 0.0
    %229 = vmatprep.subr.mxu0 0.0
    %230 = vmatpush1.msra.mxu0 0.0
    %231 = vmatprep.subr.mxu0 0.0
    %232 = vmatpush1.msra.mxu0 0.0
    %233 = vmatprep.subr.mxu0 0.0
    %234 = vmatpush1.msra.mxu0 0.0
    %235 = vmatprep.subr.mxu0 0.0
    %236 = vmatpush1.msra.mxu0 0.0
    %237 = vmatprep.subr.mxu0 0.0
    %238 = vmatpush1.msra.mxu0 0.0
    %239 = vmatprep.subr.mxu0 0.0
    %240 = vmatpush1.msra.mxu0 0.0
    %241 = vmatprep.subr.mxu0 0.0
    %242 = vmatpush1.msra.mxu0 0.0
    %243 = vmatprep.subr.mxu0 0.0
    %244 = vmatpush1.msra.mxu0 0.0
    %245 = vmatprep.subr.mxu0 0.0
    %246 = vmatpush1.msra.mxu0 0.0
    %247 = vmatprep.subr.mxu0 0.0
    %248 = vmatpush1.msra.mxu0 0.0
    %249 = vmatprep.subr.mxu0 0.0
    %250 = vmatpush1.msra.mxu0 0.0
    %251 = vmatprep.subr.mxu0 0.0
    %252 = vmatpush1.msra.mxu0 0.0
    %253 = vmatprep.subr.mxu0 0.0
    %254 = vmatpush1.msra.mxu0 0.0
    %255 = vmatprep.subr.mxu0 0.0
    %256 = vmatpush1.msra.mxu0 0.0
    %257 = vmatprep.subr.mxu0 0.0
    %258 = vmatpush1.msra.mxu0 0.0
    %259 = vmatprep.subr.mxu0 0.0
    %260 = vmatpush1.msra.mxu0 0.0
    %261 = vmatprep.subr.mxu0 0.0
    %262 = vmatpush1.msra.mxu0 0.0
    %263 = vmatprep.subr.mxu0 0.0
    %264 = vmatpush1.msra.mxu0 0.0
    %265 = vmatprep.subr.mxu0 0.0
    %266 = vmatpush1.msra.mxu0 0.0
    %267 = vmatprep.subr.mxu0 0.0
    %268 = vmatpush1.msra.mxu0 0.0
    %269 = vmatprep.subr.mxu0 0.0
    %270 = vmatpush1.msra.mxu0 0.0
    %271 = vmatprep.subr.mxu0 0.0
    %272 = vmatpush1.msra.mxu0 0.0
    %273 = vmatprep.subr.mxu0 0.0
    %274 = vmatpush1.msra.mxu0 0.0
    %275 = vmatprep.subr.mxu0 0.0
    %276 = vmatpush1.msra.mxu0 0.0
    %277 = vmatprep.subr.mxu0 0.0
    %278 = vmatpush1.msra.mxu0 0.0
    %279 = vmatprep.subr.mxu0 0.0
    %280 = vmatpush1.msra.mxu0 0.0
    %281 = vmatprep.mubr.f32.mxu0 0.0
    %282 = vmatmul.mubr.f32.gmra.mrb[0].mxu0 %v58
    %v283 = vpop.f32.mrb[0].mxu0
    %v284 = vadd.f32 0.0, %v283
    %v285 = vpop.f32.mrb[0].mxu0
    %286 = vmatprep.mubr.f32.mxu0 0.0
    %287 = vmatmul.mubr.f32.gmra.mrb[0].mxu0 %v61
    %v288 = vpop.f32.mrb[0].mxu0
    %v289 = vadd.f32 0.0, %v288
    %v290 = vpop.f32.mrb[0].mxu0
    %291 = vdwg.mxu0
    %292 = vst [vmem:[#allocation2] sm:$0xff] %v130
    %293 = vst [vmem:[#allocation2 + $0x8] sm:$0xff] %v132
    %294 = vst [vmem:[#allocation2 + $0x10] sm:$0xff] %v207
    %295 = vst [vmem:[#allocation2 + $0x18] sm:$0xff] %v209
    %296 = vst [vmem:[#allocation2 + $0x20] sm:$0xff] %v284
    %297 = vst [vmem:[#allocation2 + $0x28] sm:$0xff] %v136
    %298 = vst [vmem:[#allocation2 + $0x30] sm:$0xff] %v138
    %299 = vst [vmem:[#allocation2 + $0x38] sm:$0xff] %v213
    %300 = vst [vmem:[#allocation2 + $0x40] sm:$0xff] %v215
    %301 = vst [vmem:[#allocation2 + $0x48] sm:$0xff] %v289
    %v302 = vld [vmem:[#allocation2 + $0x20] sm:$0xff]
    %v303 = vld [vmem:[#allocation2 + $0x48] sm:$0xff]
    %vm304 = vcmask 122880
    %305 = vst.msk [vmem:[#allocation4] sm:$0x1] %vm304, -1e+30
    %306 = vst.msk [vmem:[#allocation5] sm:$0x1] %vm304, 0.0
    %v307 = vld [vmem:[%s6] sm:$0x1]
    %v309 = vlaneseq
    %v310 = vshrl.u32 %v309, 7
    %v311 = vsub.s32 0, %v310
    %v312 = vrot.slane %v307, %v311
    %314 = vst [vmem:[#allocation3] sm:$0xff] %v312
    %315 = vst [vmem:[#allocation3 + $0x8] sm:$0xff] %v312
    %v316 = vld [vmem:[%s0] sm:$0xff]
    %v317 = vld [vmem:[%s0 + $0x8] sm:$0xff]
    %v318 = vld [vmem:[%s0 + $0x10] sm:$0xff]
    %v319 = vld [vmem:[%s0 + $0x18] sm:$0xff]
    %v320 = vld [vmem:[%s0 + $0x20] sm:$0xff]
    %v321 = vld [vmem:[%s0 + $0x28] sm:$0xff]
    %v322 = vld [vmem:[%s0 + $0x30] sm:$0xff]
    %v323 = vld [vmem:[%s0 + $0x38] sm:$0xff]
    %v324 = vld [vmem:[%s0 + $0x40] sm:$0xff]
    %v325 = vld [vmem:[%s0 + $0x48] sm:$0xff]
    %v326 = vld [vmem:[%s0 + $0x50] sm:$0xff]
    %v327 = vld [vmem:[%s0 + $0x58] sm:$0xff]
    %v328 = vld [vmem:[%s0 + $0x60] sm:$0xff]
    %v329 = vld [vmem:[%s0 + $0x68] sm:$0xff]
    %v330 = vld [vmem:[%s0 + $0x70] sm:$0xff]
    %v331 = vld [vmem:[%s0 + $0x78] sm:$0xff]
    %v332 = vld [vmem:[%s1] sm:$0xff]
    %v333 = vld [vmem:[%s1 + $0x8] sm:$0xff]
    %v334 = vld [vmem:[%s1 + $0x10] sm:$0xff]
    %v335 = vld [vmem:[%s1 + $0x18] sm:$0xff]
    %v336 = vld [vmem:[%s1 + $0x20] sm:$0xff]
    %v337 = vld [vmem:[%s1 + $0x28] sm:$0xff]
    %v338 = vld [vmem:[%s1 + $0x30] sm:$0xff]
    %v339 = vld [vmem:[%s1 + $0x38] sm:$0xff]
    %v340 = vld [vmem:[%s1 + $0x40] sm:$0xff]
    %v341 = vld [vmem:[%s1 + $0x48] sm:$0xff]
    %v342 = vld [vmem:[%s1 + $0x50] sm:$0xff]
    %v343 = vld [vmem:[%s1 + $0x58] sm:$0xff]
    %v344 = vld [vmem:[%s1 + $0x60] sm:$0xff]
    %v345 = vld [vmem:[%s1 + $0x68] sm:$0xff]
    %v346 = vld [vmem:[%s1 + $0x70] sm:$0xff]
    %v347 = vld [vmem:[%s1 + $0x78] sm:$0xff]
    %v348 = vld [vmem:[%s2] sm:$0xff]
    %v349 = vld [vmem:[%s2 + $0x8] sm:$0xff]
    %v350 = vld [vmem:[%s2 + $0x10] sm:$0xff]
    %v351 = vld [vmem:[%s2 + $0x18] sm:$0xff]
    %v352 = vld [vmem:[%s2 + $0x20] sm:$0xff]
    %v353 = vld [vmem:[%s2 + $0x28] sm:$0xff]
    %v354 = vld [vmem:[%s2 + $0x30] sm:$0xff]
    %v355 = vld [vmem:[%s2 + $0x38] sm:$0xff]
    %v356 = vld [vmem:[%s2 + $0x40] sm:$0xff]
    %v357 = vld [vmem:[%s2 + $0x48] sm:$0xff]
    %v358 = vld [vmem:[%s2 + $0x50] sm:$0xff]
    %v359 = vld [vmem:[%s2 + $0x58] sm:$0xff]
    %v360 = vld [vmem:[%s2 + $0x60] sm:$0xff]
    %v361 = vld [vmem:[%s2 + $0x68] sm:$0xff]
    %v362 = vld [vmem:[%s2 + $0x70] sm:$0xff]
    %v363 = vld [vmem:[%s2 + $0x78] sm:$0xff]
    %v364 = vlaneseq
    %v365 = vshrl.u32 %v364, 7
    %v366 = vadd.s32 %v365, 8
    %v367 = vadd.s32 %v365, 16
    %v368 = vadd.s32 %v365, 24
    %v369 = vadd.s32 %v365, 32
    %v370 = vadd.s32 %v365, 40
    %v371 = vadd.s32 %v365, 48
    %v372 = vadd.s32 %v365, 56
    %v373 = vadd.s32 %v365, 64
    %v374 = vadd.s32 %v365, 72
    %v375 = vadd.s32 %v365, 80
    %v376 = vadd.s32 %v365, 88
    %v377 = vadd.s32 %v365, 96
    %v378 = vadd.s32 %v365, 104
    %v379 = vadd.s32 %v365, 112
    %v380 = vadd.s32 %v365, 120
    %v381 = vstv 0
    %v382 = vadd.s32 %v365, %v381
    %v383 = vadd.s32 %v366, %v381
    %v384 = vadd.s32 %v367, %v381
    %v385 = vadd.s32 %v368, %v381
    %v386 = vadd.s32 %v369, %v381
    %v387 = vadd.s32 %v370, %v381
    %v388 = vadd.s32 %v371, %v381
    %v389 = vadd.s32 %v372, %v381
    %v390 = vadd.s32 %v373, %v381
    %v391 = vadd.s32 %v374, %v381
    %v392 = vadd.s32 %v375, %v381
    %v393 = vadd.s32 %v376, %v381
    %v394 = vadd.s32 %v377, %v381
    %v395 = vadd.s32 %v378, %v381
    %v396 = vadd.s32 %v379, %v381
    %v397 = vadd.s32 %v380, %v381
    %vm398 = vcmp.lt.s32.totalorder %v382, 32
    %vm399 = vcmp.lt.s32.totalorder %v383, 32
    %vm400 = vcmp.lt.s32.totalorder %v384, 32
    %vm401 = vcmp.lt.s32.totalorder %v385, 32
    %vm402 = vcmp.lt.s32.totalorder %v386, 32
    %vm403 = vcmp.lt.s32.totalorder %v387, 32
    %vm404 = vcmp.lt.s32.totalorder %v388, 32
    %vm405 = vcmp.lt.s32.totalorder %v389, 32
    %vm406 = vcmp.lt.s32.totalorder %v390, 32
    %vm407 = vcmp.lt.s32.totalorder %v391, 32
    %vm408 = vcmp.lt.s32.totalorder %v392, 32
    %vm409 = vcmp.lt.s32.totalorder %v393, 32
    %vm410 = vcmp.lt.s32.totalorder %v394, 32
    %vm411 = vcmp.lt.s32.totalorder %v395, 32
    %vm412 = vcmp.lt.s32.totalorder %v396, 32
    %vm413 = vcmp.lt.s32.totalorder %v397, 32
    %v414 = vlaneseq
    %v415 = vand.u32 %v414, 127
    %416 = vset.pattern.permute.xlu0 0
    %417 = vperm.xlu0 %416, %v316
    %v418 = vpop.permute.xlu0 %417
    %419 = vset.pattern.permute.xlu0 0
    %420 = vperm.xlu0 %419, %v317
    %v421 = vpop.permute.xlu0 %420
    %422 = vset.pattern.permute.xlu0 0
    %423 = vperm.xlu0 %422, %v318
    %v424 = vpop.permute.xlu0 %423
    %425 = vset.pattern.permute.xlu0 0
    %426 = vperm.xlu0 %425, %v319
    %v427 = vpop.permute.xlu0 %426
    %428 = vset.pattern.permute.xlu0 0
    %429 = vperm.xlu0 %428, %v320
    %v430 = vpop.permute.xlu0 %429
    %431 = vset.pattern.permute.xlu0 0
    %432 = vperm.xlu0 %431, %v321
    %v433 = vpop.permute.xlu0 %432
    %434 = vset.pattern.permute.xlu0 0
    %435 = vperm.xlu0 %434, %v322
    %v436 = vpop.permute.xlu0 %435
    %437 = vset.pattern.permute.xlu0 0
    %438 = vperm.xlu0 %437, %v323
    %v439 = vpop.permute.xlu0 %438
    %440 = vset.pattern.permute.xlu0 0
    %441 = vperm.xlu0 %440, %v324
    %v442 = vpop.permute.xlu0 %441
    %443 = vset.pattern.permute.xlu0 0
    %444 = vperm.xlu0 %443, %v325
    %v445 = vpop.permute.xlu0 %444
    %446 = vset.pattern.permute.xlu0 0
    %447 = vperm.xlu0 %446, %v326
    %v448 = vpop.permute.xlu0 %447
    %449 = vset.pattern.permute.xlu0 0
    %450 = vperm.xlu0 %449, %v327
    %v451 = vpop.permute.xlu0 %450
    %452 = vset.pattern.permute.xlu0 0
    %453 = vperm.xlu0 %452, %v328
    %v454 = vpop.permute.xlu0 %453
    %455 = vset.pattern.permute.xlu0 0
    %456 = vperm.xlu0 %455, %v329
    %v457 = vpop.permute.xlu0 %456
    %458 = vset.pattern.permute.xlu0 0
    %459 = vperm.xlu0 %458, %v330
    %v460 = vpop.permute.xlu0 %459
    %461 = vset.pattern.permute.xlu0 0
    %462 = vperm.xlu0 %461, %v331
    %v463 = vpop.permute.xlu0 %462
    %vm464 = vcmp.eq.s32.totalorder %v415, %v418
    %vm465 = vcmp.eq.s32.totalorder %v415, %v421
    %vm466 = vcmp.eq.s32.totalorder %v415, %v424
    %vm467 = vcmp.eq.s32.totalorder %v415, %v427
    %vm468 = vcmp.eq.s32.totalorder %v415, %v430
    %vm469 = vcmp.eq.s32.totalorder %v415, %v433
    %vm470 = vcmp.eq.s32.totalorder %v415, %v436
    %vm471 = vcmp.eq.s32.totalorder %v415, %v439
    %vm472 = vcmp.eq.s32.totalorder %v415, %v442
    %vm473 = vcmp.eq.s32.totalorder %v415, %v445
    %vm474 = vcmp.eq.s32.totalorder %v415, %v448
    %vm475 = vcmp.eq.s32.totalorder %v415, %v451
    %vm476 = vcmp.eq.s32.totalorder %v415, %v454
    %vm477 = vcmp.eq.s32.totalorder %v415, %v457
    %vm478 = vcmp.eq.s32.totalorder %v415, %v460
    %vm479 = vcmp.eq.s32.totalorder %v415, %v463
    %480 = vset.pattern.permute.xlu0 0
    %481 = vperm.xlu0 %480, %v332
    %v482 = vpop.permute.xlu0 %481
    %483 = vset.pattern.permute.xlu0 0
    %484 = vperm.xlu0 %483, %v333
    %v485 = vpop.permute.xlu0 %484
    %486 = vset.pattern.permute.xlu0 0
    %487 = vperm.xlu0 %486, %v334
    %v488 = vpop.permute.xlu0 %487
    %489 = vset.pattern.permute.xlu0 0
    %490 = vperm.xlu0 %489, %v335
    %v491 = vpop.permute.xlu0 %490
    %492 = vset.pattern.permute.xlu0 0
    %493 = vperm.xlu0 %492, %v336
    %v494 = vpop.permute.xlu0 %493
    %495 = vset.pattern.permute.xlu0 0
    %496 = vperm.xlu0 %495, %v337
    %v497 = vpop.permute.xlu0 %496
    %498 = vset.pattern.permute.xlu0 0
    %499 = vperm.xlu0 %498, %v338
    %v500 = vpop.permute.xlu0 %499
    %501 = vset.pattern.permute.xlu0 0
    %502 = vperm.xlu0 %501, %v339
    %v503 = vpop.permute.xlu0 %502
    %504 = vset.pattern.permute.xlu0 0
    %505 = vperm.xlu0 %504, %v340
    %v506 = vpop.permute.xlu0 %505
    %507 = vset.pattern.permute.xlu0 0
    %508 = vperm.xlu0 %507, %v341
    %v509 = vpop.permute.xlu0 %508
    %510 = vset.pattern.permute.xlu0 0
    %511 = vperm.xlu0 %510, %v342
    %v512 = vpop.permute.xlu0 %511
    %513 = vset.pattern.permute.xlu0 0
    %514 = vperm.xlu0 %513, %v343
    %v515 = vpop.permute.xlu0 %514
    %516 = vset.pattern.permute.xlu0 0
    %517 = vperm.xlu0 %516, %v344
    %v518 = vpop.permute.xlu0 %517
    %519 = vset.pattern.permute.xlu0 0
    %520 = vperm.xlu0 %519, %v345
    %v521 = vpop.permute.xlu0 %520
    %522 = vset.pattern.permute.xlu0 0
    %523 = vperm.xlu0 %522, %v346
    %v524 = vpop.permute.xlu0 %523
    %525 = vset.pattern.permute.xlu0 0
    %526 = vperm.xlu0 %525, %v347
    %v527 = vpop.permute.xlu0 %526
    %vm528 = vcmp.eq.s32.totalorder %v415, %v482
    %vm529 = vcmp.eq.s32.totalorder %v415, %v485
    %vm530 = vcmp.eq.s32.totalorder %v415, %v488
    %vm531 = vcmp.eq.s32.totalorder %v415, %v491
    %vm532 = vcmp.eq.s32.totalorder %v415, %v494
    %vm533 = vcmp.eq.s32.totalorder %v415, %v497
    %vm534 = vcmp.eq.s32.totalorder %v415, %v500
    %vm535 = vcmp.eq.s32.totalorder %v415, %v503
    %vm536 = vcmp.eq.s32.totalorder %v415, %v506
    %vm537 = vcmp.eq.s32.totalorder %v415, %v509
    %vm538 = vcmp.eq.s32.totalorder %v415, %v512
    %vm539 = vcmp.eq.s32.totalorder %v415, %v515
    %vm540 = vcmp.eq.s32.totalorder %v415, %v518
    %vm541 = vcmp.eq.s32.totalorder %v415, %v521
    %vm542 = vcmp.eq.s32.totalorder %v415, %v524
    %vm543 = vcmp.eq.s32.totalorder %v415, %v527
    %v544 = vsel %vm464, 1.0, 0.0
    %v545 = vsel %vm465, 1.0, 0.0
    %v546 = vsel %vm466, 1.0, 0.0
    %v547 = vsel %vm467, 1.0, 0.0
    %v548 = vsel %vm468, 1.0, 0.0
    %v549 = vsel %vm469, 1.0, 0.0
    %v550 = vsel %vm470, 1.0, 0.0
    %v551 = vsel %vm471, 1.0, 0.0
    %v552 = vsel %vm472, 1.0, 0.0
    %v553 = vsel %vm473, 1.0, 0.0
    %v554 = vsel %vm474, 1.0, 0.0
    %v555 = vsel %vm475, 1.0, 0.0
    %v556 = vsel %vm476, 1.0, 0.0
    %v557 = vsel %vm477, 1.0, 0.0
    %v558 = vsel %vm478, 1.0, 0.0
    %v559 = vsel %vm479, 1.0, 0.0
    %v560 = vsel %vm528, 1.0, 0.0
    %v561 = vsel %vm529, 1.0, 0.0
    %v562 = vsel %vm530, 1.0, 0.0
    %v563 = vsel %vm531, 1.0, 0.0
    %v564 = vsel %vm532, 1.0, 0.0
    %v565 = vsel %vm533, 1.0, 0.0
    %v566 = vsel %vm534, 1.0, 0.0
    %v567 = vsel %vm535, 1.0, 0.0
    %v568 = vsel %vm536, 1.0, 0.0
    %v569 = vsel %vm537, 1.0, 0.0
    %v570 = vsel %vm538, 1.0, 0.0
    %v571 = vsel %vm539, 1.0, 0.0
    %v572 = vsel %vm540, 1.0, 0.0
    %v573 = vsel %vm541, 1.0, 0.0
    %v574 = vsel %vm542, 1.0, 0.0
    %v575 = vsel %vm543, 1.0, 0.0
    %578 = vrot.lane.b32.xlu0 %v302, 124
    %v579 = vpop.permute.xlu0 %578
    %580 = vrot.lane.b32.xlu0 %v303, 124
    %v581 = vpop.permute.xlu0 %580
    %vm584 = vcmask 130048
    %v586 = vsel %vm584, %v544, 0
    %v589 = vsel %vm584, %v545, 0
    %v592 = vsel %vm584, %v546, 0
    %v595 = vsel %vm584, %v547, 0
    %v598 = vsel %vm584, %v548, 0
    %v601 = vsel %vm584, %v549, 0
    %v604 = vsel %vm584, %v550, 0
    %v607 = vsel %vm584, %v551, 0
    %v610 = vsel %vm584, %v552, 0
    %v613 = vsel %vm584, %v553, 0
    %v616 = vsel %vm584, %v554, 0
    %v619 = vsel %vm584, %v555, 0
    %v622 = vsel %vm584, %v556, 0
    %v625 = vsel %vm584, %v557, 0
    %v628 = vsel %vm584, %v558, 0
    %v631 = vsel %vm584, %v559, 0
    %633 = vmatprep.subr.mxu0 0.0
    %634 = vmatpush1.msra.mxu0 %v579
    %635 = vmatprep.subr.mxu0 0.0
    %636 = vmatpush1.msra.mxu0 %v581
    %637 = vmatprep.subr.mxu0 0.0
    %638 = vmatpush1.msra.mxu0 0.0
    %639 = vmatprep.subr.mxu0 0.0
    %640 = vmatpush1.msra.mxu0 0.0
    %641 = vmatprep.subr.mxu0 0.0
    %642 = vmatpush1.msra.mxu0 0.0
    %643 = vmatprep.subr.mxu0 0.0
    %644 = vmatpush1.msra.mxu0 0.0
    %645 = vmatprep.subr.mxu0 0.0
    %646 = vmatpush1.msra.mxu0 0.0
    %647 = vmatprep.subr.mxu0 0.0
    %648 = vmatpush1.msra.mxu0 0.0
    %649 = vmatprep.subr.mxu0 0.0
    %650 = vmatpush1.msra.mxu0 0.0
    %651 = vmatprep.subr.mxu0 0.0
    %652 = vmatpush1.msra.mxu0 0.0
    %653 = vmatprep.subr.mxu0 0.0
    %654 = vmatpush1.msra.mxu0 0.0
    %655 = vmatprep.subr.mxu0 0.0
    %656 = vmatpush1.msra.mxu0 0.0
    %657 = vmatprep.subr.mxu0 0.0
    %658 = vmatpush1.msra.mxu0 0.0
    %659 = vmatprep.subr.mxu0 0.0
    %660 = vmatpush1.msra.mxu0 0.0
    %661 = vmatprep.subr.mxu0 0.0
    %662 = vmatpush1.msra.mxu0 0.0
    %663 = vmatprep.subr.mxu0 0.0
    %664 = vmatpush1.msra.mxu0 0.0
    %665 = vmatprep.subr.mxu0 0.0
    %666 = vmatpush1.msra.mxu0 0.0
    %667 = vmatprep.subr.mxu0 0.0
    %668 = vmatpush1.msra.mxu0 0.0
    %669 = vmatprep.subr.mxu0 0.0
    %670 = vmatpush1.msra.mxu0 0.0
    %671 = vmatprep.subr.mxu0 0.0
    %672 = vmatpush1.msra.mxu0 0.0
    %673 = vmatprep.subr.mxu0 0.0
    %674 = vmatpush1.msra.mxu0 0.0
    %675 = vmatprep.subr.mxu0 0.0
    %676 = vmatpush1.msra.mxu0 0.0
    %677 = vmatprep.subr.mxu0 0.0
    %678 = vmatpush1.msra.mxu0 0.0
    %679 = vmatprep.subr.mxu0 0.0
    %680 = vmatpush1.msra.mxu0 0.0
    %681 = vmatprep.subr.mxu0 0.0
    %682 = vmatpush1.msra.mxu0 0.0
    %683 = vmatprep.subr.mxu0 0.0
    %684 = vmatpush1.msra.mxu0 0.0
    %685 = vmatprep.subr.mxu0 0.0
    %686 = vmatpush1.msra.mxu0 0.0
    %687 = vmatprep.subr.mxu0 0.0
    %688 = vmatpush1.msra.mxu0 0.0
    %689 = vmatprep.subr.mxu0 0.0
    %690 = vmatpush1.msra.mxu0 0.0
    %691 = vmatprep.subr.mxu0 0.0
    %692 = vmatpush1.msra.mxu0 0.0
    %693 = vmatprep.subr.mxu0 0.0
    %694 = vmatpush1.msra.mxu0 0.0
    %695 = vmatprep.subr.mxu0 0.0
    %696 = vmatpush1.msra.mxu0 0.0
    %697 = vmatprep.mubr.f32.mxu0 0.0
    %698 = vmatmul.mubr.f32.gmra.mrb[0].mxu0 %v586
    %v699 = vpop.f32.mrb[0].mxu0
    %v700 = vadd.f32 0.0, %v699
    %v701 = vpop.f32.mrb[0].mxu0
    %702 = vmatprep.mubr.f32.mxu0 0.0
    %703 = vmatmul.mubr.f32.gmra.mrb[0].mxu0 %v589
    %v704 = vpop.f32.mrb[0].mxu0
    %v705 = vadd.f32 0.0, %v704
    %v706 = vpop.f32.mrb[0].mxu0
    %707 = vmatprep.mubr.f32.mxu0 0.0
    %708 = vmatmul.mubr.f32.gmra.mrb[0].mxu0 %v592
    %v709 = vpop.f32.mrb[0].mxu0
    %v710 = vadd.f32 0.0, %v709
    %v711 = vpop.f32.mrb[0].mxu0
    %712 = vmatprep.mubr.f32.mxu0 0.0
    %713 = vmatmul.mubr.f32.gmra.mrb[0].mxu0 %v595
    %v714 = vpop.f32.mrb[0].mxu0
    %v715 = vadd.f32 0.0, %v714
    %v716 = vpop.f32.mrb[0].mxu0
    %717 = vmatprep.mubr.f32.mxu0 0.0
    %718 = vmatmul.mubr.f32.gmra.mrb[0].mxu0 %v598
    %v719 = vpop.f32.mrb[0].mxu0
    %v720 = vadd.f32 0.0, %v719
    %v721 = vpop.f32.mrb[0].mxu0
    %722 = vmatprep.mubr.f32.mxu0 0.0
    %723 = vmatmul.mubr.f32.gmra.mrb[0].mxu0 %v601
    %v724 = vpop.f32.mrb[0].mxu0
    %v725 = vadd.f32 0.0, %v724
    %v726 = vpop.f32.mrb[0].mxu0
    %727 = vmatprep.mubr.f32.mxu0 0.0
    %728 = vmatmul.mubr.f32.gmra.mrb[0].mxu0 %v604
    %v729 = vpop.f32.mrb[0].mxu0
    %v730 = vadd.f32 0.0, %v729
    %v731 = vpop.f32.mrb[0].mxu0
    %732 = vmatprep.mubr.f32.mxu0 0.0
    %733 = vmatmul.mubr.f32.gmra.mrb[0].mxu0 %v607
    %v734 = vpop.f32.mrb[0].mxu0
    %v735 = vadd.f32 0.0, %v734
    %v736 = vpop.f32.mrb[0].mxu0
    %737 = vmatprep.mubr.f32.mxu0 0.0
    %738 = vmatmul.mubr.f32.gmra.mrb[0].mxu0 %v610
    %v739 = vpop.f32.mrb[0].mxu0
    %v740 = vadd.f32 0.0, %v739
    %v741 = vpop.f32.mrb[0].mxu0
    %742 = vmatprep.mubr.f32.mxu0 0.0
    %743 = vmatmul.mubr.f32.gmra.mrb[0].mxu0 %v613
    %v744 = vpop.f32.mrb[0].mxu0
    %v745 = vadd.f32 0.0, %v744
    %v746 = vpop.f32.mrb[0].mxu0
    %747 = vmatprep.mubr.f32.mxu0 0.0
    %748 = vmatmul.mubr.f32.gmra.mrb[0].mxu0 %v616
    %v749 = vpop.f32.mrb[0].mxu0
    %v750 = vadd.f32 0.0, %v749
    %v751 = vpop.f32.mrb[0].mxu0
    %752 = vmatprep.mubr.f32.mxu0 0.0
    %753 = vmatmul.mubr.f32.gmra.mrb[0].mxu0 %v619
    %v754 = vpop.f32.mrb[0].mxu0
    %v755 = vadd.f32 0.0, %v754
    %v756 = vpop.f32.mrb[0].mxu0
    %757 = vmatprep.mubr.f32.mxu0 0.0
    %758 = vmatmul.mubr.f32.gmra.mrb[0].mxu0 %v622
    %v759 = vpop.f32.mrb[0].mxu0
    %v760 = vadd.f32 0.0, %v759
    %v761 = vpop.f32.mrb[0].mxu0
    %762 = vmatprep.mubr.f32.mxu0 0.0
    %763 = vmatmul.mubr.f32.gmra.mrb[0].mxu0 %v625
    %v764 = vpop.f32.mrb[0].mxu0
    %v765 = vadd.f32 0.0, %v764
    %v766 = vpop.f32.mrb[0].mxu0
    %767 = vmatprep.mubr.f32.mxu0 0.0
    %768 = vmatmul.mubr.f32.gmra.mrb[0].mxu0 %v628
    %v769 = vpop.f32.mrb[0].mxu0
    %v770 = vadd.f32 0.0, %v769
    %v771 = vpop.f32.mrb[0].mxu0
    %772 = vmatprep.mubr.f32.mxu0 0.0
    %773 = vmatmul.mubr.f32.gmra.mrb[0].mxu0 %v631
    %v774 = vpop.f32.mrb[0].mxu0
    %v775 = vadd.f32 0.0, %v774
    %v776 = vpop.f32.mrb[0].mxu0
    %777 = vdwg.mxu0
    %v779 = vsel %vm584, %v560, 0
    %v782 = vsel %vm584, %v561, 0
    %v785 = vsel %vm584, %v562, 0
    %v788 = vsel %vm584, %v563, 0
    %v791 = vsel %vm584, %v564, 0
    %v794 = vsel %vm584, %v565, 0
    %v797 = vsel %vm584, %v566, 0
    %v800 = vsel %vm584, %v567, 0
    %v803 = vsel %vm584, %v568, 0
    %v806 = vsel %vm584, %v569, 0
    %v809 = vsel %vm584, %v570, 0
    %v812 = vsel %vm584, %v571, 0
    %v815 = vsel %vm584, %v572, 0
    %v818 = vsel %vm584, %v573, 0
    %v821 = vsel %vm584, %v574, 0
    %v824 = vsel %vm584, %v575, 0
    %826 = vmatprep.subr.mxu0 0.0
    %827 = vmatpush1.msra.mxu0 %v302
    %828 = vmatprep.subr.mxu0 0.0
    %829 = vmatpush1.msra.mxu0 %v303
    %830 = vmatprep.subr.mxu0 0.0
    %831 = vmatpush1.msra.mxu0 0.0
    %832 = vmatprep.subr.mxu0 0.0
    %833 = vmatpush1.msra.mxu0 0.0
    %834 = vmatprep.subr.mxu0 0.0
    %835 = vmatpush1.msra.mxu0 0.0
    %836 = vmatprep.subr.mxu0 0.0
    %837 = vmatpush1.msra.mxu0 0.0
    %838 = vmatprep.subr.mxu0 0.0
    %839 = vmatpush1.msra.mxu0 0.0
    %840 = vmatprep.subr.mxu0 0.0
    %841 = vmatpush1.msra.mxu0 0.0
    %842 = vmatprep.subr.mxu0 0.0
    %843 = vmatpush1.msra.mxu0 0.0
    %844 = vmatprep.subr.mxu0 0.0
    %845 = vmatpush1.msra.mxu0 0.0
    %846 = vmatprep.subr.mxu0 0.0
    %847 = vmatpush1.msra.mxu0 0.0
    %848 = vmatprep.subr.mxu0 0.0
    %849 = vmatpush1.msra.mxu0 0.0
    %850 = vmatprep.subr.mxu0 0.0
    %851 = vmatpush1.msra.mxu0 0.0
    %852 = vmatprep.subr.mxu0 0.0
    %853 = vmatpush1.msra.mxu0 0.0
    %854 = vmatprep.subr.mxu0 0.0
    %855 = vmatpush1.msra.mxu0 0.0
    %856 = vmatprep.subr.mxu0 0.0
    %857 = vmatpush1.msra.mxu0 0.0
    %858 = vmatprep.subr.mxu0 0.0
    %859 = vmatpush1.msra.mxu0 0.0
    %860 = vmatprep.subr.mxu0 0.0
    %861 = vmatpush1.msra.mxu0 0.0
    %862 = vmatprep.subr.mxu0 0.0
    %863 = vmatpush1.msra.mxu0 0.0
    %864 = vmatprep.subr.mxu0 0.0
    %865 = vmatpush1.msra.mxu0 0.0
    %866 = vmatprep.subr.mxu0 0.0
    %867 = vmatpush1.msra.mxu0 0.0
    %868 = vmatprep.subr.mxu0 0.0
    %869 = vmatpush1.msra.mxu0 0.0
    %870 = vmatprep.subr.mxu0 0.0
    %871 = vmatpush1.msra.mxu0 0.0
    %872 = vmatprep.subr.mxu0 0.0
    %873 = vmatpush1.msra.mxu0 0.0
    %874 = vmatprep.subr.mxu0 0.0
    %875 = vmatpush1.msra.mxu0 0.0
    %876 = vmatprep.subr.mxu0 0.0
    %877 = vmatpush1.msra.mxu0 0.0
    %878 = vmatprep.subr.mxu0 0.0
    %879 = vmatpush1.msra.mxu0 0.0
    %880 = vmatprep.subr.mxu0 0.0
    %881 = vmatpush1.msra.mxu0 0.0
    %882 = vmatprep.subr.mxu0 0.0
    %883 = vmatpush1.msra.mxu0 0.0
    %884 = vmatprep.subr.mxu0 0.0
    %885 = vmatpush1.msra.mxu0 0.0
    %886 = vmatprep.subr.mxu0 0.0
    %887 = vmatpush1.msra.mxu0 0.0
    %888 = vmatprep.subr.mxu0 0.0
    %889 = vmatpush1.msra.mxu0 0.0
    %890 = vmatprep.mubr.f32.mxu0 0.0
    %891 = vmatmul.mubr.f32.gmra.mrb[0].mxu0 %v779
    %v892 = vpop.f32.mrb[0].mxu0
    %v893 = vadd.f32 0.0, %v892
    %v894 = vpop.f32.mrb[0].mxu0
    %895 = vmatprep.mubr.f32.mxu0 0.0
    %896 = vmatmul.mubr.f32.gmra.mrb[0].mxu0 %v782
    %v897 = vpop.f32.mrb[0].mxu0
    %v898 = vadd.f32 0.0, %v897
    %v899 = vpop.f32.mrb[0].mxu0
    %900 = vmatprep.mubr.f32.mxu0 0.0
    %901 = vmatmul.mubr.f32.gmra.mrb[0].mxu0 %v785
    %v902 = vpop.f32.mrb[0].mxu0
    %v903 = vadd.f32 0.0, %v902
    %v904 = vpop.f32.mrb[0].mxu0
    %905 = vmatprep.mubr.f32.mxu0 0.0
    %906 = vmatmul.mubr.f32.gmra.mrb[0].mxu0 %v788
    %v907 = vpop.f32.mrb[0].mxu0
    %v908 = vadd.f32 0.0, %v907
    %v909 = vpop.f32.mrb[0].mxu0
    %910 = vmatprep.mubr.f32.mxu0 0.0
    %911 = vmatmul.mubr.f32.gmra.mrb[0].mxu0 %v791
    %v912 = vpop.f32.mrb[0].mxu0
    %v913 = vadd.f32 0.0, %v912
    %v914 = vpop.f32.mrb[0].mxu0
    %915 = vmatprep.mubr.f32.mxu0 0.0
    %916 = vmatmul.mubr.f32.gmra.mrb[0].mxu0 %v794
    %v917 = vpop.f32.mrb[0].mxu0
    %v918 = vadd.f32 0.0, %v917
    %v919 = vpop.f32.mrb[0].mxu0
    %920 = vmatprep.mubr.f32.mxu0 0.0
    %921 = vmatmul.mubr.f32.gmra.mrb[0].mxu0 %v797
    %v922 = vpop.f32.mrb[0].mxu0
    %v923 = vadd.f32 0.0, %v922
    %v924 = vpop.f32.mrb[0].mxu0
    %925 = vmatprep.mubr.f32.mxu0 0.0
    %926 = vmatmul.mubr.f32.gmra.mrb[0].mxu0 %v800
    %v927 = vpop.f32.mrb[0].mxu0
    %v928 = vadd.f32 0.0, %v927
    %v929 = vpop.f32.mrb[0].mxu0
    %930 = vmatprep.mubr.f32.mxu0 0.0
    %931 = vmatmul.mubr.f32.gmra.mrb[0].mxu0 %v803
    %v932 = vpop.f32.mrb[0].mxu0
    %v933 = vadd.f32 0.0, %v932
    %v934 = vpop.f32.mrb[0].mxu0
    %935 = vmatprep.mubr.f32.mxu0 0.0
    %936 = vmatmul.mubr.f32.gmra.mrb[0].mxu0 %v806
    %v937 = vpop.f32.mrb[0].mxu0
    %v938 = vadd.f32 0.0, %v937
    %v939 = vpop.f32.mrb[0].mxu0
    %940 = vmatprep.mubr.f32.mxu0 0.0
    %941 = vmatmul.mubr.f32.gmra.mrb[0].mxu0 %v809
    %v942 = vpop.f32.mrb[0].mxu0
    %v943 = vadd.f32 0.0, %v942
    %v944 = vpop.f32.mrb[0].mxu0
    %945 = vmatprep.mubr.f32.mxu0 0.0
    %946 = vmatmul.mubr.f32.gmra.mrb[0].mxu0 %v812
    %v947 = vpop.f32.mrb[0].mxu0
    %v948 = vadd.f32 0.0, %v947
    %v949 = vpop.f32.mrb[0].mxu0
    %950 = vmatprep.mubr.f32.mxu0 0.0
    %951 = vmatmul.mubr.f32.gmra.mrb[0].mxu0 %v815
    %v952 = vpop.f32.mrb[0].mxu0
    %v953 = vadd.f32 0.0, %v952
    %v954 = vpop.f32.mrb[0].mxu0
    %955 = vmatprep.mubr.f32.mxu0 0.0
    %956 = vmatmul.mubr.f32.gmra.mrb[0].mxu0 %v818
    %v957 = vpop.f32.mrb[0].mxu0
    %v958 = vadd.f32 0.0, %v957
    %v959 = vpop.f32.mrb[0].mxu0
    %960 = vmatprep.mubr.f32.mxu0 0.0
    %961 = vmatmul.mubr.f32.gmra.mrb[0].mxu0 %v821
    %v962 = vpop.f32.mrb[0].mxu0
    %v963 = vadd.f32 0.0, %v962
    %v964 = vpop.f32.mrb[0].mxu0
    %965 = vmatprep.mubr.f32.mxu0 0.0
    %966 = vmatmul.mubr.f32.gmra.mrb[0].mxu0 %v824
    %v967 = vpop.f32.mrb[0].mxu0
    %v968 = vadd.f32 0.0, %v967
    %v969 = vpop.f32.mrb[0].mxu0
    %970 = vdwg.mxu0
    %vm971 = vcmp.eq.s32.totalorder %v348, 0
    %vm972 = vcmp.eq.s32.totalorder %v349, 0
    %vm973 = vcmp.eq.s32.totalorder %v350, 0
    %vm974 = vcmp.eq.s32.totalorder %v351, 0
    %vm975 = vcmp.eq.s32.totalorder %v352, 0
    %vm976 = vcmp.eq.s32.totalorder %v353, 0
    %vm977 = vcmp.eq.s32.totalorder %v354, 0
    %vm978 = vcmp.eq.s32.totalorder %v355, 0
    %vm979 = vcmp.eq.s32.totalorder %v356, 0
    %vm980 = vcmp.eq.s32.totalorder %v357, 0
    %vm981 = vcmp.eq.s32.totalorder %v358, 0
    %vm982 = vcmp.eq.s32.totalorder %v359, 0
    %vm983 = vcmp.eq.s32.totalorder %v360, 0
    %vm984 = vcmp.eq.s32.totalorder %v361, 0
    %vm985 = vcmp.eq.s32.totalorder %v362, 0
    %vm986 = vcmp.eq.s32.totalorder %v363, 0
    %v987 = vadd.f32 %v893, %v700
    %v988 = vadd.f32 %v898, %v705
    %v989 = vadd.f32 %v903, %v710
    %v990 = vadd.f32 %v908, %v715
    %v991 = vadd.f32 %v913, %v720
    %v992 = vadd.f32 %v918, %v725
    %v993 = vadd.f32 %v923, %v730
    %v994 = vadd.f32 %v928, %v735
    %v995 = vadd.f32 %v933, %v740
    %v996 = vadd.f32 %v938, %v745
    %v997 = vadd.f32 %v943, %v750
    %v998 = vadd.f32 %v948, %v755
    %v999 = vadd.f32 %v953, %v760
    %v1000 = vadd.f32 %v958, %v765
    %v1001 = vadd.f32 %v963, %v770
    %v1002 = vadd.f32 %v968, %v775
    %v1003 = vsel %vm971, %v987, 0.0
    %v1004 = vsel %vm972, %v988, 0.0
    %v1005 = vsel %vm973, %v989, 0.0
    %v1006 = vsel %vm974, %v990, 0.0
    %v1007 = vsel %vm975, %v991, 0.0
    %v1008 = vsel %vm976, %v992, 0.0
    %v1009 = vsel %vm977, %v993, 0.0
    %v1010 = vsel %vm978, %v994, 0.0
    %v1011 = vsel %vm979, %v995, 0.0
    %v1012 = vsel %vm980, %v996, 0.0
    %v1013 = vsel %vm981, %v997, 0.0
    %v1014 = vsel %vm982, %v998, 0.0
    %v1015 = vsel %vm983, %v999, 0.0
    %v1016 = vsel %vm984, %v1000, 0.0
    %v1017 = vsel %vm985, %v1001, 0.0
    %v1018 = vsel %vm986, %v1002, 0.0
    %v1019 = vadd.f32 %v1003, 0.0
    %v1020 = vadd.f32 %v1004, 0.0
    %v1021 = vadd.f32 %v1005, 0.0
    %v1022 = vadd.f32 %v1006, 0.0
    %v1023 = vadd.f32 %v1007, 0.0
    %v1024 = vadd.f32 %v1008, 0.0
    %v1025 = vadd.f32 %v1009, 0.0
    %v1026 = vadd.f32 %v1010, 0.0
    %v1027 = vadd.f32 %v1011, 0.0
    %v1028 = vadd.f32 %v1012, 0.0
    %v1029 = vadd.f32 %v1013, 0.0
    %v1030 = vadd.f32 %v1014, 0.0
    %v1031 = vadd.f32 %v1015, 0.0
    %v1032 = vadd.f32 %v1016, 0.0
    %v1033 = vadd.f32 %v1017, 0.0
    %v1034 = vadd.f32 %v1018, 0.0
    %vm1035 = vcmp.eq.s32.totalorder %v348, 1
    %vm1036 = vcmp.eq.s32.totalorder %v349, 1
    %vm1037 = vcmp.eq.s32.totalorder %v350, 1
    %vm1038 = vcmp.eq.s32.totalorder %v351, 1
    %vm1039 = vcmp.eq.s32.totalorder %v352, 1
    %vm1040 = vcmp.eq.s32.totalorder %v353, 1
    %vm1041 = vcmp.eq.s32.totalorder %v354, 1
    %vm1042 = vcmp.eq.s32.totalorder %v355, 1
    %vm1043 = vcmp.eq.s32.totalorder %v356, 1
    %vm1044 = vcmp.eq.s32.totalorder %v357, 1
    %vm1045 = vcmp.eq.s32.totalorder %v358, 1
    %vm1046 = vcmp.eq.s32.totalorder %v359, 1
    %vm1047 = vcmp.eq.s32.totalorder %v360, 1
    %vm1048 = vcmp.eq.s32.totalorder %v361, 1
    %vm1049 = vcmp.eq.s32.totalorder %v362, 1
    %vm1050 = vcmp.eq.s32.totalorder %v363, 1
    %1067 = vrot.lane.b32.xlu0 %v987, 127
    %v1068 = vpop.permute.xlu0 %1067
    %1069 = vrot.lane.b32.xlu0 %v988, 127
    %v1070 = vpop.permute.xlu0 %1069
    %1071 = vrot.lane.b32.xlu0 %v989, 127
    %v1072 = vpop.permute.xlu0 %1071
    %1073 = vrot.lane.b32.xlu0 %v990, 127
    %v1074 = vpop.permute.xlu0 %1073
    %1075 = vrot.lane.b32.xlu0 %v991, 127
    %v1076 = vpop.permute.xlu0 %1075
    %1077 = vrot.lane.b32.xlu0 %v992, 127
    %v1078 = vpop.permute.xlu0 %1077
    %1079 = vrot.lane.b32.xlu0 %v993, 127
    %v1080 = vpop.permute.xlu0 %1079
    %1081 = vrot.lane.b32.xlu0 %v994, 127
    %v1082 = vpop.permute.xlu0 %1081
    %1083 = vrot.lane.b32.xlu0 %v995, 127
    %v1084 = vpop.permute.xlu0 %1083
    %1085 = vrot.lane.b32.xlu0 %v996, 127
    %v1086 = vpop.permute.xlu0 %1085
    %1087 = vrot.lane.b32.xlu0 %v997, 127
    %v1088 = vpop.permute.xlu0 %1087
    %1089 = vrot.lane.b32.xlu0 %v998, 127
    %v1090 = vpop.permute.xlu0 %1089
    %1091 = vrot.lane.b32.xlu0 %v999, 127
    %v1092 = vpop.permute.xlu0 %1091
    %1093 = vrot.lane.b32.xlu0 %v1000, 127
    %v1094 = vpop.permute.xlu0 %1093
    %1095 = vrot.lane.b32.xlu0 %v1001, 127
    %v1096 = vpop.permute.xlu0 %1095
    %1097 = vrot.lane.b32.xlu0 %v1002, 127
    %v1098 = vpop.permute.xlu0 %1097
    %v1115 = vsel %vm1035, %v1068, 0.0
    %v1116 = vsel %vm1036, %v1070, 0.0
    %v1117 = vsel %vm1037, %v1072, 0.0
    %v1118 = vsel %vm1038, %v1074, 0.0
    %v1119 = vsel %vm1039, %v1076, 0.0
    %v1120 = vsel %vm1040, %v1078, 0.0
    %v1121 = vsel %vm1041, %v1080, 0.0
    %v1122 = vsel %vm1042, %v1082, 0.0
    %v1123 = vsel %vm1043, %v1084, 0.0
    %v1124 = vsel %vm1044, %v1086, 0.0
    %v1125 = vsel %vm1045, %v1088, 0.0
    %v1126 = vsel %vm1046, %v1090, 0.0
    %v1127 = vsel %vm1047, %v1092, 0.0
    %v1128 = vsel %vm1048, %v1094, 0.0
    %v1129 = vsel %vm1049, %v1096, 0.0
    %v1130 = vsel %vm1050, %v1098, 0.0
    %v1131 = vadd.f32 %v1019, %v1115
    %v1132 = vadd.f32 %v1020, %v1116
    %v1133 = vadd.f32 %v1021, %v1117
    %v1134 = vadd.f32 %v1022, %v1118
    %v1135 = vadd.f32 %v1023, %v1119
    %v1136 = vadd.f32 %v1024, %v1120
    %v1137 = vadd.f32 %v1025, %v1121
    %v1138 = vadd.f32 %v1026, %v1122
    %v1139 = vadd.f32 %v1027, %v1123
    %v1140 = vadd.f32 %v1028, %v1124
    %v1141 = vadd.f32 %v1029, %v1125
    %v1142 = vadd.f32 %v1030, %v1126
    %v1143 = vadd.f32 %v1031, %v1127
    %v1144 = vadd.f32 %v1032, %v1128
    %v1145 = vadd.f32 %v1033, %v1129
    %v1146 = vadd.f32 %v1034, %v1130
    %vm1147 = vcmp.eq.s32.totalorder %v348, 2
    %vm1148 = vcmp.eq.s32.totalorder %v349, 2
    %vm1149 = vcmp.eq.s32.totalorder %v350, 2
    %vm1150 = vcmp.eq.s32.totalorder %v351, 2
    %vm1151 = vcmp.eq.s32.totalorder %v352, 2
    %vm1152 = vcmp.eq.s32.totalorder %v353, 2
    %vm1153 = vcmp.eq.s32.totalorder %v354, 2
    %vm1154 = vcmp.eq.s32.totalorder %v355, 2
    %vm1155 = vcmp.eq.s32.totalorder %v356, 2
    %vm1156 = vcmp.eq.s32.totalorder %v357, 2
    %vm1157 = vcmp.eq.s32.totalorder %v358, 2
    %vm1158 = vcmp.eq.s32.totalorder %v359, 2
    %vm1159 = vcmp.eq.s32.totalorder %v360, 2
    %vm1160 = vcmp.eq.s32.totalorder %v361, 2
    %vm1161 = vcmp.eq.s32.totalorder %v362, 2
    %vm1162 = vcmp.eq.s32.totalorder %v363, 2
    %1163 = vrot.lane.b32.xlu0 %v987, 126
    %v1164 = vpop.permute.xlu0 %1163
    %1165 = vrot.lane.b32.xlu0 %v988, 126
    %v1166 = vpop.permute.xlu0 %1165
    %1167 = vrot.lane.b32.xlu0 %v989, 126
    %v1168 = vpop.permute.xlu0 %1167
    %1169 = vrot.lane.b32.xlu0 %v990, 126
    %v1170 = vpop.permute.xlu0 %1169
    %1171 = vrot.lane.b32.xlu0 %v991, 126
    %v1172 = vpop.permute.xlu0 %1171
    %1173 = vrot.lane.b32.xlu0 %v992, 126
    %v1174 = vpop.permute.xlu0 %1173
    %1175 = vrot.lane.b32.xlu0 %v993, 126
    %v1176 = vpop.permute.xlu0 %1175
    %1177 = vrot.lane.b32.xlu0 %v994, 126
    %v1178 = vpop.permute.xlu0 %1177
    %1179 = vrot.lane.b32.xlu0 %v995, 126
    %v1180 = vpop.permute.xlu0 %1179
    %1181 = vrot.lane.b32.xlu0 %v996, 126
    %v1182 = vpop.permute.xlu0 %1181
    %1183 = vrot.lane.b32.xlu0 %v997, 126
    %v1184 = vpop.permute.xlu0 %1183
    %1185 = vrot.lane.b32.xlu0 %v998, 126
    %v1186 = vpop.permute.xlu0 %1185
    %1187 = vrot.lane.b32.xlu0 %v999, 126
    %v1188 = vpop.permute.xlu0 %1187
    %1189 = vrot.lane.b32.xlu0 %v1000, 126
    %v1190 = vpop.permute.xlu0 %1189
    %1191 = vrot.lane.b32.xlu0 %v1001, 126
    %v1192 = vpop.permute.xlu0 %1191
    %1193 = vrot.lane.b32.xlu0 %v1002, 126
    %v1194 = vpop.permute.xlu0 %1193
    %v1211 = vsel %vm1147, %v1164, 0.0
    %v1212 = vsel %vm1148, %v1166, 0.0
    %v1213 = vsel %vm1149, %v1168, 0.0
    %v1214 = vsel %vm1150, %v1170, 0.0
    %v1215 = vsel %vm1151, %v1172, 0.0
    %v1216 = vsel %vm1152, %v1174, 0.0
    %v1217 = vsel %vm1153, %v1176, 0.0
    %v1218 = vsel %vm1154, %v1178, 0.0
    %v1219 = vsel %vm1155, %v1180, 0.0
    %v1220 = vsel %vm1156, %v1182, 0.0
    %v1221 = vsel %vm1157, %v1184, 0.0
    %v1222 = vsel %vm1158, %v1186, 0.0
    %v1223 = vsel %vm1159, %v1188, 0.0
    %v1224 = vsel %vm1160, %v1190, 0.0
    %v1225 = vsel %vm1161, %v1192, 0.0
    %v1226 = vsel %vm1162, %v1194, 0.0
    %v1227 = vadd.f32 %v1131, %v1211
    %v1228 = vadd.f32 %v1132, %v1212
    %v1229 = vadd.f32 %v1133, %v1213
    %v1230 = vadd.f32 %v1134, %v1214
    %v1231 = vadd.f32 %v1135, %v1215
    %v1232 = vadd.f32 %v1136, %v1216
    %v1233 = vadd.f32 %v1137, %v1217
    %v1234 = vadd.f32 %v1138, %v1218
    %v1235 = vadd.f32 %v1139, %v1219
    %v1236 = vadd.f32 %v1140, %v1220
    %v1237 = vadd.f32 %v1141, %v1221
    %v1238 = vadd.f32 %v1142, %v1222
    %v1239 = vadd.f32 %v1143, %v1223
    %v1240 = vadd.f32 %v1144, %v1224
    %v1241 = vadd.f32 %v1145, %v1225
    %v1242 = vadd.f32 %v1146, %v1226
    %vm1243 = vcmp.eq.s32.totalorder %v348, 3
    %vm1244 = vcmp.eq.s32.totalorder %v349, 3
    %vm1245 = vcmp.eq.s32.totalorder %v350, 3
    %vm1246 = vcmp.eq.s32.totalorder %v351, 3
    %vm1247 = vcmp.eq.s32.totalorder %v352, 3
    %vm1248 = vcmp.eq.s32.totalorder %v353, 3
    %vm1249 = vcmp.eq.s32.totalorder %v354, 3
    %vm1250 = vcmp.eq.s32.totalorder %v355, 3
    %vm1251 = vcmp.eq.s32.totalorder %v356, 3
    %vm1252 = vcmp.eq.s32.totalorder %v357, 3
    %vm1253 = vcmp.eq.s32.totalorder %v358, 3
    %vm1254 = vcmp.eq.s32.totalorder %v359, 3
    %vm1255 = vcmp.eq.s32.totalorder %v360, 3
    %vm1256 = vcmp.eq.s32.totalorder %v361, 3
    %vm1257 = vcmp.eq.s32.totalorder %v362, 3
    %vm1258 = vcmp.eq.s32.totalorder %v363, 3
    %1259 = vrot.lane.b32.xlu0 %v987, 125
    %v1260 = vpop.permute.xlu0 %1259
    %1261 = vrot.lane.b32.xlu0 %v988, 125
    %v1262 = vpop.permute.xlu0 %1261
    %1263 = vrot.lane.b32.xlu0 %v989, 125
    %v1264 = vpop.permute.xlu0 %1263
    %1265 = vrot.lane.b32.xlu0 %v990, 125
    %v1266 = vpop.permute.xlu0 %1265
    %1267 = vrot.lane.b32.xlu0 %v991, 125
    %v1268 = vpop.permute.xlu0 %1267
    %1269 = vrot.lane.b32.xlu0 %v992, 125
    %v1270 = vpop.permute.xlu0 %1269
    %1271 = vrot.lane.b32.xlu0 %v993, 125
    %v1272 = vpop.permute.xlu0 %1271
    %1273 = vrot.lane.b32.xlu0 %v994, 125
    %v1274 = vpop.permute.xlu0 %1273
    %1275 = vrot.lane.b32.xlu0 %v995, 125
    %v1276 = vpop.permute.xlu0 %1275
    %1277 = vrot.lane.b32.xlu0 %v996, 125
    %v1278 = vpop.permute.xlu0 %1277
    %1279 = vrot.lane.b32.xlu0 %v997, 125
    %v1280 = vpop.permute.xlu0 %1279
    %1281 = vrot.lane.b32.xlu0 %v998, 125
    %v1282 = vpop.permute.xlu0 %1281
    %1283 = vrot.lane.b32.xlu0 %v999, 125
    %v1284 = vpop.permute.xlu0 %1283
    %1285 = vrot.lane.b32.xlu0 %v1000, 125
    %v1286 = vpop.permute.xlu0 %1285
    %1287 = vrot.lane.b32.xlu0 %v1001, 125
    %v1288 = vpop.permute.xlu0 %1287
    %1289 = vrot.lane.b32.xlu0 %v1002, 125
    %v1290 = vpop.permute.xlu0 %1289
    %v1307 = vsel %vm1243, %v1260, 0.0
    %v1308 = vsel %vm1244, %v1262, 0.0
    %v1309 = vsel %vm1245, %v1264, 0.0
    %v1310 = vsel %vm1246, %v1266, 0.0
    %v1311 = vsel %vm1247, %v1268, 0.0
    %v1312 = vsel %vm1248, %v1270, 0.0
    %v1313 = vsel %vm1249, %v1272, 0.0
    %v1314 = vsel %vm1250, %v1274, 0.0
    %v1315 = vsel %vm1251, %v1276, 0.0
    %v1316 = vsel %vm1252, %v1278, 0.0
    %v1317 = vsel %vm1253, %v1280, 0.0
    %v1318 = vsel %vm1254, %v1282, 0.0
    %v1319 = vsel %vm1255, %v1284, 0.0
    %v1320 = vsel %vm1256, %v1286, 0.0
    %v1321 = vsel %vm1257, %v1288, 0.0
    %v1322 = vsel %vm1258, %v1290, 0.0
    %v1323 = vadd.f32 %v1227, %v1307
    %v1324 = vadd.f32 %v1228, %v1308
    %v1325 = vadd.f32 %v1229, %v1309
    %v1326 = vadd.f32 %v1230, %v1310
    %v1327 = vadd.f32 %v1231, %v1311
    %v1328 = vadd.f32 %v1232, %v1312
    %v1329 = vadd.f32 %v1233, %v1313
    %v1330 = vadd.f32 %v1234, %v1314
    %v1331 = vadd.f32 %v1235, %v1315
    %v1332 = vadd.f32 %v1236, %v1316
    %v1333 = vadd.f32 %v1237, %v1317
    %v1334 = vadd.f32 %v1238, %v1318
    %v1335 = vadd.f32 %v1239, %v1319
    %v1336 = vadd.f32 %v1240, %v1320
    %v1337 = vadd.f32 %v1241, %v1321
    %v1338 = vadd.f32 %v1242, %v1322
    %vm1339 = vcmp.gt.f32.partialorder %v1323, 0.0
    %vm1340 = vcmp.gt.f32.partialorder %v1324, 0.0
    %vm1341 = vcmp.gt.f32.partialorder %v1325, 0.0
    %vm1342 = vcmp.gt.f32.partialorder %v1326, 0.0
    %vm1343 = vcmp.gt.f32.partialorder %v1327, 0.0
    %vm1344 = vcmp.gt.f32.partialorder %v1328, 0.0
    %vm1345 = vcmp.gt.f32.partialorder %v1329, 0.0
    %vm1346 = vcmp.gt.f32.partialorder %v1330, 0.0
    %vm1347 = vcmp.gt.f32.partialorder %v1331, 0.0
    %vm1348 = vcmp.gt.f32.partialorder %v1332, 0.0
    %vm1349 = vcmp.gt.f32.partialorder %v1333, 0.0
    %vm1350 = vcmp.gt.f32.partialorder %v1334, 0.0
    %vm1351 = vcmp.gt.f32.partialorder %v1335, 0.0
    %vm1352 = vcmp.gt.f32.partialorder %v1336, 0.0
    %vm1353 = vcmp.gt.f32.partialorder %v1337, 0.0
    %vm1354 = vcmp.gt.f32.partialorder %v1338, 0.0
    %v1355 = vmul.f32 %v1323, 0.2
    %v1356 = vmul.f32 %v1324, 0.2
    %v1357 = vmul.f32 %v1325, 0.2
    %v1358 = vmul.f32 %v1326, 0.2
    %v1359 = vmul.f32 %v1327, 0.2
    %v1360 = vmul.f32 %v1328, 0.2
    %v1361 = vmul.f32 %v1329, 0.2
    %v1362 = vmul.f32 %v1330, 0.2
    %v1363 = vmul.f32 %v1331, 0.2
    %v1364 = vmul.f32 %v1332, 0.2
    %v1365 = vmul.f32 %v1333, 0.2
    %v1366 = vmul.f32 %v1334, 0.2
    %v1367 = vmul.f32 %v1335, 0.2
    %v1368 = vmul.f32 %v1336, 0.2
    %v1369 = vmul.f32 %v1337, 0.2
    %v1370 = vmul.f32 %v1338, 0.2
    %v1371 = vsel %vm1339, %v1323, %v1355
    %v1372 = vsel %vm1340, %v1324, %v1356
    %v1373 = vsel %vm1341, %v1325, %v1357
    %v1374 = vsel %vm1342, %v1326, %v1358
    %v1375 = vsel %vm1343, %v1327, %v1359
    %v1376 = vsel %vm1344, %v1328, %v1360
    %v1377 = vsel %vm1345, %v1329, %v1361
    %v1378 = vsel %vm1346, %v1330, %v1362
    %v1379 = vsel %vm1347, %v1331, %v1363
    %v1380 = vsel %vm1348, %v1332, %v1364
    %v1381 = vsel %vm1349, %v1333, %v1365
    %v1382 = vsel %vm1350, %v1334, %v1366
    %v1383 = vsel %vm1351, %v1335, %v1367
    %v1384 = vsel %vm1352, %v1336, %v1368
    %v1385 = vsel %vm1353, %v1337, %v1369
    %v1386 = vsel %vm1354, %v1338, %v1370
    %v1387 = vsel %vm398, %v1371, -1e+30
    %v1388 = vsel %vm399, %v1372, -1e+30
    %v1389 = vsel %vm400, %v1373, -1e+30
    %v1390 = vsel %vm401, %v1374, -1e+30
    %v1391 = vsel %vm402, %v1375, -1e+30
    %v1392 = vsel %vm403, %v1376, -1e+30
    %v1393 = vsel %vm404, %v1377, -1e+30
    %v1394 = vsel %vm405, %v1378, -1e+30
    %v1395 = vsel %vm406, %v1379, -1e+30
    %v1396 = vsel %vm407, %v1380, -1e+30
    %v1397 = vsel %vm408, %v1381, -1e+30
    %v1398 = vsel %vm409, %v1382, -1e+30
    %v1399 = vsel %vm410, %v1383, -1e+30
    %v1400 = vsel %vm411, %v1384, -1e+30
    %v1401 = vsel %vm412, %v1385, -1e+30
    %v1402 = vsel %vm413, %v1386, -1e+30
    %vm1403 = vcmask 7168
    %1404 = vst.msk [vmem:[#allocation6] sm:$0xff] %vm1403, %v1387
    %1405 = vst.msk [vmem:[#allocation6 + $0x8] sm:$0xff] %vm1403, %v1388
    %1406 = vst.msk [vmem:[#allocation6 + $0x10] sm:$0xff] %vm1403, %v1389
    %1407 = vst.msk [vmem:[#allocation6 + $0x18] sm:$0xff] %vm1403, %v1390
    %1408 = vst.msk [vmem:[#allocation6 + $0x20] sm:$0xff] %vm1403, %v1391
    %1409 = vst.msk [vmem:[#allocation6 + $0x28] sm:$0xff] %vm1403, %v1392
    %1410 = vst.msk [vmem:[#allocation6 + $0x30] sm:$0xff] %vm1403, %v1393
    %1411 = vst.msk [vmem:[#allocation6 + $0x38] sm:$0xff] %vm1403, %v1394
    %1412 = vst.msk [vmem:[#allocation6 + $0x40] sm:$0xff] %vm1403, %v1395
    %1413 = vst.msk [vmem:[#allocation6 + $0x48] sm:$0xff] %vm1403, %v1396
    %1414 = vst.msk [vmem:[#allocation6 + $0x50] sm:$0xff] %vm1403, %v1397
    %1415 = vst.msk [vmem:[#allocation6 + $0x58] sm:$0xff] %vm1403, %v1398
    %1416 = vst.msk [vmem:[#allocation6 + $0x60] sm:$0xff] %vm1403, %v1399
    %1417 = vst.msk [vmem:[#allocation6 + $0x68] sm:$0xff] %vm1403, %v1400
    %1418 = vst.msk [vmem:[#allocation6 + $0x70] sm:$0xff] %vm1403, %v1401
    %1419 = vst.msk [vmem:[#allocation6 + $0x78] sm:$0xff] %vm1403, %v1402
    %v1420 = vld [vmem:[#allocation4] sm:$0x1]
    %1422 = vset.pattern.permute.xlu0 0
    %1423 = vperm.xlu0 %1422, %v1387
    %v1424 = vpop.permute.xlu0 %1423
    %1427 = vset.pattern.permute.xlu0 0
    %1428 = vperm.xlu0 %1427, %v1388
    %v1429 = vpop.permute.xlu0 %1428
    %1432 = vset.pattern.permute.xlu0 0
    %1433 = vperm.xlu0 %1432, %v1389
    %v1434 = vpop.permute.xlu0 %1433
    %1437 = vset.pattern.permute.xlu0 0
    %1438 = vperm.xlu0 %1437, %v1390
    %v1439 = vpop.permute.xlu0 %1438
    %1442 = vset.pattern.permute.xlu0 0
    %1443 = vperm.xlu0 %1442, %v1391
    %v1444 = vpop.permute.xlu0 %1443
    %1447 = vset.pattern.permute.xlu0 0
    %1448 = vperm.xlu0 %1447, %v1392
    %v1449 = vpop.permute.xlu0 %1448
    %1452 = vset.pattern.permute.xlu0 0
    %1453 = vperm.xlu0 %1452, %v1393
    %v1454 = vpop.permute.xlu0 %1453
    %1457 = vset.pattern.permute.xlu0 0
    %1458 = vperm.xlu0 %1457, %v1394
    %v1459 = vpop.permute.xlu0 %1458
    %1462 = vset.pattern.permute.xlu0 0
    %1463 = vperm.xlu0 %1462, %v1395
    %v1464 = vpop.permute.xlu0 %1463
    %1467 = vset.pattern.permute.xlu0 0
    %1468 = vperm.xlu0 %1467, %v1396
    %v1469 = vpop.permute.xlu0 %1468
    %1472 = vset.pattern.permute.xlu0 0
    %1473 = vperm.xlu0 %1472, %v1397
    %v1474 = vpop.permute.xlu0 %1473
    %1477 = vset.pattern.permute.xlu0 0
    %1478 = vperm.xlu0 %1477, %v1398
    %v1479 = vpop.permute.xlu0 %1478
    %1482 = vset.pattern.permute.xlu0 0
    %1483 = vperm.xlu0 %1482, %v1399
    %v1484 = vpop.permute.xlu0 %1483
    %1487 = vset.pattern.permute.xlu0 0
    %1488 = vperm.xlu0 %1487, %v1400
    %v1489 = vpop.permute.xlu0 %1488
    %1492 = vset.pattern.permute.xlu0 0
    %1493 = vperm.xlu0 %1492, %v1401
    %v1494 = vpop.permute.xlu0 %1493
    %1497 = vset.pattern.permute.xlu0 0
    %1498 = vperm.xlu0 %1497, %v1402
    %v1499 = vpop.permute.xlu0 %1498
    %v1501 = vsel %vm528, %v1424, -1e+30
    %v1502 = vsel %vm529, %v1429, -1e+30
    %v1503 = vsel %vm530, %v1434, -1e+30
    %v1504 = vsel %vm531, %v1439, -1e+30
    %v1505 = vsel %vm532, %v1444, -1e+30
    %v1506 = vsel %vm533, %v1449, -1e+30
    %v1507 = vsel %vm534, %v1454, -1e+30
    %v1508 = vsel %vm535, %v1459, -1e+30
    %v1509 = vsel %vm536, %v1464, -1e+30
    %v1510 = vsel %vm537, %v1469, -1e+30
    %v1511 = vsel %vm538, %v1474, -1e+30
    %v1512 = vsel %vm539, %v1479, -1e+30
    %v1513 = vsel %vm540, %v1484, -1e+30
    %v1514 = vsel %vm541, %v1489, -1e+30
    %v1515 = vsel %vm542, %v1494, -1e+30
    %v1516 = vsel %vm543, %v1499, -1e+30
    %v1517 = vsel %vm584, %v1501, -inf
    %v1518 = vsel %vm584, %v1502, -inf
    %v1519 = vsel %vm584, %v1503, -inf
    %v1520 = vsel %vm584, %v1504, -inf
    %v1521 = vsel %vm584, %v1505, -inf
    %v1522 = vmax.f32 %v1517, %v1521
    %v1523 = vsel %vm584, %v1506, -inf
    %v1524 = vmax.f32 %v1518, %v1523
    %v1525 = vsel %vm584, %v1507, -inf
    %v1526 = vmax.f32 %v1519, %v1525
    %v1527 = vsel %vm584, %v1508, -inf
    %v1528 = vmax.f32 %v1520, %v1527
    %v1529 = vsel %vm584, %v1509, -inf
    %v1530 = vmax.f32 %v1522, %v1529
    %v1531 = vsel %vm584, %v1510, -inf
    %v1532 = vmax.f32 %v1524, %v1531
    %v1533 = vsel %vm584, %v1511, -inf
    %v1534 = vmax.f32 %v1526, %v1533
    %v1535 = vsel %vm584, %v1512, -inf
    %v1536 = vmax.f32 %v1528, %v1535
    %v1537 = vsel %vm584, %v1513, -inf
    %v1538 = vmax.f32 %v1530, %v1537
    %v1539 = vsel %vm584, %v1514, -inf
    %v1540 = vmax.f32 %v1532, %v1539
    %v1541 = vsel %vm584, %v1515, -inf
    %v1542 = vmax.f32 %v1534, %v1541
    %v1543 = vsel %vm584, %v1516, -inf
    %v1544 = vmax.f32 %v1536, %v1543
    %v1545 = vmax.f32 %v1538, %v1540
    %v1546 = vmax.f32 %v1542, %v1544
    %v1547 = vmax.f32 %v1545, %v1546
    %v1548 = vrot.slane %v1547, 4
    %v1549 = vmax.f32 %v1547, %v1548
    %v1550 = vrot.slane %v1549, 2
    %v1551 = vmax.f32 %v1549, %v1550
    %v1552 = vrot.slane %v1551, 1
    %v1553 = vmax.f32 %v1551, %v1552
    %v1554 = vmax.f32 %v1420, %v1553
    %v1556 = vlaneseq
    %v1557 = vshrl.u32 %v1556, 7
    %v1558 = vsub.s32 0, %v1557
    %v1559 = vrot.slane %v1554, %v1558
    %v1561 = vsel %vm528, %v1559, 0.0
    %v1562 = vsel %vm529, %v1559, 0.0
    %v1563 = vsel %vm530, %v1559, 0.0
    %v1564 = vsel %vm531, %v1559, 0.0
    %v1565 = vsel %vm532, %v1559, 0.0
    %v1566 = vsel %vm533, %v1559, 0.0
    %v1567 = vsel %vm534, %v1559, 0.0
    %v1568 = vsel %vm535, %v1559, 0.0
    %v1569 = vsel %vm536, %v1559, 0.0
    %v1570 = vsel %vm537, %v1559, 0.0
    %v1571 = vsel %vm538, %v1559, 0.0
    %v1572 = vsel %vm539, %v1559, 0.0
    %v1573 = vsel %vm540, %v1559, 0.0
    %v1574 = vsel %vm541, %v1559, 0.0
    %v1575 = vsel %vm542, %v1559, 0.0
    %v1576 = vsel %vm543, %v1559, 0.0
    %v1577 = vsel %vm584, %v1561, 0.0
    %1578 = vadd.xlane.f32.xlu0 %v1577
    %v1579 = vpop.xlane.xlu0 %1578
    %v1580 = vsel %vm584, %v1562, 0.0
    %1581 = vadd.xlane.f32.xlu0 %v1580
    %v1582 = vpop.xlane.xlu0 %1581
    %v1583 = vsel %vm584, %v1563, 0.0
    %1584 = vadd.xlane.f32.xlu0 %v1583
    %v1585 = vpop.xlane.xlu0 %1584
    %v1586 = vsel %vm584, %v1564, 0.0
    %1587 = vadd.xlane.f32.xlu0 %v1586
    %v1588 = vpop.xlane.xlu0 %1587
    %v1589 = vsel %vm584, %v1565, 0.0
    %1590 = vadd.xlane.f32.xlu0 %v1589
    %v1591 = vpop.xlane.xlu0 %1590
    %v1592 = vsel %vm584, %v1566, 0.0
    %1593 = vadd.xlane.f32.xlu0 %v1592
    %v1594 = vpop.xlane.xlu0 %1593
    %v1595 = vsel %vm584, %v1567, 0.0
    %1596 = vadd.xlane.f32.xlu0 %v1595
    %v1597 = vpop.xlane.xlu0 %1596
    %v1598 = vsel %vm584, %v1568, 0.0
    %1599 = vadd.xlane.f32.xlu0 %v1598
    %v1600 = vpop.xlane.xlu0 %1599
    %v1601 = vsel %vm584, %v1569, 0.0
    %1602 = vadd.xlane.f32.xlu0 %v1601
    %v1603 = vpop.xlane.xlu0 %1602
    %v1604 = vsel %vm584, %v1570, 0.0
    %1605 = vadd.xlane.f32.xlu0 %v1604
    %v1606 = vpop.xlane.xlu0 %1605
    %v1607 = vsel %vm584, %v1571, 0.0
    %1608 = vadd.xlane.f32.xlu0 %v1607
    %v1609 = vpop.xlane.xlu0 %1608
    %v1610 = vsel %vm584, %v1572, 0.0
    %1611 = vadd.xlane.f32.xlu0 %v1610
    %v1612 = vpop.xlane.xlu0 %1611
    %v1613 = vsel %vm584, %v1573, 0.0
    %1614 = vadd.xlane.f32.xlu0 %v1613
    %v1615 = vpop.xlane.xlu0 %1614
    %v1616 = vsel %vm584, %v1574, 0.0
    %1617 = vadd.xlane.f32.xlu0 %v1616
    %v1618 = vpop.xlane.xlu0 %1617
    %v1619 = vsel %vm584, %v1575, 0.0
    %1620 = vadd.xlane.f32.xlu0 %v1619
    %v1621 = vpop.xlane.xlu0 %1620
    %v1622 = vsel %vm584, %v1576, 0.0
    %1623 = vadd.xlane.f32.xlu0 %v1622
    %v1624 = vpop.xlane.xlu0 %1623
    %v1625 = vsub.f32 %v1387, %v1579
    %v1626 = vsub.f32 %v1388, %v1582
    %v1627 = vsub.f32 %v1389, %v1585
    %v1628 = vsub.f32 %v1390, %v1588
    %v1629 = vsub.f32 %v1391, %v1591
    %v1630 = vsub.f32 %v1392, %v1594
    %v1631 = vsub.f32 %v1393, %v1597
    %v1632 = vsub.f32 %v1394, %v1600
    %v1633 = vsub.f32 %v1395, %v1603
    %v1634 = vsub.f32 %v1396, %v1606
    %v1635 = vsub.f32 %v1397, %v1609
    %v1636 = vsub.f32 %v1398, %v1612
    %v1637 = vsub.f32 %v1399, %v1615
    %v1638 = vsub.f32 %v1400, %v1618
    %v1639 = vsub.f32 %v1401, %v1621
    %v1640 = vsub.f32 %v1402, %v1624
    %v1641 = vmul.f32 %v1625, 1.442695
    %v1642 = vpow.pop %v1641
    %v1643 = vmul.f32 %v1626, 1.442695
    %v1644 = vpow.pop %v1643
    %v1645 = vmul.f32 %v1627, 1.442695
    %v1646 = vpow.pop %v1645
    %v1647 = vmul.f32 %v1628, 1.442695
    %v1648 = vpow.pop %v1647
    %v1649 = vmul.f32 %v1629, 1.442695
    %v1650 = vpow.pop %v1649
    %v1651 = vmul.f32 %v1630, 1.442695
    %v1652 = vpow.pop %v1651
    %v1653 = vmul.f32 %v1631, 1.442695
    %v1654 = vpow.pop %v1653
    %v1655 = vmul.f32 %v1632, 1.442695
    %v1656 = vpow.pop %v1655
    %v1657 = vmul.f32 %v1633, 1.442695
    %v1658 = vpow.pop %v1657
    %v1659 = vmul.f32 %v1634, 1.442695
    %v1660 = vpow.pop %v1659
    %v1661 = vmul.f32 %v1635, 1.442695
    %v1662 = vpow.pop %v1661
    %v1663 = vmul.f32 %v1636, 1.442695
    %v1664 = vpow.pop %v1663
    %v1665 = vmul.f32 %v1637, 1.442695
    %v1666 = vpow.pop %v1665
    %v1667 = vmul.f32 %v1638, 1.442695
    %v1668 = vpow.pop %v1667
    %v1669 = vmul.f32 %v1639, 1.442695
    %v1670 = vpow.pop %v1669
    %v1671 = vmul.f32 %v1640, 1.442695
    %v1672 = vpow.pop %v1671
    %v1673 = vsel %vm398, 1.0, 0.0
    %v1674 = vsel %vm399, 1.0, 0.0
    %v1675 = vsel %vm400, 1.0, 0.0
    %v1676 = vsel %vm401, 1.0, 0.0
    %v1677 = vsel %vm402, 1.0, 0.0
    %v1678 = vsel %vm403, 1.0, 0.0
    %v1679 = vsel %vm404, 1.0, 0.0
    %v1680 = vsel %vm405, 1.0, 0.0
    %v1681 = vsel %vm406, 1.0, 0.0
    %v1682 = vsel %vm407, 1.0, 0.0
    %v1683 = vsel %vm408, 1.0, 0.0
    %v1684 = vsel %vm409, 1.0, 0.0
    %v1685 = vsel %vm410, 1.0, 0.0
    %v1686 = vsel %vm411, 1.0, 0.0
    %v1687 = vsel %vm412, 1.0, 0.0
    %v1688 = vsel %vm413, 1.0, 0.0
    %v1689 = vmul.f32 %v1642, %v1673
    %v1690 = vmul.f32 %v1644, %v1674
    %v1691 = vmul.f32 %v1646, %v1675
    %v1692 = vmul.f32 %v1648, %v1676
    %v1693 = vmul.f32 %v1650, %v1677
    %v1694 = vmul.f32 %v1652, %v1678
    %v1695 = vmul.f32 %v1654, %v1679
    %v1696 = vmul.f32 %v1656, %v1680
    %v1697 = vmul.f32 %v1658, %v1681
    %v1698 = vmul.f32 %v1660, %v1682
    %v1699 = vmul.f32 %v1662, %v1683
    %v1700 = vmul.f32 %v1664, %v1684
    %v1701 = vmul.f32 %v1666, %v1685
    %v1702 = vmul.f32 %v1668, %v1686
    %v1703 = vmul.f32 %v1670, %v1687
    %v1704 = vmul.f32 %v1672, %v1688
    %v1705 = vld [vmem:[#allocation5] sm:$0x1]
    %v1706 = vsub.f32 %v1420, %v1554
    %v1707 = vmul.f32 %v1706, 1.442695
    %v1708 = vpow.pop %v1707
    %v1709 = vmul.f32 %v1705, %v1708
    %1711 = vset.pattern.permute.xlu0 0
    %1712 = vperm.xlu0 %1711, %v1689
    %v1713 = vpop.permute.xlu0 %1712
    %1716 = vset.pattern.permute.xlu0 0
    %1717 = vperm.xlu0 %1716, %v1690
    %v1718 = vpop.permute.xlu0 %1717
    %1721 = vset.pattern.permute.xlu0 0
    %1722 = vperm.xlu0 %1721, %v1691
    %v1723 = vpop.permute.xlu0 %1722
    %1726 = vset.pattern.permute.xlu0 0
    %1727 = vperm.xlu0 %1726, %v1692
    %v1728 = vpop.permute.xlu0 %1727
    %1731 = vset.pattern.permute.xlu0 0
    %1732 = vperm.xlu0 %1731, %v1693
    %v1733 = vpop.permute.xlu0 %1732
    %1736 = vset.pattern.permute.xlu0 0
    %1737 = vperm.xlu0 %1736, %v1694
    %v1738 = vpop.permute.xlu0 %1737
    %1741 = vset.pattern.permute.xlu0 0
    %1742 = vperm.xlu0 %1741, %v1695
    %v1743 = vpop.permute.xlu0 %1742
    %1746 = vset.pattern.permute.xlu0 0
    %1747 = vperm.xlu0 %1746, %v1696
    %v1748 = vpop.permute.xlu0 %1747
    %1751 = vset.pattern.permute.xlu0 0
    %1752 = vperm.xlu0 %1751, %v1697
    %v1753 = vpop.permute.xlu0 %1752
    %1756 = vset.pattern.permute.xlu0 0
    %1757 = vperm.xlu0 %1756, %v1698
    %v1758 = vpop.permute.xlu0 %1757
    %1761 = vset.pattern.permute.xlu0 0
    %1762 = vperm.xlu0 %1761, %v1699
    %v1763 = vpop.permute.xlu0 %1762
    %1766 = vset.pattern.permute.xlu0 0
    %1767 = vperm.xlu0 %1766, %v1700
    %v1768 = vpop.permute.xlu0 %1767
    %1771 = vset.pattern.permute.xlu0 0
    %1772 = vperm.xlu0 %1771, %v1701
    %v1773 = vpop.permute.xlu0 %1772
    %1776 = vset.pattern.permute.xlu0 0
    %1777 = vperm.xlu0 %1776, %v1702
    %v1778 = vpop.permute.xlu0 %1777
    %1781 = vset.pattern.permute.xlu0 0
    %1782 = vperm.xlu0 %1781, %v1703
    %v1783 = vpop.permute.xlu0 %1782
    %1786 = vset.pattern.permute.xlu0 0
    %1787 = vperm.xlu0 %1786, %v1704
    %v1788 = vpop.permute.xlu0 %1787
    %v1790 = vsel %vm528, %v1713, 0.0
    %v1791 = vsel %vm529, %v1718, 0.0
    %v1792 = vsel %vm530, %v1723, 0.0
    %v1793 = vsel %vm531, %v1728, 0.0
    %v1794 = vsel %vm532, %v1733, 0.0
    %v1795 = vsel %vm533, %v1738, 0.0
    %v1796 = vsel %vm534, %v1743, 0.0
    %v1797 = vsel %vm535, %v1748, 0.0
    %v1798 = vsel %vm536, %v1753, 0.0
    %v1799 = vsel %vm537, %v1758, 0.0
    %v1800 = vsel %vm538, %v1763, 0.0
    %v1801 = vsel %vm539, %v1768, 0.0
    %v1802 = vsel %vm540, %v1773, 0.0
    %v1803 = vsel %vm541, %v1778, 0.0
    %v1804 = vsel %vm542, %v1783, 0.0
    %v1805 = vsel %vm543, %v1788, 0.0
    %v1806 = vsel %vm584, %v1790, 0.0
    %v1807 = vsel %vm584, %v1791, 0.0
    %v1808 = vadd.f32 %v1806, %v1807
    %v1809 = vsel %vm584, %v1792, 0.0
    %v1810 = vadd.f32 %v1808, %v1809
    %v1811 = vsel %vm584, %v1793, 0.0
    %v1812 = vadd.f32 %v1810, %v1811
    %v1813 = vsel %vm584, %v1794, 0.0
    %v1814 = vadd.f32 %v1812, %v1813
    %v1815 = vsel %vm584, %v1795, 0.0
    %v1816 = vadd.f32 %v1814, %v1815
    %v1817 = vsel %vm584, %v1796, 0.0
    %v1818 = vadd.f32 %v1816, %v1817
    %v1819 = vsel %vm584, %v1797, 0.0
    %v1820 = vadd.f32 %v1818, %v1819
    %v1821 = vsel %vm584, %v1798, 0.0
    %v1822 = vadd.f32 %v1820, %v1821
    %v1823 = vsel %vm584, %v1799, 0.0
    %v1824 = vadd.f32 %v1822, %v1823
    %v1825 = vsel %vm584, %v1800, 0.0
    %v1826 = vadd.f32 %v1824, %v1825
    %v1827 = vsel %vm584, %v1801, 0.0
    %v1828 = vadd.f32 %v1826, %v1827
    %v1829 = vsel %vm584, %v1802, 0.0
    %v1830 = vadd.f32 %v1828, %v1829
    %v1831 = vsel %vm584, %v1803, 0.0
    %v1832 = vadd.f32 %v1830, %v1831
    %v1833 = vsel %vm584, %v1804, 0.0
    %v1834 = vadd.f32 %v1832, %v1833
    %v1835 = vsel %vm584, %v1805, 0.0
    %v1836 = vadd.f32 %v1834, %v1835
    %v1837 = vrot.slane %v1836, 4
    %v1838 = vadd.f32 %v1836, %v1837
    %v1839 = vrot.slane %v1838, 2
    %v1840 = vadd.f32 %v1838, %v1839
    %v1841 = vrot.slane %v1840, 1
    %v1842 = vadd.f32 %v1840, %v1841
    %v1843 = vadd.f32 %v1709, %v1842
    %1844 = vst.msk [vmem:[#allocation5] sm:$0x1] %vm304, %v1843
    %1845 = vst.msk [vmem:[#allocation4] sm:$0x1] %vm304, %v1554
    %v1846 = vld [vmem:[%s0] sm:$0xff]
    %v1847 = vld [vmem:[%s0 + $0x8] sm:$0xff]
    %v1848 = vld [vmem:[%s0 + $0x10] sm:$0xff]
    %v1849 = vld [vmem:[%s0 + $0x18] sm:$0xff]
    %v1850 = vld [vmem:[%s0 + $0x20] sm:$0xff]
    %v1851 = vld [vmem:[%s0 + $0x28] sm:$0xff]
    %v1852 = vld [vmem:[%s0 + $0x30] sm:$0xff]
    %v1853 = vld [vmem:[%s0 + $0x38] sm:$0xff]
    %v1854 = vld [vmem:[%s0 + $0x40] sm:$0xff]
    %v1855 = vld [vmem:[%s0 + $0x48] sm:$0xff]
    %v1856 = vld [vmem:[%s0 + $0x50] sm:$0xff]
    %v1857 = vld [vmem:[%s0 + $0x58] sm:$0xff]
    %v1858 = vld [vmem:[%s0 + $0x60] sm:$0xff]
    %v1859 = vld [vmem:[%s0 + $0x68] sm:$0xff]
    %v1860 = vld [vmem:[%s0 + $0x70] sm:$0xff]
    %v1861 = vld [vmem:[%s0 + $0x78] sm:$0xff]
    %v1862 = vld [vmem:[%s1] sm:$0xff]
    %v1863 = vld [vmem:[%s1 + $0x8] sm:$0xff]
    %v1864 = vld [vmem:[%s1 + $0x10] sm:$0xff]
    %v1865 = vld [vmem:[%s1 + $0x18] sm:$0xff]
    %v1866 = vld [vmem:[%s1 + $0x20] sm:$0xff]
    %v1867 = vld [vmem:[%s1 + $0x28] sm:$0xff]
    %v1868 = vld [vmem:[%s1 + $0x30] sm:$0xff]
    %v1869 = vld [vmem:[%s1 + $0x38] sm:$0xff]
    %v1870 = vld [vmem:[%s1 + $0x40] sm:$0xff]
    %v1871 = vld [vmem:[%s1 + $0x48] sm:$0xff]
    %v1872 = vld [vmem:[%s1 + $0x50] sm:$0xff]
    %v1873 = vld [vmem:[%s1 + $0x58] sm:$0xff]
    %v1874 = vld [vmem:[%s1 + $0x60] sm:$0xff]
    %v1875 = vld [vmem:[%s1 + $0x68] sm:$0xff]
    %v1876 = vld [vmem:[%s1 + $0x70] sm:$0xff]
    %v1877 = vld [vmem:[%s1 + $0x78] sm:$0xff]
    %v1878 = vld [vmem:[%s2] sm:$0xff]
    %v1879 = vld [vmem:[%s2 + $0x8] sm:$0xff]
    %v1880 = vld [vmem:[%s2 + $0x10] sm:$0xff]
    %v1881 = vld [vmem:[%s2 + $0x18] sm:$0xff]
    %v1882 = vld [vmem:[%s2 + $0x20] sm:$0xff]
    %v1883 = vld [vmem:[%s2 + $0x28] sm:$0xff]
    %v1884 = vld [vmem:[%s2 + $0x30] sm:$0xff]
    %v1885 = vld [vmem:[%s2 + $0x38] sm:$0xff]
    %v1886 = vld [vmem:[%s2 + $0x40] sm:$0xff]
    %v1887 = vld [vmem:[%s2 + $0x48] sm:$0xff]
    %v1888 = vld [vmem:[%s2 + $0x50] sm:$0xff]
    %v1889 = vld [vmem:[%s2 + $0x58] sm:$0xff]
    %v1890 = vld [vmem:[%s2 + $0x60] sm:$0xff]
    %v1891 = vld [vmem:[%s2 + $0x68] sm:$0xff]
    %v1892 = vld [vmem:[%s2 + $0x70] sm:$0xff]
    %v1893 = vld [vmem:[%s2 + $0x78] sm:$0xff]
    %1894 = vset.pattern.permute.xlu0 0
    %1895 = vperm.xlu0 %1894, %v1846
    %v1896 = vpop.permute.xlu0 %1895
    %1897 = vset.pattern.permute.xlu0 0
    %1898 = vperm.xlu0 %1897, %v1847
    %v1899 = vpop.permute.xlu0 %1898
    %1900 = vset.pattern.permute.xlu0 0
    %1901 = vperm.xlu0 %1900, %v1848
    %v1902 = vpop.permute.xlu0 %1901
    %1903 = vset.pattern.permute.xlu0 0
    %1904 = vperm.xlu0 %1903, %v1849
    %v1905 = vpop.permute.xlu0 %1904
    %1906 = vset.pattern.permute.xlu0 0
    %1907 = vperm.xlu0 %1906, %v1850
    %v1908 = vpop.permute.xlu0 %1907
    %1909 = vset.pattern.permute.xlu0 0
    %1910 = vperm.xlu0 %1909, %v1851
    %v1911 = vpop.permute.xlu0 %1910
    %1912 = vset.pattern.permute.xlu0 0
    %1913 = vperm.xlu0 %1912, %v1852
    %v1914 = vpop.permute.xlu0 %1913
    %1915 = vset.pattern.permute.xlu0 0
    %1916 = vperm.xlu0 %1915, %v1853
    %v1917 = vpop.permute.xlu0 %1916
    %1918 = vset.pattern.permute.xlu0 0
    %1919 = vperm.xlu0 %1918, %v1854
    %v1920 = vpop.permute.xlu0 %1919
    %1921 = vset.pattern.permute.xlu0 0
    %1922 = vperm.xlu0 %1921, %v1855
    %v1923 = vpop.permute.xlu0 %1922
    %1924 = vset.pattern.permute.xlu0 0
    %1925 = vperm.xlu0 %1924, %v1856
    %v1926 = vpop.permute.xlu0 %1925
    %1927 = vset.pattern.permute.xlu0 0
    %1928 = vperm.xlu0 %1927, %v1857
    %v1929 = vpop.permute.xlu0 %1928
    %1930 = vset.pattern.permute.xlu0 0
    %1931 = vperm.xlu0 %1930, %v1858
    %v1932 = vpop.permute.xlu0 %1931
    %1933 = vset.pattern.permute.xlu0 0
    %1934 = vperm.xlu0 %1933, %v1859
    %v1935 = vpop.permute.xlu0 %1934
    %1936 = vset.pattern.permute.xlu0 0
    %1937 = vperm.xlu0 %1936, %v1860
    %v1938 = vpop.permute.xlu0 %1937
    %1939 = vset.pattern.permute.xlu0 0
    %1940 = vperm.xlu0 %1939, %v1861
    %v1941 = vpop.permute.xlu0 %1940
    %vm1942 = vcmp.eq.s32.totalorder %v415, %v1896
    %vm1943 = vcmp.eq.s32.totalorder %v415, %v1899
    %vm1944 = vcmp.eq.s32.totalorder %v415, %v1902
    %vm1945 = vcmp.eq.s32.totalorder %v415, %v1905
    %vm1946 = vcmp.eq.s32.totalorder %v415, %v1908
    %vm1947 = vcmp.eq.s32.totalorder %v415, %v1911
    %vm1948 = vcmp.eq.s32.totalorder %v415, %v1914
    %vm1949 = vcmp.eq.s32.totalorder %v415, %v1917
    %vm1950 = vcmp.eq.s32.totalorder %v415, %v1920
    %vm1951 = vcmp.eq.s32.totalorder %v415, %v1923
    %vm1952 = vcmp.eq.s32.totalorder %v415, %v1926
    %vm1953 = vcmp.eq.s32.totalorder %v415, %v1929
    %vm1954 = vcmp.eq.s32.totalorder %v415, %v1932
    %vm1955 = vcmp.eq.s32.totalorder %v415, %v1935
    %vm1956 = vcmp.eq.s32.totalorder %v415, %v1938
    %vm1957 = vcmp.eq.s32.totalorder %v415, %v1941
    %1958 = vset.pattern.permute.xlu0 0
    %1959 = vperm.xlu0 %1958, %v1862
    %v1960 = vpop.permute.xlu0 %1959
    %1961 = vset.pattern.permute.xlu0 0
    %1962 = vperm.xlu0 %1961, %v1863
    %v1963 = vpop.permute.xlu0 %1962
    %1964 = vset.pattern.permute.xlu0 0
    %1965 = vperm.xlu0 %1964, %v1864
    %v1966 = vpop.permute.xlu0 %1965
    %1967 = vset.pattern.permute.xlu0 0
    %1968 = vperm.xlu0 %1967, %v1865
    %v1969 = vpop.permute.xlu0 %1968
    %1970 = vset.pattern.permute.xlu0 0
    %1971 = vperm.xlu0 %1970, %v1866
    %v1972 = vpop.permute.xlu0 %1971
    %1973 = vset.pattern.permute.xlu0 0
    %1974 = vperm.xlu0 %1973, %v1867
    %v1975 = vpop.permute.xlu0 %1974
    %1976 = vset.pattern.permute.xlu0 0
    %1977 = vperm.xlu0 %1976, %v1868
    %v1978 = vpop.permute.xlu0 %1977
    %1979 = vset.pattern.permute.xlu0 0
    %1980 = vperm.xlu0 %1979, %v1869
    %v1981 = vpop.permute.xlu0 %1980
    %1982 = vset.pattern.permute.xlu0 0
    %1983 = vperm.xlu0 %1982, %v1870
    %v1984 = vpop.permute.xlu0 %1983
    %1985 = vset.pattern.permute.xlu0 0
    %1986 = vperm.xlu0 %1985, %v1871
    %v1987 = vpop.permute.xlu0 %1986
    %1988 = vset.pattern.permute.xlu0 0
    %1989 = vperm.xlu0 %1988, %v1872
    %v1990 = vpop.permute.xlu0 %1989
    %1991 = vset.pattern.permute.xlu0 0
    %1992 = vperm.xlu0 %1991, %v1873
    %v1993 = vpop.permute.xlu0 %1992
    %1994 = vset.pattern.permute.xlu0 0
    %1995 = vperm.xlu0 %1994, %v1874
    %v1996 = vpop.permute.xlu0 %1995
    %1997 = vset.pattern.permute.xlu0 0
    %1998 = vperm.xlu0 %1997, %v1875
    %v1999 = vpop.permute.xlu0 %1998
    %2000 = vset.pattern.permute.xlu0 0
    %2001 = vperm.xlu0 %2000, %v1876
    %v2002 = vpop.permute.xlu0 %2001
    %2003 = vset.pattern.permute.xlu0 0
    %2004 = vperm.xlu0 %2003, %v1877
    %v2005 = vpop.permute.xlu0 %2004
    %vm2006 = vcmp.eq.s32.totalorder %v415, %v1960
    %vm2007 = vcmp.eq.s32.totalorder %v415, %v1963
    %vm2008 = vcmp.eq.s32.totalorder %v415, %v1966
    %vm2009 = vcmp.eq.s32.totalorder %v415, %v1969
    %vm2010 = vcmp.eq.s32.totalorder %v415, %v1972
    %vm2011 = vcmp.eq.s32.totalorder %v415, %v1975
    %vm2012 = vcmp.eq.s32.totalorder %v415, %v1978
    %vm2013 = vcmp.eq.s32.totalorder %v415, %v1981
    %vm2014 = vcmp.eq.s32.totalorder %v415, %v1984
    %vm2015 = vcmp.eq.s32.totalorder %v415, %v1987
    %vm2016 = vcmp.eq.s32.totalorder %v415, %v1990
    %vm2017 = vcmp.eq.s32.totalorder %v415, %v1993
    %vm2018 = vcmp.eq.s32.totalorder %v415, %v1996
    %vm2019 = vcmp.eq.s32.totalorder %v415, %v1999
    %vm2020 = vcmp.eq.s32.totalorder %v415, %v2002
    %vm2021 = vcmp.eq.s32.totalorder %v415, %v2005
    %v2022 = vsel %vm1942, 1.0, 0.0
    %v2023 = vsel %vm1943, 1.0, 0.0
    %v2024 = vsel %vm1944, 1.0, 0.0
    %v2025 = vsel %vm1945, 1.0, 0.0
    %v2026 = vsel %vm1946, 1.0, 0.0
    %v2027 = vsel %vm1947, 1.0, 0.0
    %v2028 = vsel %vm1948, 1.0, 0.0
    %v2029 = vsel %vm1949, 1.0, 0.0
    %v2030 = vsel %vm1950, 1.0, 0.0
    %v2031 = vsel %vm1951, 1.0, 0.0
    %v2032 = vsel %vm1952, 1.0, 0.0
    %v2033 = vsel %vm1953, 1.0, 0.0
    %v2034 = vsel %vm1954, 1.0, 0.0
    %v2035 = vsel %vm1955, 1.0, 0.0
    %v2036 = vsel %vm1956, 1.0, 0.0
    %v2037 = vsel %vm1957, 1.0, 0.0
    %v2038 = vld [vmem:[#allocation6] sm:$0xff]
    %v2039 = vld [vmem:[#allocation6 + $0x8] sm:$0xff]
    %v2040 = vld [vmem:[#allocation6 + $0x10] sm:$0xff]
    %v2041 = vld [vmem:[#allocation6 + $0x18] sm:$0xff]
    %v2042 = vld [vmem:[#allocation6 + $0x20] sm:$0xff]
    %v2043 = vld [vmem:[#allocation6 + $0x28] sm:$0xff]
    %v2044 = vld [vmem:[#allocation6 + $0x30] sm:$0xff]
    %v2045 = vld [vmem:[#allocation6 + $0x38] sm:$0xff]
    %v2046 = vld [vmem:[#allocation6 + $0x40] sm:$0xff]
    %v2047 = vld [vmem:[#allocation6 + $0x48] sm:$0xff]
    %v2048 = vld [vmem:[#allocation6 + $0x50] sm:$0xff]
    %v2049 = vld [vmem:[#allocation6 + $0x58] sm:$0xff]
    %v2050 = vld [vmem:[#allocation6 + $0x60] sm:$0xff]
    %v2051 = vld [vmem:[#allocation6 + $0x68] sm:$0xff]
    %v2052 = vld [vmem:[#allocation6 + $0x70] sm:$0xff]
    %v2053 = vld [vmem:[#allocation6 + $0x78] sm:$0xff]
    %v2054 = vld [vmem:[#allocation4] sm:$0x1]
    %v2056 = vlaneseq
    %v2057 = vshrl.u32 %v2056, 7
    %v2058 = vsub.s32 0, %v2057
    %v2059 = vrot.slane %v2054, %v2058
    %v2061 = vsel %vm2006, %v2059, 0.0
    %v2062 = vsel %vm2007, %v2059, 0.0
    %v2063 = vsel %vm2008, %v2059, 0.0
    %v2064 = vsel %vm2009, %v2059, 0.0
    %v2065 = vsel %vm2010, %v2059, 0.0
    %v2066 = vsel %vm2011, %v2059, 0.0
    %v2067 = vsel %vm2012, %v2059, 0.0
    %v2068 = vsel %vm2013, %v2059, 0.0
    %v2069 = vsel %vm2014, %v2059, 0.0
    %v2070 = vsel %vm2015, %v2059, 0.0
    %v2071 = vsel %vm2016, %v2059, 0.0
    %v2072 = vsel %vm2017, %v2059, 0.0
    %v2073 = vsel %vm2018, %v2059, 0.0
    %v2074 = vsel %vm2019, %v2059, 0.0
    %v2075 = vsel %vm2020, %v2059, 0.0
    %v2076 = vsel %vm2021, %v2059, 0.0
    %v2077 = vsel %vm584, %v2061, 0.0
    %2078 = vadd.xlane.f32.xlu0 %v2077
    %v2079 = vpop.xlane.xlu0 %2078
    %v2080 = vsel %vm584, %v2062, 0.0
    %2081 = vadd.xlane.f32.xlu0 %v2080
    %v2082 = vpop.xlane.xlu0 %2081
    %v2083 = vsel %vm584, %v2063, 0.0
    %2084 = vadd.xlane.f32.xlu0 %v2083
    %v2085 = vpop.xlane.xlu0 %2084
    %v2086 = vsel %vm584, %v2064, 0.0
    %2087 = vadd.xlane.f32.xlu0 %v2086
    %v2088 = vpop.xlane.xlu0 %2087
    %v2089 = vsel %vm584, %v2065, 0.0
    %2090 = vadd.xlane.f32.xlu0 %v2089
    %v2091 = vpop.xlane.xlu0 %2090
    %v2092 = vsel %vm584, %v2066, 0.0
    %2093 = vadd.xlane.f32.xlu0 %v2092
    %v2094 = vpop.xlane.xlu0 %2093
    %v2095 = vsel %vm584, %v2067, 0.0
    %2096 = vadd.xlane.f32.xlu0 %v2095
    %v2097 = vpop.xlane.xlu0 %2096
    %v2098 = vsel %vm584, %v2068, 0.0
    %2099 = vadd.xlane.f32.xlu0 %v2098
    %v2100 = vpop.xlane.xlu0 %2099
    %v2101 = vsel %vm584, %v2069, 0.0
    %2102 = vadd.xlane.f32.xlu0 %v2101
    %v2103 = vpop.xlane.xlu0 %2102
    %v2104 = vsel %vm584, %v2070, 0.0
    %2105 = vadd.xlane.f32.xlu0 %v2104
    %v2106 = vpop.xlane.xlu0 %2105
    %v2107 = vsel %vm584, %v2071, 0.0
    %2108 = vadd.xlane.f32.xlu0 %v2107
    %v2109 = vpop.xlane.xlu0 %2108
    %v2110 = vsel %vm584, %v2072, 0.0
    %2111 = vadd.xlane.f32.xlu0 %v2110
    %v2112 = vpop.xlane.xlu0 %2111
    %v2113 = vsel %vm584, %v2073, 0.0
    %2114 = vadd.xlane.f32.xlu0 %v2113
    %v2115 = vpop.xlane.xlu0 %2114
    %v2116 = vsel %vm584, %v2074, 0.0
    %2117 = vadd.xlane.f32.xlu0 %v2116
    %v2118 = vpop.xlane.xlu0 %2117
    %v2119 = vsel %vm584, %v2075, 0.0
    %2120 = vadd.xlane.f32.xlu0 %v2119
    %v2121 = vpop.xlane.xlu0 %2120
    %v2122 = vsel %vm584, %v2076, 0.0
    %2123 = vadd.xlane.f32.xlu0 %v2122
    %v2124 = vpop.xlane.xlu0 %2123
    %v2125 = vld [vmem:[#allocation5] sm:$0x1]
    %v2127 = vlaneseq
    %v2128 = vshrl.u32 %v2127, 7
    %v2129 = vsub.s32 0, %v2128
    %v2130 = vrot.slane %v2125, %v2129
    %v2132 = vsel %vm2006, %v2130, 0.0
    %v2133 = vsel %vm2007, %v2130, 0.0
    %v2134 = vsel %vm2008, %v2130, 0.0
    %v2135 = vsel %vm2009, %v2130, 0.0
    %v2136 = vsel %vm2010, %v2130, 0.0
    %v2137 = vsel %vm2011, %v2130, 0.0
    %v2138 = vsel %vm2012, %v2130, 0.0
    %v2139 = vsel %vm2013, %v2130, 0.0
    %v2140 = vsel %vm2014, %v2130, 0.0
    %v2141 = vsel %vm2015, %v2130, 0.0
    %v2142 = vsel %vm2016, %v2130, 0.0
    %v2143 = vsel %vm2017, %v2130, 0.0
    %v2144 = vsel %vm2018, %v2130, 0.0
    %v2145 = vsel %vm2019, %v2130, 0.0
    %v2146 = vsel %vm2020, %v2130, 0.0
    %v2147 = vsel %vm2021, %v2130, 0.0
    %v2148 = vsel %vm584, %v2132, 0.0
    %2149 = vadd.xlane.f32.xlu0 %v2148
    %v2150 = vpop.xlane.xlu0 %2149
    %v2151 = vsel %vm584, %v2133, 0.0
    %2152 = vadd.xlane.f32.xlu0 %v2151
    %v2153 = vpop.xlane.xlu0 %2152
    %v2154 = vsel %vm584, %v2134, 0.0
    %2155 = vadd.xlane.f32.xlu0 %v2154
    %v2156 = vpop.xlane.xlu0 %2155
    %v2157 = vsel %vm584, %v2135, 0.0
    %2158 = vadd.xlane.f32.xlu0 %v2157
    %v2159 = vpop.xlane.xlu0 %2158
    %v2160 = vsel %vm584, %v2136, 0.0
    %2161 = vadd.xlane.f32.xlu0 %v2160
    %v2162 = vpop.xlane.xlu0 %2161
    %v2163 = vsel %vm584, %v2137, 0.0
    %2164 = vadd.xlane.f32.xlu0 %v2163
    %v2165 = vpop.xlane.xlu0 %2164
    %v2166 = vsel %vm584, %v2138, 0.0
    %2167 = vadd.xlane.f32.xlu0 %v2166
    %v2168 = vpop.xlane.xlu0 %2167
    %v2169 = vsel %vm584, %v2139, 0.0
    %2170 = vadd.xlane.f32.xlu0 %v2169
    %v2171 = vpop.xlane.xlu0 %2170
    %v2172 = vsel %vm584, %v2140, 0.0
    %2173 = vadd.xlane.f32.xlu0 %v2172
    %v2174 = vpop.xlane.xlu0 %2173
    %v2175 = vsel %vm584, %v2141, 0.0
    %2176 = vadd.xlane.f32.xlu0 %v2175
    %v2177 = vpop.xlane.xlu0 %2176
    %v2178 = vsel %vm584, %v2142, 0.0
    %2179 = vadd.xlane.f32.xlu0 %v2178
    %v2180 = vpop.xlane.xlu0 %2179
    %v2181 = vsel %vm584, %v2143, 0.0
    %2182 = vadd.xlane.f32.xlu0 %v2181
    %v2183 = vpop.xlane.xlu0 %2182
    %v2184 = vsel %vm584, %v2144, 0.0
    %2185 = vadd.xlane.f32.xlu0 %v2184
    %v2186 = vpop.xlane.xlu0 %2185
    %v2187 = vsel %vm584, %v2145, 0.0
    %2188 = vadd.xlane.f32.xlu0 %v2187
    %v2189 = vpop.xlane.xlu0 %2188
    %v2190 = vsel %vm584, %v2146, 0.0
    %2191 = vadd.xlane.f32.xlu0 %v2190
    %v2192 = vpop.xlane.xlu0 %2191
    %v2193 = vsel %vm584, %v2147, 0.0
    %2194 = vadd.xlane.f32.xlu0 %v2193
    %v2195 = vpop.xlane.xlu0 %2194
    %v2196 = vsub.f32 %v2038, %v2079
    %v2197 = vsub.f32 %v2039, %v2082
    %v2198 = vsub.f32 %v2040, %v2085
    %v2199 = vsub.f32 %v2041, %v2088
    %v2200 = vsub.f32 %v2042, %v2091
    %v2201 = vsub.f32 %v2043, %v2094
    %v2202 = vsub.f32 %v2044, %v2097
    %v2203 = vsub.f32 %v2045, %v2100
    %v2204 = vsub.f32 %v2046, %v2103
    %v2205 = vsub.f32 %v2047, %v2106
    %v2206 = vsub.f32 %v2048, %v2109
    %v2207 = vsub.f32 %v2049, %v2112
    %v2208 = vsub.f32 %v2050, %v2115
    %v2209 = vsub.f32 %v2051, %v2118
    %v2210 = vsub.f32 %v2052, %v2121
    %v2211 = vsub.f32 %v2053, %v2124
    %v2212 = vmul.f32 %v2196, 1.442695
    %v2213 = vpow.pop %v2212
    %v2214 = vmul.f32 %v2197, 1.442695
    %v2215 = vpow.pop %v2214
    %v2216 = vmul.f32 %v2198, 1.442695
    %v2217 = vpow.pop %v2216
    %v2218 = vmul.f32 %v2199, 1.442695
    %v2219 = vpow.pop %v2218
    %v2220 = vmul.f32 %v2200, 1.442695
    %v2221 = vpow.pop %v2220
    %v2222 = vmul.f32 %v2201, 1.442695
    %v2223 = vpow.pop %v2222
    %v2224 = vmul.f32 %v2202, 1.442695
    %v2225 = vpow.pop %v2224
    %v2226 = vmul.f32 %v2203, 1.442695
    %v2227 = vpow.pop %v2226
    %v2228 = vmul.f32 %v2204, 1.442695
    %v2229 = vpow.pop %v2228
    %v2230 = vmul.f32 %v2205, 1.442695
    %v2231 = vpow.pop %v2230
    %v2232 = vmul.f32 %v2206, 1.442695
    %v2233 = vpow.pop %v2232
    %v2234 = vmul.f32 %v2207, 1.442695
    %v2235 = vpow.pop %v2234
    %v2236 = vmul.f32 %v2208, 1.442695
    %v2237 = vpow.pop %v2236
    %v2238 = vmul.f32 %v2209, 1.442695
    %v2239 = vpow.pop %v2238
    %v2240 = vmul.f32 %v2210, 1.442695
    %v2241 = vpow.pop %v2240
    %v2242 = vmul.f32 %v2211, 1.442695
    %v2243 = vpow.pop %v2242
    %v2244 = vadd.f32 %v2150, 1e-16
    %v2245 = vadd.f32 %v2153, 1e-16
    %v2246 = vadd.f32 %v2156, 1e-16
    %v2247 = vadd.f32 %v2159, 1e-16
    %v2248 = vadd.f32 %v2162, 1e-16
    %v2249 = vadd.f32 %v2165, 1e-16
    %v2250 = vadd.f32 %v2168, 1e-16
    %v2251 = vadd.f32 %v2171, 1e-16
    %v2252 = vadd.f32 %v2174, 1e-16
    %v2253 = vadd.f32 %v2177, 1e-16
    %v2254 = vadd.f32 %v2180, 1e-16
    %v2255 = vadd.f32 %v2183, 1e-16
    %v2256 = vadd.f32 %v2186, 1e-16
    %v2257 = vadd.f32 %v2189, 1e-16
    %v2258 = vadd.f32 %v2192, 1e-16
    %v2259 = vadd.f32 %v2195, 1e-16
    %v2260 = vrcp.pop %v2244
    %v2261 = vmul.f32 %v2213, %v2260
    %v2262 = vrcp.pop %v2245
    %v2263 = vmul.f32 %v2215, %v2262
    %v2264 = vrcp.pop %v2246
    %v2265 = vmul.f32 %v2217, %v2264
    %v2266 = vrcp.pop %v2247
    %v2267 = vmul.f32 %v2219, %v2266
    %v2268 = vrcp.pop %v2248
    %v2269 = vmul.f32 %v2221, %v2268
    %v2270 = vrcp.pop %v2249
    %v2271 = vmul.f32 %v2223, %v2270
    %v2272 = vrcp.pop %v2250
    %v2273 = vmul.f32 %v2225, %v2272
    %v2274 = vrcp.pop %v2251
    %v2275 = vmul.f32 %v2227, %v2274
    %v2276 = vrcp.pop %v2252
    %v2277 = vmul.f32 %v2229, %v2276
    %v2278 = vrcp.pop %v2253
    %v2279 = vmul.f32 %v2231, %v2278
    %v2280 = vrcp.pop %v2254
    %v2281 = vmul.f32 %v2233, %v2280
    %v2282 = vrcp.pop %v2255
    %v2283 = vmul.f32 %v2235, %v2282
    %v2284 = vrcp.pop %v2256
    %v2285 = vmul.f32 %v2237, %v2284
    %v2286 = vrcp.pop %v2257
    %v2287 = vmul.f32 %v2239, %v2286
    %v2288 = vrcp.pop %v2258
    %v2289 = vmul.f32 %v2241, %v2288
    %v2290 = vrcp.pop %v2259
    %v2291 = vmul.f32 %v2243, %v2290
    %v2292 = vmul.f32 %v2261, %v1673
    %v2293 = vmul.f32 %v2263, %v1674
    %v2294 = vmul.f32 %v2265, %v1675
    %v2295 = vmul.f32 %v2267, %v1676
    %v2296 = vmul.f32 %v2269, %v1677
    %v2297 = vmul.f32 %v2271, %v1678
    %v2298 = vmul.f32 %v2273, %v1679
    %v2299 = vmul.f32 %v2275, %v1680
    %v2300 = vmul.f32 %v2277, %v1681
    %v2301 = vmul.f32 %v2279, %v1682
    %v2302 = vmul.f32 %v2281, %v1683
    %v2303 = vmul.f32 %v2283, %v1684
    %v2304 = vmul.f32 %v2285, %v1685
    %v2305 = vmul.f32 %v2287, %v1686
    %v2306 = vmul.f32 %v2289, %v1687
    %v2307 = vmul.f32 %v2291, %v1688
    %v2308 = vld [vmem:[#allocation2] sm:$0xff]
    %v2309 = vld [vmem:[#allocation2 + $0x8] sm:$0xff]
    %v2310 = vld [vmem:[#allocation2 + $0x10] sm:$0xff]
    %v2311 = vld [vmem:[#allocation2 + $0x18] sm:$0xff]
    %v2312 = vld [vmem:[#allocation2 + $0x28] sm:$0xff]
    %v2313 = vld [vmem:[#allocation2 + $0x30] sm:$0xff]
    %v2314 = vld [vmem:[#allocation2 + $0x38] sm:$0xff]
    %v2315 = vld [vmem:[#allocation2 + $0x40] sm:$0xff]
    %v2317 = vsel %vm584, %v2022, 0
    %v2320 = vsel %vm584, %v2023, 0
    %v2323 = vsel %vm584, %v2024, 0
    %v2326 = vsel %vm584, %v2025, 0
    %v2329 = vsel %vm584, %v2026, 0
    %v2332 = vsel %vm584, %v2027, 0
    %v2335 = vsel %vm584, %v2028, 0
    %v2338 = vsel %vm584, %v2029, 0
    %v2341 = vsel %vm584, %v2030, 0
    %v2344 = vsel %vm584, %v2031, 0
    %v2347 = vsel %vm584, %v2032, 0
    %v2350 = vsel %vm584, %v2033, 0
    %v2353 = vsel %vm584, %v2034, 0
    %v2356 = vsel %vm584, %v2035, 0
    %v2359 = vsel %vm584, %v2036, 0
    %v2362 = vsel %vm584, %v2037, 0
    %2364 = vmatprep.subr.mxu0 %v2309
    %2365 = vmatpush1.msra.mxu0 %v2308
    %2366 = vmatprep.subr.mxu0 %v2313
    %2367 = vmatpush1.msra.mxu0 %v2312
    %2368 = vmatprep.subr.mxu0 0.0
    %2369 = vmatpush1.msra.mxu0 0.0
    %2370 = vmatprep.subr.mxu0 0.0
    %2371 = vmatpush1.msra.mxu0 0.0
    %2372 = vmatprep.subr.mxu0 0.0
    %2373 = vmatpush1.msra.mxu0 0.0
    %2374 = vmatprep.subr.mxu0 0.0
    %2375 = vmatpush1.msra.mxu0 0.0
    %2376 = vmatprep.subr.mxu0 0.0
    %2377 = vmatpush1.msra.mxu0 0.0
    %2378 = vmatprep.subr.mxu0 0.0
    %2379 = vmatpush1.msra.mxu0 0.0
    %2380 = vmatprep.subr.mxu0 0.0
    %2381 = vmatpush1.msra.mxu0 0.0
    %2382 = vmatprep.subr.mxu0 0.0
    %2383 = vmatpush1.msra.mxu0 0.0
    %2384 = vmatprep.subr.mxu0 0.0
    %2385 = vmatpush1.msra.mxu0 0.0
    %2386 = vmatprep.subr.mxu0 0.0
    %2387 = vmatpush1.msra.mxu0 0.0
    %2388 = vmatprep.subr.mxu0 0.0
    %2389 = vmatpush1.msra.mxu0 0.0
    %2390 = vmatprep.subr.mxu0 0.0
    %2391 = vmatpush1.msra.mxu0 0.0
    %2392 = vmatprep.subr.mxu0 0.0
    %2393 = vmatpush1.msra.mxu0 0.0
    %2394 = vmatprep.subr.mxu0 0.0
    %2395 = vmatpush1.msra.mxu0 0.0
    %2396 = vmatprep.subr.mxu0 0.0
    %2397 = vmatpush1.msra.mxu0 0.0
    %2398 = vmatprep.subr.mxu0 0.0
    %2399 = vmatpush1.msra.mxu0 0.0
    %2400 = vmatprep.subr.mxu0 0.0
    %2401 = vmatpush1.msra.mxu0 0.0
    %2402 = vmatprep.subr.mxu0 0.0
    %2403 = vmatpush1.msra.mxu0 0.0
    %2404 = vmatprep.subr.mxu0 0.0
    %2405 = vmatpush1.msra.mxu0 0.0
    %2406 = vmatprep.subr.mxu0 0.0
    %2407 = vmatpush1.msra.mxu0 0.0
    %2408 = vmatprep.subr.mxu0 0.0
    %2409 = vmatpush1.msra.mxu0 0.0
    %2410 = vmatprep.subr.mxu0 0.0
    %2411 = vmatpush1.msra.mxu0 0.0
    %2412 = vmatprep.subr.mxu0 0.0
    %2413 = vmatpush1.msra.mxu0 0.0
    %2414 = vmatprep.subr.mxu0 0.0
    %2415 = vmatpush1.msra.mxu0 0.0
    %2416 = vmatprep.subr.mxu0 0.0
    %2417 = vmatpush1.msra.mxu0 0.0
    %2418 = vmatprep.subr.mxu0 0.0
    %2419 = vmatpush1.msra.mxu0 0.0
    %2420 = vmatprep.subr.mxu0 0.0
    %2421 = vmatpush1.msra.mxu0 0.0
    %2422 = vmatprep.subr.mxu0 0.0
    %2423 = vmatpush1.msra.mxu0 0.0
    %2424 = vmatprep.subr.mxu0 0.0
    %2425 = vmatpush1.msra.mxu0 0.0
    %2426 = vmatprep.subr.mxu0 0.0
    %2427 = vmatpush1.msra.mxu0 0.0
    %2428 = vmatprep.mubr.f32.mxu0 0.0
    %2429 = vmatmul.mubr.f32.gmra.mrb[0].mxu0 %v2317
    %v2430 = vpop.f32.mrb[0].mxu0
    %v2431 = vadd.f32 0.0, %v2430
    %v2432 = vpop.f32.mrb[0].mxu0
    %v2433 = vadd.f32 0.0, %v2432
    %2434 = vmatprep.mubr.f32.mxu0 0.0
    %2435 = vmatmul.mubr.f32.gmra.mrb[0].mxu0 %v2320
    %v2436 = vpop.f32.mrb[0].mxu0
    %v2437 = vadd.f32 0.0, %v2436
    %v2438 = vpop.f32.mrb[0].mxu0
    %v2439 = vadd.f32 0.0, %v2438
    %2440 = vmatprep.mubr.f32.mxu0 0.0
    %2441 = vmatmul.mubr.f32.gmra.mrb[0].mxu0 %v2323
    %v2442 = vpop.f32.mrb[0].mxu0
    %v2443 = vadd.f32 0.0, %v2442
    %v2444 = vpop.f32.mrb[0].mxu0
    %v2445 = vadd.f32 0.0, %v2444
    %2446 = vmatprep.mubr.f32.mxu0 0.0
    %2447 = vmatmul.mubr.f32.gmra.mrb[0].mxu0 %v2326
    %v2448 = vpop.f32.mrb[0].mxu0
    %v2449 = vadd.f32 0.0, %v2448
    %v2450 = vpop.f32.mrb[0].mxu0
    %v2451 = vadd.f32 0.0, %v2450
    %2452 = vmatprep.mubr.f32.mxu0 0.0
    %2453 = vmatmul.mubr.f32.gmra.mrb[0].mxu0 %v2329
    %v2454 = vpop.f32.mrb[0].mxu0
    %v2455 = vadd.f32 0.0, %v2454
    %v2456 = vpop.f32.mrb[0].mxu0
    %v2457 = vadd.f32 0.0, %v2456
    %2458 = vmatprep.mubr.f32.mxu0 0.0
    %2459 = vmatmul.mubr.f32.gmra.mrb[0].mxu0 %v2332
    %v2460 = vpop.f32.mrb[0].mxu0
    %v2461 = vadd.f32 0.0, %v2460
    %v2462 = vpop.f32.mrb[0].mxu0
    %v2463 = vadd.f32 0.0, %v2462
    %2464 = vmatprep.mubr.f32.mxu0 0.0
    %2465 = vmatmul.mubr.f32.gmra.mrb[0].mxu0 %v2335
    %v2466 = vpop.f32.mrb[0].mxu0
    %v2467 = vadd.f32 0.0, %v2466
    %v2468 = vpop.f32.mrb[0].mxu0
    %v2469 = vadd.f32 0.0, %v2468
    %2470 = vmatprep.mubr.f32.mxu0 0.0
    %2471 = vmatmul.mubr.f32.gmra.mrb[0].mxu0 %v2338
    %v2472 = vpop.f32.mrb[0].mxu0
    %v2473 = vadd.f32 0.0, %v2472
    %v2474 = vpop.f32.mrb[0].mxu0
    %v2475 = vadd.f32 0.0, %v2474
    %2476 = vmatprep.mubr.f32.mxu0 0.0
    %2477 = vmatmul.mubr.f32.gmra.mrb[0].mxu0 %v2341
    %v2478 = vpop.f32.mrb[0].mxu0
    %v2479 = vadd.f32 0.0, %v2478
    %v2480 = vpop.f32.mrb[0].mxu0
    %v2481 = vadd.f32 0.0, %v2480
    %2482 = vmatprep.mubr.f32.mxu0 0.0
    %2483 = vmatmul.mubr.f32.gmra.mrb[0].mxu0 %v2344
    %v2484 = vpop.f32.mrb[0].mxu0
    %v2485 = vadd.f32 0.0, %v2484
    %v2486 = vpop.f32.mrb[0].mxu0
    %v2487 = vadd.f32 0.0, %v2486
    %2488 = vmatprep.mubr.f32.mxu0 0.0
    %2489 = vmatmul.mubr.f32.gmra.mrb[0].mxu0 %v2347
    %v2490 = vpop.f32.mrb[0].mxu0
    %v2491 = vadd.f32 0.0, %v2490
    %v2492 = vpop.f32.mrb[0].mxu0
    %v2493 = vadd.f32 0.0, %v2492
    %2494 = vmatprep.mubr.f32.mxu0 0.0
    %2495 = vmatmul.mubr.f32.gmra.mrb[0].mxu0 %v2350
    %v2496 = vpop.f32.mrb[0].mxu0
    %v2497 = vadd.f32 0.0, %v2496
    %v2498 = vpop.f32.mrb[0].mxu0
    %v2499 = vadd.f32 0.0, %v2498
    %2500 = vmatprep.mubr.f32.mxu0 0.0
    %2501 = vmatmul.mubr.f32.gmra.mrb[0].mxu0 %v2353
    %v2502 = vpop.f32.mrb[0].mxu0
    %v2503 = vadd.f32 0.0, %v2502
    %v2504 = vpop.f32.mrb[0].mxu0
    %v2505 = vadd.f32 0.0, %v2504
    %2506 = vmatprep.mubr.f32.mxu0 0.0
    %2507 = vmatmul.mubr.f32.gmra.mrb[0].mxu0 %v2356
    %v2508 = vpop.f32.mrb[0].mxu0
    %v2509 = vadd.f32 0.0, %v2508
    %v2510 = vpop.f32.mrb[0].mxu0
    %v2511 = vadd.f32 0.0, %v2510
    %2512 = vmatprep.mubr.f32.mxu0 0.0
    %2513 = vmatmul.mubr.f32.gmra.mrb[0].mxu0 %v2359
    %v2514 = vpop.f32.mrb[0].mxu0
    %v2515 = vadd.f32 0.0, %v2514
    %v2516 = vpop.f32.mrb[0].mxu0
    %v2517 = vadd.f32 0.0, %v2516
    %2518 = vmatprep.mubr.f32.mxu0 0.0
    %2519 = vmatmul.mubr.f32.gmra.mrb[0].mxu0 %v2362
    %v2520 = vpop.f32.mrb[0].mxu0
    %v2521 = vadd.f32 0.0, %v2520
    %v2522 = vpop.f32.mrb[0].mxu0
    %v2523 = vadd.f32 0.0, %v2522
    %2524 = vdwg.mxu0
    %2525 = vmatprep.subr.mxu0 %v2311
    %2526 = vmatpush1.msra.mxu0 %v2310
    %2527 = vmatprep.subr.mxu0 %v2315
    %2528 = vmatpush1.msra.mxu0 %v2314
    %2529 = vmatprep.subr.mxu0 0.0
    %2530 = vmatpush1.msra.mxu0 0.0
    %2531 = vmatprep.subr.mxu0 0.0
    %2532 = vmatpush1.msra.mxu0 0.0
    %2533 = vmatprep.subr.mxu0 0.0
    %2534 = vmatpush1.msra.mxu0 0.0
    %2535 = vmatprep.subr.mxu0 0.0
    %2536 = vmatpush1.msra.mxu0 0.0
    %2537 = vmatprep.subr.mxu0 0.0
    %2538 = vmatpush1.msra.mxu0 0.0
    %2539 = vmatprep.subr.mxu0 0.0
    %2540 = vmatpush1.msra.mxu0 0.0
    %2541 = vmatprep.subr.mxu0 0.0
    %2542 = vmatpush1.msra.mxu0 0.0
    %2543 = vmatprep.subr.mxu0 0.0
    %2544 = vmatpush1.msra.mxu0 0.0
    %2545 = vmatprep.subr.mxu0 0.0
    %2546 = vmatpush1.msra.mxu0 0.0
    %2547 = vmatprep.subr.mxu0 0.0
    %2548 = vmatpush1.msra.mxu0 0.0
    %2549 = vmatprep.subr.mxu0 0.0
    %2550 = vmatpush1.msra.mxu0 0.0
    %2551 = vmatprep.subr.mxu0 0.0
    %2552 = vmatpush1.msra.mxu0 0.0
    %2553 = vmatprep.subr.mxu0 0.0
    %2554 = vmatpush1.msra.mxu0 0.0
    %2555 = vmatprep.subr.mxu0 0.0
    %2556 = vmatpush1.msra.mxu0 0.0
    %2557 = vmatprep.subr.mxu0 0.0
    %2558 = vmatpush1.msra.mxu0 0.0
    %2559 = vmatprep.subr.mxu0 0.0
    %2560 = vmatpush1.msra.mxu0 0.0
    %2561 = vmatprep.subr.mxu0 0.0
    %2562 = vmatpush1.msra.mxu0 0.0
    %2563 = vmatprep.subr.mxu0 0.0
    %2564 = vmatpush1.msra.mxu0 0.0
    %2565 = vmatprep.subr.mxu0 0.0
    %2566 = vmatpush1.msra.mxu0 0.0
    %2567 = vmatprep.subr.mxu0 0.0
    %2568 = vmatpush1.msra.mxu0 0.0
    %2569 = vmatprep.subr.mxu0 0.0
    %2570 = vmatpush1.msra.mxu0 0.0
    %2571 = vmatprep.subr.mxu0 0.0
    %2572 = vmatpush1.msra.mxu0 0.0
    %2573 = vmatprep.subr.mxu0 0.0
    %2574 = vmatpush1.msra.mxu0 0.0
    %2575 = vmatprep.subr.mxu0 0.0
    %2576 = vmatpush1.msra.mxu0 0.0
    %2577 = vmatprep.subr.mxu0 0.0
    %2578 = vmatpush1.msra.mxu0 0.0
    %2579 = vmatprep.subr.mxu0 0.0
    %2580 = vmatpush1.msra.mxu0 0.0
    %2581 = vmatprep.subr.mxu0 0.0
    %2582 = vmatpush1.msra.mxu0 0.0
    %2583 = vmatprep.subr.mxu0 0.0
    %2584 = vmatpush1.msra.mxu0 0.0
    %2585 = vmatprep.subr.mxu0 0.0
    %2586 = vmatpush1.msra.mxu0 0.0
    %2587 = vmatprep.subr.mxu0 0.0
    %2588 = vmatpush1.msra.mxu0 0.0
    %2589 = vmatprep.mubr.f32.mxu0 0.0
    %2590 = vmatmul.mubr.f32.gmra.mrb[0].mxu0 %v2317
    %v2591 = vpop.f32.mrb[0].mxu0
    %v2592 = vadd.f32 0.0, %v2591
    %v2593 = vpop.f32.mrb[0].mxu0
    %v2594 = vadd.f32 0.0, %v2593
    %2595 = vmatprep.mubr.f32.mxu0 0.0
    %2596 = vmatmul.mubr.f32.gmra.mrb[0].mxu0 %v2320
    %v2597 = vpop.f32.mrb[0].mxu0
    %v2598 = vadd.f32 0.0, %v2597
    %v2599 = vpop.f32.mrb[0].mxu0
    %v2600 = vadd.f32 0.0, %v2599
    %2601 = vmatprep.mubr.f32.mxu0 0.0
    %2602 = vmatmul.mubr.f32.gmra.mrb[0].mxu0 %v2323
    %v2603 = vpop.f32.mrb[0].mxu0
    %v2604 = vadd.f32 0.0, %v2603
    %v2605 = vpop.f32.mrb[0].mxu0
    %v2606 = vadd.f32 0.0, %v2605
    %2607 = vmatprep.mubr.f32.mxu0 0.0
    %2608 = vmatmul.mubr.f32.gmra.mrb[0].mxu0 %v2326
    %v2609 = vpop.f32.mrb[0].mxu0
    %v2610 = vadd.f32 0.0, %v2609
    %v2611 = vpop.f32.mrb[0].mxu0
    %v2612 = vadd.f32 0.0, %v2611
    %2613 = vmatprep.mubr.f32.mxu0 0.0
    %2614 = vmatmul.mubr.f32.gmra.mrb[0].mxu0 %v2329
    %v2615 = vpop.f32.mrb[0].mxu0
    %v2616 = vadd.f32 0.0, %v2615
    %v2617 = vpop.f32.mrb[0].mxu0
    %v2618 = vadd.f32 0.0, %v2617
    %2619 = vmatprep.mubr.f32.mxu0 0.0
    %2620 = vmatmul.mubr.f32.gmra.mrb[0].mxu0 %v2332
    %v2621 = vpop.f32.mrb[0].mxu0
    %v2622 = vadd.f32 0.0, %v2621
    %v2623 = vpop.f32.mrb[0].mxu0
    %v2624 = vadd.f32 0.0, %v2623
    %2625 = vmatprep.mubr.f32.mxu0 0.0
    %2626 = vmatmul.mubr.f32.gmra.mrb[0].mxu0 %v2335
    %v2627 = vpop.f32.mrb[0].mxu0
    %v2628 = vadd.f32 0.0, %v2627
    %v2629 = vpop.f32.mrb[0].mxu0
    %v2630 = vadd.f32 0.0, %v2629
    %2631 = vmatprep.mubr.f32.mxu0 0.0
    %2632 = vmatmul.mubr.f32.gmra.mrb[0].mxu0 %v2338
    %v2633 = vpop.f32.mrb[0].mxu0
    %v2634 = vadd.f32 0.0, %v2633
    %v2635 = vpop.f32.mrb[0].mxu0
    %v2636 = vadd.f32 0.0, %v2635
    %2637 = vmatprep.mubr.f32.mxu0 0.0
    %2638 = vmatmul.mubr.f32.gmra.mrb[0].mxu0 %v2341
    %v2639 = vpop.f32.mrb[0].mxu0
    %v2640 = vadd.f32 0.0, %v2639
    %v2641 = vpop.f32.mrb[0].mxu0
    %v2642 = vadd.f32 0.0, %v2641
    %2643 = vmatprep.mubr.f32.mxu0 0.0
    %2644 = vmatmul.mubr.f32.gmra.mrb[0].mxu0 %v2344
    %v2645 = vpop.f32.mrb[0].mxu0
    %v2646 = vadd.f32 0.0, %v2645
    %v2647 = vpop.f32.mrb[0].mxu0
    %v2648 = vadd.f32 0.0, %v2647
    %2649 = vmatprep.mubr.f32.mxu0 0.0
    %2650 = vmatmul.mubr.f32.gmra.mrb[0].mxu0 %v2347
    %v2651 = vpop.f32.mrb[0].mxu0
    %v2652 = vadd.f32 0.0, %v2651
    %v2653 = vpop.f32.mrb[0].mxu0
    %v2654 = vadd.f32 0.0, %v2653
    %2655 = vmatprep.mubr.f32.mxu0 0.0
    %2656 = vmatmul.mubr.f32.gmra.mrb[0].mxu0 %v2350
    %v2657 = vpop.f32.mrb[0].mxu0
    %v2658 = vadd.f32 0.0, %v2657
    %v2659 = vpop.f32.mrb[0].mxu0
    %v2660 = vadd.f32 0.0, %v2659
    %2661 = vmatprep.mubr.f32.mxu0 0.0
    %2662 = vmatmul.mubr.f32.gmra.mrb[0].mxu0 %v2353
    %v2663 = vpop.f32.mrb[0].mxu0
    %v2664 = vadd.f32 0.0, %v2663
    %v2665 = vpop.f32.mrb[0].mxu0
    %v2666 = vadd.f32 0.0, %v2665
    %2667 = vmatprep.mubr.f32.mxu0 0.0
    %2668 = vmatmul.mubr.f32.gmra.mrb[0].mxu0 %v2356
    %v2669 = vpop.f32.mrb[0].mxu0
    %v2670 = vadd.f32 0.0, %v2669
    %v2671 = vpop.f32.mrb[0].mxu0
    %v2672 = vadd.f32 0.0, %v2671
    %2673 = vmatprep.mubr.f32.mxu0 0.0
    %2674 = vmatmul.mubr.f32.gmra.mrb[0].mxu0 %v2359
    %v2675 = vpop.f32.mrb[0].mxu0
    %v2676 = vadd.f32 0.0, %v2675
    %v2677 = vpop.f32.mrb[0].mxu0
    %v2678 = vadd.f32 0.0, %v2677
    %2679 = vmatprep.mubr.f32.mxu0 0.0
    %2680 = vmatmul.mubr.f32.gmra.mrb[0].mxu0 %v2362
    %v2681 = vpop.f32.mrb[0].mxu0
    %v2682 = vadd.f32 0.0, %v2681
    %v2683 = vpop.f32.mrb[0].mxu0
    %v2684 = vadd.f32 0.0, %v2683
    %2685 = vdwg.mxu0
    %vm2686 = vcmp.eq.s32.totalorder %v1878, 0
    %vm2687 = vcmp.eq.s32.totalorder %v1879, 0
    %vm2688 = vcmp.eq.s32.totalorder %v1880, 0
    %vm2689 = vcmp.eq.s32.totalorder %v1881, 0
    %vm2690 = vcmp.eq.s32.totalorder %v1882, 0
    %vm2691 = vcmp.eq.s32.totalorder %v1883, 0
    %vm2692 = vcmp.eq.s32.totalorder %v1884, 0
    %vm2693 = vcmp.eq.s32.totalorder %v1885, 0
    %vm2694 = vcmp.eq.s32.totalorder %v1886, 0
    %vm2695 = vcmp.eq.s32.totalorder %v1887, 0
    %vm2696 = vcmp.eq.s32.totalorder %v1888, 0
    %vm2697 = vcmp.eq.s32.totalorder %v1889, 0
    %vm2698 = vcmp.eq.s32.totalorder %v1890, 0
    %vm2699 = vcmp.eq.s32.totalorder %v1891, 0
    %vm2700 = vcmp.eq.s32.totalorder %v1892, 0
    %vm2701 = vcmp.eq.s32.totalorder %v1893, 0
    %v2702 = vsel %vm2686, 1, 0
    %v2703 = vsel %vm2687, 1, 0
    %v2704 = vsel %vm2688, 1, 0
    %v2705 = vsel %vm2689, 1, 0
    %v2706 = vsel %vm2690, 1, 0
    %v2707 = vsel %vm2691, 1, 0
    %v2708 = vsel %vm2692, 1, 0
    %v2709 = vsel %vm2693, 1, 0
    %v2710 = vsel %vm2694, 1, 0
    %v2711 = vsel %vm2695, 1, 0
    %v2712 = vsel %vm2696, 1, 0
    %v2713 = vsel %vm2697, 1, 0
    %v2714 = vsel %vm2698, 1, 0
    %v2715 = vsel %vm2699, 1, 0
    %v2716 = vsel %vm2700, 1, 0
    %v2717 = vsel %vm2701, 1, 0
    %2718 = vset.pattern.permute.xlu0 0
    %2719 = vperm.xlu0 %2718, %v2702
    %v2720 = vpop.permute.xlu0 %2719
    %2721 = vset.pattern.permute.xlu0 0
    %2722 = vperm.xlu0 %2721, %v2703
    %v2723 = vpop.permute.xlu0 %2722
    %2724 = vset.pattern.permute.xlu0 0
    %2725 = vperm.xlu0 %2724, %v2704
    %v2726 = vpop.permute.xlu0 %2725
    %2727 = vset.pattern.permute.xlu0 0
    %2728 = vperm.xlu0 %2727, %v2705
    %v2729 = vpop.permute.xlu0 %2728
    %2730 = vset.pattern.permute.xlu0 0
    %2731 = vperm.xlu0 %2730, %v2706
    %v2732 = vpop.permute.xlu0 %2731
    %2733 = vset.pattern.permute.xlu0 0
    %2734 = vperm.xlu0 %2733, %v2707
    %v2735 = vpop.permute.xlu0 %2734
    %2736 = vset.pattern.permute.xlu0 0
    %2737 = vperm.xlu0 %2736, %v2708
    %v2738 = vpop.permute.xlu0 %2737
    %2739 = vset.pattern.permute.xlu0 0
    %2740 = vperm.xlu0 %2739, %v2709
    %v2741 = vpop.permute.xlu0 %2740
    %2742 = vset.pattern.permute.xlu0 0
    %2743 = vperm.xlu0 %2742, %v2710
    %v2744 = vpop.permute.xlu0 %2743
    %2745 = vset.pattern.permute.xlu0 0
    %2746 = vperm.xlu0 %2745, %v2711
    %v2747 = vpop.permute.xlu0 %2746
    %2748 = vset.pattern.permute.xlu0 0
    %2749 = vperm.xlu0 %2748, %v2712
    %v2750 = vpop.permute.xlu0 %2749
    %2751 = vset.pattern.permute.xlu0 0
    %2752 = vperm.xlu0 %2751, %v2713
    %v2753 = vpop.permute.xlu0 %2752
    %2754 = vset.pattern.permute.xlu0 0
    %2755 = vperm.xlu0 %2754, %v2714
    %v2756 = vpop.permute.xlu0 %2755
    %2757 = vset.pattern.permute.xlu0 0
    %2758 = vperm.xlu0 %2757, %v2715
    %v2759 = vpop.permute.xlu0 %2758
    %2760 = vset.pattern.permute.xlu0 0
    %2761 = vperm.xlu0 %2760, %v2716
    %v2762 = vpop.permute.xlu0 %2761
    %2763 = vset.pattern.permute.xlu0 0
    %2764 = vperm.xlu0 %2763, %v2717
    %v2765 = vpop.permute.xlu0 %2764
    %vm2766 = vcmp.eq.s32.totalorder %v2720, 1
    %vm2767 = vcmp.eq.s32.totalorder %v2723, 1
    %vm2768 = vcmp.eq.s32.totalorder %v2726, 1
    %vm2769 = vcmp.eq.s32.totalorder %v2729, 1
    %vm2770 = vcmp.eq.s32.totalorder %v2732, 1
    %vm2771 = vcmp.eq.s32.totalorder %v2735, 1
    %vm2772 = vcmp.eq.s32.totalorder %v2738, 1
    %vm2773 = vcmp.eq.s32.totalorder %v2741, 1
    %vm2774 = vcmp.eq.s32.totalorder %v2744, 1
    %vm2775 = vcmp.eq.s32.totalorder %v2747, 1
    %vm2776 = vcmp.eq.s32.totalorder %v2750, 1
    %vm2777 = vcmp.eq.s32.totalorder %v2753, 1
    %vm2778 = vcmp.eq.s32.totalorder %v2756, 1
    %vm2779 = vcmp.eq.s32.totalorder %v2759, 1
    %vm2780 = vcmp.eq.s32.totalorder %v2762, 1
    %vm2781 = vcmp.eq.s32.totalorder %v2765, 1
    %v2782 = vsel %vm2766, %v2431, 0.0
    %v2783 = vsel %vm2767, %v2437, 0.0
    %v2784 = vsel %vm2768, %v2443, 0.0
    %v2785 = vsel %vm2769, %v2449, 0.0
    %v2786 = vsel %vm2770, %v2455, 0.0
    %v2787 = vsel %vm2771, %v2461, 0.0
    %v2788 = vsel %vm2772, %v2467, 0.0
    %v2789 = vsel %vm2773, %v2473, 0.0
    %v2790 = vsel %vm2774, %v2479, 0.0
    %v2791 = vsel %vm2775, %v2485, 0.0
    %v2792 = vsel %vm2776, %v2491, 0.0
    %v2793 = vsel %vm2777, %v2497, 0.0
    %v2794 = vsel %vm2778, %v2503, 0.0
    %v2795 = vsel %vm2779, %v2509, 0.0
    %v2796 = vsel %vm2780, %v2515, 0.0
    %v2797 = vsel %vm2781, %v2521, 0.0
    %v2798 = vadd.f32 %v2782, 0.0
    %v2799 = vadd.f32 %v2783, 0.0
    %v2800 = vadd.f32 %v2784, 0.0
    %v2801 = vadd.f32 %v2785, 0.0
    %v2802 = vadd.f32 %v2786, 0.0
    %v2803 = vadd.f32 %v2787, 0.0
    %v2804 = vadd.f32 %v2788, 0.0
    %v2805 = vadd.f32 %v2789, 0.0
    %v2806 = vadd.f32 %v2790, 0.0
    %v2807 = vadd.f32 %v2791, 0.0
    %v2808 = vadd.f32 %v2792, 0.0
    %v2809 = vadd.f32 %v2793, 0.0
    %v2810 = vadd.f32 %v2794, 0.0
    %v2811 = vadd.f32 %v2795, 0.0
    %v2812 = vadd.f32 %v2796, 0.0
    %v2813 = vadd.f32 %v2797, 0.0
    %vm2814 = vcmp.eq.s32.totalorder %v1878, 1
    %vm2815 = vcmp.eq.s32.totalorder %v1879, 1
    %vm2816 = vcmp.eq.s32.totalorder %v1880, 1
    %vm2817 = vcmp.eq.s32.totalorder %v1881, 1
    %vm2818 = vcmp.eq.s32.totalorder %v1882, 1
    %vm2819 = vcmp.eq.s32.totalorder %v1883, 1
    %vm2820 = vcmp.eq.s32.totalorder %v1884, 1
    %vm2821 = vcmp.eq.s32.totalorder %v1885, 1
    %vm2822 = vcmp.eq.s32.totalorder %v1886, 1
    %vm2823 = vcmp.eq.s32.totalorder %v1887, 1
    %vm2824 = vcmp.eq.s32.totalorder %v1888, 1
    %vm2825 = vcmp.eq.s32.totalorder %v1889, 1
    %vm2826 = vcmp.eq.s32.totalorder %v1890, 1
    %vm2827 = vcmp.eq.s32.totalorder %v1891, 1
    %vm2828 = vcmp.eq.s32.totalorder %v1892, 1
    %vm2829 = vcmp.eq.s32.totalorder %v1893, 1
    %v2830 = vsel %vm2814, 1, 0
    %v2831 = vsel %vm2815, 1, 0
    %v2832 = vsel %vm2816, 1, 0
    %v2833 = vsel %vm2817, 1, 0
    %v2834 = vsel %vm2818, 1, 0
    %v2835 = vsel %vm2819, 1, 0
    %v2836 = vsel %vm2820, 1, 0
    %v2837 = vsel %vm2821, 1, 0
    %v2838 = vsel %vm2822, 1, 0
    %v2839 = vsel %vm2823, 1, 0
    %v2840 = vsel %vm2824, 1, 0
    %v2841 = vsel %vm2825, 1, 0
    %v2842 = vsel %vm2826, 1, 0
    %v2843 = vsel %vm2827, 1, 0
    %v2844 = vsel %vm2828, 1, 0
    %v2845 = vsel %vm2829, 1, 0
    %2846 = vset.pattern.permute.xlu0 0
    %2847 = vperm.xlu0 %2846, %v2830
    %v2848 = vpop.permute.xlu0 %2847
    %2849 = vset.pattern.permute.xlu0 0
    %2850 = vperm.xlu0 %2849, %v2831
    %v2851 = vpop.permute.xlu0 %2850
    %2852 = vset.pattern.permute.xlu0 0
    %2853 = vperm.xlu0 %2852, %v2832
    %v2854 = vpop.permute.xlu0 %2853
    %2855 = vset.pattern.permute.xlu0 0
    %2856 = vperm.xlu0 %2855, %v2833
    %v2857 = vpop.permute.xlu0 %2856
    %2858 = vset.pattern.permute.xlu0 0
    %2859 = vperm.xlu0 %2858, %v2834
    %v2860 = vpop.permute.xlu0 %2859
    %2861 = vset.pattern.permute.xlu0 0
    %2862 = vperm.xlu0 %2861, %v2835
    %v2863 = vpop.permute.xlu0 %2862
    %2864 = vset.pattern.permute.xlu0 0
    %2865 = vperm.xlu0 %2864, %v2836
    %v2866 = vpop.permute.xlu0 %2865
    %2867 = vset.pattern.permute.xlu0 0
    %2868 = vperm.xlu0 %2867, %v2837
    %v2869 = vpop.permute.xlu0 %2868
    %2870 = vset.pattern.permute.xlu0 0
    %2871 = vperm.xlu0 %2870, %v2838
    %v2872 = vpop.permute.xlu0 %2871
    %2873 = vset.pattern.permute.xlu0 0
    %2874 = vperm.xlu0 %2873, %v2839
    %v2875 = vpop.permute.xlu0 %2874
    %2876 = vset.pattern.permute.xlu0 0
    %2877 = vperm.xlu0 %2876, %v2840
    %v2878 = vpop.permute.xlu0 %2877
    %2879 = vset.pattern.permute.xlu0 0
    %2880 = vperm.xlu0 %2879, %v2841
    %v2881 = vpop.permute.xlu0 %2880
    %2882 = vset.pattern.permute.xlu0 0
    %2883 = vperm.xlu0 %2882, %v2842
    %v2884 = vpop.permute.xlu0 %2883
    %2885 = vset.pattern.permute.xlu0 0
    %2886 = vperm.xlu0 %2885, %v2843
    %v2887 = vpop.permute.xlu0 %2886
    %2888 = vset.pattern.permute.xlu0 0
    %2889 = vperm.xlu0 %2888, %v2844
    %v2890 = vpop.permute.xlu0 %2889
    %2891 = vset.pattern.permute.xlu0 0
    %2892 = vperm.xlu0 %2891, %v2845
    %v2893 = vpop.permute.xlu0 %2892
    %vm2894 = vcmp.eq.s32.totalorder %v2848, 1
    %vm2895 = vcmp.eq.s32.totalorder %v2851, 1
    %vm2896 = vcmp.eq.s32.totalorder %v2854, 1
    %vm2897 = vcmp.eq.s32.totalorder %v2857, 1
    %vm2898 = vcmp.eq.s32.totalorder %v2860, 1
    %vm2899 = vcmp.eq.s32.totalorder %v2863, 1
    %vm2900 = vcmp.eq.s32.totalorder %v2866, 1
    %vm2901 = vcmp.eq.s32.totalorder %v2869, 1
    %vm2902 = vcmp.eq.s32.totalorder %v2872, 1
    %vm2903 = vcmp.eq.s32.totalorder %v2875, 1
    %vm2904 = vcmp.eq.s32.totalorder %v2878, 1
    %vm2905 = vcmp.eq.s32.totalorder %v2881, 1
    %vm2906 = vcmp.eq.s32.totalorder %v2884, 1
    %vm2907 = vcmp.eq.s32.totalorder %v2887, 1
    %vm2908 = vcmp.eq.s32.totalorder %v2890, 1
    %vm2909 = vcmp.eq.s32.totalorder %v2893, 1
    %v2910 = vsel %vm2894, %v2433, 0.0
    %v2911 = vsel %vm2895, %v2439, 0.0
    %v2912 = vsel %vm2896, %v2445, 0.0
    %v2913 = vsel %vm2897, %v2451, 0.0
    %v2914 = vsel %vm2898, %v2457, 0.0
    %v2915 = vsel %vm2899, %v2463, 0.0
    %v2916 = vsel %vm2900, %v2469, 0.0
    %v2917 = vsel %vm2901, %v2475, 0.0
    %v2918 = vsel %vm2902, %v2481, 0.0
    %v2919 = vsel %vm2903, %v2487, 0.0
    %v2920 = vsel %vm2904, %v2493, 0.0
    %v2921 = vsel %vm2905, %v2499, 0.0
    %v2922 = vsel %vm2906, %v2505, 0.0
    %v2923 = vsel %vm2907, %v2511, 0.0
    %v2924 = vsel %vm2908, %v2517, 0.0
    %v2925 = vsel %vm2909, %v2523, 0.0
    %v2926 = vadd.f32 %v2798, %v2910
    %v2927 = vadd.f32 %v2799, %v2911
    %v2928 = vadd.f32 %v2800, %v2912
    %v2929 = vadd.f32 %v2801, %v2913
    %v2930 = vadd.f32 %v2802, %v2914
    %v2931 = vadd.f32 %v2803, %v2915
    %v2932 = vadd.f32 %v2804, %v2916
    %v2933 = vadd.f32 %v2805, %v2917
    %v2934 = vadd.f32 %v2806, %v2918
    %v2935 = vadd.f32 %v2807, %v2919
    %v2936 = vadd.f32 %v2808, %v2920
    %v2937 = vadd.f32 %v2809, %v2921
    %v2938 = vadd.f32 %v2810, %v2922
    %v2939 = vadd.f32 %v2811, %v2923
    %v2940 = vadd.f32 %v2812, %v2924
    %v2941 = vadd.f32 %v2813, %v2925
    %vm2942 = vcmp.eq.s32.totalorder %v1878, 2
    %vm2943 = vcmp.eq.s32.totalorder %v1879, 2
    %vm2944 = vcmp.eq.s32.totalorder %v1880, 2
    %vm2945 = vcmp.eq.s32.totalorder %v1881, 2
    %vm2946 = vcmp.eq.s32.totalorder %v1882, 2
    %vm2947 = vcmp.eq.s32.totalorder %v1883, 2
    %vm2948 = vcmp.eq.s32.totalorder %v1884, 2
    %vm2949 = vcmp.eq.s32.totalorder %v1885, 2
    %vm2950 = vcmp.eq.s32.totalorder %v1886, 2
    %vm2951 = vcmp.eq.s32.totalorder %v1887, 2
    %vm2952 = vcmp.eq.s32.totalorder %v1888, 2
    %vm2953 = vcmp.eq.s32.totalorder %v1889, 2
    %vm2954 = vcmp.eq.s32.totalorder %v1890, 2
    %vm2955 = vcmp.eq.s32.totalorder %v1891, 2
    %vm2956 = vcmp.eq.s32.totalorder %v1892, 2
    %vm2957 = vcmp.eq.s32.totalorder %v1893, 2
    %v2958 = vsel %vm2942, 1, 0
    %v2959 = vsel %vm2943, 1, 0
    %v2960 = vsel %vm2944, 1, 0
    %v2961 = vsel %vm2945, 1, 0
    %v2962 = vsel %vm2946, 1, 0
    %v2963 = vsel %vm2947, 1, 0
    %v2964 = vsel %vm2948, 1, 0
    %v2965 = vsel %vm2949, 1, 0
    %v2966 = vsel %vm2950, 1, 0
    %v2967 = vsel %vm2951, 1, 0
    %v2968 = vsel %vm2952, 1, 0
    %v2969 = vsel %vm2953, 1, 0
    %v2970 = vsel %vm2954, 1, 0
    %v2971 = vsel %vm2955, 1, 0
    %v2972 = vsel %vm2956, 1, 0
    %v2973 = vsel %vm2957, 1, 0
    %2974 = vset.pattern.permute.xlu0 0
    %2975 = vperm.xlu0 %2974, %v2958
    %v2976 = vpop.permute.xlu0 %2975
    %2977 = vset.pattern.permute.xlu0 0
    %2978 = vperm.xlu0 %2977, %v2959
    %v2979 = vpop.permute.xlu0 %2978
    %2980 = vset.pattern.permute.xlu0 0
    %2981 = vperm.xlu0 %2980, %v2960
    %v2982 = vpop.permute.xlu0 %2981
    %2983 = vset.pattern.permute.xlu0 0
    %2984 = vperm.xlu0 %2983, %v2961
    %v2985 = vpop.permute.xlu0 %2984
    %2986 = vset.pattern.permute.xlu0 0
    %2987 = vperm.xlu0 %2986, %v2962
    %v2988 = vpop.permute.xlu0 %2987
    %2989 = vset.pattern.permute.xlu0 0
    %2990 = vperm.xlu0 %2989, %v2963
    %v2991 = vpop.permute.xlu0 %2990
    %2992 = vset.pattern.permute.xlu0 0
    %2993 = vperm.xlu0 %2992, %v2964
    %v2994 = vpop.permute.xlu0 %2993
    %2995 = vset.pattern.permute.xlu0 0
    %2996 = vperm.xlu0 %2995, %v2965
    %v2997 = vpop.permute.xlu0 %2996
    %2998 = vset.pattern.permute.xlu0 0
    %2999 = vperm.xlu0 %2998, %v2966
    %v3000 = vpop.permute.xlu0 %2999
    %3001 = vset.pattern.permute.xlu0 0
    %3002 = vperm.xlu0 %3001, %v2967
    %v3003 = vpop.permute.xlu0 %3002
    %3004 = vset.pattern.permute.xlu0 0
    %3005 = vperm.xlu0 %3004, %v2968
    %v3006 = vpop.permute.xlu0 %3005
    %3007 = vset.pattern.permute.xlu0 0
    %3008 = vperm.xlu0 %3007, %v2969
    %v3009 = vpop.permute.xlu0 %3008
    %3010 = vset.pattern.permute.xlu0 0
    %3011 = vperm.xlu0 %3010, %v2970
    %v3012 = vpop.permute.xlu0 %3011
    %3013 = vset.pattern.permute.xlu0 0
    %3014 = vperm.xlu0 %3013, %v2971
    %v3015 = vpop.permute.xlu0 %3014
    %3016 = vset.pattern.permute.xlu0 0
    %3017 = vperm.xlu0 %3016, %v2972
    %v3018 = vpop.permute.xlu0 %3017
    %3019 = vset.pattern.permute.xlu0 0
    %3020 = vperm.xlu0 %3019, %v2973
    %v3021 = vpop.permute.xlu0 %3020
    %vm3022 = vcmp.eq.s32.totalorder %v2976, 1
    %vm3023 = vcmp.eq.s32.totalorder %v2979, 1
    %vm3024 = vcmp.eq.s32.totalorder %v2982, 1
    %vm3025 = vcmp.eq.s32.totalorder %v2985, 1
    %vm3026 = vcmp.eq.s32.totalorder %v2988, 1
    %vm3027 = vcmp.eq.s32.totalorder %v2991, 1
    %vm3028 = vcmp.eq.s32.totalorder %v2994, 1
    %vm3029 = vcmp.eq.s32.totalorder %v2997, 1
    %vm3030 = vcmp.eq.s32.totalorder %v3000, 1
    %vm3031 = vcmp.eq.s32.totalorder %v3003, 1
    %vm3032 = vcmp.eq.s32.totalorder %v3006, 1
    %vm3033 = vcmp.eq.s32.totalorder %v3009, 1
    %vm3034 = vcmp.eq.s32.totalorder %v3012, 1
    %vm3035 = vcmp.eq.s32.totalorder %v3015, 1
    %vm3036 = vcmp.eq.s32.totalorder %v3018, 1
    %vm3037 = vcmp.eq.s32.totalorder %v3021, 1
    %v3038 = vsel %vm3022, %v2592, 0.0
    %v3039 = vsel %vm3023, %v2598, 0.0
    %v3040 = vsel %vm3024, %v2604, 0.0
    %v3041 = vsel %vm3025, %v2610, 0.0
    %v3042 = vsel %vm3026, %v2616, 0.0
    %v3043 = vsel %vm3027, %v2622, 0.0
    %v3044 = vsel %vm3028, %v2628, 0.0
    %v3045 = vsel %vm3029, %v2634, 0.0
    %v3046 = vsel %vm3030, %v2640, 0.0
    %v3047 = vsel %vm3031, %v2646, 0.0
    %v3048 = vsel %vm3032, %v2652, 0.0
    %v3049 = vsel %vm3033, %v2658, 0.0
    %v3050 = vsel %vm3034, %v2664, 0.0
    %v3051 = vsel %vm3035, %v2670, 0.0
    %v3052 = vsel %vm3036, %v2676, 0.0
    %v3053 = vsel %vm3037, %v2682, 0.0
    %v3054 = vadd.f32 %v2926, %v3038
    %v3055 = vadd.f32 %v2927, %v3039
    %v3056 = vadd.f32 %v2928, %v3040
    %v3057 = vadd.f32 %v2929, %v3041
    %v3058 = vadd.f32 %v2930, %v3042
    %v3059 = vadd.f32 %v2931, %v3043
    %v3060 = vadd.f32 %v2932, %v3044
    %v3061 = vadd.f32 %v2933, %v3045
    %v3062 = vadd.f32 %v2934, %v3046
    %v3063 = vadd.f32 %v2935, %v3047
    %v3064 = vadd.f32 %v2936, %v3048
    %v3065 = vadd.f32 %v2937, %v3049
    %v3066 = vadd.f32 %v2938, %v3050
    %v3067 = vadd.f32 %v2939, %v3051
    %v3068 = vadd.f32 %v2940, %v3052
    %v3069 = vadd.f32 %v2941, %v3053
    %vm3070 = vcmp.eq.s32.totalorder %v1878, 3
    %vm3071 = vcmp.eq.s32.totalorder %v1879, 3
    %vm3072 = vcmp.eq.s32.totalorder %v1880, 3
    %vm3073 = vcmp.eq.s32.totalorder %v1881, 3
    %vm3074 = vcmp.eq.s32.totalorder %v1882, 3
    %vm3075 = vcmp.eq.s32.totalorder %v1883, 3
    %vm3076 = vcmp.eq.s32.totalorder %v1884, 3
    %vm3077 = vcmp.eq.s32.totalorder %v1885, 3
    %vm3078 = vcmp.eq.s32.totalorder %v1886, 3
    %vm3079 = vcmp.eq.s32.totalorder %v1887, 3
    %vm3080 = vcmp.eq.s32.totalorder %v1888, 3
    %vm3081 = vcmp.eq.s32.totalorder %v1889, 3
    %vm3082 = vcmp.eq.s32.totalorder %v1890, 3
    %vm3083 = vcmp.eq.s32.totalorder %v1891, 3
    %vm3084 = vcmp.eq.s32.totalorder %v1892, 3
    %vm3085 = vcmp.eq.s32.totalorder %v1893, 3
    %v3086 = vsel %vm3070, 1, 0
    %v3087 = vsel %vm3071, 1, 0
    %v3088 = vsel %vm3072, 1, 0
    %v3089 = vsel %vm3073, 1, 0
    %v3090 = vsel %vm3074, 1, 0
    %v3091 = vsel %vm3075, 1, 0
    %v3092 = vsel %vm3076, 1, 0
    %v3093 = vsel %vm3077, 1, 0
    %v3094 = vsel %vm3078, 1, 0
    %v3095 = vsel %vm3079, 1, 0
    %v3096 = vsel %vm3080, 1, 0
    %v3097 = vsel %vm3081, 1, 0
    %v3098 = vsel %vm3082, 1, 0
    %v3099 = vsel %vm3083, 1, 0
    %v3100 = vsel %vm3084, 1, 0
    %v3101 = vsel %vm3085, 1, 0
    %3102 = vset.pattern.permute.xlu0 0
    %3103 = vperm.xlu0 %3102, %v3086
    %v3104 = vpop.permute.xlu0 %3103
    %3105 = vset.pattern.permute.xlu0 0
    %3106 = vperm.xlu0 %3105, %v3087
    %v3107 = vpop.permute.xlu0 %3106
    %3108 = vset.pattern.permute.xlu0 0
    %3109 = vperm.xlu0 %3108, %v3088
    %v3110 = vpop.permute.xlu0 %3109
    %3111 = vset.pattern.permute.xlu0 0
    %3112 = vperm.xlu0 %3111, %v3089
    %v3113 = vpop.permute.xlu0 %3112
    %3114 = vset.pattern.permute.xlu0 0
    %3115 = vperm.xlu0 %3114, %v3090
    %v3116 = vpop.permute.xlu0 %3115
    %3117 = vset.pattern.permute.xlu0 0
    %3118 = vperm.xlu0 %3117, %v3091
    %v3119 = vpop.permute.xlu0 %3118
    %3120 = vset.pattern.permute.xlu0 0
    %3121 = vperm.xlu0 %3120, %v3092
    %v3122 = vpop.permute.xlu0 %3121
    %3123 = vset.pattern.permute.xlu0 0
    %3124 = vperm.xlu0 %3123, %v3093
    %v3125 = vpop.permute.xlu0 %3124
    %3126 = vset.pattern.permute.xlu0 0
    %3127 = vperm.xlu0 %3126, %v3094
    %v3128 = vpop.permute.xlu0 %3127
    %3129 = vset.pattern.permute.xlu0 0
    %3130 = vperm.xlu0 %3129, %v3095
    %v3131 = vpop.permute.xlu0 %3130
    %3132 = vset.pattern.permute.xlu0 0
    %3133 = vperm.xlu0 %3132, %v3096
    %v3134 = vpop.permute.xlu0 %3133
    %3135 = vset.pattern.permute.xlu0 0
    %3136 = vperm.xlu0 %3135, %v3097
    %v3137 = vpop.permute.xlu0 %3136
    %3138 = vset.pattern.permute.xlu0 0
    %3139 = vperm.xlu0 %3138, %v3098
    %v3140 = vpop.permute.xlu0 %3139
    %3141 = vset.pattern.permute.xlu0 0
    %3142 = vperm.xlu0 %3141, %v3099
    %v3143 = vpop.permute.xlu0 %3142
    %3144 = vset.pattern.permute.xlu0 0
    %3145 = vperm.xlu0 %3144, %v3100
    %v3146 = vpop.permute.xlu0 %3145
    %3147 = vset.pattern.permute.xlu0 0
    %3148 = vperm.xlu0 %3147, %v3101
    %v3149 = vpop.permute.xlu0 %3148
    %vm3150 = vcmp.eq.s32.totalorder %v3104, 1
    %vm3151 = vcmp.eq.s32.totalorder %v3107, 1
    %vm3152 = vcmp.eq.s32.totalorder %v3110, 1
    %vm3153 = vcmp.eq.s32.totalorder %v3113, 1
    %vm3154 = vcmp.eq.s32.totalorder %v3116, 1
    %vm3155 = vcmp.eq.s32.totalorder %v3119, 1
    %vm3156 = vcmp.eq.s32.totalorder %v3122, 1
    %vm3157 = vcmp.eq.s32.totalorder %v3125, 1
    %vm3158 = vcmp.eq.s32.totalorder %v3128, 1
    %vm3159 = vcmp.eq.s32.totalorder %v3131, 1
    %vm3160 = vcmp.eq.s32.totalorder %v3134, 1
    %vm3161 = vcmp.eq.s32.totalorder %v3137, 1
    %vm3162 = vcmp.eq.s32.totalorder %v3140, 1
    %vm3163 = vcmp.eq.s32.totalorder %v3143, 1
    %vm3164 = vcmp.eq.s32.totalorder %v3146, 1
    %vm3165 = vcmp.eq.s32.totalorder %v3149, 1
    %v3166 = vsel %vm3150, %v2594, 0.0
    %v3167 = vsel %vm3151, %v2600, 0.0
    %v3168 = vsel %vm3152, %v2606, 0.0
    %v3169 = vsel %vm3153, %v2612, 0.0
    %v3170 = vsel %vm3154, %v2618, 0.0
    %v3171 = vsel %vm3155, %v2624, 0.0
    %v3172 = vsel %vm3156, %v2630, 0.0
    %v3173 = vsel %vm3157, %v2636, 0.0
    %v3174 = vsel %vm3158, %v2642, 0.0
    %v3175 = vsel %vm3159, %v2648, 0.0
    %v3176 = vsel %vm3160, %v2654, 0.0
    %v3177 = vsel %vm3161, %v2660, 0.0
    %v3178 = vsel %vm3162, %v2666, 0.0
    %v3179 = vsel %vm3163, %v2672, 0.0
    %v3180 = vsel %vm3164, %v2678, 0.0
    %v3181 = vsel %vm3165, %v2684, 0.0
    %v3182 = vadd.f32 %v3054, %v3166
    %v3183 = vadd.f32 %v3055, %v3167
    %v3184 = vadd.f32 %v3056, %v3168
    %v3185 = vadd.f32 %v3057, %v3169
    %v3186 = vadd.f32 %v3058, %v3170
    %v3187 = vadd.f32 %v3059, %v3171
    %v3188 = vadd.f32 %v3060, %v3172
    %v3189 = vadd.f32 %v3061, %v3173
    %v3190 = vadd.f32 %v3062, %v3174
    %v3191 = vadd.f32 %v3063, %v3175
    %v3192 = vadd.f32 %v3064, %v3176
    %v3193 = vadd.f32 %v3065, %v3177
    %v3194 = vadd.f32 %v3066, %v3178
    %v3195 = vadd.f32 %v3067, %v3179
    %v3196 = vadd.f32 %v3068, %v3180
    %v3197 = vadd.f32 %v3069, %v3181
    %3199 = vset.pattern.permute.xlu0 0
    %3200 = vperm.xlu0 %3199, %v2292
    %v3201 = vpop.permute.xlu0 %3200
    %3204 = vset.pattern.permute.xlu0 0
    %3205 = vperm.xlu0 %3204, %v2293
    %v3206 = vpop.permute.xlu0 %3205
    %3209 = vset.pattern.permute.xlu0 0
    %3210 = vperm.xlu0 %3209, %v2294
    %v3211 = vpop.permute.xlu0 %3210
    %3214 = vset.pattern.permute.xlu0 0
    %3215 = vperm.xlu0 %3214, %v2295
    %v3216 = vpop.permute.xlu0 %3215
    %3219 = vset.pattern.permute.xlu0 0
    %3220 = vperm.xlu0 %3219, %v2296
    %v3221 = vpop.permute.xlu0 %3220
    %3224 = vset.pattern.permute.xlu0 0
    %3225 = vperm.xlu0 %3224, %v2297
    %v3226 = vpop.permute.xlu0 %3225
    %3229 = vset.pattern.permute.xlu0 0
    %3230 = vperm.xlu0 %3229, %v2298
    %v3231 = vpop.permute.xlu0 %3230
    %3234 = vset.pattern.permute.xlu0 0
    %3235 = vperm.xlu0 %3234, %v2299
    %v3236 = vpop.permute.xlu0 %3235
    %3239 = vset.pattern.permute.xlu0 0
    %3240 = vperm.xlu0 %3239, %v2300
    %v3241 = vpop.permute.xlu0 %3240
    %3244 = vset.pattern.permute.xlu0 0
    %3245 = vperm.xlu0 %3244, %v2301
    %v3246 = vpop.permute.xlu0 %3245
    %3249 = vset.pattern.permute.xlu0 0
    %3250 = vperm.xlu0 %3249, %v2302
    %v3251 = vpop.permute.xlu0 %3250
    %3254 = vset.pattern.permute.xlu0 0
    %3255 = vperm.xlu0 %3254, %v2303
    %v3256 = vpop.permute.xlu0 %3255
    %3259 = vset.pattern.permute.xlu0 0
    %3260 = vperm.xlu0 %3259, %v2304
    %v3261 = vpop.permute.xlu0 %3260
    %3264 = vset.pattern.permute.xlu0 0
    %3265 = vperm.xlu0 %3264, %v2305
    %v3266 = vpop.permute.xlu0 %3265
    %3269 = vset.pattern.permute.xlu0 0
    %3270 = vperm.xlu0 %3269, %v2306
    %v3271 = vpop.permute.xlu0 %3270
    %3274 = vset.pattern.permute.xlu0 0
    %3275 = vperm.xlu0 %3274, %v2307
    %v3276 = vpop.permute.xlu0 %3275
    %v3278 = vmul.f32 %v3201, %v3182
    %v3279 = vmul.f32 %v3206, %v3183
    %v3280 = vmul.f32 %v3211, %v3184
    %v3281 = vmul.f32 %v3216, %v3185
    %v3282 = vmul.f32 %v3221, %v3186
    %v3283 = vmul.f32 %v3226, %v3187
    %v3284 = vmul.f32 %v3231, %v3188
    %v3285 = vmul.f32 %v3236, %v3189
    %v3286 = vmul.f32 %v3241, %v3190
    %v3287 = vmul.f32 %v3246, %v3191
    %v3288 = vmul.f32 %v3251, %v3192
    %v3289 = vmul.f32 %v3256, %v3193
    %v3290 = vmul.f32 %v3261, %v3194
    %v3291 = vmul.f32 %v3266, %v3195
    %v3292 = vmul.f32 %v3271, %v3196
    %v3293 = vmul.f32 %v3276, %v3197
    %v3294 = vld [vmem:[%s3] sm:$0x1]
    %v3295 = vlaneseq
    %v3296 = vshrl.u32 %v3295, 7
    %v3297 = vsub.s32 0, %v3296
    %v3298 = vrot.slane %v3294, %v3297
    %vm3299 = vcmp.eq.s32.totalorder %v365, %v3298
    %vm3300 = vcmp.eq.s32.totalorder %v366, %v3298
    %v3301 = vsel %vm3299, 1.0, 0.0
    %v3302 = vsel %vm3300, 1.0, 0.0
    %v3303 = vld [vmem:[#allocation3] sm:$0xff]
    %v3304 = vld [vmem:[#allocation3 + $0x8] sm:$0xff]
    %3305 = vmatprep.subr.mxu0 0.0
    %3306 = vmatpush1.msra.mxu0 %v3278
    %3307 = vmatprep.subr.mxu0 0.0
    %3308 = vmatpush1.msra.mxu0 %v3279
    %3309 = vmatprep.subr.mxu0 0.0
    %3310 = vmatpush1.msra.mxu0 %v3280
    %3311 = vmatprep.subr.mxu0 0.0
    %3312 = vmatpush1.msra.mxu0 %v3281
    %3313 = vmatprep.subr.mxu0 0.0
    %3314 = vmatpush1.msra.mxu0 %v3282
    %3315 = vmatprep.subr.mxu0 0.0
    %3316 = vmatpush1.msra.mxu0 %v3283
    %3317 = vmatprep.subr.mxu0 0.0
    %3318 = vmatpush1.msra.mxu0 %v3284
    %3319 = vmatprep.subr.mxu0 0.0
    %3320 = vmatpush1.msra.mxu0 %v3285
    %3321 = vmatprep.subr.mxu0 0.0
    %3322 = vmatpush1.msra.mxu0 %v3286
    %3323 = vmatprep.subr.mxu0 0.0
    %3324 = vmatpush1.msra.mxu0 %v3287
    %3325 = vmatprep.subr.mxu0 0.0
    %3326 = vmatpush1.msra.mxu0 %v3288
    %3327 = vmatprep.subr.mxu0 0.0
    %3328 = vmatpush1.msra.mxu0 %v3289
    %3329 = vmatprep.subr.mxu0 0.0
    %3330 = vmatpush1.msra.mxu0 %v3290
    %3331 = vmatprep.subr.mxu0 0.0
    %3332 = vmatpush1.msra.mxu0 %v3291
    %3333 = vmatprep.subr.mxu0 0.0
    %3334 = vmatpush1.msra.mxu0 %v3292
    %3335 = vmatprep.subr.mxu0 0.0
    %3336 = vmatpush1.msra.mxu0 %v3293
    %3337 = vmatprep.subr.mxu0 0.0
    %3338 = vmatpush1.msra.mxu0 0.0
    %3339 = vmatprep.subr.mxu0 0.0
    %3340 = vmatpush1.msra.mxu0 0.0
    %3341 = vmatprep.subr.mxu0 0.0
    %3342 = vmatpush1.msra.mxu0 0.0
    %3343 = vmatprep.subr.mxu0 0.0
    %3344 = vmatpush1.msra.mxu0 0.0
    %3345 = vmatprep.subr.mxu0 0.0
    %3346 = vmatpush1.msra.mxu0 0.0
    %3347 = vmatprep.subr.mxu0 0.0
    %3348 = vmatpush1.msra.mxu0 0.0
    %3349 = vmatprep.subr.mxu0 0.0
    %3350 = vmatpush1.msra.mxu0 0.0
    %3351 = vmatprep.subr.mxu0 0.0
    %3352 = vmatpush1.msra.mxu0 0.0
    %3353 = vmatprep.subr.mxu0 0.0
    %3354 = vmatpush1.msra.mxu0 0.0
    %3355 = vmatprep.subr.mxu0 0.0
    %3356 = vmatpush1.msra.mxu0 0.0
    %3357 = vmatprep.subr.mxu0 0.0
    %3358 = vmatpush1.msra.mxu0 0.0
    %3359 = vmatprep.subr.mxu0 0.0
    %3360 = vmatpush1.msra.mxu0 0.0
    %3361 = vmatprep.subr.mxu0 0.0
    %3362 = vmatpush1.msra.mxu0 0.0
    %3363 = vmatprep.subr.mxu0 0.0
    %3364 = vmatpush1.msra.mxu0 0.0
    %3365 = vmatprep.subr.mxu0 0.0
    %3366 = vmatpush1.msra.mxu0 0.0
    %3367 = vmatprep.subr.mxu0 0.0
    %3368 = vmatpush1.msra.mxu0 0.0
    %3369 = vmatprep.mubr.f32.mxu0 0.0
    %3370 = vmatmul.mubr.f32.gmra.mrb[0].mxu0 %v3301
    %v3371 = vpop.f32.mrb[0].mxu0
    %v3372 = vadd.f32 0.0, %v3371
    %v3373 = vpop.f32.mrb[0].mxu0
    %3374 = vmatprep.mubr.f32.mxu0 0.0
    %3375 = vmatmul.mubr.f32.gmra.mrb[0].mxu0 %v3302
    %v3376 = vpop.f32.mrb[0].mxu0
    %v3377 = vadd.f32 0.0, %v3376
    %v3378 = vpop.f32.mrb[0].mxu0
    %3379 = vdwg.mxu0
    %v3380 = vadd.f32 %v3303, %v3372
    %v3381 = vadd.f32 %v3304, %v3377
    %3382 = vst [vmem:[#allocation3] sm:$0xff] %v3380
    %3383 = vst [vmem:[#allocation3 + $0x8] sm:$0xff] %v3381
    %v3384 = vld [vmem:[#allocation3] sm:$0xff]
    %v3385 = vld [vmem:[#allocation3 + $0x8] sm:$0xff]
    %v3386 = vmax.f32 %v3384, 0.0
    %v3387 = vmax.f32 %v3385, 0.0
    %v3388 = vld [vmem:[#allocation7] sm:$0xff]
    %v3389 = vld [vmem:[#allocation7 + $0x8] sm:$0xff]
    %v3390 = vld [vmem:[#allocation7 + $0x10] sm:$0xff]
    %v3391 = vld [vmem:[#allocation7 + $0x18] sm:$0xff]
    %v3392 = vld [vmem:[#allocation7 + $0x20] sm:$0xff]
    %v3393 = vld [vmem:[#allocation7 + $0x28] sm:$0xff]
    %v3394 = vld [vmem:[#allocation7 + $0x30] sm:$0xff]
    %v3395 = vld [vmem:[#allocation7 + $0x38] sm:$0xff]
    %v3396 = vld [vmem:[#allocation7 + $0x40] sm:$0xff]
    %v3397 = vld [vmem:[#allocation7 + $0x48] sm:$0xff]
    %v3398 = vld [vmem:[#allocation7 + $0x50] sm:$0xff]
    %v3399 = vld [vmem:[#allocation7 + $0x58] sm:$0xff]
    %v3400 = vld [vmem:[#allocation7 + $0x60] sm:$0xff]
    %v3401 = vld [vmem:[#allocation7 + $0x68] sm:$0xff]
    %v3402 = vld [vmem:[#allocation7 + $0x70] sm:$0xff]
    %v3403 = vld [vmem:[#allocation7 + $0x78] sm:$0xff]
    %v3404 = vld [vmem:[#allocation7 + $0x80] sm:$0xff]
    %v3405 = vld [vmem:[#allocation7 + $0x88] sm:$0xff]
    %v3406 = vld [vmem:[#allocation7 + $0x90] sm:$0xff]
    %v3407 = vld [vmem:[#allocation7 + $0x98] sm:$0xff]
    %v3408 = vld [vmem:[#allocation7 + $0xa0] sm:$0xff]
    %v3409 = vld [vmem:[#allocation7 + $0xa8] sm:$0xff]
    %v3410 = vld [vmem:[#allocation7 + $0xb0] sm:$0xff]
    %v3411 = vld [vmem:[#allocation7 + $0xb8] sm:$0xff]
    %v3412 = vld [vmem:[#allocation7 + $0xc0] sm:$0xff]
    %v3413 = vld [vmem:[#allocation7 + $0xc8] sm:$0xff]
    %v3414 = vld [vmem:[#allocation7 + $0xd0] sm:$0xff]
    %v3415 = vld [vmem:[#allocation7 + $0xd8] sm:$0xff]
    %v3416 = vld [vmem:[#allocation7 + $0xe0] sm:$0xff]
    %v3417 = vld [vmem:[#allocation7 + $0xe8] sm:$0xff]
    %v3418 = vld [vmem:[#allocation7 + $0xf0] sm:$0xff]
    %v3419 = vld [vmem:[#allocation7 + $0xf8] sm:$0xff]
    %v3420 = vld [vmem:[#allocation7 + $0x100] sm:$0xff]
    %v3421 = vld [vmem:[#allocation7 + $0x108] sm:$0xff]
    %v3422 = vld [vmem:[#allocation7 + $0x110] sm:$0xff]
    %v3423 = vld [vmem:[#allocation7 + $0x118] sm:$0xff]
    %v3424 = vld [vmem:[#allocation7 + $0x120] sm:$0xff]
    %v3425 = vld [vmem:[#allocation7 + $0x128] sm:$0xff]
    %v3426 = vld [vmem:[#allocation7 + $0x130] sm:$0xff]
    %v3427 = vld [vmem:[#allocation7 + $0x138] sm:$0xff]
    %v3428 = vld [vmem:[#allocation7 + $0x140] sm:$0xff]
    %v3429 = vld [vmem:[#allocation7 + $0x148] sm:$0xff]
    %v3430 = vld [vmem:[#allocation7 + $0x150] sm:$0xff]
    %v3431 = vld [vmem:[#allocation7 + $0x158] sm:$0xff]
    %v3432 = vld [vmem:[#allocation7 + $0x160] sm:$0xff]
    %v3433 = vld [vmem:[#allocation7 + $0x168] sm:$0xff]
    %v3434 = vld [vmem:[#allocation7 + $0x170] sm:$0xff]
    %v3435 = vld [vmem:[#allocation7 + $0x178] sm:$0xff]
    %v3436 = vld [vmem:[#allocation7 + $0x180] sm:$0xff]
    %v3437 = vld [vmem:[#allocation7 + $0x188] sm:$0xff]
    %v3438 = vld [vmem:[#allocation7 + $0x190] sm:$0xff]
    %v3439 = vld [vmem:[#allocation7 + $0x198] sm:$0xff]
    %v3440 = vld [vmem:[#allocation7 + $0x1a0] sm:$0xff]
    %v3441 = vld [vmem:[#allocation7 + $0x1a8] sm:$0xff]
    %v3442 = vld [vmem:[#allocation7 + $0x1b0] sm:$0xff]
    %v3443 = vld [vmem:[#allocation7 + $0x1b8] sm:$0xff]
    %v3444 = vld [vmem:[#allocation7 + $0x1c0] sm:$0xff]
    %v3445 = vld [vmem:[#allocation7 + $0x1c8] sm:$0xff]
    %v3446 = vld [vmem:[#allocation7 + $0x1d0] sm:$0xff]
    %v3447 = vld [vmem:[#allocation7 + $0x1d8] sm:$0xff]
    %v3448 = vld [vmem:[#allocation7 + $0x1e0] sm:$0xff]
    %v3449 = vld [vmem:[#allocation7 + $0x1e8] sm:$0xff]
    %v3450 = vld [vmem:[#allocation7 + $0x1f0] sm:$0xff]
    %v3451 = vld [vmem:[#allocation7 + $0x1f8] sm:$0xff]
    %v3452 = vld [vmem:[#allocation7 + $0x200] sm:$0xff]
    %v3453 = vld [vmem:[#allocation7 + $0x208] sm:$0xff]
    %v3454 = vld [vmem:[#allocation7 + $0x210] sm:$0xff]
    %v3455 = vld [vmem:[#allocation7 + $0x218] sm:$0xff]
    %v3456 = vld [vmem:[#allocation7 + $0x220] sm:$0xff]
    %v3457 = vld [vmem:[#allocation7 + $0x228] sm:$0xff]
    %v3458 = vld [vmem:[#allocation7 + $0x230] sm:$0xff]
    %v3459 = vld [vmem:[#allocation7 + $0x238] sm:$0xff]
    %v3460 = vld [vmem:[#allocation7 + $0x240] sm:$0xff]
    %v3461 = vld [vmem:[#allocation7 + $0x248] sm:$0xff]
    %v3462 = vld [vmem:[#allocation7 + $0x250] sm:$0xff]
    %v3463 = vld [vmem:[#allocation7 + $0x258] sm:$0xff]
    %v3464 = vld [vmem:[#allocation7 + $0x260] sm:$0xff]
    %v3465 = vld [vmem:[#allocation7 + $0x268] sm:$0xff]
    %v3466 = vld [vmem:[#allocation7 + $0x270] sm:$0xff]
    %v3467 = vld [vmem:[#allocation7 + $0x278] sm:$0xff]
    %3468 = vmatprep.subr.mxu0 %v3389
    %3469 = vmatpush1.msra.mxu0 %v3388
    %3470 = vmatprep.subr.mxu0 %v3394
    %3471 = vmatpush1.msra.mxu0 %v3393
    %3472 = vmatprep.subr.mxu0 %v3399
    %3473 = vmatpush1.msra.mxu0 %v3398
    %3474 = vmatprep.subr.mxu0 %v3404
    %3475 = vmatpush1.msra.mxu0 %v3403
    %3476 = vmatprep.subr.mxu0 %v3409
    %3477 = vmatpush1.msra.mxu0 %v3408
    %3478 = vmatprep.subr.mxu0 %v3414
    %3479 = vmatpush1.msra.mxu0 %v3413
    %3480 = vmatprep.subr.mxu0 %v3419
    %3481 = vmatpush1.msra.mxu0 %v3418
    %3482 = vmatprep.subr.mxu0 %v3424
    %3483 = vmatpush1.msra.mxu0 %v3423
    %3484 = vmatprep.subr.mxu0 %v3429
    %3485 = vmatpush1.msra.mxu0 %v3428
    %3486 = vmatprep.subr.mxu0 %v3434
    %3487 = vmatpush1.msra.mxu0 %v3433
    %3488 = vmatprep.subr.mxu0 %v3439
    %3489 = vmatpush1.msra.mxu0 %v3438
    %3490 = vmatprep.subr.mxu0 %v3444
    %3491 = vmatpush1.msra.mxu0 %v3443
    %3492 = vmatprep.subr.mxu0 %v3449
    %3493 = vmatpush1.msra.mxu0 %v3448
    %3494 = vmatprep.subr.mxu0 %v3454
    %3495 = vmatpush1.msra.mxu0 %v3453
    %3496 = vmatprep.subr.mxu0 %v3459
    %3497 = vmatpush1.msra.mxu0 %v3458
    %3498 = vmatprep.subr.mxu0 %v3464
    %3499 = vmatpush1.msra.mxu0 %v3463
    %3500 = vmatprep.subr.mxu0 0.0
    %3501 = vmatpush1.msra.mxu0 0.0
    %3502 = vmatprep.subr.mxu0 0.0
    %3503 = vmatpush1.msra.mxu0 0.0
    %3504 = vmatprep.subr.mxu0 0.0
    %3505 = vmatpush1.msra.mxu0 0.0
    %3506 = vmatprep.subr.mxu0 0.0
    %3507 = vmatpush1.msra.mxu0 0.0
    %3508 = vmatprep.subr.mxu0 0.0
    %3509 = vmatpush1.msra.mxu0 0.0
    %3510 = vmatprep.subr.mxu0 0.0
    %3511 = vmatpush1.msra.mxu0 0.0
    %3512 = vmatprep.subr.mxu0 0.0
    %3513 = vmatpush1.msra.mxu0 0.0
    %3514 = vmatprep.subr.mxu0 0.0
    %3515 = vmatpush1.msra.mxu0 0.0
    %3516 = vmatprep.subr.mxu0 0.0
    %3517 = vmatpush1.msra.mxu0 0.0
    %3518 = vmatprep.subr.mxu0 0.0
    %3519 = vmatpush1.msra.mxu0 0.0
    %3520 = vmatprep.subr.mxu0 0.0
    %3521 = vmatpush1.msra.mxu0 0.0
    %3522 = vmatprep.subr.mxu0 0.0
    %3523 = vmatpush1.msra.mxu0 0.0
    %3524 = vmatprep.subr.mxu0 0.0
    %3525 = vmatpush1.msra.mxu0 0.0
    %3526 = vmatprep.subr.mxu0 0.0
    %3527 = vmatpush1.msra.mxu0 0.0
    %3528 = vmatprep.subr.mxu0 0.0
    %3529 = vmatpush1.msra.mxu0 0.0
    %3530 = vmatprep.subr.mxu0 0.0
    %3531 = vmatpush1.msra.mxu0 0.0
    %3532 = vmatprep.mubr.f32.mxu0 0.0
    %3533 = vmatmul.mubr.f32.gmra.mrb[0].mxu0 %v3386
    %v3534 = vpop.f32.mrb[0].mxu0
    %v3535 = vadd.f32 0.0, %v3534
    %v3536 = vpop.f32.mrb[0].mxu0
    %v3537 = vadd.f32 0.0, %v3536
    %3538 = vmatprep.mubr.f32.mxu0 0.0
    %3539 = vmatmul.mubr.f32.gmra.mrb[0].mxu0 %v3387
    %v3540 = vpop.f32.mrb[0].mxu0
    %v3541 = vadd.f32 0.0, %v3540
    %v3542 = vpop.f32.mrb[0].mxu0
    %v3543 = vadd.f32 0.0, %v3542
    %3544 = vdwg.mxu0
    %3545 = vmatprep.subr.mxu0 %v3391
    %3546 = vmatpush1.msra.mxu0 %v3390
    %3547 = vmatprep.subr.mxu0 %v3396
    %3548 = vmatpush1.msra.mxu0 %v3395
    %3549 = vmatprep.subr.mxu0 %v3401
    %3550 = vmatpush1.msra.mxu0 %v3400
    %3551 = vmatprep.subr.mxu0 %v3406
    %3552 = vmatpush1.msra.mxu0 %v3405
    %3553 = vmatprep.subr.mxu0 %v3411
    %3554 = vmatpush1.msra.mxu0 %v3410
    %3555 = vmatprep.subr.mxu0 %v3416
    %3556 = vmatpush1.msra.mxu0 %v3415
    %3557 = vmatprep.subr.mxu0 %v3421
    %3558 = vmatpush1.msra.mxu0 %v3420
    %3559 = vmatprep.subr.mxu0 %v3426
    %3560 = vmatpush1.msra.mxu0 %v3425
    %3561 = vmatprep.subr.mxu0 %v3431
    %3562 = vmatpush1.msra.mxu0 %v3430
    %3563 = vmatprep.subr.mxu0 %v3436
    %3564 = vmatpush1.msra.mxu0 %v3435
    %3565 = vmatprep.subr.mxu0 %v3441
    %3566 = vmatpush1.msra.mxu0 %v3440
    %3567 = vmatprep.subr.mxu0 %v3446
    %3568 = vmatpush1.msra.mxu0 %v3445
    %3569 = vmatprep.subr.mxu0 %v3451
    %3570 = vmatpush1.msra.mxu0 %v3450
    %3571 = vmatprep.subr.mxu0 %v3456
    %3572 = vmatpush1.msra.mxu0 %v3455
    %3573 = vmatprep.subr.mxu0 %v3461
    %3574 = vmatpush1.msra.mxu0 %v3460
    %3575 = vmatprep.subr.mxu0 %v3466
    %3576 = vmatpush1.msra.mxu0 %v3465
    %3577 = vmatprep.subr.mxu0 0.0
    %3578 = vmatpush1.msra.mxu0 0.0
    %3579 = vmatprep.subr.mxu0 0.0
    %3580 = vmatpush1.msra.mxu0 0.0
    %3581 = vmatprep.subr.mxu0 0.0
    %3582 = vmatpush1.msra.mxu0 0.0
    %3583 = vmatprep.subr.mxu0 0.0
    %3584 = vmatpush1.msra.mxu0 0.0
    %3585 = vmatprep.subr.mxu0 0.0
    %3586 = vmatpush1.msra.mxu0 0.0
    %3587 = vmatprep.subr.mxu0 0.0
    %3588 = vmatpush1.msra.mxu0 0.0
    %3589 = vmatprep.subr.mxu0 0.0
    %3590 = vmatpush1.msra.mxu0 0.0
    %3591 = vmatprep.subr.mxu0 0.0
    %3592 = vmatpush1.msra.mxu0 0.0
    %3593 = vmatprep.subr.mxu0 0.0
    %3594 = vmatpush1.msra.mxu0 0.0
    %3595 = vmatprep.subr.mxu0 0.0
    %3596 = vmatpush1.msra.mxu0 0.0
    %3597 = vmatprep.subr.mxu0 0.0
    %3598 = vmatpush1.msra.mxu0 0.0
    %3599 = vmatprep.subr.mxu0 0.0
    %3600 = vmatpush1.msra.mxu0 0.0
    %3601 = vmatprep.subr.mxu0 0.0
    %3602 = vmatpush1.msra.mxu0 0.0
    %3603 = vmatprep.subr.mxu0 0.0
    %3604 = vmatpush1.msra.mxu0 0.0
    %3605 = vmatprep.subr.mxu0 0.0
    %3606 = vmatpush1.msra.mxu0 0.0
    %3607 = vmatprep.subr.mxu0 0.0
    %3608 = vmatpush1.msra.mxu0 0.0
    %3609 = vmatprep.mubr.f32.mxu0 0.0
    %3610 = vmatmul.mubr.f32.gmra.mrb[0].mxu0 %v3386
    %v3611 = vpop.f32.mrb[0].mxu0
    %v3612 = vadd.f32 0.0, %v3611
    %v3613 = vpop.f32.mrb[0].mxu0
    %v3614 = vadd.f32 0.0, %v3613
    %3615 = vmatprep.mubr.f32.mxu0 0.0
    %3616 = vmatmul.mubr.f32.gmra.mrb[0].mxu0 %v3387
    %v3617 = vpop.f32.mrb[0].mxu0
    %v3618 = vadd.f32 0.0, %v3617
    %v3619 = vpop.f32.mrb[0].mxu0
    %v3620 = vadd.f32 0.0, %v3619
    %3621 = vdwg.mxu0
    %3622 = vmatprep.subr.mxu0 0.0
    %3623 = vmatpush1.msra.mxu0 %v3392
    %3624 = vmatprep.subr.mxu0 0.0
    %3625 = vmatpush1.msra.mxu0 %v3397
    %3626 = vmatprep.subr.mxu0 0.0
    %3627 = vmatpush1.msra.mxu0 %v3402
    %3628 = vmatprep.subr.mxu0 0.0
    %3629 = vmatpush1.msra.mxu0 %v3407
    %3630 = vmatprep.subr.mxu0 0.0
    %3631 = vmatpush1.msra.mxu0 %v3412
    %3632 = vmatprep.subr.mxu0 0.0
    %3633 = vmatpush1.msra.mxu0 %v3417
    %3634 = vmatprep.subr.mxu0 0.0
    %3635 = vmatpush1.msra.mxu0 %v3422
    %3636 = vmatprep.subr.mxu0 0.0
    %3637 = vmatpush1.msra.mxu0 %v3427
    %3638 = vmatprep.subr.mxu0 0.0
    %3639 = vmatpush1.msra.mxu0 %v3432
    %3640 = vmatprep.subr.mxu0 0.0
    %3641 = vmatpush1.msra.mxu0 %v3437
    %3642 = vmatprep.subr.mxu0 0.0
    %3643 = vmatpush1.msra.mxu0 %v3442
    %3644 = vmatprep.subr.mxu0 0.0
    %3645 = vmatpush1.msra.mxu0 %v3447
    %3646 = vmatprep.subr.mxu0 0.0
    %3647 = vmatpush1.msra.mxu0 %v3452
    %3648 = vmatprep.subr.mxu0 0.0
    %3649 = vmatpush1.msra.mxu0 %v3457
    %3650 = vmatprep.subr.mxu0 0.0
    %3651 = vmatpush1.msra.mxu0 %v3462
    %3652 = vmatprep.subr.mxu0 0.0
    %3653 = vmatpush1.msra.mxu0 %v3467
    %3654 = vmatprep.subr.mxu0 0.0
    %3655 = vmatpush1.msra.mxu0 0.0
    %3656 = vmatprep.subr.mxu0 0.0
    %3657 = vmatpush1.msra.mxu0 0.0
    %3658 = vmatprep.subr.mxu0 0.0
    %3659 = vmatpush1.msra.mxu0 0.0
    %3660 = vmatprep.subr.mxu0 0.0
    %3661 = vmatpush1.msra.mxu0 0.0
    %3662 = vmatprep.subr.mxu0 0.0
    %3663 = vmatpush1.msra.mxu0 0.0
    %3664 = vmatprep.subr.mxu0 0.0
    %3665 = vmatpush1.msra.mxu0 0.0
    %3666 = vmatprep.subr.mxu0 0.0
    %3667 = vmatpush1.msra.mxu0 0.0
    %3668 = vmatprep.subr.mxu0 0.0
    %3669 = vmatpush1.msra.mxu0 0.0
    %3670 = vmatprep.subr.mxu0 0.0
    %3671 = vmatpush1.msra.mxu0 0.0
    %3672 = vmatprep.subr.mxu0 0.0
    %3673 = vmatpush1.msra.mxu0 0.0
    %3674 = vmatprep.subr.mxu0 0.0
    %3675 = vmatpush1.msra.mxu0 0.0
    %3676 = vmatprep.subr.mxu0 0.0
    %3677 = vmatpush1.msra.mxu0 0.0
    %3678 = vmatprep.subr.mxu0 0.0
    %3679 = vmatpush1.msra.mxu0 0.0
    %3680 = vmatprep.subr.mxu0 0.0
    %3681 = vmatpush1.msra.mxu0 0.0
    %3682 = vmatprep.subr.mxu0 0.0
    %3683 = vmatpush1.msra.mxu0 0.0
    %3684 = vmatprep.subr.mxu0 0.0
    %3685 = vmatpush1.msra.mxu0 0.0
    %3686 = vmatprep.mubr.f32.mxu0 0.0
    %3687 = vmatmul.mubr.f32.gmra.mrb[0].mxu0 %v3386
    %v3688 = vpop.f32.mrb[0].mxu0
    %v3689 = vadd.f32 0.0, %v3688
    %v3690 = vpop.f32.mrb[0].mxu0
    %3691 = vmatprep.mubr.f32.mxu0 0.0
    %3692 = vmatmul.mubr.f32.gmra.mrb[0].mxu0 %v3387
    %v3693 = vpop.f32.mrb[0].mxu0
    %v3694 = vadd.f32 0.0, %v3693
    %v3695 = vpop.f32.mrb[0].mxu0
    %3696 = vdwg.mxu0
    %3697 = vst [vmem:[#allocation2] sm:$0xff] %v3535
    %3698 = vst [vmem:[#allocation2 + $0x8] sm:$0xff] %v3537
    %3699 = vst [vmem:[#allocation2 + $0x10] sm:$0xff] %v3612
    %3700 = vst [vmem:[#allocation2 + $0x18] sm:$0xff] %v3614
    %3701 = vst [vmem:[#allocation2 + $0x20] sm:$0xff] %v3689
    %3702 = vst [vmem:[#allocation2 + $0x28] sm:$0xff] %v3541
    %3703 = vst [vmem:[#allocation2 + $0x30] sm:$0xff] %v3543
    %3704 = vst [vmem:[#allocation2 + $0x38] sm:$0xff] %v3618
    %3705 = vst [vmem:[#allocation2 + $0x40] sm:$0xff] %v3620
    %3706 = vst [vmem:[#allocation2 + $0x48] sm:$0xff] %v3694
    %v3707 = vld [vmem:[#allocation2 + $0x20] sm:$0xff]
    %v3708 = vld [vmem:[#allocation2 + $0x48] sm:$0xff]
    %3709 = vst.msk [vmem:[#allocation4] sm:$0x1] %vm304, -1e+30
    %3710 = vst.msk [vmem:[#allocation5] sm:$0x1] %vm304, 0.0
    %v3711 = vld [vmem:[%s8] sm:$0x1]
    %v3713 = vlaneseq
    %v3714 = vshrl.u32 %v3713, 7
    %v3715 = vsub.s32 0, %v3714
    %v3716 = vrot.slane %v3711, %v3715
    %3718 = vst [vmem:[#allocation10] sm:$0xff] %v3716
    %3719 = vst [vmem:[#allocation10 + $0x8] sm:$0xff] %v3716
    %v3720 = vld [vmem:[%s0] sm:$0xff]
    %v3721 = vld [vmem:[%s0 + $0x8] sm:$0xff]
    %v3722 = vld [vmem:[%s0 + $0x10] sm:$0xff]
    %v3723 = vld [vmem:[%s0 + $0x18] sm:$0xff]
    %v3724 = vld [vmem:[%s0 + $0x20] sm:$0xff]
    %v3725 = vld [vmem:[%s0 + $0x28] sm:$0xff]
    %v3726 = vld [vmem:[%s0 + $0x30] sm:$0xff]
    %v3727 = vld [vmem:[%s0 + $0x38] sm:$0xff]
    %v3728 = vld [vmem:[%s0 + $0x40] sm:$0xff]
    %v3729 = vld [vmem:[%s0 + $0x48] sm:$0xff]
    %v3730 = vld [vmem:[%s0 + $0x50] sm:$0xff]
    %v3731 = vld [vmem:[%s0 + $0x58] sm:$0xff]
    %v3732 = vld [vmem:[%s0 + $0x60] sm:$0xff]
    %v3733 = vld [vmem:[%s0 + $0x68] sm:$0xff]
    %v3734 = vld [vmem:[%s0 + $0x70] sm:$0xff]
    %v3735 = vld [vmem:[%s0 + $0x78] sm:$0xff]
    %v3736 = vld [vmem:[%s1] sm:$0xff]
    %v3737 = vld [vmem:[%s1 + $0x8] sm:$0xff]
    %v3738 = vld [vmem:[%s1 + $0x10] sm:$0xff]
    %v3739 = vld [vmem:[%s1 + $0x18] sm:$0xff]
    %v3740 = vld [vmem:[%s1 + $0x20] sm:$0xff]
    %v3741 = vld [vmem:[%s1 + $0x28] sm:$0xff]
    %v3742 = vld [vmem:[%s1 + $0x30] sm:$0xff]
    %v3743 = vld [vmem:[%s1 + $0x38] sm:$0xff]
    %v3744 = vld [vmem:[%s1 + $0x40] sm:$0xff]
    %v3745 = vld [vmem:[%s1 + $0x48] sm:$0xff]
    %v3746 = vld [vmem:[%s1 + $0x50] sm:$0xff]
    %v3747 = vld [vmem:[%s1 + $0x58] sm:$0xff]
    %v3748 = vld [vmem:[%s1 + $0x60] sm:$0xff]
    %v3749 = vld [vmem:[%s1 + $0x68] sm:$0xff]
    %v3750 = vld [vmem:[%s1 + $0x70] sm:$0xff]
    %v3751 = vld [vmem:[%s1 + $0x78] sm:$0xff]
    %v3752 = vld [vmem:[%s2] sm:$0xff]
    %v3753 = vld [vmem:[%s2 + $0x8] sm:$0xff]
    %v3754 = vld [vmem:[%s2 + $0x10] sm:$0xff]
    %v3755 = vld [vmem:[%s2 + $0x18] sm:$0xff]
    %v3756 = vld [vmem:[%s2 + $0x20] sm:$0xff]
    %v3757 = vld [vmem:[%s2 + $0x28] sm:$0xff]
    %v3758 = vld [vmem:[%s2 + $0x30] sm:$0xff]
    %v3759 = vld [vmem:[%s2 + $0x38] sm:$0xff]
    %v3760 = vld [vmem:[%s2 + $0x40] sm:$0xff]
    %v3761 = vld [vmem:[%s2 + $0x48] sm:$0xff]
    %v3762 = vld [vmem:[%s2 + $0x50] sm:$0xff]
    %v3763 = vld [vmem:[%s2 + $0x58] sm:$0xff]
    %v3764 = vld [vmem:[%s2 + $0x60] sm:$0xff]
    %v3765 = vld [vmem:[%s2 + $0x68] sm:$0xff]
    %v3766 = vld [vmem:[%s2 + $0x70] sm:$0xff]
    %v3767 = vld [vmem:[%s2 + $0x78] sm:$0xff]
    %3768 = vset.pattern.permute.xlu0 0
    %3769 = vperm.xlu0 %3768, %v3720
    %v3770 = vpop.permute.xlu0 %3769
    %3771 = vset.pattern.permute.xlu0 0
    %3772 = vperm.xlu0 %3771, %v3721
    %v3773 = vpop.permute.xlu0 %3772
    %3774 = vset.pattern.permute.xlu0 0
    %3775 = vperm.xlu0 %3774, %v3722
    %v3776 = vpop.permute.xlu0 %3775
    %3777 = vset.pattern.permute.xlu0 0
    %3778 = vperm.xlu0 %3777, %v3723
    %v3779 = vpop.permute.xlu0 %3778
    %3780 = vset.pattern.permute.xlu0 0
    %3781 = vperm.xlu0 %3780, %v3724
    %v3782 = vpop.permute.xlu0 %3781
    %3783 = vset.pattern.permute.xlu0 0
    %3784 = vperm.xlu0 %3783, %v3725
    %v3785 = vpop.permute.xlu0 %3784
    %3786 = vset.pattern.permute.xlu0 0
    %3787 = vperm.xlu0 %3786, %v3726
    %v3788 = vpop.permute.xlu0 %3787
    %3789 = vset.pattern.permute.xlu0 0
    %3790 = vperm.xlu0 %3789, %v3727
    %v3791 = vpop.permute.xlu0 %3790
    %3792 = vset.pattern.permute.xlu0 0
    %3793 = vperm.xlu0 %3792, %v3728
    %v3794 = vpop.permute.xlu0 %3793
    %3795 = vset.pattern.permute.xlu0 0
    %3796 = vperm.xlu0 %3795, %v3729
    %v3797 = vpop.permute.xlu0 %3796
    %3798 = vset.pattern.permute.xlu0 0
    %3799 = vperm.xlu0 %3798, %v3730
    %v3800 = vpop.permute.xlu0 %3799
    %3801 = vset.pattern.permute.xlu0 0
    %3802 = vperm.xlu0 %3801, %v3731
    %v3803 = vpop.permute.xlu0 %3802
    %3804 = vset.pattern.permute.xlu0 0
    %3805 = vperm.xlu0 %3804, %v3732
    %v3806 = vpop.permute.xlu0 %3805
    %3807 = vset.pattern.permute.xlu0 0
    %3808 = vperm.xlu0 %3807, %v3733
    %v3809 = vpop.permute.xlu0 %3808
    %3810 = vset.pattern.permute.xlu0 0
    %3811 = vperm.xlu0 %3810, %v3734
    %v3812 = vpop.permute.xlu0 %3811
    %3813 = vset.pattern.permute.xlu0 0
    %3814 = vperm.xlu0 %3813, %v3735
    %v3815 = vpop.permute.xlu0 %3814
    %vm3816 = vcmp.eq.s32.totalorder %v415, %v3770
    %vm3817 = vcmp.eq.s32.totalorder %v415, %v3773
    %vm3818 = vcmp.eq.s32.totalorder %v415, %v3776
    %vm3819 = vcmp.eq.s32.totalorder %v415, %v3779
    %vm3820 = vcmp.eq.s32.totalorder %v415, %v3782
    %vm3821 = vcmp.eq.s32.totalorder %v415, %v3785
    %vm3822 = vcmp.eq.s32.totalorder %v415, %v3788
    %vm3823 = vcmp.eq.s32.totalorder %v415, %v3791
    %vm3824 = vcmp.eq.s32.totalorder %v415, %v3794
    %vm3825 = vcmp.eq.s32.totalorder %v415, %v3797
    %vm3826 = vcmp.eq.s32.totalorder %v415, %v3800
    %vm3827 = vcmp.eq.s32.totalorder %v415, %v3803
    %vm3828 = vcmp.eq.s32.totalorder %v415, %v3806
    %vm3829 = vcmp.eq.s32.totalorder %v415, %v3809
    %vm3830 = vcmp.eq.s32.totalorder %v415, %v3812
    %vm3831 = vcmp.eq.s32.totalorder %v415, %v3815
    %3832 = vset.pattern.permute.xlu0 0
    %3833 = vperm.xlu0 %3832, %v3736
    %v3834 = vpop.permute.xlu0 %3833
    %3835 = vset.pattern.permute.xlu0 0
    %3836 = vperm.xlu0 %3835, %v3737
    %v3837 = vpop.permute.xlu0 %3836
    %3838 = vset.pattern.permute.xlu0 0
    %3839 = vperm.xlu0 %3838, %v3738
    %v3840 = vpop.permute.xlu0 %3839
    %3841 = vset.pattern.permute.xlu0 0
    %3842 = vperm.xlu0 %3841, %v3739
    %v3843 = vpop.permute.xlu0 %3842
    %3844 = vset.pattern.permute.xlu0 0
    %3845 = vperm.xlu0 %3844, %v3740
    %v3846 = vpop.permute.xlu0 %3845
    %3847 = vset.pattern.permute.xlu0 0
    %3848 = vperm.xlu0 %3847, %v3741
    %v3849 = vpop.permute.xlu0 %3848
    %3850 = vset.pattern.permute.xlu0 0
    %3851 = vperm.xlu0 %3850, %v3742
    %v3852 = vpop.permute.xlu0 %3851
    %3853 = vset.pattern.permute.xlu0 0
    %3854 = vperm.xlu0 %3853, %v3743
    %v3855 = vpop.permute.xlu0 %3854
    %3856 = vset.pattern.permute.xlu0 0
    %3857 = vperm.xlu0 %3856, %v3744
    %v3858 = vpop.permute.xlu0 %3857
    %3859 = vset.pattern.permute.xlu0 0
    %3860 = vperm.xlu0 %3859, %v3745
    %v3861 = vpop.permute.xlu0 %3860
    %3862 = vset.pattern.permute.xlu0 0
    %3863 = vperm.xlu0 %3862, %v3746
    %v3864 = vpop.permute.xlu0 %3863
    %3865 = vset.pattern.permute.xlu0 0
    %3866 = vperm.xlu0 %3865, %v3747
    %v3867 = vpop.permute.xlu0 %3866
    %3868 = vset.pattern.permute.xlu0 0
    %3869 = vperm.xlu0 %3868, %v3748
    %v3870 = vpop.permute.xlu0 %3869
    %3871 = vset.pattern.permute.xlu0 0
    %3872 = vperm.xlu0 %3871, %v3749
    %v3873 = vpop.permute.xlu0 %3872
    %3874 = vset.pattern.permute.xlu0 0
    %3875 = vperm.xlu0 %3874, %v3750
    %v3876 = vpop.permute.xlu0 %3875
    %3877 = vset.pattern.permute.xlu0 0
    %3878 = vperm.xlu0 %3877, %v3751
    %v3879 = vpop.permute.xlu0 %3878
    %vm3880 = vcmp.eq.s32.totalorder %v415, %v3834
    %vm3881 = vcmp.eq.s32.totalorder %v415, %v3837
    %vm3882 = vcmp.eq.s32.totalorder %v415, %v3840
    %vm3883 = vcmp.eq.s32.totalorder %v415, %v3843
    %vm3884 = vcmp.eq.s32.totalorder %v415, %v3846
    %vm3885 = vcmp.eq.s32.totalorder %v415, %v3849
    %vm3886 = vcmp.eq.s32.totalorder %v415, %v3852
    %vm3887 = vcmp.eq.s32.totalorder %v415, %v3855
    %vm3888 = vcmp.eq.s32.totalorder %v415, %v3858
    %vm3889 = vcmp.eq.s32.totalorder %v415, %v3861
    %vm3890 = vcmp.eq.s32.totalorder %v415, %v3864
    %vm3891 = vcmp.eq.s32.totalorder %v415, %v3867
    %vm3892 = vcmp.eq.s32.totalorder %v415, %v3870
    %vm3893 = vcmp.eq.s32.totalorder %v415, %v3873
    %vm3894 = vcmp.eq.s32.totalorder %v415, %v3876
    %vm3895 = vcmp.eq.s32.totalorder %v415, %v3879
    %v3896 = vsel %vm3816, 1.0, 0.0
    %v3897 = vsel %vm3817, 1.0, 0.0
    %v3898 = vsel %vm3818, 1.0, 0.0
    %v3899 = vsel %vm3819, 1.0, 0.0
    %v3900 = vsel %vm3820, 1.0, 0.0
    %v3901 = vsel %vm3821, 1.0, 0.0
    %v3902 = vsel %vm3822, 1.0, 0.0
    %v3903 = vsel %vm3823, 1.0, 0.0
    %v3904 = vsel %vm3824, 1.0, 0.0
    %v3905 = vsel %vm3825, 1.0, 0.0
    %v3906 = vsel %vm3826, 1.0, 0.0
    %v3907 = vsel %vm3827, 1.0, 0.0
    %v3908 = vsel %vm3828, 1.0, 0.0
    %v3909 = vsel %vm3829, 1.0, 0.0
    %v3910 = vsel %vm3830, 1.0, 0.0
    %v3911 = vsel %vm3831, 1.0, 0.0
    %v3912 = vsel %vm3880, 1.0, 0.0
    %v3913 = vsel %vm3881, 1.0, 0.0
    %v3914 = vsel %vm3882, 1.0, 0.0
    %v3915 = vsel %vm3883, 1.0, 0.0
    %v3916 = vsel %vm3884, 1.0, 0.0
    %v3917 = vsel %vm3885, 1.0, 0.0
    %v3918 = vsel %vm3886, 1.0, 0.0
    %v3919 = vsel %vm3887, 1.0, 0.0
    %v3920 = vsel %vm3888, 1.0, 0.0
    %v3921 = vsel %vm3889, 1.0, 0.0
    %v3922 = vsel %vm3890, 1.0, 0.0
    %v3923 = vsel %vm3891, 1.0, 0.0
    %v3924 = vsel %vm3892, 1.0, 0.0
    %v3925 = vsel %vm3893, 1.0, 0.0
    %v3926 = vsel %vm3894, 1.0, 0.0
    %v3927 = vsel %vm3895, 1.0, 0.0
    %3930 = vrot.lane.b32.xlu0 %v3707, 124
    %v3931 = vpop.permute.xlu0 %3930
    %3932 = vrot.lane.b32.xlu0 %v3708, 124
    %v3933 = vpop.permute.xlu0 %3932
    %v3937 = vsel %vm584, %v3896, 0
    %v3940 = vsel %vm584, %v3897, 0
    %v3943 = vsel %vm584, %v3898, 0
    %v3946 = vsel %vm584, %v3899, 0
    %v3949 = vsel %vm584, %v3900, 0
    %v3952 = vsel %vm584, %v3901, 0
    %v3955 = vsel %vm584, %v3902, 0
    %v3958 = vsel %vm584, %v3903, 0
    %v3961 = vsel %vm584, %v3904, 0
    %v3964 = vsel %vm584, %v3905, 0
    %v3967 = vsel %vm584, %v3906, 0
    %v3970 = vsel %vm584, %v3907, 0
    %v3973 = vsel %vm584, %v3908, 0
    %v3976 = vsel %vm584, %v3909, 0
    %v3979 = vsel %vm584, %v3910, 0
    %v3982 = vsel %vm584, %v3911, 0
    %3984 = vmatprep.subr.mxu0 0.0
    %3985 = vmatpush1.msra.mxu0 %v3931
    %3986 = vmatprep.subr.mxu0 0.0
    %3987 = vmatpush1.msra.mxu0 %v3933
    %3988 = vmatprep.subr.mxu0 0.0
    %3989 = vmatpush1.msra.mxu0 0.0
    %3990 = vmatprep.subr.mxu0 0.0
    %3991 = vmatpush1.msra.mxu0 0.0
    %3992 = vmatprep.subr.mxu0 0.0
    %3993 = vmatpush1.msra.mxu0 0.0
    %3994 = vmatprep.subr.mxu0 0.0
    %3995 = vmatpush1.msra.mxu0 0.0
    %3996 = vmatprep.subr.mxu0 0.0
    %3997 = vmatpush1.msra.mxu0 0.0
    %3998 = vmatprep.subr.mxu0 0.0
    %3999 = vmatpush1.msra.mxu0 0.0
    %4000 = vmatprep.subr.mxu0 0.0
    %4001 = vmatpush1.msra.mxu0 0.0
    %4002 = vmatprep.subr.mxu0 0.0
    %4003 = vmatpush1.msra.mxu0 0.0
    %4004 = vmatprep.subr.mxu0 0.0
    %4005 = vmatpush1.msra.mxu0 0.0
    %4006 = vmatprep.subr.mxu0 0.0
    %4007 = vmatpush1.msra.mxu0 0.0
    %4008 = vmatprep.subr.mxu0 0.0
    %4009 = vmatpush1.msra.mxu0 0.0
    %4010 = vmatprep.subr.mxu0 0.0
    %4011 = vmatpush1.msra.mxu0 0.0
    %4012 = vmatprep.subr.mxu0 0.0
    %4013 = vmatpush1.msra.mxu0 0.0
    %4014 = vmatprep.subr.mxu0 0.0
    %4015 = vmatpush1.msra.mxu0 0.0
    %4016 = vmatprep.subr.mxu0 0.0
    %4017 = vmatpush1.msra.mxu0 0.0
    %4018 = vmatprep.subr.mxu0 0.0
    %4019 = vmatpush1.msra.mxu0 0.0
    %4020 = vmatprep.subr.mxu0 0.0
    %4021 = vmatpush1.msra.mxu0 0.0
    %4022 = vmatprep.subr.mxu0 0.0
    %4023 = vmatpush1.msra.mxu0 0.0
    %4024 = vmatprep.subr.mxu0 0.0
    %4025 = vmatpush1.msra.mxu0 0.0
    %4026 = vmatprep.subr.mxu0 0.0
    %4027 = vmatpush1.msra.mxu0 0.0
    %4028 = vmatprep.subr.mxu0 0.0
    %4029 = vmatpush1.msra.mxu0 0.0
    %4030 = vmatprep.subr.mxu0 0.0
    %4031 = vmatpush1.msra.mxu0 0.0
    %4032 = vmatprep.subr.mxu0 0.0
    %4033 = vmatpush1.msra.mxu0 0.0
    %4034 = vmatprep.subr.mxu0 0.0
    %4035 = vmatpush1.msra.mxu0 0.0
    %4036 = vmatprep.subr.mxu0 0.0
    %4037 = vmatpush1.msra.mxu0 0.0
    %4038 = vmatprep.subr.mxu0 0.0
    %4039 = vmatpush1.msra.mxu0 0.0
    %4040 = vmatprep.subr.mxu0 0.0
    %4041 = vmatpush1.msra.mxu0 0.0
    %4042 = vmatprep.subr.mxu0 0.0
    %4043 = vmatpush1.msra.mxu0 0.0
    %4044 = vmatprep.subr.mxu0 0.0
    %4045 = vmatpush1.msra.mxu0 0.0
    %4046 = vmatprep.subr.mxu0 0.0
    %4047 = vmatpush1.msra.mxu0 0.0
    %4048 = vmatprep.mubr.f32.mxu0 0.0
    %4049 = vmatmul.mubr.f32.gmra.mrb[0].mxu0 %v3937
    %v4050 = vpop.f32.mrb[0].mxu0
    %v4051 = vadd.f32 0.0, %v4050
    %v4052 = vpop.f32.mrb[0].mxu0
    %4053 = vmatprep.mubr.f32.mxu0 0.0
    %4054 = vmatmul.mubr.f32.gmra.mrb[0].mxu0 %v3940
    %v4055 = vpop.f32.mrb[0].mxu0
    %v4056 = vadd.f32 0.0, %v4055
    %v4057 = vpop.f32.mrb[0].mxu0
    %4058 = vmatprep.mubr.f32.mxu0 0.0
    %4059 = vmatmul.mubr.f32.gmra.mrb[0].mxu0 %v3943
    %v4060 = vpop.f32.mrb[0].mxu0
    %v4061 = vadd.f32 0.0, %v4060
    %v4062 = vpop.f32.mrb[0].mxu0
    %4063 = vmatprep.mubr.f32.mxu0 0.0
    %4064 = vmatmul.mubr.f32.gmra.mrb[0].mxu0 %v3946
    %v4065 = vpop.f32.mrb[0].mxu0
    %v4066 = vadd.f32 0.0, %v4065
    %v4067 = vpop.f32.mrb[0].mxu0
    %4068 = vmatprep.mubr.f32.mxu0 0.0
    %4069 = vmatmul.mubr.f32.gmra.mrb[0].mxu0 %v3949
    %v4070 = vpop.f32.mrb[0].mxu0
    %v4071 = vadd.f32 0.0, %v4070
    %v4072 = vpop.f32.mrb[0].mxu0
    %4073 = vmatprep.mubr.f32.mxu0 0.0
    %4074 = vmatmul.mubr.f32.gmra.mrb[0].mxu0 %v3952
    %v4075 = vpop.f32.mrb[0].mxu0
    %v4076 = vadd.f32 0.0, %v4075
    %v4077 = vpop.f32.mrb[0].mxu0
    %4078 = vmatprep.mubr.f32.mxu0 0.0
    %4079 = vmatmul.mubr.f32.gmra.mrb[0].mxu0 %v3955
    %v4080 = vpop.f32.mrb[0].mxu0
    %v4081 = vadd.f32 0.0, %v4080
    %v4082 = vpop.f32.mrb[0].mxu0
    %4083 = vmatprep.mubr.f32.mxu0 0.0
    %4084 = vmatmul.mubr.f32.gmra.mrb[0].mxu0 %v3958
    %v4085 = vpop.f32.mrb[0].mxu0
    %v4086 = vadd.f32 0.0, %v4085
    %v4087 = vpop.f32.mrb[0].mxu0
    %4088 = vmatprep.mubr.f32.mxu0 0.0
    %4089 = vmatmul.mubr.f32.gmra.mrb[0].mxu0 %v3961
    %v4090 = vpop.f32.mrb[0].mxu0
    %v4091 = vadd.f32 0.0, %v4090
    %v4092 = vpop.f32.mrb[0].mxu0
    %4093 = vmatprep.mubr.f32.mxu0 0.0
    %4094 = vmatmul.mubr.f32.gmra.mrb[0].mxu0 %v3964
    %v4095 = vpop.f32.mrb[0].mxu0
    %v4096 = vadd.f32 0.0, %v4095
    %v4097 = vpop.f32.mrb[0].mxu0
    %4098 = vmatprep.mubr.f32.mxu0 0.0
    %4099 = vmatmul.mubr.f32.gmra.mrb[0].mxu0 %v3967
    %v4100 = vpop.f32.mrb[0].mxu0
    %v4101 = vadd.f32 0.0, %v4100
    %v4102 = vpop.f32.mrb[0].mxu0
    %4103 = vmatprep.mubr.f32.mxu0 0.0
    %4104 = vmatmul.mubr.f32.gmra.mrb[0].mxu0 %v3970
    %v4105 = vpop.f32.mrb[0].mxu0
    %v4106 = vadd.f32 0.0, %v4105
    %v4107 = vpop.f32.mrb[0].mxu0
    %4108 = vmatprep.mubr.f32.mxu0 0.0
    %4109 = vmatmul.mubr.f32.gmra.mrb[0].mxu0 %v3973
    %v4110 = vpop.f32.mrb[0].mxu0
    %v4111 = vadd.f32 0.0, %v4110
    %v4112 = vpop.f32.mrb[0].mxu0
    %4113 = vmatprep.mubr.f32.mxu0 0.0
    %4114 = vmatmul.mubr.f32.gmra.mrb[0].mxu0 %v3976
    %v4115 = vpop.f32.mrb[0].mxu0
    %v4116 = vadd.f32 0.0, %v4115
    %v4117 = vpop.f32.mrb[0].mxu0
    %4118 = vmatprep.mubr.f32.mxu0 0.0
    %4119 = vmatmul.mubr.f32.gmra.mrb[0].mxu0 %v3979
    %v4120 = vpop.f32.mrb[0].mxu0
    %v4121 = vadd.f32 0.0, %v4120
    %v4122 = vpop.f32.mrb[0].mxu0
    %4123 = vmatprep.mubr.f32.mxu0 0.0
    %4124 = vmatmul.mubr.f32.gmra.mrb[0].mxu0 %v3982
    %v4125 = vpop.f32.mrb[0].mxu0
    %v4126 = vadd.f32 0.0, %v4125
    %v4127 = vpop.f32.mrb[0].mxu0
    %4128 = vdwg.mxu0
    %v4130 = vsel %vm584, %v3912, 0
    %v4133 = vsel %vm584, %v3913, 0
    %v4136 = vsel %vm584, %v3914, 0
    %v4139 = vsel %vm584, %v3915, 0
    %v4142 = vsel %vm584, %v3916, 0
    %v4145 = vsel %vm584, %v3917, 0
    %v4148 = vsel %vm584, %v3918, 0
    %v4151 = vsel %vm584, %v3919, 0
    %v4154 = vsel %vm584, %v3920, 0
    %v4157 = vsel %vm584, %v3921, 0
    %v4160 = vsel %vm584, %v3922, 0
    %v4163 = vsel %vm584, %v3923, 0
    %v4166 = vsel %vm584, %v3924, 0
    %v4169 = vsel %vm584, %v3925, 0
    %v4172 = vsel %vm584, %v3926, 0
    %v4175 = vsel %vm584, %v3927, 0
    %4177 = vmatprep.subr.mxu0 0.0
    %4178 = vmatpush1.msra.mxu0 %v3707
    %4179 = vmatprep.subr.mxu0 0.0
    %4180 = vmatpush1.msra.mxu0 %v3708
    %4181 = vmatprep.subr.mxu0 0.0
    %4182 = vmatpush1.msra.mxu0 0.0
    %4183 = vmatprep.subr.mxu0 0.0
    %4184 = vmatpush1.msra.mxu0 0.0
    %4185 = vmatprep.subr.mxu0 0.0
    %4186 = vmatpush1.msra.mxu0 0.0
    %4187 = vmatprep.subr.mxu0 0.0
    %4188 = vmatpush1.msra.mxu0 0.0
    %4189 = vmatprep.subr.mxu0 0.0
    %4190 = vmatpush1.msra.mxu0 0.0
    %4191 = vmatprep.subr.mxu0 0.0
    %4192 = vmatpush1.msra.mxu0 0.0
    %4193 = vmatprep.subr.mxu0 0.0
    %4194 = vmatpush1.msra.mxu0 0.0
    %4195 = vmatprep.subr.mxu0 0.0
    %4196 = vmatpush1.msra.mxu0 0.0
    %4197 = vmatprep.subr.mxu0 0.0
    %4198 = vmatpush1.msra.mxu0 0.0
    %4199 = vmatprep.subr.mxu0 0.0
    %4200 = vmatpush1.msra.mxu0 0.0
    %4201 = vmatprep.subr.mxu0 0.0
    %4202 = vmatpush1.msra.mxu0 0.0
    %4203 = vmatprep.subr.mxu0 0.0
    %4204 = vmatpush1.msra.mxu0 0.0
    %4205 = vmatprep.subr.mxu0 0.0
    %4206 = vmatpush1.msra.mxu0 0.0
    %4207 = vmatprep.subr.mxu0 0.0
    %4208 = vmatpush1.msra.mxu0 0.0
    %4209 = vmatprep.subr.mxu0 0.0
    %4210 = vmatpush1.msra.mxu0 0.0
    %4211 = vmatprep.subr.mxu0 0.0
    %4212 = vmatpush1.msra.mxu0 0.0
    %4213 = vmatprep.subr.mxu0 0.0
    %4214 = vmatpush1.msra.mxu0 0.0
    %4215 = vmatprep.subr.mxu0 0.0
    %4216 = vmatpush1.msra.mxu0 0.0
    %4217 = vmatprep.subr.mxu0 0.0
    %4218 = vmatpush1.msra.mxu0 0.0
    %4219 = vmatprep.subr.mxu0 0.0
    %4220 = vmatpush1.msra.mxu0 0.0
    %4221 = vmatprep.subr.mxu0 0.0
    %4222 = vmatpush1.msra.mxu0 0.0
    %4223 = vmatprep.subr.mxu0 0.0
    %4224 = vmatpush1.msra.mxu0 0.0
    %4225 = vmatprep.subr.mxu0 0.0
    %4226 = vmatpush1.msra.mxu0 0.0
    %4227 = vmatprep.subr.mxu0 0.0
    %4228 = vmatpush1.msra.mxu0 0.0
    %4229 = vmatprep.subr.mxu0 0.0
    %4230 = vmatpush1.msra.mxu0 0.0
    %4231 = vmatprep.subr.mxu0 0.0
    %4232 = vmatpush1.msra.mxu0 0.0
    %4233 = vmatprep.subr.mxu0 0.0
    %4234 = vmatpush1.msra.mxu0 0.0
    %4235 = vmatprep.subr.mxu0 0.0
    %4236 = vmatpush1.msra.mxu0 0.0
    %4237 = vmatprep.subr.mxu0 0.0
    %4238 = vmatpush1.msra.mxu0 0.0
    %4239 = vmatprep.subr.mxu0 0.0
    %4240 = vmatpush1.msra.mxu0 0.0
    %4241 = vmatprep.mubr.f32.mxu0 0.0
    %4242 = vmatmul.mubr.f32.gmra.mrb[0].mxu0 %v4130
    %v4243 = vpop.f32.mrb[0].mxu0
    %v4244 = vadd.f32 0.0, %v4243
    %v4245 = vpop.f32.mrb[0].mxu0
    %4246 = vmatprep.mubr.f32.mxu0 0.0
    %4247 = vmatmul.mubr.f32.gmra.mrb[0].mxu0 %v4133
    %v4248 = vpop.f32.mrb[0].mxu0
    %v4249 = vadd.f32 0.0, %v4248
    %v4250 = vpop.f32.mrb[0].mxu0
    %4251 = vmatprep.mubr.f32.mxu0 0.0
    %4252 = vmatmul.mubr.f32.gmra.mrb[0].mxu0 %v4136
    %v4253 = vpop.f32.mrb[0].mxu0
    %v4254 = vadd.f32 0.0, %v4253
    %v4255 = vpop.f32.mrb[0].mxu0
    %4256 = vmatprep.mubr.f32.mxu0 0.0
    %4257 = vmatmul.mubr.f32.gmra.mrb[0].mxu0 %v4139
    %v4258 = vpop.f32.mrb[0].mxu0
    %v4259 = vadd.f32 0.0, %v4258
    %v4260 = vpop.f32.mrb[0].mxu0
    %4261 = vmatprep.mubr.f32.mxu0 0.0
    %4262 = vmatmul.mubr.f32.gmra.mrb[0].mxu0 %v4142
    %v4263 = vpop.f32.mrb[0].mxu0
    %v4264 = vadd.f32 0.0, %v4263
    %v4265 = vpop.f32.mrb[0].mxu0
    %4266 = vmatprep.mubr.f32.mxu0 0.0
    %4267 = vmatmul.mubr.f32.gmra.mrb[0].mxu0 %v4145
    %v4268 = vpop.f32.mrb[0].mxu0
    %v4269 = vadd.f32 0.0, %v4268
    %v4270 = vpop.f32.mrb[0].mxu0
    %4271 = vmatprep.mubr.f32.mxu0 0.0
    %4272 = vmatmul.mubr.f32.gmra.mrb[0].mxu0 %v4148
    %v4273 = vpop.f32.mrb[0].mxu0
    %v4274 = vadd.f32 0.0, %v4273
    %v4275 = vpop.f32.mrb[0].mxu0
    %4276 = vmatprep.mubr.f32.mxu0 0.0
    %4277 = vmatmul.mubr.f32.gmra.mrb[0].mxu0 %v4151
    %v4278 = vpop.f32.mrb[0].mxu0
    %v4279 = vadd.f32 0.0, %v4278
    %v4280 = vpop.f32.mrb[0].mxu0
    %4281 = vmatprep.mubr.f32.mxu0 0.0
    %4282 = vmatmul.mubr.f32.gmra.mrb[0].mxu0 %v4154
    %v4283 = vpop.f32.mrb[0].mxu0
    %v4284 = vadd.f32 0.0, %v4283
    %v4285 = vpop.f32.mrb[0].mxu0
    %4286 = vmatprep.mubr.f32.mxu0 0.0
    %4287 = vmatmul.mubr.f32.gmra.mrb[0].mxu0 %v4157
    %v4288 = vpop.f32.mrb[0].mxu0
    %v4289 = vadd.f32 0.0, %v4288
    %v4290 = vpop.f32.mrb[0].mxu0
    %4291 = vmatprep.mubr.f32.mxu0 0.0
    %4292 = vmatmul.mubr.f32.gmra.mrb[0].mxu0 %v4160
    %v4293 = vpop.f32.mrb[0].mxu0
    %v4294 = vadd.f32 0.0, %v4293
    %v4295 = vpop.f32.mrb[0].mxu0
    %4296 = vmatprep.mubr.f32.mxu0 0.0
    %4297 = vmatmul.mubr.f32.gmra.mrb[0].mxu0 %v4163
    %v4298 = vpop.f32.mrb[0].mxu0
    %v4299 = vadd.f32 0.0, %v4298
    %v4300 = vpop.f32.mrb[0].mxu0
    %4301 = vmatprep.mubr.f32.mxu0 0.0
    %4302 = vmatmul.mubr.f32.gmra.mrb[0].mxu0 %v4166
    %v4303 = vpop.f32.mrb[0].mxu0
    %v4304 = vadd.f32 0.0, %v4303
    %v4305 = vpop.f32.mrb[0].mxu0
    %4306 = vmatprep.mubr.f32.mxu0 0.0
    %4307 = vmatmul.mubr.f32.gmra.mrb[0].mxu0 %v4169
    %v4308 = vpop.f32.mrb[0].mxu0
    %v4309 = vadd.f32 0.0, %v4308
    %v4310 = vpop.f32.mrb[0].mxu0
    %4311 = vmatprep.mubr.f32.mxu0 0.0
    %4312 = vmatmul.mubr.f32.gmra.mrb[0].mxu0 %v4172
    %v4313 = vpop.f32.mrb[0].mxu0
    %v4314 = vadd.f32 0.0, %v4313
    %v4315 = vpop.f32.mrb[0].mxu0
    %4316 = vmatprep.mubr.f32.mxu0 0.0
    %4317 = vmatmul.mubr.f32.gmra.mrb[0].mxu0 %v4175
    %v4318 = vpop.f32.mrb[0].mxu0
    %v4319 = vadd.f32 0.0, %v4318
    %v4320 = vpop.f32.mrb[0].mxu0
    %4321 = vdwg.mxu0
    %vm4322 = vcmp.eq.s32.totalorder %v3752, 0
    %vm4323 = vcmp.eq.s32.totalorder %v3753, 0
    %vm4324 = vcmp.eq.s32.totalorder %v3754, 0
    %vm4325 = vcmp.eq.s32.totalorder %v3755, 0
    %vm4326 = vcmp.eq.s32.totalorder %v3756, 0
    %vm4327 = vcmp.eq.s32.totalorder %v3757, 0
    %vm4328 = vcmp.eq.s32.totalorder %v3758, 0
    %vm4329 = vcmp.eq.s32.totalorder %v3759, 0
    %vm4330 = vcmp.eq.s32.totalorder %v3760, 0
    %vm4331 = vcmp.eq.s32.totalorder %v3761, 0
    %vm4332 = vcmp.eq.s32.totalorder %v3762, 0
    %vm4333 = vcmp.eq.s32.totalorder %v3763, 0
    %vm4334 = vcmp.eq.s32.totalorder %v3764, 0
    %vm4335 = vcmp.eq.s32.totalorder %v3765, 0
    %vm4336 = vcmp.eq.s32.totalorder %v3766, 0
    %vm4337 = vcmp.eq.s32.totalorder %v3767, 0
    %v4338 = vadd.f32 %v4244, %v4051
    %v4339 = vadd.f32 %v4249, %v4056
    %v4340 = vadd.f32 %v4254, %v4061
    %v4341 = vadd.f32 %v4259, %v4066
    %v4342 = vadd.f32 %v4264, %v4071
    %v4343 = vadd.f32 %v4269, %v4076
    %v4344 = vadd.f32 %v4274, %v4081
    %v4345 = vadd.f32 %v4279, %v4086
    %v4346 = vadd.f32 %v4284, %v4091
    %v4347 = vadd.f32 %v4289, %v4096
    %v4348 = vadd.f32 %v4294, %v4101
    %v4349 = vadd.f32 %v4299, %v4106
    %v4350 = vadd.f32 %v4304, %v4111
    %v4351 = vadd.f32 %v4309, %v4116
    %v4352 = vadd.f32 %v4314, %v4121
    %v4353 = vadd.f32 %v4319, %v4126
    %v4354 = vsel %vm4322, %v4338, 0.0
    %v4355 = vsel %vm4323, %v4339, 0.0
    %v4356 = vsel %vm4324, %v4340, 0.0
    %v4357 = vsel %vm4325, %v4341, 0.0
    %v4358 = vsel %vm4326, %v4342, 0.0
    %v4359 = vsel %vm4327, %v4343, 0.0
    %v4360 = vsel %vm4328, %v4344, 0.0
    %v4361 = vsel %vm4329, %v4345, 0.0
    %v4362 = vsel %vm4330, %v4346, 0.0
    %v4363 = vsel %vm4331, %v4347, 0.0
    %v4364 = vsel %vm4332, %v4348, 0.0
    %v4365 = vsel %vm4333, %v4349, 0.0
    %v4366 = vsel %vm4334, %v4350, 0.0
    %v4367 = vsel %vm4335, %v4351, 0.0
    %v4368 = vsel %vm4336, %v4352, 0.0
    %v4369 = vsel %vm4337, %v4353, 0.0
    %v4370 = vadd.f32 %v4354, 0.0
    %v4371 = vadd.f32 %v4355, 0.0
    %v4372 = vadd.f32 %v4356, 0.0
    %v4373 = vadd.f32 %v4357, 0.0
    %v4374 = vadd.f32 %v4358, 0.0
    %v4375 = vadd.f32 %v4359, 0.0
    %v4376 = vadd.f32 %v4360, 0.0
    %v4377 = vadd.f32 %v4361, 0.0
    %v4378 = vadd.f32 %v4362, 0.0
    %v4379 = vadd.f32 %v4363, 0.0
    %v4380 = vadd.f32 %v4364, 0.0
    %v4381 = vadd.f32 %v4365, 0.0
    %v4382 = vadd.f32 %v4366, 0.0
    %v4383 = vadd.f32 %v4367, 0.0
    %v4384 = vadd.f32 %v4368, 0.0
    %v4385 = vadd.f32 %v4369, 0.0
    %vm4386 = vcmp.eq.s32.totalorder %v3752, 1
    %vm4387 = vcmp.eq.s32.totalorder %v3753, 1
    %vm4388 = vcmp.eq.s32.totalorder %v3754, 1
    %vm4389 = vcmp.eq.s32.totalorder %v3755, 1
    %vm4390 = vcmp.eq.s32.totalorder %v3756, 1
    %vm4391 = vcmp.eq.s32.totalorder %v3757, 1
    %vm4392 = vcmp.eq.s32.totalorder %v3758, 1
    %vm4393 = vcmp.eq.s32.totalorder %v3759, 1
    %vm4394 = vcmp.eq.s32.totalorder %v3760, 1
    %vm4395 = vcmp.eq.s32.totalorder %v3761, 1
    %vm4396 = vcmp.eq.s32.totalorder %v3762, 1
    %vm4397 = vcmp.eq.s32.totalorder %v3763, 1
    %vm4398 = vcmp.eq.s32.totalorder %v3764, 1
    %vm4399 = vcmp.eq.s32.totalorder %v3765, 1
    %vm4400 = vcmp.eq.s32.totalorder %v3766, 1
    %vm4401 = vcmp.eq.s32.totalorder %v3767, 1
    %4418 = vrot.lane.b32.xlu0 %v4338, 127
    %v4419 = vpop.permute.xlu0 %4418
    %4420 = vrot.lane.b32.xlu0 %v4339, 127
    %v4421 = vpop.permute.xlu0 %4420
    %4422 = vrot.lane.b32.xlu0 %v4340, 127
    %v4423 = vpop.permute.xlu0 %4422
    %4424 = vrot.lane.b32.xlu0 %v4341, 127
    %v4425 = vpop.permute.xlu0 %4424
    %4426 = vrot.lane.b32.xlu0 %v4342, 127
    %v4427 = vpop.permute.xlu0 %4426
    %4428 = vrot.lane.b32.xlu0 %v4343, 127
    %v4429 = vpop.permute.xlu0 %4428
    %4430 = vrot.lane.b32.xlu0 %v4344, 127
    %v4431 = vpop.permute.xlu0 %4430
    %4432 = vrot.lane.b32.xlu0 %v4345, 127
    %v4433 = vpop.permute.xlu0 %4432
    %4434 = vrot.lane.b32.xlu0 %v4346, 127
    %v4435 = vpop.permute.xlu0 %4434
    %4436 = vrot.lane.b32.xlu0 %v4347, 127
    %v4437 = vpop.permute.xlu0 %4436
    %4438 = vrot.lane.b32.xlu0 %v4348, 127
    %v4439 = vpop.permute.xlu0 %4438
    %4440 = vrot.lane.b32.xlu0 %v4349, 127
    %v4441 = vpop.permute.xlu0 %4440
    %4442 = vrot.lane.b32.xlu0 %v4350, 127
    %v4443 = vpop.permute.xlu0 %4442
    %4444 = vrot.lane.b32.xlu0 %v4351, 127
    %v4445 = vpop.permute.xlu0 %4444
    %4446 = vrot.lane.b32.xlu0 %v4352, 127
    %v4447 = vpop.permute.xlu0 %4446
    %4448 = vrot.lane.b32.xlu0 %v4353, 127
    %v4449 = vpop.permute.xlu0 %4448
    %v4466 = vsel %vm4386, %v4419, 0.0
    %v4467 = vsel %vm4387, %v4421, 0.0
    %v4468 = vsel %vm4388, %v4423, 0.0
    %v4469 = vsel %vm4389, %v4425, 0.0
    %v4470 = vsel %vm4390, %v4427, 0.0
    %v4471 = vsel %vm4391, %v4429, 0.0
    %v4472 = vsel %vm4392, %v4431, 0.0
    %v4473 = vsel %vm4393, %v4433, 0.0
    %v4474 = vsel %vm4394, %v4435, 0.0
    %v4475 = vsel %vm4395, %v4437, 0.0
    %v4476 = vsel %vm4396, %v4439, 0.0
    %v4477 = vsel %vm4397, %v4441, 0.0
    %v4478 = vsel %vm4398, %v4443, 0.0
    %v4479 = vsel %vm4399, %v4445, 0.0
    %v4480 = vsel %vm4400, %v4447, 0.0
    %v4481 = vsel %vm4401, %v4449, 0.0
    %v4482 = vadd.f32 %v4370, %v4466
    %v4483 = vadd.f32 %v4371, %v4467
    %v4484 = vadd.f32 %v4372, %v4468
    %v4485 = vadd.f32 %v4373, %v4469
    %v4486 = vadd.f32 %v4374, %v4470
    %v4487 = vadd.f32 %v4375, %v4471
    %v4488 = vadd.f32 %v4376, %v4472
    %v4489 = vadd.f32 %v4377, %v4473
    %v4490 = vadd.f32 %v4378, %v4474
    %v4491 = vadd.f32 %v4379, %v4475
    %v4492 = vadd.f32 %v4380, %v4476
    %v4493 = vadd.f32 %v4381, %v4477
    %v4494 = vadd.f32 %v4382, %v4478
    %v4495 = vadd.f32 %v4383, %v4479
    %v4496 = vadd.f32 %v4384, %v4480
    %v4497 = vadd.f32 %v4385, %v4481
    %vm4498 = vcmp.eq.s32.totalorder %v3752, 2
    %vm4499 = vcmp.eq.s32.totalorder %v3753, 2
    %vm4500 = vcmp.eq.s32.totalorder %v3754, 2
    %vm4501 = vcmp.eq.s32.totalorder %v3755, 2
    %vm4502 = vcmp.eq.s32.totalorder %v3756, 2
    %vm4503 = vcmp.eq.s32.totalorder %v3757, 2
    %vm4504 = vcmp.eq.s32.totalorder %v3758, 2
    %vm4505 = vcmp.eq.s32.totalorder %v3759, 2
    %vm4506 = vcmp.eq.s32.totalorder %v3760, 2
    %vm4507 = vcmp.eq.s32.totalorder %v3761, 2
    %vm4508 = vcmp.eq.s32.totalorder %v3762, 2
    %vm4509 = vcmp.eq.s32.totalorder %v3763, 2
    %vm4510 = vcmp.eq.s32.totalorder %v3764, 2
    %vm4511 = vcmp.eq.s32.totalorder %v3765, 2
    %vm4512 = vcmp.eq.s32.totalorder %v3766, 2
    %vm4513 = vcmp.eq.s32.totalorder %v3767, 2
    %4514 = vrot.lane.b32.xlu0 %v4338, 126
    %v4515 = vpop.permute.xlu0 %4514
    %4516 = vrot.lane.b32.xlu0 %v4339, 126
    %v4517 = vpop.permute.xlu0 %4516
    %4518 = vrot.lane.b32.xlu0 %v4340, 126
    %v4519 = vpop.permute.xlu0 %4518
    %4520 = vrot.lane.b32.xlu0 %v4341, 126
    %v4521 = vpop.permute.xlu0 %4520
    %4522 = vrot.lane.b32.xlu0 %v4342, 126
    %v4523 = vpop.permute.xlu0 %4522
    %4524 = vrot.lane.b32.xlu0 %v4343, 126
    %v4525 = vpop.permute.xlu0 %4524
    %4526 = vrot.lane.b32.xlu0 %v4344, 126
    %v4527 = vpop.permute.xlu0 %4526
    %4528 = vrot.lane.b32.xlu0 %v4345, 126
    %v4529 = vpop.permute.xlu0 %4528
    %4530 = vrot.lane.b32.xlu0 %v4346, 126
    %v4531 = vpop.permute.xlu0 %4530
    %4532 = vrot.lane.b32.xlu0 %v4347, 126
    %v4533 = vpop.permute.xlu0 %4532
    %4534 = vrot.lane.b32.xlu0 %v4348, 126
    %v4535 = vpop.permute.xlu0 %4534
    %4536 = vrot.lane.b32.xlu0 %v4349, 126
    %v4537 = vpop.permute.xlu0 %4536
    %4538 = vrot.lane.b32.xlu0 %v4350, 126
    %v4539 = vpop.permute.xlu0 %4538
    %4540 = vrot.lane.b32.xlu0 %v4351, 126
    %v4541 = vpop.permute.xlu0 %4540
    %4542 = vrot.lane.b32.xlu0 %v4352, 126
    %v4543 = vpop.permute.xlu0 %4542
    %4544 = vrot.lane.b32.xlu0 %v4353, 126
    %v4545 = vpop.permute.xlu0 %4544
    %v4562 = vsel %vm4498, %v4515, 0.0
    %v4563 = vsel %vm4499, %v4517, 0.0
    %v4564 = vsel %vm4500, %v4519, 0.0
    %v4565 = vsel %vm4501, %v4521, 0.0
    %v4566 = vsel %vm4502, %v4523, 0.0
    %v4567 = vsel %vm4503, %v4525, 0.0
    %v4568 = vsel %vm4504, %v4527, 0.0
    %v4569 = vsel %vm4505, %v4529, 0.0
    %v4570 = vsel %vm4506, %v4531, 0.0
    %v4571 = vsel %vm4507, %v4533, 0.0
    %v4572 = vsel %vm4508, %v4535, 0.0
    %v4573 = vsel %vm4509, %v4537, 0.0
    %v4574 = vsel %vm4510, %v4539, 0.0
    %v4575 = vsel %vm4511, %v4541, 0.0
    %v4576 = vsel %vm4512, %v4543, 0.0
    %v4577 = vsel %vm4513, %v4545, 0.0
    %v4578 = vadd.f32 %v4482, %v4562
    %v4579 = vadd.f32 %v4483, %v4563
    %v4580 = vadd.f32 %v4484, %v4564
    %v4581 = vadd.f32 %v4485, %v4565
    %v4582 = vadd.f32 %v4486, %v4566
    %v4583 = vadd.f32 %v4487, %v4567
    %v4584 = vadd.f32 %v4488, %v4568
    %v4585 = vadd.f32 %v4489, %v4569
    %v4586 = vadd.f32 %v4490, %v4570
    %v4587 = vadd.f32 %v4491, %v4571
    %v4588 = vadd.f32 %v4492, %v4572
    %v4589 = vadd.f32 %v4493, %v4573
    %v4590 = vadd.f32 %v4494, %v4574
    %v4591 = vadd.f32 %v4495, %v4575
    %v4592 = vadd.f32 %v4496, %v4576
    %v4593 = vadd.f32 %v4497, %v4577
    %vm4594 = vcmp.eq.s32.totalorder %v3752, 3
    %vm4595 = vcmp.eq.s32.totalorder %v3753, 3
    %vm4596 = vcmp.eq.s32.totalorder %v3754, 3
    %vm4597 = vcmp.eq.s32.totalorder %v3755, 3
    %vm4598 = vcmp.eq.s32.totalorder %v3756, 3
    %vm4599 = vcmp.eq.s32.totalorder %v3757, 3
    %vm4600 = vcmp.eq.s32.totalorder %v3758, 3
    %vm4601 = vcmp.eq.s32.totalorder %v3759, 3
    %vm4602 = vcmp.eq.s32.totalorder %v3760, 3
    %vm4603 = vcmp.eq.s32.totalorder %v3761, 3
    %vm4604 = vcmp.eq.s32.totalorder %v3762, 3
    %vm4605 = vcmp.eq.s32.totalorder %v3763, 3
    %vm4606 = vcmp.eq.s32.totalorder %v3764, 3
    %vm4607 = vcmp.eq.s32.totalorder %v3765, 3
    %vm4608 = vcmp.eq.s32.totalorder %v3766, 3
    %vm4609 = vcmp.eq.s32.totalorder %v3767, 3
    %4610 = vrot.lane.b32.xlu0 %v4338, 125
    %v4611 = vpop.permute.xlu0 %4610
    %4612 = vrot.lane.b32.xlu0 %v4339, 125
    %v4613 = vpop.permute.xlu0 %4612
    %4614 = vrot.lane.b32.xlu0 %v4340, 125
    %v4615 = vpop.permute.xlu0 %4614
    %4616 = vrot.lane.b32.xlu0 %v4341, 125
    %v4617 = vpop.permute.xlu0 %4616
    %4618 = vrot.lane.b32.xlu0 %v4342, 125
    %v4619 = vpop.permute.xlu0 %4618
    %4620 = vrot.lane.b32.xlu0 %v4343, 125
    %v4621 = vpop.permute.xlu0 %4620
    %4622 = vrot.lane.b32.xlu0 %v4344, 125
    %v4623 = vpop.permute.xlu0 %4622
    %4624 = vrot.lane.b32.xlu0 %v4345, 125
    %v4625 = vpop.permute.xlu0 %4624
    %4626 = vrot.lane.b32.xlu0 %v4346, 125
    %v4627 = vpop.permute.xlu0 %4626
    %4628 = vrot.lane.b32.xlu0 %v4347, 125
    %v4629 = vpop.permute.xlu0 %4628
    %4630 = vrot.lane.b32.xlu0 %v4348, 125
    %v4631 = vpop.permute.xlu0 %4630
    %4632 = vrot.lane.b32.xlu0 %v4349, 125
    %v4633 = vpop.permute.xlu0 %4632
    %4634 = vrot.lane.b32.xlu0 %v4350, 125
    %v4635 = vpop.permute.xlu0 %4634
    %4636 = vrot.lane.b32.xlu0 %v4351, 125
    %v4637 = vpop.permute.xlu0 %4636
    %4638 = vrot.lane.b32.xlu0 %v4352, 125
    %v4639 = vpop.permute.xlu0 %4638
    %4640 = vrot.lane.b32.xlu0 %v4353, 125
    %v4641 = vpop.permute.xlu0 %4640
    %v4658 = vsel %vm4594, %v4611, 0.0
    %v4659 = vsel %vm4595, %v4613, 0.0
    %v4660 = vsel %vm4596, %v4615, 0.0
    %v4661 = vsel %vm4597, %v4617, 0.0
    %v4662 = vsel %vm4598, %v4619, 0.0
    %v4663 = vsel %vm4599, %v4621, 0.0
    %v4664 = vsel %vm4600, %v4623, 0.0
    %v4665 = vsel %vm4601, %v4625, 0.0
    %v4666 = vsel %vm4602, %v4627, 0.0
    %v4667 = vsel %vm4603, %v4629, 0.0
    %v4668 = vsel %vm4604, %v4631, 0.0
    %v4669 = vsel %vm4605, %v4633, 0.0
    %v4670 = vsel %vm4606, %v4635, 0.0
    %v4671 = vsel %vm4607, %v4637, 0.0
    %v4672 = vsel %vm4608, %v4639, 0.0
    %v4673 = vsel %vm4609, %v4641, 0.0
    %v4674 = vadd.f32 %v4578, %v4658
    %v4675 = vadd.f32 %v4579, %v4659
    %v4676 = vadd.f32 %v4580, %v4660
    %v4677 = vadd.f32 %v4581, %v4661
    %v4678 = vadd.f32 %v4582, %v4662
    %v4679 = vadd.f32 %v4583, %v4663
    %v4680 = vadd.f32 %v4584, %v4664
    %v4681 = vadd.f32 %v4585, %v4665
    %v4682 = vadd.f32 %v4586, %v4666
    %v4683 = vadd.f32 %v4587, %v4667
    %v4684 = vadd.f32 %v4588, %v4668
    %v4685 = vadd.f32 %v4589, %v4669
    %v4686 = vadd.f32 %v4590, %v4670
    %v4687 = vadd.f32 %v4591, %v4671
    %v4688 = vadd.f32 %v4592, %v4672
    %v4689 = vadd.f32 %v4593, %v4673
    %vm4690 = vcmp.gt.f32.partialorder %v4674, 0.0
    %vm4691 = vcmp.gt.f32.partialorder %v4675, 0.0
    %vm4692 = vcmp.gt.f32.partialorder %v4676, 0.0
    %vm4693 = vcmp.gt.f32.partialorder %v4677, 0.0
    %vm4694 = vcmp.gt.f32.partialorder %v4678, 0.0
    %vm4695 = vcmp.gt.f32.partialorder %v4679, 0.0
    %vm4696 = vcmp.gt.f32.partialorder %v4680, 0.0
    %vm4697 = vcmp.gt.f32.partialorder %v4681, 0.0
    %vm4698 = vcmp.gt.f32.partialorder %v4682, 0.0
    %vm4699 = vcmp.gt.f32.partialorder %v4683, 0.0
    %vm4700 = vcmp.gt.f32.partialorder %v4684, 0.0
    %vm4701 = vcmp.gt.f32.partialorder %v4685, 0.0
    %vm4702 = vcmp.gt.f32.partialorder %v4686, 0.0
    %vm4703 = vcmp.gt.f32.partialorder %v4687, 0.0
    %vm4704 = vcmp.gt.f32.partialorder %v4688, 0.0
    %vm4705 = vcmp.gt.f32.partialorder %v4689, 0.0
    %v4706 = vmul.f32 %v4674, 0.2
    %v4707 = vmul.f32 %v4675, 0.2
    %v4708 = vmul.f32 %v4676, 0.2
    %v4709 = vmul.f32 %v4677, 0.2
    %v4710 = vmul.f32 %v4678, 0.2
    %v4711 = vmul.f32 %v4679, 0.2
    %v4712 = vmul.f32 %v4680, 0.2
    %v4713 = vmul.f32 %v4681, 0.2
    %v4714 = vmul.f32 %v4682, 0.2
    %v4715 = vmul.f32 %v4683, 0.2
    %v4716 = vmul.f32 %v4684, 0.2
    %v4717 = vmul.f32 %v4685, 0.2
    %v4718 = vmul.f32 %v4686, 0.2
    %v4719 = vmul.f32 %v4687, 0.2
    %v4720 = vmul.f32 %v4688, 0.2
    %v4721 = vmul.f32 %v4689, 0.2
    %v4722 = vsel %vm4690, %v4674, %v4706
    %v4723 = vsel %vm4691, %v4675, %v4707
    %v4724 = vsel %vm4692, %v4676, %v4708
    %v4725 = vsel %vm4693, %v4677, %v4709
    %v4726 = vsel %vm4694, %v4678, %v4710
    %v4727 = vsel %vm4695, %v4679, %v4711
    %v4728 = vsel %vm4696, %v4680, %v4712
    %v4729 = vsel %vm4697, %v4681, %v4713
    %v4730 = vsel %vm4698, %v4682, %v4714
    %v4731 = vsel %vm4699, %v4683, %v4715
    %v4732 = vsel %vm4700, %v4684, %v4716
    %v4733 = vsel %vm4701, %v4685, %v4717
    %v4734 = vsel %vm4702, %v4686, %v4718
    %v4735 = vsel %vm4703, %v4687, %v4719
    %v4736 = vsel %vm4704, %v4688, %v4720
    %v4737 = vsel %vm4705, %v4689, %v4721
    %v4738 = vsel %vm398, %v4722, -1e+30
    %v4739 = vsel %vm399, %v4723, -1e+30
    %v4740 = vsel %vm400, %v4724, -1e+30
    %v4741 = vsel %vm401, %v4725, -1e+30
    %v4742 = vsel %vm402, %v4726, -1e+30
    %v4743 = vsel %vm403, %v4727, -1e+30
    %v4744 = vsel %vm404, %v4728, -1e+30
    %v4745 = vsel %vm405, %v4729, -1e+30
    %v4746 = vsel %vm406, %v4730, -1e+30
    %v4747 = vsel %vm407, %v4731, -1e+30
    %v4748 = vsel %vm408, %v4732, -1e+30
    %v4749 = vsel %vm409, %v4733, -1e+30
    %v4750 = vsel %vm410, %v4734, -1e+30
    %v4751 = vsel %vm411, %v4735, -1e+30
    %v4752 = vsel %vm412, %v4736, -1e+30
    %v4753 = vsel %vm413, %v4737, -1e+30
    %4754 = vst.msk [vmem:[#allocation6] sm:$0xff] %vm1403, %v4738
    %4755 = vst.msk [vmem:[#allocation6 + $0x8] sm:$0xff] %vm1403, %v4739
    %4756 = vst.msk [vmem:[#allocation6 + $0x10] sm:$0xff] %vm1403, %v4740
    %4757 = vst.msk [vmem:[#allocation6 + $0x18] sm:$0xff] %vm1403, %v4741
    %4758 = vst.msk [vmem:[#allocation6 + $0x20] sm:$0xff] %vm1403, %v4742
    %4759 = vst.msk [vmem:[#allocation6 + $0x28] sm:$0xff] %vm1403, %v4743
    %4760 = vst.msk [vmem:[#allocation6 + $0x30] sm:$0xff] %vm1403, %v4744
    %4761 = vst.msk [vmem:[#allocation6 + $0x38] sm:$0xff] %vm1403, %v4745
    %4762 = vst.msk [vmem:[#allocation6 + $0x40] sm:$0xff] %vm1403, %v4746
    %4763 = vst.msk [vmem:[#allocation6 + $0x48] sm:$0xff] %vm1403, %v4747
    %4764 = vst.msk [vmem:[#allocation6 + $0x50] sm:$0xff] %vm1403, %v4748
    %4765 = vst.msk [vmem:[#allocation6 + $0x58] sm:$0xff] %vm1403, %v4749
    %4766 = vst.msk [vmem:[#allocation6 + $0x60] sm:$0xff] %vm1403, %v4750
    %4767 = vst.msk [vmem:[#allocation6 + $0x68] sm:$0xff] %vm1403, %v4751
    %4768 = vst.msk [vmem:[#allocation6 + $0x70] sm:$0xff] %vm1403, %v4752
    %4769 = vst.msk [vmem:[#allocation6 + $0x78] sm:$0xff] %vm1403, %v4753
    %v4770 = vld [vmem:[#allocation4] sm:$0x1]
    %4772 = vset.pattern.permute.xlu0 0
    %4773 = vperm.xlu0 %4772, %v4738
    %v4774 = vpop.permute.xlu0 %4773
    %4777 = vset.pattern.permute.xlu0 0
    %4778 = vperm.xlu0 %4777, %v4739
    %v4779 = vpop.permute.xlu0 %4778
    %4782 = vset.pattern.permute.xlu0 0
    %4783 = vperm.xlu0 %4782, %v4740
    %v4784 = vpop.permute.xlu0 %4783
    %4787 = vset.pattern.permute.xlu0 0
    %4788 = vperm.xlu0 %4787, %v4741
    %v4789 = vpop.permute.xlu0 %4788
    %4792 = vset.pattern.permute.xlu0 0
    %4793 = vperm.xlu0 %4792, %v4742
    %v4794 = vpop.permute.xlu0 %4793
    %4797 = vset.pattern.permute.xlu0 0
    %4798 = vperm.xlu0 %4797, %v4743
    %v4799 = vpop.permute.xlu0 %4798
    %4802 = vset.pattern.permute.xlu0 0
    %4803 = vperm.xlu0 %4802, %v4744
    %v4804 = vpop.permute.xlu0 %4803
    %4807 = vset.pattern.permute.xlu0 0
    %4808 = vperm.xlu0 %4807, %v4745
    %v4809 = vpop.permute.xlu0 %4808
    %4812 = vset.pattern.permute.xlu0 0
    %4813 = vperm.xlu0 %4812, %v4746
    %v4814 = vpop.permute.xlu0 %4813
    %4817 = vset.pattern.permute.xlu0 0
    %4818 = vperm.xlu0 %4817, %v4747
    %v4819 = vpop.permute.xlu0 %4818
    %4822 = vset.pattern.permute.xlu0 0
    %4823 = vperm.xlu0 %4822, %v4748
    %v4824 = vpop.permute.xlu0 %4823
    %4827 = vset.pattern.permute.xlu0 0
    %4828 = vperm.xlu0 %4827, %v4749
    %v4829 = vpop.permute.xlu0 %4828
    %4832 = vset.pattern.permute.xlu0 0
    %4833 = vperm.xlu0 %4832, %v4750
    %v4834 = vpop.permute.xlu0 %4833
    %4837 = vset.pattern.permute.xlu0 0
    %4838 = vperm.xlu0 %4837, %v4751
    %v4839 = vpop.permute.xlu0 %4838
    %4842 = vset.pattern.permute.xlu0 0
    %4843 = vperm.xlu0 %4842, %v4752
    %v4844 = vpop.permute.xlu0 %4843
    %4847 = vset.pattern.permute.xlu0 0
    %4848 = vperm.xlu0 %4847, %v4753
    %v4849 = vpop.permute.xlu0 %4848
    %v4851 = vsel %vm3880, %v4774, -1e+30
    %v4852 = vsel %vm3881, %v4779, -1e+30
    %v4853 = vsel %vm3882, %v4784, -1e+30
    %v4854 = vsel %vm3883, %v4789, -1e+30
    %v4855 = vsel %vm3884, %v4794, -1e+30
    %v4856 = vsel %vm3885, %v4799, -1e+30
    %v4857 = vsel %vm3886, %v4804, -1e+30
    %v4858 = vsel %vm3887, %v4809, -1e+30
    %v4859 = vsel %vm3888, %v4814, -1e+30
    %v4860 = vsel %vm3889, %v4819, -1e+30
    %v4861 = vsel %vm3890, %v4824, -1e+30
    %v4862 = vsel %vm3891, %v4829, -1e+30
    %v4863 = vsel %vm3892, %v4834, -1e+30
    %v4864 = vsel %vm3893, %v4839, -1e+30
    %v4865 = vsel %vm3894, %v4844, -1e+30
    %v4866 = vsel %vm3895, %v4849, -1e+30
    %v4867 = vsel %vm584, %v4851, -inf
    %v4868 = vsel %vm584, %v4852, -inf
    %v4869 = vsel %vm584, %v4853, -inf
    %v4870 = vsel %vm584, %v4854, -inf
    %v4871 = vsel %vm584, %v4855, -inf
    %v4872 = vmax.f32 %v4867, %v4871
    %v4873 = vsel %vm584, %v4856, -inf
    %v4874 = vmax.f32 %v4868, %v4873
    %v4875 = vsel %vm584, %v4857, -inf
    %v4876 = vmax.f32 %v4869, %v4875
    %v4877 = vsel %vm584, %v4858, -inf
    %v4878 = vmax.f32 %v4870, %v4877
    %v4879 = vsel %vm584, %v4859, -inf
    %v4880 = vmax.f32 %v4872, %v4879
    %v4881 = vsel %vm584, %v4860, -inf
    %v4882 = vmax.f32 %v4874, %v4881
    %v4883 = vsel %vm584, %v4861, -inf
    %v4884 = vmax.f32 %v4876, %v4883
    %v4885 = vsel %vm584, %v4862, -inf
    %v4886 = vmax.f32 %v4878, %v4885
    %v4887 = vsel %vm584, %v4863, -inf
    %v4888 = vmax.f32 %v4880, %v4887
    %v4889 = vsel %vm584, %v4864, -inf
    %v4890 = vmax.f32 %v4882, %v4889
    %v4891 = vsel %vm584, %v4865, -inf
    %v4892 = vmax.f32 %v4884, %v4891
    %v4893 = vsel %vm584, %v4866, -inf
    %v4894 = vmax.f32 %v4886, %v4893
    %v4895 = vmax.f32 %v4888, %v4890
    %v4896 = vmax.f32 %v4892, %v4894
    %v4897 = vmax.f32 %v4895, %v4896
    %v4898 = vrot.slane %v4897, 4
    %v4899 = vmax.f32 %v4897, %v4898
    %v4900 = vrot.slane %v4899, 2
    %v4901 = vmax.f32 %v4899, %v4900
    %v4902 = vrot.slane %v4901, 1
    %v4903 = vmax.f32 %v4901, %v4902
    %v4904 = vmax.f32 %v4770, %v4903
    %v4906 = vlaneseq
    %v4907 = vshrl.u32 %v4906, 7
    %v4908 = vsub.s32 0, %v4907
    %v4909 = vrot.slane %v4904, %v4908
    %v4911 = vsel %vm3880, %v4909, 0.0
    %v4912 = vsel %vm3881, %v4909, 0.0
    %v4913 = vsel %vm3882, %v4909, 0.0
    %v4914 = vsel %vm3883, %v4909, 0.0
    %v4915 = vsel %vm3884, %v4909, 0.0
    %v4916 = vsel %vm3885, %v4909, 0.0
    %v4917 = vsel %vm3886, %v4909, 0.0
    %v4918 = vsel %vm3887, %v4909, 0.0
    %v4919 = vsel %vm3888, %v4909, 0.0
    %v4920 = vsel %vm3889, %v4909, 0.0
    %v4921 = vsel %vm3890, %v4909, 0.0
    %v4922 = vsel %vm3891, %v4909, 0.0
    %v4923 = vsel %vm3892, %v4909, 0.0
    %v4924 = vsel %vm3893, %v4909, 0.0
    %v4925 = vsel %vm3894, %v4909, 0.0
    %v4926 = vsel %vm3895, %v4909, 0.0
    %v4927 = vsel %vm584, %v4911, 0.0
    %4928 = vadd.xlane.f32.xlu0 %v4927
    %v4929 = vpop.xlane.xlu0 %4928
    %v4930 = vsel %vm584, %v4912, 0.0
    %4931 = vadd.xlane.f32.xlu0 %v4930
    %v4932 = vpop.xlane.xlu0 %4931
    %v4933 = vsel %vm584, %v4913, 0.0
    %4934 = vadd.xlane.f32.xlu0 %v4933
    %v4935 = vpop.xlane.xlu0 %4934
    %v4936 = vsel %vm584, %v4914, 0.0
    %4937 = vadd.xlane.f32.xlu0 %v4936
    %v4938 = vpop.xlane.xlu0 %4937
    %v4939 = vsel %vm584, %v4915, 0.0
    %4940 = vadd.xlane.f32.xlu0 %v4939
    %v4941 = vpop.xlane.xlu0 %4940
    %v4942 = vsel %vm584, %v4916, 0.0
    %4943 = vadd.xlane.f32.xlu0 %v4942
    %v4944 = vpop.xlane.xlu0 %4943
    %v4945 = vsel %vm584, %v4917, 0.0
    %4946 = vadd.xlane.f32.xlu0 %v4945
    %v4947 = vpop.xlane.xlu0 %4946
    %v4948 = vsel %vm584, %v4918, 0.0
    %4949 = vadd.xlane.f32.xlu0 %v4948
    %v4950 = vpop.xlane.xlu0 %4949
    %v4951 = vsel %vm584, %v4919, 0.0
    %4952 = vadd.xlane.f32.xlu0 %v4951
    %v4953 = vpop.xlane.xlu0 %4952
    %v4954 = vsel %vm584, %v4920, 0.0
    %4955 = vadd.xlane.f32.xlu0 %v4954
    %v4956 = vpop.xlane.xlu0 %4955
    %v4957 = vsel %vm584, %v4921, 0.0
    %4958 = vadd.xlane.f32.xlu0 %v4957
    %v4959 = vpop.xlane.xlu0 %4958
    %v4960 = vsel %vm584, %v4922, 0.0
    %4961 = vadd.xlane.f32.xlu0 %v4960
    %v4962 = vpop.xlane.xlu0 %4961
    %v4963 = vsel %vm584, %v4923, 0.0
    %4964 = vadd.xlane.f32.xlu0 %v4963
    %v4965 = vpop.xlane.xlu0 %4964
    %v4966 = vsel %vm584, %v4924, 0.0
    %4967 = vadd.xlane.f32.xlu0 %v4966
    %v4968 = vpop.xlane.xlu0 %4967
    %v4969 = vsel %vm584, %v4925, 0.0
    %4970 = vadd.xlane.f32.xlu0 %v4969
    %v4971 = vpop.xlane.xlu0 %4970
    %v4972 = vsel %vm584, %v4926, 0.0
    %4973 = vadd.xlane.f32.xlu0 %v4972
    %v4974 = vpop.xlane.xlu0 %4973
    %v4975 = vsub.f32 %v4738, %v4929
    %v4976 = vsub.f32 %v4739, %v4932
    %v4977 = vsub.f32 %v4740, %v4935
    %v4978 = vsub.f32 %v4741, %v4938
    %v4979 = vsub.f32 %v4742, %v4941
    %v4980 = vsub.f32 %v4743, %v4944
    %v4981 = vsub.f32 %v4744, %v4947
    %v4982 = vsub.f32 %v4745, %v4950
    %v4983 = vsub.f32 %v4746, %v4953
    %v4984 = vsub.f32 %v4747, %v4956
    %v4985 = vsub.f32 %v4748, %v4959
    %v4986 = vsub.f32 %v4749, %v4962
    %v4987 = vsub.f32 %v4750, %v4965
    %v4988 = vsub.f32 %v4751, %v4968
    %v4989 = vsub.f32 %v4752, %v4971
    %v4990 = vsub.f32 %v4753, %v4974
    %v4991 = vmul.f32 %v4975, 1.442695
    %v4992 = vpow.pop %v4991
    %v4993 = vmul.f32 %v4976, 1.442695
    %v4994 = vpow.pop %v4993
    %v4995 = vmul.f32 %v4977, 1.442695
    %v4996 = vpow.pop %v4995
    %v4997 = vmul.f32 %v4978, 1.442695
    %v4998 = vpow.pop %v4997
    %v4999 = vmul.f32 %v4979, 1.442695
    %v5000 = vpow.pop %v4999
    %v5001 = vmul.f32 %v4980, 1.442695
    %v5002 = vpow.pop %v5001
    %v5003 = vmul.f32 %v4981, 1.442695
    %v5004 = vpow.pop %v5003
    %v5005 = vmul.f32 %v4982, 1.442695
    %v5006 = vpow.pop %v5005
    %v5007 = vmul.f32 %v4983, 1.442695
    %v5008 = vpow.pop %v5007
    %v5009 = vmul.f32 %v4984, 1.442695
    %v5010 = vpow.pop %v5009
    %v5011 = vmul.f32 %v4985, 1.442695
    %v5012 = vpow.pop %v5011
    %v5013 = vmul.f32 %v4986, 1.442695
    %v5014 = vpow.pop %v5013
    %v5015 = vmul.f32 %v4987, 1.442695
    %v5016 = vpow.pop %v5015
    %v5017 = vmul.f32 %v4988, 1.442695
    %v5018 = vpow.pop %v5017
    %v5019 = vmul.f32 %v4989, 1.442695
    %v5020 = vpow.pop %v5019
    %v5021 = vmul.f32 %v4990, 1.442695
    %v5022 = vpow.pop %v5021
    %v5023 = vmul.f32 %v4992, %v1673
    %v5024 = vmul.f32 %v4994, %v1674
    %v5025 = vmul.f32 %v4996, %v1675
    %v5026 = vmul.f32 %v4998, %v1676
    %v5027 = vmul.f32 %v5000, %v1677
    %v5028 = vmul.f32 %v5002, %v1678
    %v5029 = vmul.f32 %v5004, %v1679
    %v5030 = vmul.f32 %v5006, %v1680
    %v5031 = vmul.f32 %v5008, %v1681
    %v5032 = vmul.f32 %v5010, %v1682
    %v5033 = vmul.f32 %v5012, %v1683
    %v5034 = vmul.f32 %v5014, %v1684
    %v5035 = vmul.f32 %v5016, %v1685
    %v5036 = vmul.f32 %v5018, %v1686
    %v5037 = vmul.f32 %v5020, %v1687
    %v5038 = vmul.f32 %v5022, %v1688
    %v5039 = vld [vmem:[#allocation5] sm:$0x1]
    %v5040 = vsub.f32 %v4770, %v4904
    %v5041 = vmul.f32 %v5040, 1.442695
    %v5042 = vpow.pop %v5041
    %v5043 = vmul.f32 %v5039, %v5042
    %5045 = vset.pattern.permute.xlu0 0
    %5046 = vperm.xlu0 %5045, %v5023
    %v5047 = vpop.permute.xlu0 %5046
    %5050 = vset.pattern.permute.xlu0 0
    %5051 = vperm.xlu0 %5050, %v5024
    %v5052 = vpop.permute.xlu0 %5051
    %5055 = vset.pattern.permute.xlu0 0
    %5056 = vperm.xlu0 %5055, %v5025
    %v5057 = vpop.permute.xlu0 %5056
    %5060 = vset.pattern.permute.xlu0 0
    %5061 = vperm.xlu0 %5060, %v5026
    %v5062 = vpop.permute.xlu0 %5061
    %5065 = vset.pattern.permute.xlu0 0
    %5066 = vperm.xlu0 %5065, %v5027
    %v5067 = vpop.permute.xlu0 %5066
    %5070 = vset.pattern.permute.xlu0 0
    %5071 = vperm.xlu0 %5070, %v5028
    %v5072 = vpop.permute.xlu0 %5071
    %5075 = vset.pattern.permute.xlu0 0
    %5076 = vperm.xlu0 %5075, %v5029
    %v5077 = vpop.permute.xlu0 %5076
    %5080 = vset.pattern.permute.xlu0 0
    %5081 = vperm.xlu0 %5080, %v5030
    %v5082 = vpop.permute.xlu0 %5081
    %5085 = vset.pattern.permute.xlu0 0
    %5086 = vperm.xlu0 %5085, %v5031
    %v5087 = vpop.permute.xlu0 %5086
    %5090 = vset.pattern.permute.xlu0 0
    %5091 = vperm.xlu0 %5090, %v5032
    %v5092 = vpop.permute.xlu0 %5091
    %5095 = vset.pattern.permute.xlu0 0
    %5096 = vperm.xlu0 %5095, %v5033
    %v5097 = vpop.permute.xlu0 %5096
    %5100 = vset.pattern.permute.xlu0 0
    %5101 = vperm.xlu0 %5100, %v5034
    %v5102 = vpop.permute.xlu0 %5101
    %5105 = vset.pattern.permute.xlu0 0
    %5106 = vperm.xlu0 %5105, %v5035
    %v5107 = vpop.permute.xlu0 %5106
    %5110 = vset.pattern.permute.xlu0 0
    %5111 = vperm.xlu0 %5110, %v5036
    %v5112 = vpop.permute.xlu0 %5111
    %5115 = vset.pattern.permute.xlu0 0
    %5116 = vperm.xlu0 %5115, %v5037
    %v5117 = vpop.permute.xlu0 %5116
    %5120 = vset.pattern.permute.xlu0 0
    %5121 = vperm.xlu0 %5120, %v5038
    %v5122 = vpop.permute.xlu0 %5121
    %v5124 = vsel %vm3880, %v5047, 0.0
    %v5125 = vsel %vm3881, %v5052, 0.0
    %v5126 = vsel %vm3882, %v5057, 0.0
    %v5127 = vsel %vm3883, %v5062, 0.0
    %v5128 = vsel %vm3884, %v5067, 0.0
    %v5129 = vsel %vm3885, %v5072, 0.0
    %v5130 = vsel %vm3886, %v5077, 0.0
    %v5131 = vsel %vm3887, %v5082, 0.0
    %v5132 = vsel %vm3888, %v5087, 0.0
    %v5133 = vsel %vm3889, %v5092, 0.0
    %v5134 = vsel %vm3890, %v5097, 0.0
    %v5135 = vsel %vm3891, %v5102, 0.0
    %v5136 = vsel %vm3892, %v5107, 0.0
    %v5137 = vsel %vm3893, %v5112, 0.0
    %v5138 = vsel %vm3894, %v5117, 0.0
    %v5139 = vsel %vm3895, %v5122, 0.0
    %v5140 = vsel %vm584, %v5124, 0.0
    %v5141 = vsel %vm584, %v5125, 0.0
    %v5142 = vadd.f32 %v5140, %v5141
    %v5143 = vsel %vm584, %v5126, 0.0
    %v5144 = vadd.f32 %v5142, %v5143
    %v5145 = vsel %vm584, %v5127, 0.0
    %v5146 = vadd.f32 %v5144, %v5145
    %v5147 = vsel %vm584, %v5128, 0.0
    %v5148 = vadd.f32 %v5146, %v5147
    %v5149 = vsel %vm584, %v5129, 0.0
    %v5150 = vadd.f32 %v5148, %v5149
    %v5151 = vsel %vm584, %v5130, 0.0
    %v5152 = vadd.f32 %v5150, %v5151
    %v5153 = vsel %vm584, %v5131, 0.0
    %v5154 = vadd.f32 %v5152, %v5153
    %v5155 = vsel %vm584, %v5132, 0.0
    %v5156 = vadd.f32 %v5154, %v5155
    %v5157 = vsel %vm584, %v5133, 0.0
    %v5158 = vadd.f32 %v5156, %v5157
    %v5159 = vsel %vm584, %v5134, 0.0
    %v5160 = vadd.f32 %v5158, %v5159
    %v5161 = vsel %vm584, %v5135, 0.0
    %v5162 = vadd.f32 %v5160, %v5161
    %v5163 = vsel %vm584, %v5136, 0.0
    %v5164 = vadd.f32 %v5162, %v5163
    %v5165 = vsel %vm584, %v5137, 0.0
    %v5166 = vadd.f32 %v5164, %v5165
    %v5167 = vsel %vm584, %v5138, 0.0
    %v5168 = vadd.f32 %v5166, %v5167
    %v5169 = vsel %vm584, %v5139, 0.0
    %v5170 = vadd.f32 %v5168, %v5169
    %v5171 = vrot.slane %v5170, 4
    %v5172 = vadd.f32 %v5170, %v5171
    %v5173 = vrot.slane %v5172, 2
    %v5174 = vadd.f32 %v5172, %v5173
    %v5175 = vrot.slane %v5174, 1
    %v5176 = vadd.f32 %v5174, %v5175
    %v5177 = vadd.f32 %v5043, %v5176
    %5178 = vst.msk [vmem:[#allocation5] sm:$0x1] %vm304, %v5177
    %5179 = vst.msk [vmem:[#allocation4] sm:$0x1] %vm304, %v4904
    %v5180 = vld [vmem:[%s0] sm:$0xff]
    %v5181 = vld [vmem:[%s0 + $0x8] sm:$0xff]
    %v5182 = vld [vmem:[%s0 + $0x10] sm:$0xff]
    %v5183 = vld [vmem:[%s0 + $0x18] sm:$0xff]
    %v5184 = vld [vmem:[%s0 + $0x20] sm:$0xff]
    %v5185 = vld [vmem:[%s0 + $0x28] sm:$0xff]
    %v5186 = vld [vmem:[%s0 + $0x30] sm:$0xff]
    %v5187 = vld [vmem:[%s0 + $0x38] sm:$0xff]
    %v5188 = vld [vmem:[%s0 + $0x40] sm:$0xff]
    %v5189 = vld [vmem:[%s0 + $0x48] sm:$0xff]
    %v5190 = vld [vmem:[%s0 + $0x50] sm:$0xff]
    %v5191 = vld [vmem:[%s0 + $0x58] sm:$0xff]
    %v5192 = vld [vmem:[%s0 + $0x60] sm:$0xff]
    %v5193 = vld [vmem:[%s0 + $0x68] sm:$0xff]
    %v5194 = vld [vmem:[%s0 + $0x70] sm:$0xff]
    %v5195 = vld [vmem:[%s0 + $0x78] sm:$0xff]
    %v5196 = vld [vmem:[%s1] sm:$0xff]
    %v5197 = vld [vmem:[%s1 + $0x8] sm:$0xff]
    %v5198 = vld [vmem:[%s1 + $0x10] sm:$0xff]
    %v5199 = vld [vmem:[%s1 + $0x18] sm:$0xff]
    %v5200 = vld [vmem:[%s1 + $0x20] sm:$0xff]
    %v5201 = vld [vmem:[%s1 + $0x28] sm:$0xff]
    %v5202 = vld [vmem:[%s1 + $0x30] sm:$0xff]
    %v5203 = vld [vmem:[%s1 + $0x38] sm:$0xff]
    %v5204 = vld [vmem:[%s1 + $0x40] sm:$0xff]
    %v5205 = vld [vmem:[%s1 + $0x48] sm:$0xff]
    %v5206 = vld [vmem:[%s1 + $0x50] sm:$0xff]
    %v5207 = vld [vmem:[%s1 + $0x58] sm:$0xff]
    %v5208 = vld [vmem:[%s1 + $0x60] sm:$0xff]
    %v5209 = vld [vmem:[%s1 + $0x68] sm:$0xff]
    %v5210 = vld [vmem:[%s1 + $0x70] sm:$0xff]
    %v5211 = vld [vmem:[%s1 + $0x78] sm:$0xff]
    %v5212 = vld [vmem:[%s2] sm:$0xff]
    %v5213 = vld [vmem:[%s2 + $0x8] sm:$0xff]
    %v5214 = vld [vmem:[%s2 + $0x10] sm:$0xff]
    %v5215 = vld [vmem:[%s2 + $0x18] sm:$0xff]
    %v5216 = vld [vmem:[%s2 + $0x20] sm:$0xff]
    %v5217 = vld [vmem:[%s2 + $0x28] sm:$0xff]
    %v5218 = vld [vmem:[%s2 + $0x30] sm:$0xff]
    %v5219 = vld [vmem:[%s2 + $0x38] sm:$0xff]
    %v5220 = vld [vmem:[%s2 + $0x40] sm:$0xff]
    %v5221 = vld [vmem:[%s2 + $0x48] sm:$0xff]
    %v5222 = vld [vmem:[%s2 + $0x50] sm:$0xff]
    %v5223 = vld [vmem:[%s2 + $0x58] sm:$0xff]
    %v5224 = vld [vmem:[%s2 + $0x60] sm:$0xff]
    %v5225 = vld [vmem:[%s2 + $0x68] sm:$0xff]
    %v5226 = vld [vmem:[%s2 + $0x70] sm:$0xff]
    %v5227 = vld [vmem:[%s2 + $0x78] sm:$0xff]
    %5228 = vset.pattern.permute.xlu0 0
    %5229 = vperm.xlu0 %5228, %v5180
    %v5230 = vpop.permute.xlu0 %5229
    %5231 = vset.pattern.permute.xlu0 0
    %5232 = vperm.xlu0 %5231, %v5181
    %v5233 = vpop.permute.xlu0 %5232
    %5234 = vset.pattern.permute.xlu0 0
    %5235 = vperm.xlu0 %5234, %v5182
    %v5236 = vpop.permute.xlu0 %5235
    %5237 = vset.pattern.permute.xlu0 0
    %5238 = vperm.xlu0 %5237, %v5183
    %v5239 = vpop.permute.xlu0 %5238
    %5240 = vset.pattern.permute.xlu0 0
    %5241 = vperm.xlu0 %5240, %v5184
    %v5242 = vpop.permute.xlu0 %5241
    %5243 = vset.pattern.permute.xlu0 0
    %5244 = vperm.xlu0 %5243, %v5185
    %v5245 = vpop.permute.xlu0 %5244
    %5246 = vset.pattern.permute.xlu0 0
    %5247 = vperm.xlu0 %5246, %v5186
    %v5248 = vpop.permute.xlu0 %5247
    %5249 = vset.pattern.permute.xlu0 0
    %5250 = vperm.xlu0 %5249, %v5187
    %v5251 = vpop.permute.xlu0 %5250
    %5252 = vset.pattern.permute.xlu0 0
    %5253 = vperm.xlu0 %5252, %v5188
    %v5254 = vpop.permute.xlu0 %5253
    %5255 = vset.pattern.permute.xlu0 0
    %5256 = vperm.xlu0 %5255, %v5189
    %v5257 = vpop.permute.xlu0 %5256
    %5258 = vset.pattern.permute.xlu0 0
    %5259 = vperm.xlu0 %5258, %v5190
    %v5260 = vpop.permute.xlu0 %5259
    %5261 = vset.pattern.permute.xlu0 0
    %5262 = vperm.xlu0 %5261, %v5191
    %v5263 = vpop.permute.xlu0 %5262
    %5264 = vset.pattern.permute.xlu0 0
    %5265 = vperm.xlu0 %5264, %v5192
    %v5266 = vpop.permute.xlu0 %5265
    %5267 = vset.pattern.permute.xlu0 0
    %5268 = vperm.xlu0 %5267, %v5193
    %v5269 = vpop.permute.xlu0 %5268
    %5270 = vset.pattern.permute.xlu0 0
    %5271 = vperm.xlu0 %5270, %v5194
    %v5272 = vpop.permute.xlu0 %5271
    %5273 = vset.pattern.permute.xlu0 0
    %5274 = vperm.xlu0 %5273, %v5195
    %v5275 = vpop.permute.xlu0 %5274
    %vm5276 = vcmp.eq.s32.totalorder %v415, %v5230
    %vm5277 = vcmp.eq.s32.totalorder %v415, %v5233
    %vm5278 = vcmp.eq.s32.totalorder %v415, %v5236
    %vm5279 = vcmp.eq.s32.totalorder %v415, %v5239
    %vm5280 = vcmp.eq.s32.totalorder %v415, %v5242
    %vm5281 = vcmp.eq.s32.totalorder %v415, %v5245
    %vm5282 = vcmp.eq.s32.totalorder %v415, %v5248
    %vm5283 = vcmp.eq.s32.totalorder %v415, %v5251
    %vm5284 = vcmp.eq.s32.totalorder %v415, %v5254
    %vm5285 = vcmp.eq.s32.totalorder %v415, %v5257
    %vm5286 = vcmp.eq.s32.totalorder %v415, %v5260
    %vm5287 = vcmp.eq.s32.totalorder %v415, %v5263
    %vm5288 = vcmp.eq.s32.totalorder %v415, %v5266
    %vm5289 = vcmp.eq.s32.totalorder %v415, %v5269
    %vm5290 = vcmp.eq.s32.totalorder %v415, %v5272
    %vm5291 = vcmp.eq.s32.totalorder %v415, %v5275
    %5292 = vset.pattern.permute.xlu0 0
    %5293 = vperm.xlu0 %5292, %v5196
    %v5294 = vpop.permute.xlu0 %5293
    %5295 = vset.pattern.permute.xlu0 0
    %5296 = vperm.xlu0 %5295, %v5197
    %v5297 = vpop.permute.xlu0 %5296
    %5298 = vset.pattern.permute.xlu0 0
    %5299 = vperm.xlu0 %5298, %v5198
    %v5300 = vpop.permute.xlu0 %5299
    %5301 = vset.pattern.permute.xlu0 0
    %5302 = vperm.xlu0 %5301, %v5199
    %v5303 = vpop.permute.xlu0 %5302
    %5304 = vset.pattern.permute.xlu0 0
    %5305 = vperm.xlu0 %5304, %v5200
    %v5306 = vpop.permute.xlu0 %5305
    %5307 = vset.pattern.permute.xlu0 0
    %5308 = vperm.xlu0 %5307, %v5201
    %v5309 = vpop.permute.xlu0 %5308
    %5310 = vset.pattern.permute.xlu0 0
    %5311 = vperm.xlu0 %5310, %v5202
    %v5312 = vpop.permute.xlu0 %5311
    %5313 = vset.pattern.permute.xlu0 0
    %5314 = vperm.xlu0 %5313, %v5203
    %v5315 = vpop.permute.xlu0 %5314
    %5316 = vset.pattern.permute.xlu0 0
    %5317 = vperm.xlu0 %5316, %v5204
    %v5318 = vpop.permute.xlu0 %5317
    %5319 = vset.pattern.permute.xlu0 0
    %5320 = vperm.xlu0 %5319, %v5205
    %v5321 = vpop.permute.xlu0 %5320
    %5322 = vset.pattern.permute.xlu0 0
    %5323 = vperm.xlu0 %5322, %v5206
    %v5324 = vpop.permute.xlu0 %5323
    %5325 = vset.pattern.permute.xlu0 0
    %5326 = vperm.xlu0 %5325, %v5207
    %v5327 = vpop.permute.xlu0 %5326
    %5328 = vset.pattern.permute.xlu0 0
    %5329 = vperm.xlu0 %5328, %v5208
    %v5330 = vpop.permute.xlu0 %5329
    %5331 = vset.pattern.permute.xlu0 0
    %5332 = vperm.xlu0 %5331, %v5209
    %v5333 = vpop.permute.xlu0 %5332
    %5334 = vset.pattern.permute.xlu0 0
    %5335 = vperm.xlu0 %5334, %v5210
    %v5336 = vpop.permute.xlu0 %5335
    %5337 = vset.pattern.permute.xlu0 0
    %5338 = vperm.xlu0 %5337, %v5211
    %v5339 = vpop.permute.xlu0 %5338
    %vm5340 = vcmp.eq.s32.totalorder %v415, %v5294
    %vm5341 = vcmp.eq.s32.totalorder %v415, %v5297
    %vm5342 = vcmp.eq.s32.totalorder %v415, %v5300
    %vm5343 = vcmp.eq.s32.totalorder %v415, %v5303
    %vm5344 = vcmp.eq.s32.totalorder %v415, %v5306
    %vm5345 = vcmp.eq.s32.totalorder %v415, %v5309
    %vm5346 = vcmp.eq.s32.totalorder %v415, %v5312
    %vm5347 = vcmp.eq.s32.totalorder %v415, %v5315
    %vm5348 = vcmp.eq.s32.totalorder %v415, %v5318
    %vm5349 = vcmp.eq.s32.totalorder %v415, %v5321
    %vm5350 = vcmp.eq.s32.totalorder %v415, %v5324
    %vm5351 = vcmp.eq.s32.totalorder %v415, %v5327
    %vm5352 = vcmp.eq.s32.totalorder %v415, %v5330
    %vm5353 = vcmp.eq.s32.totalorder %v415, %v5333
    %vm5354 = vcmp.eq.s32.totalorder %v415, %v5336
    %vm5355 = vcmp.eq.s32.totalorder %v415, %v5339
    %v5356 = vsel %vm5276, 1.0, 0.0
    %v5357 = vsel %vm5277, 1.0, 0.0
    %v5358 = vsel %vm5278, 1.0, 0.0
    %v5359 = vsel %vm5279, 1.0, 0.0
    %v5360 = vsel %vm5280, 1.0, 0.0
    %v5361 = vsel %vm5281, 1.0, 0.0
    %v5362 = vsel %vm5282, 1.0, 0.0
    %v5363 = vsel %vm5283, 1.0, 0.0
    %v5364 = vsel %vm5284, 1.0, 0.0
    %v5365 = vsel %vm5285, 1.0, 0.0
    %v5366 = vsel %vm5286, 1.0, 0.0
    %v5367 = vsel %vm5287, 1.0, 0.0
    %v5368 = vsel %vm5288, 1.0, 0.0
    %v5369 = vsel %vm5289, 1.0, 0.0
    %v5370 = vsel %vm5290, 1.0, 0.0
    %v5371 = vsel %vm5291, 1.0, 0.0
    %v5372 = vld [vmem:[#allocation6] sm:$0xff]
    %v5373 = vld [vmem:[#allocation6 + $0x8] sm:$0xff]
    %v5374 = vld [vmem:[#allocation6 + $0x10] sm:$0xff]
    %v5375 = vld [vmem:[#allocation6 + $0x18] sm:$0xff]
    %v5376 = vld [vmem:[#allocation6 + $0x20] sm:$0xff]
    %v5377 = vld [vmem:[#allocation6 + $0x28] sm:$0xff]
    %v5378 = vld [vmem:[#allocation6 + $0x30] sm:$0xff]
    %v5379 = vld [vmem:[#allocation6 + $0x38] sm:$0xff]
    %v5380 = vld [vmem:[#allocation6 + $0x40] sm:$0xff]
    %v5381 = vld [vmem:[#allocation6 + $0x48] sm:$0xff]
    %v5382 = vld [vmem:[#allocation6 + $0x50] sm:$0xff]
    %v5383 = vld [vmem:[#allocation6 + $0x58] sm:$0xff]
    %v5384 = vld [vmem:[#allocation6 + $0x60] sm:$0xff]
    %v5385 = vld [vmem:[#allocation6 + $0x68] sm:$0xff]
    %v5386 = vld [vmem:[#allocation6 + $0x70] sm:$0xff]
    %v5387 = vld [vmem:[#allocation6 + $0x78] sm:$0xff]
    %v5388 = vld [vmem:[#allocation4] sm:$0x1]
    %v5390 = vlaneseq
    %v5391 = vshrl.u32 %v5390, 7
    %v5392 = vsub.s32 0, %v5391
    %v5393 = vrot.slane %v5388, %v5392
    %v5395 = vsel %vm5340, %v5393, 0.0
    %v5396 = vsel %vm5341, %v5393, 0.0
    %v5397 = vsel %vm5342, %v5393, 0.0
    %v5398 = vsel %vm5343, %v5393, 0.0
    %v5399 = vsel %vm5344, %v5393, 0.0
    %v5400 = vsel %vm5345, %v5393, 0.0
    %v5401 = vsel %vm5346, %v5393, 0.0
    %v5402 = vsel %vm5347, %v5393, 0.0
    %v5403 = vsel %vm5348, %v5393, 0.0
    %v5404 = vsel %vm5349, %v5393, 0.0
    %v5405 = vsel %vm5350, %v5393, 0.0
    %v5406 = vsel %vm5351, %v5393, 0.0
    %v5407 = vsel %vm5352, %v5393, 0.0
    %v5408 = vsel %vm5353, %v5393, 0.0
    %v5409 = vsel %vm5354, %v5393, 0.0
    %v5410 = vsel %vm5355, %v5393, 0.0
    %v5411 = vsel %vm584, %v5395, 0.0
    %5412 = vadd.xlane.f32.xlu0 %v5411
    %v5413 = vpop.xlane.xlu0 %5412
    %v5414 = vsel %vm584, %v5396, 0.0
    %5415 = vadd.xlane.f32.xlu0 %v5414
    %v5416 = vpop.xlane.xlu0 %5415
    %v5417 = vsel %vm584, %v5397, 0.0
    %5418 = vadd.xlane.f32.xlu0 %v5417
    %v5419 = vpop.xlane.xlu0 %5418
    %v5420 = vsel %vm584, %v5398, 0.0
    %5421 = vadd.xlane.f32.xlu0 %v5420
    %v5422 = vpop.xlane.xlu0 %5421
    %v5423 = vsel %vm584, %v5399, 0.0
    %5424 = vadd.xlane.f32.xlu0 %v5423
    %v5425 = vpop.xlane.xlu0 %5424
    %v5426 = vsel %vm584, %v5400, 0.0
    %5427 = vadd.xlane.f32.xlu0 %v5426
    %v5428 = vpop.xlane.xlu0 %5427
    %v5429 = vsel %vm584, %v5401, 0.0
    %5430 = vadd.xlane.f32.xlu0 %v5429
    %v5431 = vpop.xlane.xlu0 %5430
    %v5432 = vsel %vm584, %v5402, 0.0
    %5433 = vadd.xlane.f32.xlu0 %v5432
    %v5434 = vpop.xlane.xlu0 %5433
    %v5435 = vsel %vm584, %v5403, 0.0
    %5436 = vadd.xlane.f32.xlu0 %v5435
    %v5437 = vpop.xlane.xlu0 %5436
    %v5438 = vsel %vm584, %v5404, 0.0
    %5439 = vadd.xlane.f32.xlu0 %v5438
    %v5440 = vpop.xlane.xlu0 %5439
    %v5441 = vsel %vm584, %v5405, 0.0
    %5442 = vadd.xlane.f32.xlu0 %v5441
    %v5443 = vpop.xlane.xlu0 %5442
    %v5444 = vsel %vm584, %v5406, 0.0
    %5445 = vadd.xlane.f32.xlu0 %v5444
    %v5446 = vpop.xlane.xlu0 %5445
    %v5447 = vsel %vm584, %v5407, 0.0
    %5448 = vadd.xlane.f32.xlu0 %v5447
    %v5449 = vpop.xlane.xlu0 %5448
    %v5450 = vsel %vm584, %v5408, 0.0
    %5451 = vadd.xlane.f32.xlu0 %v5450
    %v5452 = vpop.xlane.xlu0 %5451
    %v5453 = vsel %vm584, %v5409, 0.0
    %5454 = vadd.xlane.f32.xlu0 %v5453
    %v5455 = vpop.xlane.xlu0 %5454
    %v5456 = vsel %vm584, %v5410, 0.0
    %5457 = vadd.xlane.f32.xlu0 %v5456
    %v5458 = vpop.xlane.xlu0 %5457
    %v5459 = vld [vmem:[#allocation5] sm:$0x1]
    %v5461 = vlaneseq
    %v5462 = vshrl.u32 %v5461, 7
    %v5463 = vsub.s32 0, %v5462
    %v5464 = vrot.slane %v5459, %v5463
    %v5466 = vsel %vm5340, %v5464, 0.0
    %v5467 = vsel %vm5341, %v5464, 0.0
    %v5468 = vsel %vm5342, %v5464, 0.0
    %v5469 = vsel %vm5343, %v5464, 0.0
    %v5470 = vsel %vm5344, %v5464, 0.0
    %v5471 = vsel %vm5345, %v5464, 0.0
    %v5472 = vsel %vm5346, %v5464, 0.0
    %v5473 = vsel %vm5347, %v5464, 0.0
    %v5474 = vsel %vm5348, %v5464, 0.0
    %v5475 = vsel %vm5349, %v5464, 0.0
    %v5476 = vsel %vm5350, %v5464, 0.0
    %v5477 = vsel %vm5351, %v5464, 0.0
    %v5478 = vsel %vm5352, %v5464, 0.0
    %v5479 = vsel %vm5353, %v5464, 0.0
    %v5480 = vsel %vm5354, %v5464, 0.0
    %v5481 = vsel %vm5355, %v5464, 0.0
    %v5482 = vsel %vm584, %v5466, 0.0
    %5483 = vadd.xlane.f32.xlu0 %v5482
    %v5484 = vpop.xlane.xlu0 %5483
    %v5485 = vsel %vm584, %v5467, 0.0
    %5486 = vadd.xlane.f32.xlu0 %v5485
    %v5487 = vpop.xlane.xlu0 %5486
    %v5488 = vsel %vm584, %v5468, 0.0
    %5489 = vadd.xlane.f32.xlu0 %v5488
    %v5490 = vpop.xlane.xlu0 %5489
    %v5491 = vsel %vm584, %v5469, 0.0
    %5492 = vadd.xlane.f32.xlu0 %v5491
    %v5493 = vpop.xlane.xlu0 %5492
    %v5494 = vsel %vm584, %v5470, 0.0
    %5495 = vadd.xlane.f32.xlu0 %v5494
    %v5496 = vpop.xlane.xlu0 %5495
    %v5497 = vsel %vm584, %v5471, 0.0
    %5498 = vadd.xlane.f32.xlu0 %v5497
    %v5499 = vpop.xlane.xlu0 %5498
    %v5500 = vsel %vm584, %v5472, 0.0
    %5501 = vadd.xlane.f32.xlu0 %v5500
    %v5502 = vpop.xlane.xlu0 %5501
    %v5503 = vsel %vm584, %v5473, 0.0
    %5504 = vadd.xlane.f32.xlu0 %v5503
    %v5505 = vpop.xlane.xlu0 %5504
    %v5506 = vsel %vm584, %v5474, 0.0
    %5507 = vadd.xlane.f32.xlu0 %v5506
    %v5508 = vpop.xlane.xlu0 %5507
    %v5509 = vsel %vm584, %v5475, 0.0
    %5510 = vadd.xlane.f32.xlu0 %v5509
    %v5511 = vpop.xlane.xlu0 %5510
    %v5512 = vsel %vm584, %v5476, 0.0
    %5513 = vadd.xlane.f32.xlu0 %v5512
    %v5514 = vpop.xlane.xlu0 %5513
    %v5515 = vsel %vm584, %v5477, 0.0
    %5516 = vadd.xlane.f32.xlu0 %v5515
    %v5517 = vpop.xlane.xlu0 %5516
    %v5518 = vsel %vm584, %v5478, 0.0
    %5519 = vadd.xlane.f32.xlu0 %v5518
    %v5520 = vpop.xlane.xlu0 %5519
    %v5521 = vsel %vm584, %v5479, 0.0
    %5522 = vadd.xlane.f32.xlu0 %v5521
    %v5523 = vpop.xlane.xlu0 %5522
    %v5524 = vsel %vm584, %v5480, 0.0
    %5525 = vadd.xlane.f32.xlu0 %v5524
    %v5526 = vpop.xlane.xlu0 %5525
    %v5527 = vsel %vm584, %v5481, 0.0
    %5528 = vadd.xlane.f32.xlu0 %v5527
    %v5529 = vpop.xlane.xlu0 %5528
    %v5530 = vsub.f32 %v5372, %v5413
    %v5531 = vsub.f32 %v5373, %v5416
    %v5532 = vsub.f32 %v5374, %v5419
    %v5533 = vsub.f32 %v5375, %v5422
    %v5534 = vsub.f32 %v5376, %v5425
    %v5535 = vsub.f32 %v5377, %v5428
    %v5536 = vsub.f32 %v5378, %v5431
    %v5537 = vsub.f32 %v5379, %v5434
    %v5538 = vsub.f32 %v5380, %v5437
    %v5539 = vsub.f32 %v5381, %v5440
    %v5540 = vsub.f32 %v5382, %v5443
    %v5541 = vsub.f32 %v5383, %v5446
    %v5542 = vsub.f32 %v5384, %v5449
    %v5543 = vsub.f32 %v5385, %v5452
    %v5544 = vsub.f32 %v5386, %v5455
    %v5545 = vsub.f32 %v5387, %v5458
    %v5546 = vmul.f32 %v5530, 1.442695
    %v5547 = vpow.pop %v5546
    %v5548 = vmul.f32 %v5531, 1.442695
    %v5549 = vpow.pop %v5548
    %v5550 = vmul.f32 %v5532, 1.442695
    %v5551 = vpow.pop %v5550
    %v5552 = vmul.f32 %v5533, 1.442695
    %v5553 = vpow.pop %v5552
    %v5554 = vmul.f32 %v5534, 1.442695
    %v5555 = vpow.pop %v5554
    %v5556 = vmul.f32 %v5535, 1.442695
    %v5557 = vpow.pop %v5556
    %v5558 = vmul.f32 %v5536, 1.442695
    %v5559 = vpow.pop %v5558
    %v5560 = vmul.f32 %v5537, 1.442695
    %v5561 = vpow.pop %v5560
    %v5562 = vmul.f32 %v5538, 1.442695
    %v5563 = vpow.pop %v5562
    %v5564 = vmul.f32 %v5539, 1.442695
    %v5565 = vpow.pop %v5564
    %v5566 = vmul.f32 %v5540, 1.442695
    %v5567 = vpow.pop %v5566
    %v5568 = vmul.f32 %v5541, 1.442695
    %v5569 = vpow.pop %v5568
    %v5570 = vmul.f32 %v5542, 1.442695
    %v5571 = vpow.pop %v5570
    %v5572 = vmul.f32 %v5543, 1.442695
    %v5573 = vpow.pop %v5572
    %v5574 = vmul.f32 %v5544, 1.442695
    %v5575 = vpow.pop %v5574
    %v5576 = vmul.f32 %v5545, 1.442695
    %v5577 = vpow.pop %v5576
    %v5578 = vadd.f32 %v5484, 1e-16
    %v5579 = vadd.f32 %v5487, 1e-16
    %v5580 = vadd.f32 %v5490, 1e-16
    %v5581 = vadd.f32 %v5493, 1e-16
    %v5582 = vadd.f32 %v5496, 1e-16
    %v5583 = vadd.f32 %v5499, 1e-16
    %v5584 = vadd.f32 %v5502, 1e-16
    %v5585 = vadd.f32 %v5505, 1e-16
    %v5586 = vadd.f32 %v5508, 1e-16
    %v5587 = vadd.f32 %v5511, 1e-16
    %v5588 = vadd.f32 %v5514, 1e-16
    %v5589 = vadd.f32 %v5517, 1e-16
    %v5590 = vadd.f32 %v5520, 1e-16
    %v5591 = vadd.f32 %v5523, 1e-16
    %v5592 = vadd.f32 %v5526, 1e-16
    %v5593 = vadd.f32 %v5529, 1e-16
    %v5594 = vrcp.pop %v5578
    %v5595 = vmul.f32 %v5547, %v5594
    %v5596 = vrcp.pop %v5579
    %v5597 = vmul.f32 %v5549, %v5596
    %v5598 = vrcp.pop %v5580
    %v5599 = vmul.f32 %v5551, %v5598
    %v5600 = vrcp.pop %v5581
    %v5601 = vmul.f32 %v5553, %v5600
    %v5602 = vrcp.pop %v5582
    %v5603 = vmul.f32 %v5555, %v5602
    %v5604 = vrcp.pop %v5583
    %v5605 = vmul.f32 %v5557, %v5604
    %v5606 = vrcp.pop %v5584
    %v5607 = vmul.f32 %v5559, %v5606
    %v5608 = vrcp.pop %v5585
    %v5609 = vmul.f32 %v5561, %v5608
    %v5610 = vrcp.pop %v5586
    %v5611 = vmul.f32 %v5563, %v5610
    %v5612 = vrcp.pop %v5587
    %v5613 = vmul.f32 %v5565, %v5612
    %v5614 = vrcp.pop %v5588
    %v5615 = vmul.f32 %v5567, %v5614
    %v5616 = vrcp.pop %v5589
    %v5617 = vmul.f32 %v5569, %v5616
    %v5618 = vrcp.pop %v5590
    %v5619 = vmul.f32 %v5571, %v5618
    %v5620 = vrcp.pop %v5591
    %v5621 = vmul.f32 %v5573, %v5620
    %v5622 = vrcp.pop %v5592
    %v5623 = vmul.f32 %v5575, %v5622
    %v5624 = vrcp.pop %v5593
    %v5625 = vmul.f32 %v5577, %v5624
    %v5626 = vmul.f32 %v5595, %v1673
    %v5627 = vmul.f32 %v5597, %v1674
    %v5628 = vmul.f32 %v5599, %v1675
    %v5629 = vmul.f32 %v5601, %v1676
    %v5630 = vmul.f32 %v5603, %v1677
    %v5631 = vmul.f32 %v5605, %v1678
    %v5632 = vmul.f32 %v5607, %v1679
    %v5633 = vmul.f32 %v5609, %v1680
    %v5634 = vmul.f32 %v5611, %v1681
    %v5635 = vmul.f32 %v5613, %v1682
    %v5636 = vmul.f32 %v5615, %v1683
    %v5637 = vmul.f32 %v5617, %v1684
    %v5638 = vmul.f32 %v5619, %v1685
    %v5639 = vmul.f32 %v5621, %v1686
    %v5640 = vmul.f32 %v5623, %v1687
    %v5641 = vmul.f32 %v5625, %v1688
    %5642 = vst.msk [vmem:[%s10] sm:$0xff] %vm1403, %v5626
    %5643 = vst.msk [vmem:[%s10 + $0x8] sm:$0xff] %vm1403, %v5627
    %5644 = vst.msk [vmem:[%s10 + $0x10] sm:$0xff] %vm1403, %v5628
    %5645 = vst.msk [vmem:[%s10 + $0x18] sm:$0xff] %vm1403, %v5629
    %5646 = vst.msk [vmem:[%s10 + $0x20] sm:$0xff] %vm1403, %v5630
    %5647 = vst.msk [vmem:[%s10 + $0x28] sm:$0xff] %vm1403, %v5631
    %5648 = vst.msk [vmem:[%s10 + $0x30] sm:$0xff] %vm1403, %v5632
    %5649 = vst.msk [vmem:[%s10 + $0x38] sm:$0xff] %vm1403, %v5633
    %5650 = vst.msk [vmem:[%s10 + $0x40] sm:$0xff] %vm1403, %v5634
    %5651 = vst.msk [vmem:[%s10 + $0x48] sm:$0xff] %vm1403, %v5635
    %5652 = vst.msk [vmem:[%s10 + $0x50] sm:$0xff] %vm1403, %v5636
    %5653 = vst.msk [vmem:[%s10 + $0x58] sm:$0xff] %vm1403, %v5637
    %5654 = vst.msk [vmem:[%s10 + $0x60] sm:$0xff] %vm1403, %v5638
    %5655 = vst.msk [vmem:[%s10 + $0x68] sm:$0xff] %vm1403, %v5639
    %5656 = vst.msk [vmem:[%s10 + $0x70] sm:$0xff] %vm1403, %v5640
    %5657 = vst.msk [vmem:[%s10 + $0x78] sm:$0xff] %vm1403, %v5641
    %v5658 = vld [vmem:[#allocation2] sm:$0xff]
    %v5659 = vld [vmem:[#allocation2 + $0x8] sm:$0xff]
    %v5660 = vld [vmem:[#allocation2 + $0x10] sm:$0xff]
    %v5661 = vld [vmem:[#allocation2 + $0x18] sm:$0xff]
    %v5662 = vld [vmem:[#allocation2 + $0x28] sm:$0xff]
    %v5663 = vld [vmem:[#allocation2 + $0x30] sm:$0xff]
    %v5664 = vld [vmem:[#allocation2 + $0x38] sm:$0xff]
    %v5665 = vld [vmem:[#allocation2 + $0x40] sm:$0xff]
    %v5667 = vsel %vm584, %v5356, 0
    %v5670 = vsel %vm584, %v5357, 0
    %v5673 = vsel %vm584, %v5358, 0
    %v5676 = vsel %vm584, %v5359, 0
    %v5679 = vsel %vm584, %v5360, 0
    %v5682 = vsel %vm584, %v5361, 0
    %v5685 = vsel %vm584, %v5362, 0
    %v5688 = vsel %vm584, %v5363, 0
    %v5691 = vsel %vm584, %v5364, 0
    %v5694 = vsel %vm584, %v5365, 0
    %v5697 = vsel %vm584, %v5366, 0
    %v5700 = vsel %vm584, %v5367, 0
    %v5703 = vsel %vm584, %v5368, 0
    %v5706 = vsel %vm584, %v5369, 0
    %v5709 = vsel %vm584, %v5370, 0
    %v5712 = vsel %vm584, %v5371, 0
    %5714 = vmatprep.subr.mxu0 %v5659
    %5715 = vmatpush1.msra.mxu0 %v5658
    %5716 = vmatprep.subr.mxu0 %v5663
    %5717 = vmatpush1.msra.mxu0 %v5662
    %5718 = vmatprep.subr.mxu0 0.0
    %5719 = vmatpush1.msra.mxu0 0.0
    %5720 = vmatprep.subr.mxu0 0.0
    %5721 = vmatpush1.msra.mxu0 0.0
    %5722 = vmatprep.subr.mxu0 0.0
    %5723 = vmatpush1.msra.mxu0 0.0
    %5724 = vmatprep.subr.mxu0 0.0
    %5725 = vmatpush1.msra.mxu0 0.0
    %5726 = vmatprep.subr.mxu0 0.0
    %5727 = vmatpush1.msra.mxu0 0.0
    %5728 = vmatprep.subr.mxu0 0.0
    %5729 = vmatpush1.msra.mxu0 0.0
    %5730 = vmatprep.subr.mxu0 0.0
    %5731 = vmatpush1.msra.mxu0 0.0
    %5732 = vmatprep.subr.mxu0 0.0
    %5733 = vmatpush1.msra.mxu0 0.0
    %5734 = vmatprep.subr.mxu0 0.0
    %5735 = vmatpush1.msra.mxu0 0.0
    %5736 = vmatprep.subr.mxu0 0.0
    %5737 = vmatpush1.msra.mxu0 0.0
    %5738 = vmatprep.subr.mxu0 0.0
    %5739 = vmatpush1.msra.mxu0 0.0
    %5740 = vmatprep.subr.mxu0 0.0
    %5741 = vmatpush1.msra.mxu0 0.0
    %5742 = vmatprep.subr.mxu0 0.0
    %5743 = vmatpush1.msra.mxu0 0.0
    %5744 = vmatprep.subr.mxu0 0.0
    %5745 = vmatpush1.msra.mxu0 0.0
    %5746 = vmatprep.subr.mxu0 0.0
    %5747 = vmatpush1.msra.mxu0 0.0
    %5748 = vmatprep.subr.mxu0 0.0
    %5749 = vmatpush1.msra.mxu0 0.0
    %5750 = vmatprep.subr.mxu0 0.0
    %5751 = vmatpush1.msra.mxu0 0.0
    %5752 = vmatprep.subr.mxu0 0.0
    %5753 = vmatpush1.msra.mxu0 0.0
    %5754 = vmatprep.subr.mxu0 0.0
    %5755 = vmatpush1.msra.mxu0 0.0
    %5756 = vmatprep.subr.mxu0 0.0
    %5757 = vmatpush1.msra.mxu0 0.0
    %5758 = vmatprep.subr.mxu0 0.0
    %5759 = vmatpush1.msra.mxu0 0.0
    %5760 = vmatprep.subr.mxu0 0.0
    %5761 = vmatpush1.msra.mxu0 0.0
    %5762 = vmatprep.subr.mxu0 0.0
    %5763 = vmatpush1.msra.mxu0 0.0
    %5764 = vmatprep.subr.mxu0 0.0
    %5765 = vmatpush1.msra.mxu0 0.0
    %5766 = vmatprep.subr.mxu0 0.0
    %5767 = vmatpush1.msra.mxu0 0.0
    %5768 = vmatprep.subr.mxu0 0.0
    %5769 = vmatpush1.msra.mxu0 0.0
    %5770 = vmatprep.subr.mxu0 0.0
    %5771 = vmatpush1.msra.mxu0 0.0
    %5772 = vmatprep.subr.mxu0 0.0
    %5773 = vmatpush1.msra.mxu0 0.0
    %5774 = vmatprep.subr.mxu0 0.0
    %5775 = vmatpush1.msra.mxu0 0.0
    %5776 = vmatprep.subr.mxu0 0.0
    %5777 = vmatpush1.msra.mxu0 0.0
    %5778 = vmatprep.mubr.f32.mxu0 0.0
    %5779 = vmatmul.mubr.f32.gmra.mrb[0].mxu0 %v5667
    %v5780 = vpop.f32.mrb[0].mxu0
    %v5781 = vadd.f32 0.0, %v5780
    %v5782 = vpop.f32.mrb[0].mxu0
    %v5783 = vadd.f32 0.0, %v5782
    %5784 = vmatprep.mubr.f32.mxu0 0.0
    %5785 = vmatmul.mubr.f32.gmra.mrb[0].mxu0 %v5670
    %v5786 = vpop.f32.mrb[0].mxu0
    %v5787 = vadd.f32 0.0, %v5786
    %v5788 = vpop.f32.mrb[0].mxu0
    %v5789 = vadd.f32 0.0, %v5788
    %5790 = vmatprep.mubr.f32.mxu0 0.0
    %5791 = vmatmul.mubr.f32.gmra.mrb[0].mxu0 %v5673
    %v5792 = vpop.f32.mrb[0].mxu0
    %v5793 = vadd.f32 0.0, %v5792
    %v5794 = vpop.f32.mrb[0].mxu0
    %v5795 = vadd.f32 0.0, %v5794
    %5796 = vmatprep.mubr.f32.mxu0 0.0
    %5797 = vmatmul.mubr.f32.gmra.mrb[0].mxu0 %v5676
    %v5798 = vpop.f32.mrb[0].mxu0
    %v5799 = vadd.f32 0.0, %v5798
    %v5800 = vpop.f32.mrb[0].mxu0
    %v5801 = vadd.f32 0.0, %v5800
    %5802 = vmatprep.mubr.f32.mxu0 0.0
    %5803 = vmatmul.mubr.f32.gmra.mrb[0].mxu0 %v5679
    %v5804 = vpop.f32.mrb[0].mxu0
    %v5805 = vadd.f32 0.0, %v5804
    %v5806 = vpop.f32.mrb[0].mxu0
    %v5807 = vadd.f32 0.0, %v5806
    %5808 = vmatprep.mubr.f32.mxu0 0.0
    %5809 = vmatmul.mubr.f32.gmra.mrb[0].mxu0 %v5682
    %v5810 = vpop.f32.mrb[0].mxu0
    %v5811 = vadd.f32 0.0, %v5810
    %v5812 = vpop.f32.mrb[0].mxu0
    %v5813 = vadd.f32 0.0, %v5812
    %5814 = vmatprep.mubr.f32.mxu0 0.0
    %5815 = vmatmul.mubr.f32.gmra.mrb[0].mxu0 %v5685
    %v5816 = vpop.f32.mrb[0].mxu0
    %v5817 = vadd.f32 0.0, %v5816
    %v5818 = vpop.f32.mrb[0].mxu0
    %v5819 = vadd.f32 0.0, %v5818
    %5820 = vmatprep.mubr.f32.mxu0 0.0
    %5821 = vmatmul.mubr.f32.gmra.mrb[0].mxu0 %v5688
    %v5822 = vpop.f32.mrb[0].mxu0
    %v5823 = vadd.f32 0.0, %v5822
    %v5824 = vpop.f32.mrb[0].mxu0
    %v5825 = vadd.f32 0.0, %v5824
    %5826 = vmatprep.mubr.f32.mxu0 0.0
    %5827 = vmatmul.mubr.f32.gmra.mrb[0].mxu0 %v5691
    %v5828 = vpop.f32.mrb[0].mxu0
    %v5829 = vadd.f32 0.0, %v5828
    %v5830 = vpop.f32.mrb[0].mxu0
    %v5831 = vadd.f32 0.0, %v5830
    %5832 = vmatprep.mubr.f32.mxu0 0.0
    %5833 = vmatmul.mubr.f32.gmra.mrb[0].mxu0 %v5694
    %v5834 = vpop.f32.mrb[0].mxu0
    %v5835 = vadd.f32 0.0, %v5834
    %v5836 = vpop.f32.mrb[0].mxu0
    %v5837 = vadd.f32 0.0, %v5836
    %5838 = vmatprep.mubr.f32.mxu0 0.0
    %5839 = vmatmul.mubr.f32.gmra.mrb[0].mxu0 %v5697
    %v5840 = vpop.f32.mrb[0].mxu0
    %v5841 = vadd.f32 0.0, %v5840
    %v5842 = vpop.f32.mrb[0].mxu0
    %v5843 = vadd.f32 0.0, %v5842
    %5844 = vmatprep.mubr.f32.mxu0 0.0
    %5845 = vmatmul.mubr.f32.gmra.mrb[0].mxu0 %v5700
    %v5846 = vpop.f32.mrb[0].mxu0
    %v5847 = vadd.f32 0.0, %v5846
    %v5848 = vpop.f32.mrb[0].mxu0
    %v5849 = vadd.f32 0.0, %v5848
    %5850 = vmatprep.mubr.f32.mxu0 0.0
    %5851 = vmatmul.mubr.f32.gmra.mrb[0].mxu0 %v5703
    %v5852 = vpop.f32.mrb[0].mxu0
    %v5853 = vadd.f32 0.0, %v5852
    %v5854 = vpop.f32.mrb[0].mxu0
    %v5855 = vadd.f32 0.0, %v5854
    %5856 = vmatprep.mubr.f32.mxu0 0.0
    %5857 = vmatmul.mubr.f32.gmra.mrb[0].mxu0 %v5706
    %v5858 = vpop.f32.mrb[0].mxu0
    %v5859 = vadd.f32 0.0, %v5858
    %v5860 = vpop.f32.mrb[0].mxu0
    %v5861 = vadd.f32 0.0, %v5860
    %5862 = vmatprep.mubr.f32.mxu0 0.0
    %5863 = vmatmul.mubr.f32.gmra.mrb[0].mxu0 %v5709
    %v5864 = vpop.f32.mrb[0].mxu0
    %v5865 = vadd.f32 0.0, %v5864
    %v5866 = vpop.f32.mrb[0].mxu0
    %v5867 = vadd.f32 0.0, %v5866
    %5868 = vmatprep.mubr.f32.mxu0 0.0
    %5869 = vmatmul.mubr.f32.gmra.mrb[0].mxu0 %v5712
    %v5870 = vpop.f32.mrb[0].mxu0
    %v5871 = vadd.f32 0.0, %v5870
    %v5872 = vpop.f32.mrb[0].mxu0
    %v5873 = vadd.f32 0.0, %v5872
    %5874 = vdwg.mxu0
    %5875 = vmatprep.subr.mxu0 %v5661
    %5876 = vmatpush1.msra.mxu0 %v5660
    %5877 = vmatprep.subr.mxu0 %v5665
    %5878 = vmatpush1.msra.mxu0 %v5664
    %5879 = vmatprep.subr.mxu0 0.0
    %5880 = vmatpush1.msra.mxu0 0.0
    %5881 = vmatprep.subr.mxu0 0.0
    %5882 = vmatpush1.msra.mxu0 0.0
    %5883 = vmatprep.subr.mxu0 0.0
    %5884 = vmatpush1.msra.mxu0 0.0
    %5885 = vmatprep.subr.mxu0 0.0
    %5886 = vmatpush1.msra.mxu0 0.0
    %5887 = vmatprep.subr.mxu0 0.0
    %5888 = vmatpush1.msra.mxu0 0.0
    %5889 = vmatprep.subr.mxu0 0.0
    %5890 = vmatpush1.msra.mxu0 0.0
    %5891 = vmatprep.subr.mxu0 0.0
    %5892 = vmatpush1.msra.mxu0 0.0
    %5893 = vmatprep.subr.mxu0 0.0
    %5894 = vmatpush1.msra.mxu0 0.0
    %5895 = vmatprep.subr.mxu0 0.0
    %5896 = vmatpush1.msra.mxu0 0.0
    %5897 = vmatprep.subr.mxu0 0.0
    %5898 = vmatpush1.msra.mxu0 0.0
    %5899 = vmatprep.subr.mxu0 0.0
    %5900 = vmatpush1.msra.mxu0 0.0
    %5901 = vmatprep.subr.mxu0 0.0
    %5902 = vmatpush1.msra.mxu0 0.0
    %5903 = vmatprep.subr.mxu0 0.0
    %5904 = vmatpush1.msra.mxu0 0.0
    %5905 = vmatprep.subr.mxu0 0.0
    %5906 = vmatpush1.msra.mxu0 0.0
    %5907 = vmatprep.subr.mxu0 0.0
    %5908 = vmatpush1.msra.mxu0 0.0
    %5909 = vmatprep.subr.mxu0 0.0
    %5910 = vmatpush1.msra.mxu0 0.0
    %5911 = vmatprep.subr.mxu0 0.0
    %5912 = vmatpush1.msra.mxu0 0.0
    %5913 = vmatprep.subr.mxu0 0.0
    %5914 = vmatpush1.msra.mxu0 0.0
    %5915 = vmatprep.subr.mxu0 0.0
    %5916 = vmatpush1.msra.mxu0 0.0
    %5917 = vmatprep.subr.mxu0 0.0
    %5918 = vmatpush1.msra.mxu0 0.0
    %5919 = vmatprep.subr.mxu0 0.0
    %5920 = vmatpush1.msra.mxu0 0.0
    %5921 = vmatprep.subr.mxu0 0.0
    %5922 = vmatpush1.msra.mxu0 0.0
    %5923 = vmatprep.subr.mxu0 0.0
    %5924 = vmatpush1.msra.mxu0 0.0
    %5925 = vmatprep.subr.mxu0 0.0
    %5926 = vmatpush1.msra.mxu0 0.0
    %5927 = vmatprep.subr.mxu0 0.0
    %5928 = vmatpush1.msra.mxu0 0.0
    %5929 = vmatprep.subr.mxu0 0.0
    %5930 = vmatpush1.msra.mxu0 0.0
    %5931 = vmatprep.subr.mxu0 0.0
    %5932 = vmatpush1.msra.mxu0 0.0
    %5933 = vmatprep.subr.mxu0 0.0
    %5934 = vmatpush1.msra.mxu0 0.0
    %5935 = vmatprep.subr.mxu0 0.0
    %5936 = vmatpush1.msra.mxu0 0.0
    %5937 = vmatprep.subr.mxu0 0.0
    %5938 = vmatpush1.msra.mxu0 0.0
    %5939 = vmatprep.mubr.f32.mxu0 0.0
    %5940 = vmatmul.mubr.f32.gmra.mrb[0].mxu0 %v5667
    %v5941 = vpop.f32.mrb[0].mxu0
    %v5942 = vadd.f32 0.0, %v5941
    %v5943 = vpop.f32.mrb[0].mxu0
    %v5944 = vadd.f32 0.0, %v5943
    %5945 = vmatprep.mubr.f32.mxu0 0.0
    %5946 = vmatmul.mubr.f32.gmra.mrb[0].mxu0 %v5670
    %v5947 = vpop.f32.mrb[0].mxu0
    %v5948 = vadd.f32 0.0, %v5947
    %v5949 = vpop.f32.mrb[0].mxu0
    %v5950 = vadd.f32 0.0, %v5949
    %5951 = vmatprep.mubr.f32.mxu0 0.0
    %5952 = vmatmul.mubr.f32.gmra.mrb[0].mxu0 %v5673
    %v5953 = vpop.f32.mrb[0].mxu0
    %v5954 = vadd.f32 0.0, %v5953
    %v5955 = vpop.f32.mrb[0].mxu0
    %v5956 = vadd.f32 0.0, %v5955
    %5957 = vmatprep.mubr.f32.mxu0 0.0
    %5958 = vmatmul.mubr.f32.gmra.mrb[0].mxu0 %v5676
    %v5959 = vpop.f32.mrb[0].mxu0
    %v5960 = vadd.f32 0.0, %v5959
    %v5961 = vpop.f32.mrb[0].mxu0
    %v5962 = vadd.f32 0.0, %v5961
    %5963 = vmatprep.mubr.f32.mxu0 0.0
    %5964 = vmatmul.mubr.f32.gmra.mrb[0].mxu0 %v5679
    %v5965 = vpop.f32.mrb[0].mxu0
    %v5966 = vadd.f32 0.0, %v5965
    %v5967 = vpop.f32.mrb[0].mxu0
    %v5968 = vadd.f32 0.0, %v5967
    %5969 = vmatprep.mubr.f32.mxu0 0.0
    %5970 = vmatmul.mubr.f32.gmra.mrb[0].mxu0 %v5682
    %v5971 = vpop.f32.mrb[0].mxu0
    %v5972 = vadd.f32 0.0, %v5971
    %v5973 = vpop.f32.mrb[0].mxu0
    %v5974 = vadd.f32 0.0, %v5973
    %5975 = vmatprep.mubr.f32.mxu0 0.0
    %5976 = vmatmul.mubr.f32.gmra.mrb[0].mxu0 %v5685
    %v5977 = vpop.f32.mrb[0].mxu0
    %v5978 = vadd.f32 0.0, %v5977
    %v5979 = vpop.f32.mrb[0].mxu0
    %v5980 = vadd.f32 0.0, %v5979
    %5981 = vmatprep.mubr.f32.mxu0 0.0
    %5982 = vmatmul.mubr.f32.gmra.mrb[0].mxu0 %v5688
    %v5983 = vpop.f32.mrb[0].mxu0
    %v5984 = vadd.f32 0.0, %v5983
    %v5985 = vpop.f32.mrb[0].mxu0
    %v5986 = vadd.f32 0.0, %v5985
    %5987 = vmatprep.mubr.f32.mxu0 0.0
    %5988 = vmatmul.mubr.f32.gmra.mrb[0].mxu0 %v5691
    %v5989 = vpop.f32.mrb[0].mxu0
    %v5990 = vadd.f32 0.0, %v5989
    %v5991 = vpop.f32.mrb[0].mxu0
    %v5992 = vadd.f32 0.0, %v5991
    %5993 = vmatprep.mubr.f32.mxu0 0.0
    %5994 = vmatmul.mubr.f32.gmra.mrb[0].mxu0 %v5694
    %v5995 = vpop.f32.mrb[0].mxu0
    %v5996 = vadd.f32 0.0, %v5995
    %v5997 = vpop.f32.mrb[0].mxu0
    %v5998 = vadd.f32 0.0, %v5997
    %5999 = vmatprep.mubr.f32.mxu0 0.0
    %6000 = vmatmul.mubr.f32.gmra.mrb[0].mxu0 %v5697
    %v6001 = vpop.f32.mrb[0].mxu0
    %v6002 = vadd.f32 0.0, %v6001
    %v6003 = vpop.f32.mrb[0].mxu0
    %v6004 = vadd.f32 0.0, %v6003
    %6005 = vmatprep.mubr.f32.mxu0 0.0
    %6006 = vmatmul.mubr.f32.gmra.mrb[0].mxu0 %v5700
    %v6007 = vpop.f32.mrb[0].mxu0
    %v6008 = vadd.f32 0.0, %v6007
    %v6009 = vpop.f32.mrb[0].mxu0
    %v6010 = vadd.f32 0.0, %v6009
    %6011 = vmatprep.mubr.f32.mxu0 0.0
    %6012 = vmatmul.mubr.f32.gmra.mrb[0].mxu0 %v5703
    %v6013 = vpop.f32.mrb[0].mxu0
    %v6014 = vadd.f32 0.0, %v6013
    %v6015 = vpop.f32.mrb[0].mxu0
    %v6016 = vadd.f32 0.0, %v6015
    %6017 = vmatprep.mubr.f32.mxu0 0.0
    %6018 = vmatmul.mubr.f32.gmra.mrb[0].mxu0 %v5706
    %v6019 = vpop.f32.mrb[0].mxu0
    %v6020 = vadd.f32 0.0, %v6019
    %v6021 = vpop.f32.mrb[0].mxu0
    %v6022 = vadd.f32 0.0, %v6021
    %6023 = vmatprep.mubr.f32.mxu0 0.0
    %6024 = vmatmul.mubr.f32.gmra.mrb[0].mxu0 %v5709
    %v6025 = vpop.f32.mrb[0].mxu0
    %v6026 = vadd.f32 0.0, %v6025
    %v6027 = vpop.f32.mrb[0].mxu0
    %v6028 = vadd.f32 0.0, %v6027
    %6029 = vmatprep.mubr.f32.mxu0 0.0
    %6030 = vmatmul.mubr.f32.gmra.mrb[0].mxu0 %v5712
    %v6031 = vpop.f32.mrb[0].mxu0
    %v6032 = vadd.f32 0.0, %v6031
    %v6033 = vpop.f32.mrb[0].mxu0
    %v6034 = vadd.f32 0.0, %v6033
    %6035 = vdwg.mxu0
    %vm6036 = vcmp.eq.s32.totalorder %v5212, 0
    %vm6037 = vcmp.eq.s32.totalorder %v5213, 0
    %vm6038 = vcmp.eq.s32.totalorder %v5214, 0
    %vm6039 = vcmp.eq.s32.totalorder %v5215, 0
    %vm6040 = vcmp.eq.s32.totalorder %v5216, 0
    %vm6041 = vcmp.eq.s32.totalorder %v5217, 0
    %vm6042 = vcmp.eq.s32.totalorder %v5218, 0
    %vm6043 = vcmp.eq.s32.totalorder %v5219, 0
    %vm6044 = vcmp.eq.s32.totalorder %v5220, 0
    %vm6045 = vcmp.eq.s32.totalorder %v5221, 0
    %vm6046 = vcmp.eq.s32.totalorder %v5222, 0
    %vm6047 = vcmp.eq.s32.totalorder %v5223, 0
    %vm6048 = vcmp.eq.s32.totalorder %v5224, 0
    %vm6049 = vcmp.eq.s32.totalorder %v5225, 0
    %vm6050 = vcmp.eq.s32.totalorder %v5226, 0
    %vm6051 = vcmp.eq.s32.totalorder %v5227, 0
    %v6052 = vsel %vm6036, 1, 0
    %v6053 = vsel %vm6037, 1, 0
    %v6054 = vsel %vm6038, 1, 0
    %v6055 = vsel %vm6039, 1, 0
    %v6056 = vsel %vm6040, 1, 0
    %v6057 = vsel %vm6041, 1, 0
    %v6058 = vsel %vm6042, 1, 0
    %v6059 = vsel %vm6043, 1, 0
    %v6060 = vsel %vm6044, 1, 0
    %v6061 = vsel %vm6045, 1, 0
    %v6062 = vsel %vm6046, 1, 0
    %v6063 = vsel %vm6047, 1, 0
    %v6064 = vsel %vm6048, 1, 0
    %v6065 = vsel %vm6049, 1, 0
    %v6066 = vsel %vm6050, 1, 0
    %v6067 = vsel %vm6051, 1, 0
    %6068 = vset.pattern.permute.xlu0 0
    %6069 = vperm.xlu0 %6068, %v6052
    %v6070 = vpop.permute.xlu0 %6069
    %6071 = vset.pattern.permute.xlu0 0
    %6072 = vperm.xlu0 %6071, %v6053
    %v6073 = vpop.permute.xlu0 %6072
    %6074 = vset.pattern.permute.xlu0 0
    %6075 = vperm.xlu0 %6074, %v6054
    %v6076 = vpop.permute.xlu0 %6075
    %6077 = vset.pattern.permute.xlu0 0
    %6078 = vperm.xlu0 %6077, %v6055
    %v6079 = vpop.permute.xlu0 %6078
    %6080 = vset.pattern.permute.xlu0 0
    %6081 = vperm.xlu0 %6080, %v6056
    %v6082 = vpop.permute.xlu0 %6081
    %6083 = vset.pattern.permute.xlu0 0
    %6084 = vperm.xlu0 %6083, %v6057
    %v6085 = vpop.permute.xlu0 %6084
    %6086 = vset.pattern.permute.xlu0 0
    %6087 = vperm.xlu0 %6086, %v6058
    %v6088 = vpop.permute.xlu0 %6087
    %6089 = vset.pattern.permute.xlu0 0
    %6090 = vperm.xlu0 %6089, %v6059
    %v6091 = vpop.permute.xlu0 %6090
    %6092 = vset.pattern.permute.xlu0 0
    %6093 = vperm.xlu0 %6092, %v6060
    %v6094 = vpop.permute.xlu0 %6093
    %6095 = vset.pattern.permute.xlu0 0
    %6096 = vperm.xlu0 %6095, %v6061
    %v6097 = vpop.permute.xlu0 %6096
    %6098 = vset.pattern.permute.xlu0 0
    %6099 = vperm.xlu0 %6098, %v6062
    %v6100 = vpop.permute.xlu0 %6099
    %6101 = vset.pattern.permute.xlu0 0
    %6102 = vperm.xlu0 %6101, %v6063
    %v6103 = vpop.permute.xlu0 %6102
    %6104 = vset.pattern.permute.xlu0 0
    %6105 = vperm.xlu0 %6104, %v6064
    %v6106 = vpop.permute.xlu0 %6105
    %6107 = vset.pattern.permute.xlu0 0
    %6108 = vperm.xlu0 %6107, %v6065
    %v6109 = vpop.permute.xlu0 %6108
    %6110 = vset.pattern.permute.xlu0 0
    %6111 = vperm.xlu0 %6110, %v6066
    %v6112 = vpop.permute.xlu0 %6111
    %6113 = vset.pattern.permute.xlu0 0
    %6114 = vperm.xlu0 %6113, %v6067
    %v6115 = vpop.permute.xlu0 %6114
    %vm6116 = vcmp.eq.s32.totalorder %v6070, 1
    %vm6117 = vcmp.eq.s32.totalorder %v6073, 1
    %vm6118 = vcmp.eq.s32.totalorder %v6076, 1
    %vm6119 = vcmp.eq.s32.totalorder %v6079, 1
    %vm6120 = vcmp.eq.s32.totalorder %v6082, 1
    %vm6121 = vcmp.eq.s32.totalorder %v6085, 1
    %vm6122 = vcmp.eq.s32.totalorder %v6088, 1
    %vm6123 = vcmp.eq.s32.totalorder %v6091, 1
    %vm6124 = vcmp.eq.s32.totalorder %v6094, 1
    %vm6125 = vcmp.eq.s32.totalorder %v6097, 1
    %vm6126 = vcmp.eq.s32.totalorder %v6100, 1
    %vm6127 = vcmp.eq.s32.totalorder %v6103, 1
    %vm6128 = vcmp.eq.s32.totalorder %v6106, 1
    %vm6129 = vcmp.eq.s32.totalorder %v6109, 1
    %vm6130 = vcmp.eq.s32.totalorder %v6112, 1
    %vm6131 = vcmp.eq.s32.totalorder %v6115, 1
    %v6132 = vsel %vm6116, %v5781, 0.0
    %v6133 = vsel %vm6117, %v5787, 0.0
    %v6134 = vsel %vm6118, %v5793, 0.0
    %v6135 = vsel %vm6119, %v5799, 0.0
    %v6136 = vsel %vm6120, %v5805, 0.0
    %v6137 = vsel %vm6121, %v5811, 0.0
    %v6138 = vsel %vm6122, %v5817, 0.0
    %v6139 = vsel %vm6123, %v5823, 0.0
    %v6140 = vsel %vm6124, %v5829, 0.0
    %v6141 = vsel %vm6125, %v5835, 0.0
    %v6142 = vsel %vm6126, %v5841, 0.0
    %v6143 = vsel %vm6127, %v5847, 0.0
    %v6144 = vsel %vm6128, %v5853, 0.0
    %v6145 = vsel %vm6129, %v5859, 0.0
    %v6146 = vsel %vm6130, %v5865, 0.0
    %v6147 = vsel %vm6131, %v5871, 0.0
    %v6148 = vadd.f32 %v6132, 0.0
    %v6149 = vadd.f32 %v6133, 0.0
    %v6150 = vadd.f32 %v6134, 0.0
    %v6151 = vadd.f32 %v6135, 0.0
    %v6152 = vadd.f32 %v6136, 0.0
    %v6153 = vadd.f32 %v6137, 0.0
    %v6154 = vadd.f32 %v6138, 0.0
    %v6155 = vadd.f32 %v6139, 0.0
    %v6156 = vadd.f32 %v6140, 0.0
    %v6157 = vadd.f32 %v6141, 0.0
    %v6158 = vadd.f32 %v6142, 0.0
    %v6159 = vadd.f32 %v6143, 0.0
    %v6160 = vadd.f32 %v6144, 0.0
    %v6161 = vadd.f32 %v6145, 0.0
    %v6162 = vadd.f32 %v6146, 0.0
    %v6163 = vadd.f32 %v6147, 0.0
    %vm6164 = vcmp.eq.s32.totalorder %v5212, 1
    %vm6165 = vcmp.eq.s32.totalorder %v5213, 1
    %vm6166 = vcmp.eq.s32.totalorder %v5214, 1
    %vm6167 = vcmp.eq.s32.totalorder %v5215, 1
    %vm6168 = vcmp.eq.s32.totalorder %v5216, 1
    %vm6169 = vcmp.eq.s32.totalorder %v5217, 1
    %vm6170 = vcmp.eq.s32.totalorder %v5218, 1
    %vm6171 = vcmp.eq.s32.totalorder %v5219, 1
    %vm6172 = vcmp.eq.s32.totalorder %v5220, 1
    %vm6173 = vcmp.eq.s32.totalorder %v5221, 1
    %vm6174 = vcmp.eq.s32.totalorder %v5222, 1
    %vm6175 = vcmp.eq.s32.totalorder %v5223, 1
    %vm6176 = vcmp.eq.s32.totalorder %v5224, 1
    %vm6177 = vcmp.eq.s32.totalorder %v5225, 1
    %vm6178 = vcmp.eq.s32.totalorder %v5226, 1
    %vm6179 = vcmp.eq.s32.totalorder %v5227, 1
    %v6180 = vsel %vm6164, 1, 0
    %v6181 = vsel %vm6165, 1, 0
    %v6182 = vsel %vm6166, 1, 0
    %v6183 = vsel %vm6167, 1, 0
    %v6184 = vsel %vm6168, 1, 0
    %v6185 = vsel %vm6169, 1, 0
    %v6186 = vsel %vm6170, 1, 0
    %v6187 = vsel %vm6171, 1, 0
    %v6188 = vsel %vm6172, 1, 0
    %v6189 = vsel %vm6173, 1, 0
    %v6190 = vsel %vm6174, 1, 0
    %v6191 = vsel %vm6175, 1, 0
    %v6192 = vsel %vm6176, 1, 0
    %v6193 = vsel %vm6177, 1, 0
    %v6194 = vsel %vm6178, 1, 0
    %v6195 = vsel %vm6179, 1, 0
    %6196 = vset.pattern.permute.xlu0 0
    %6197 = vperm.xlu0 %6196, %v6180
    %v6198 = vpop.permute.xlu0 %6197
    %6199 = vset.pattern.permute.xlu0 0
    %6200 = vperm.xlu0 %6199, %v6181
    %v6201 = vpop.permute.xlu0 %6200
    %6202 = vset.pattern.permute.xlu0 0
    %6203 = vperm.xlu0 %6202, %v6182
    %v6204 = vpop.permute.xlu0 %6203
    %6205 = vset.pattern.permute.xlu0 0
    %6206 = vperm.xlu0 %6205, %v6183
    %v6207 = vpop.permute.xlu0 %6206
    %6208 = vset.pattern.permute.xlu0 0
    %6209 = vperm.xlu0 %6208, %v6184
    %v6210 = vpop.permute.xlu0 %6209
    %6211 = vset.pattern.permute.xlu0 0
    %6212 = vperm.xlu0 %6211, %v6185
    %v6213 = vpop.permute.xlu0 %6212
    %6214 = vset.pattern.permute.xlu0 0
    %6215 = vperm.xlu0 %6214, %v6186
    %v6216 = vpop.permute.xlu0 %6215
    %6217 = vset.pattern.permute.xlu0 0
    %6218 = vperm.xlu0 %6217, %v6187
    %v6219 = vpop.permute.xlu0 %6218
    %6220 = vset.pattern.permute.xlu0 0
    %6221 = vperm.xlu0 %6220, %v6188
    %v6222 = vpop.permute.xlu0 %6221
    %6223 = vset.pattern.permute.xlu0 0
    %6224 = vperm.xlu0 %6223, %v6189
    %v6225 = vpop.permute.xlu0 %6224
    %6226 = vset.pattern.permute.xlu0 0
    %6227 = vperm.xlu0 %6226, %v6190
    %v6228 = vpop.permute.xlu0 %6227
    %6229 = vset.pattern.permute.xlu0 0
    %6230 = vperm.xlu0 %6229, %v6191
    %v6231 = vpop.permute.xlu0 %6230
    %6232 = vset.pattern.permute.xlu0 0
    %6233 = vperm.xlu0 %6232, %v6192
    %v6234 = vpop.permute.xlu0 %6233
    %6235 = vset.pattern.permute.xlu0 0
    %6236 = vperm.xlu0 %6235, %v6193
    %v6237 = vpop.permute.xlu0 %6236
    %6238 = vset.pattern.permute.xlu0 0
    %6239 = vperm.xlu0 %6238, %v6194
    %v6240 = vpop.permute.xlu0 %6239
    %6241 = vset.pattern.permute.xlu0 0
    %6242 = vperm.xlu0 %6241, %v6195
    %v6243 = vpop.permute.xlu0 %6242
    %vm6244 = vcmp.eq.s32.totalorder %v6198, 1
    %vm6245 = vcmp.eq.s32.totalorder %v6201, 1
    %vm6246 = vcmp.eq.s32.totalorder %v6204, 1
    %vm6247 = vcmp.eq.s32.totalorder %v6207, 1
    %vm6248 = vcmp.eq.s32.totalorder %v6210, 1
    %vm6249 = vcmp.eq.s32.totalorder %v6213, 1
    %vm6250 = vcmp.eq.s32.totalorder %v6216, 1
    %vm6251 = vcmp.eq.s32.totalorder %v6219, 1
    %vm6252 = vcmp.eq.s32.totalorder %v6222, 1
    %vm6253 = vcmp.eq.s32.totalorder %v6225, 1
    %vm6254 = vcmp.eq.s32.totalorder %v6228, 1
    %vm6255 = vcmp.eq.s32.totalorder %v6231, 1
    %vm6256 = vcmp.eq.s32.totalorder %v6234, 1
    %vm6257 = vcmp.eq.s32.totalorder %v6237, 1
    %vm6258 = vcmp.eq.s32.totalorder %v6240, 1
    %vm6259 = vcmp.eq.s32.totalorder %v6243, 1
    %v6260 = vsel %vm6244, %v5783, 0.0
    %v6261 = vsel %vm6245, %v5789, 0.0
    %v6262 = vsel %vm6246, %v5795, 0.0
    %v6263 = vsel %vm6247, %v5801, 0.0
    %v6264 = vsel %vm6248, %v5807, 0.0
    %v6265 = vsel %vm6249, %v5813, 0.0
    %v6266 = vsel %vm6250, %v5819, 0.0
    %v6267 = vsel %vm6251, %v5825, 0.0
    %v6268 = vsel %vm6252, %v5831, 0.0
    %v6269 = vsel %vm6253, %v5837, 0.0
    %v6270 = vsel %vm6254, %v5843, 0.0
    %v6271 = vsel %vm6255, %v5849, 0.0
    %v6272 = vsel %vm6256, %v5855, 0.0
    %v6273 = vsel %vm6257, %v5861, 0.0
    %v6274 = vsel %vm6258, %v5867, 0.0
    %v6275 = vsel %vm6259, %v5873, 0.0
    %v6276 = vadd.f32 %v6148, %v6260
    %v6277 = vadd.f32 %v6149, %v6261
    %v6278 = vadd.f32 %v6150, %v6262
    %v6279 = vadd.f32 %v6151, %v6263
    %v6280 = vadd.f32 %v6152, %v6264
    %v6281 = vadd.f32 %v6153, %v6265
    %v6282 = vadd.f32 %v6154, %v6266
    %v6283 = vadd.f32 %v6155, %v6267
    %v6284 = vadd.f32 %v6156, %v6268
    %v6285 = vadd.f32 %v6157, %v6269
    %v6286 = vadd.f32 %v6158, %v6270
    %v6287 = vadd.f32 %v6159, %v6271
    %v6288 = vadd.f32 %v6160, %v6272
    %v6289 = vadd.f32 %v6161, %v6273
    %v6290 = vadd.f32 %v6162, %v6274
    %v6291 = vadd.f32 %v6163, %v6275
    %vm6292 = vcmp.eq.s32.totalorder %v5212, 2
    %vm6293 = vcmp.eq.s32.totalorder %v5213, 2
    %vm6294 = vcmp.eq.s32.totalorder %v5214, 2
    %vm6295 = vcmp.eq.s32.totalorder %v5215, 2
    %vm6296 = vcmp.eq.s32.totalorder %v5216, 2
    %vm6297 = vcmp.eq.s32.totalorder %v5217, 2
    %vm6298 = vcmp.eq.s32.totalorder %v5218, 2
    %vm6299 = vcmp.eq.s32.totalorder %v5219, 2
    %vm6300 = vcmp.eq.s32.totalorder %v5220, 2
    %vm6301 = vcmp.eq.s32.totalorder %v5221, 2
    %vm6302 = vcmp.eq.s32.totalorder %v5222, 2
    %vm6303 = vcmp.eq.s32.totalorder %v5223, 2
    %vm6304 = vcmp.eq.s32.totalorder %v5224, 2
    %vm6305 = vcmp.eq.s32.totalorder %v5225, 2
    %vm6306 = vcmp.eq.s32.totalorder %v5226, 2
    %vm6307 = vcmp.eq.s32.totalorder %v5227, 2
    %v6308 = vsel %vm6292, 1, 0
    %v6309 = vsel %vm6293, 1, 0
    %v6310 = vsel %vm6294, 1, 0
    %v6311 = vsel %vm6295, 1, 0
    %v6312 = vsel %vm6296, 1, 0
    %v6313 = vsel %vm6297, 1, 0
    %v6314 = vsel %vm6298, 1, 0
    %v6315 = vsel %vm6299, 1, 0
    %v6316 = vsel %vm6300, 1, 0
    %v6317 = vsel %vm6301, 1, 0
    %v6318 = vsel %vm6302, 1, 0
    %v6319 = vsel %vm6303, 1, 0
    %v6320 = vsel %vm6304, 1, 0
    %v6321 = vsel %vm6305, 1, 0
    %v6322 = vsel %vm6306, 1, 0
    %v6323 = vsel %vm6307, 1, 0
    %6324 = vset.pattern.permute.xlu0 0
    %6325 = vperm.xlu0 %6324, %v6308
    %v6326 = vpop.permute.xlu0 %6325
    %6327 = vset.pattern.permute.xlu0 0
    %6328 = vperm.xlu0 %6327, %v6309
    %v6329 = vpop.permute.xlu0 %6328
    %6330 = vset.pattern.permute.xlu0 0
    %6331 = vperm.xlu0 %6330, %v6310
    %v6332 = vpop.permute.xlu0 %6331
    %6333 = vset.pattern.permute.xlu0 0
    %6334 = vperm.xlu0 %6333, %v6311
    %v6335 = vpop.permute.xlu0 %6334
    %6336 = vset.pattern.permute.xlu0 0
    %6337 = vperm.xlu0 %6336, %v6312
    %v6338 = vpop.permute.xlu0 %6337
    %6339 = vset.pattern.permute.xlu0 0
    %6340 = vperm.xlu0 %6339, %v6313
    %v6341 = vpop.permute.xlu0 %6340
    %6342 = vset.pattern.permute.xlu0 0
    %6343 = vperm.xlu0 %6342, %v6314
    %v6344 = vpop.permute.xlu0 %6343
    %6345 = vset.pattern.permute.xlu0 0
    %6346 = vperm.xlu0 %6345, %v6315
    %v6347 = vpop.permute.xlu0 %6346
    %6348 = vset.pattern.permute.xlu0 0
    %6349 = vperm.xlu0 %6348, %v6316
    %v6350 = vpop.permute.xlu0 %6349
    %6351 = vset.pattern.permute.xlu0 0
    %6352 = vperm.xlu0 %6351, %v6317
    %v6353 = vpop.permute.xlu0 %6352
    %6354 = vset.pattern.permute.xlu0 0
    %6355 = vperm.xlu0 %6354, %v6318
    %v6356 = vpop.permute.xlu0 %6355
    %6357 = vset.pattern.permute.xlu0 0
    %6358 = vperm.xlu0 %6357, %v6319
    %v6359 = vpop.permute.xlu0 %6358
    %6360 = vset.pattern.permute.xlu0 0
    %6361 = vperm.xlu0 %6360, %v6320
    %v6362 = vpop.permute.xlu0 %6361
    %6363 = vset.pattern.permute.xlu0 0
    %6364 = vperm.xlu0 %6363, %v6321
    %v6365 = vpop.permute.xlu0 %6364
    %6366 = vset.pattern.permute.xlu0 0
    %6367 = vperm.xlu0 %6366, %v6322
    %v6368 = vpop.permute.xlu0 %6367
    %6369 = vset.pattern.permute.xlu0 0
    %6370 = vperm.xlu0 %6369, %v6323
    %v6371 = vpop.permute.xlu0 %6370
    %vm6372 = vcmp.eq.s32.totalorder %v6326, 1
    %vm6373 = vcmp.eq.s32.totalorder %v6329, 1
    %vm6374 = vcmp.eq.s32.totalorder %v6332, 1
    %vm6375 = vcmp.eq.s32.totalorder %v6335, 1
    %vm6376 = vcmp.eq.s32.totalorder %v6338, 1
    %vm6377 = vcmp.eq.s32.totalorder %v6341, 1
    %vm6378 = vcmp.eq.s32.totalorder %v6344, 1
    %vm6379 = vcmp.eq.s32.totalorder %v6347, 1
    %vm6380 = vcmp.eq.s32.totalorder %v6350, 1
    %vm6381 = vcmp.eq.s32.totalorder %v6353, 1
    %vm6382 = vcmp.eq.s32.totalorder %v6356, 1
    %vm6383 = vcmp.eq.s32.totalorder %v6359, 1
    %vm6384 = vcmp.eq.s32.totalorder %v6362, 1
    %vm6385 = vcmp.eq.s32.totalorder %v6365, 1
    %vm6386 = vcmp.eq.s32.totalorder %v6368, 1
    %vm6387 = vcmp.eq.s32.totalorder %v6371, 1
    %v6388 = vsel %vm6372, %v5942, 0.0
    %v6389 = vsel %vm6373, %v5948, 0.0
    %v6390 = vsel %vm6374, %v5954, 0.0
    %v6391 = vsel %vm6375, %v5960, 0.0
    %v6392 = vsel %vm6376, %v5966, 0.0
    %v6393 = vsel %vm6377, %v5972, 0.0
    %v6394 = vsel %vm6378, %v5978, 0.0
    %v6395 = vsel %vm6379, %v5984, 0.0
    %v6396 = vsel %vm6380, %v5990, 0.0
    %v6397 = vsel %vm6381, %v5996, 0.0
    %v6398 = vsel %vm6382, %v6002, 0.0
    %v6399 = vsel %vm6383, %v6008, 0.0
    %v6400 = vsel %vm6384, %v6014, 0.0
    %v6401 = vsel %vm6385, %v6020, 0.0
    %v6402 = vsel %vm6386, %v6026, 0.0
    %v6403 = vsel %vm6387, %v6032, 0.0
    %v6404 = vadd.f32 %v6276, %v6388
    %v6405 = vadd.f32 %v6277, %v6389
    %v6406 = vadd.f32 %v6278, %v6390
    %v6407 = vadd.f32 %v6279, %v6391
    %v6408 = vadd.f32 %v6280, %v6392
    %v6409 = vadd.f32 %v6281, %v6393
    %v6410 = vadd.f32 %v6282, %v6394
    %v6411 = vadd.f32 %v6283, %v6395
    %v6412 = vadd.f32 %v6284, %v6396
    %v6413 = vadd.f32 %v6285, %v6397
    %v6414 = vadd.f32 %v6286, %v6398
    %v6415 = vadd.f32 %v6287, %v6399
    %v6416 = vadd.f32 %v6288, %v6400
    %v6417 = vadd.f32 %v6289, %v6401
    %v6418 = vadd.f32 %v6290, %v6402
    %v6419 = vadd.f32 %v6291, %v6403
    %vm6420 = vcmp.eq.s32.totalorder %v5212, 3
    %vm6421 = vcmp.eq.s32.totalorder %v5213, 3
    %vm6422 = vcmp.eq.s32.totalorder %v5214, 3
    %vm6423 = vcmp.eq.s32.totalorder %v5215, 3
    %vm6424 = vcmp.eq.s32.totalorder %v5216, 3
    %vm6425 = vcmp.eq.s32.totalorder %v5217, 3
    %vm6426 = vcmp.eq.s32.totalorder %v5218, 3
    %vm6427 = vcmp.eq.s32.totalorder %v5219, 3
    %vm6428 = vcmp.eq.s32.totalorder %v5220, 3
    %vm6429 = vcmp.eq.s32.totalorder %v5221, 3
    %vm6430 = vcmp.eq.s32.totalorder %v5222, 3
    %vm6431 = vcmp.eq.s32.totalorder %v5223, 3
    %vm6432 = vcmp.eq.s32.totalorder %v5224, 3
    %vm6433 = vcmp.eq.s32.totalorder %v5225, 3
    %vm6434 = vcmp.eq.s32.totalorder %v5226, 3
    %vm6435 = vcmp.eq.s32.totalorder %v5227, 3
    %v6436 = vsel %vm6420, 1, 0
    %v6437 = vsel %vm6421, 1, 0
    %v6438 = vsel %vm6422, 1, 0
    %v6439 = vsel %vm6423, 1, 0
    %v6440 = vsel %vm6424, 1, 0
    %v6441 = vsel %vm6425, 1, 0
    %v6442 = vsel %vm6426, 1, 0
    %v6443 = vsel %vm6427, 1, 0
    %v6444 = vsel %vm6428, 1, 0
    %v6445 = vsel %vm6429, 1, 0
    %v6446 = vsel %vm6430, 1, 0
    %v6447 = vsel %vm6431, 1, 0
    %v6448 = vsel %vm6432, 1, 0
    %v6449 = vsel %vm6433, 1, 0
    %v6450 = vsel %vm6434, 1, 0
    %v6451 = vsel %vm6435, 1, 0
    %6452 = vset.pattern.permute.xlu0 0
    %6453 = vperm.xlu0 %6452, %v6436
    %v6454 = vpop.permute.xlu0 %6453
    %6455 = vset.pattern.permute.xlu0 0
    %6456 = vperm.xlu0 %6455, %v6437
    %v6457 = vpop.permute.xlu0 %6456
    %6458 = vset.pattern.permute.xlu0 0
    %6459 = vperm.xlu0 %6458, %v6438
    %v6460 = vpop.permute.xlu0 %6459
    %6461 = vset.pattern.permute.xlu0 0
    %6462 = vperm.xlu0 %6461, %v6439
    %v6463 = vpop.permute.xlu0 %6462
    %6464 = vset.pattern.permute.xlu0 0
    %6465 = vperm.xlu0 %6464, %v6440
    %v6466 = vpop.permute.xlu0 %6465
    %6467 = vset.pattern.permute.xlu0 0
    %6468 = vperm.xlu0 %6467, %v6441
    %v6469 = vpop.permute.xlu0 %6468
    %6470 = vset.pattern.permute.xlu0 0
    %6471 = vperm.xlu0 %6470, %v6442
    %v6472 = vpop.permute.xlu0 %6471
    %6473 = vset.pattern.permute.xlu0 0
    %6474 = vperm.xlu0 %6473, %v6443
    %v6475 = vpop.permute.xlu0 %6474
    %6476 = vset.pattern.permute.xlu0 0
    %6477 = vperm.xlu0 %6476, %v6444
    %v6478 = vpop.permute.xlu0 %6477
    %6479 = vset.pattern.permute.xlu0 0
    %6480 = vperm.xlu0 %6479, %v6445
    %v6481 = vpop.permute.xlu0 %6480
    %6482 = vset.pattern.permute.xlu0 0
    %6483 = vperm.xlu0 %6482, %v6446
    %v6484 = vpop.permute.xlu0 %6483
    %6485 = vset.pattern.permute.xlu0 0
    %6486 = vperm.xlu0 %6485, %v6447
    %v6487 = vpop.permute.xlu0 %6486
    %6488 = vset.pattern.permute.xlu0 0
    %6489 = vperm.xlu0 %6488, %v6448
    %v6490 = vpop.permute.xlu0 %6489
    %6491 = vset.pattern.permute.xlu0 0
    %6492 = vperm.xlu0 %6491, %v6449
    %v6493 = vpop.permute.xlu0 %6492
    %6494 = vset.pattern.permute.xlu0 0
    %6495 = vperm.xlu0 %6494, %v6450
    %v6496 = vpop.permute.xlu0 %6495
    %6497 = vset.pattern.permute.xlu0 0
    %6498 = vperm.xlu0 %6497, %v6451
    %v6499 = vpop.permute.xlu0 %6498
    %vm6500 = vcmp.eq.s32.totalorder %v6454, 1
    %vm6501 = vcmp.eq.s32.totalorder %v6457, 1
    %vm6502 = vcmp.eq.s32.totalorder %v6460, 1
    %vm6503 = vcmp.eq.s32.totalorder %v6463, 1
    %vm6504 = vcmp.eq.s32.totalorder %v6466, 1
    %vm6505 = vcmp.eq.s32.totalorder %v6469, 1
    %vm6506 = vcmp.eq.s32.totalorder %v6472, 1
    %vm6507 = vcmp.eq.s32.totalorder %v6475, 1
    %vm6508 = vcmp.eq.s32.totalorder %v6478, 1
    %vm6509 = vcmp.eq.s32.totalorder %v6481, 1
    %vm6510 = vcmp.eq.s32.totalorder %v6484, 1
    %vm6511 = vcmp.eq.s32.totalorder %v6487, 1
    %vm6512 = vcmp.eq.s32.totalorder %v6490, 1
    %vm6513 = vcmp.eq.s32.totalorder %v6493, 1
    %vm6514 = vcmp.eq.s32.totalorder %v6496, 1
    %vm6515 = vcmp.eq.s32.totalorder %v6499, 1
    %v6516 = vsel %vm6500, %v5944, 0.0
    %v6517 = vsel %vm6501, %v5950, 0.0
    %v6518 = vsel %vm6502, %v5956, 0.0
    %v6519 = vsel %vm6503, %v5962, 0.0
    %v6520 = vsel %vm6504, %v5968, 0.0
    %v6521 = vsel %vm6505, %v5974, 0.0
    %v6522 = vsel %vm6506, %v5980, 0.0
    %v6523 = vsel %vm6507, %v5986, 0.0
    %v6524 = vsel %vm6508, %v5992, 0.0
    %v6525 = vsel %vm6509, %v5998, 0.0
    %v6526 = vsel %vm6510, %v6004, 0.0
    %v6527 = vsel %vm6511, %v6010, 0.0
    %v6528 = vsel %vm6512, %v6016, 0.0
    %v6529 = vsel %vm6513, %v6022, 0.0
    %v6530 = vsel %vm6514, %v6028, 0.0
    %v6531 = vsel %vm6515, %v6034, 0.0
    %v6532 = vadd.f32 %v6404, %v6516
    %v6533 = vadd.f32 %v6405, %v6517
    %v6534 = vadd.f32 %v6406, %v6518
    %v6535 = vadd.f32 %v6407, %v6519
    %v6536 = vadd.f32 %v6408, %v6520
    %v6537 = vadd.f32 %v6409, %v6521
    %v6538 = vadd.f32 %v6410, %v6522
    %v6539 = vadd.f32 %v6411, %v6523
    %v6540 = vadd.f32 %v6412, %v6524
    %v6541 = vadd.f32 %v6413, %v6525
    %v6542 = vadd.f32 %v6414, %v6526
    %v6543 = vadd.f32 %v6415, %v6527
    %v6544 = vadd.f32 %v6416, %v6528
    %v6545 = vadd.f32 %v6417, %v6529
    %v6546 = vadd.f32 %v6418, %v6530
    %v6547 = vadd.f32 %v6419, %v6531
    %6549 = vset.pattern.permute.xlu0 0
    %6550 = vperm.xlu0 %6549, %v5626
    %v6551 = vpop.permute.xlu0 %6550
    %6554 = vset.pattern.permute.xlu0 0
    %6555 = vperm.xlu0 %6554, %v5627
    %v6556 = vpop.permute.xlu0 %6555
    %6559 = vset.pattern.permute.xlu0 0
    %6560 = vperm.xlu0 %6559, %v5628
    %v6561 = vpop.permute.xlu0 %6560
    %6564 = vset.pattern.permute.xlu0 0
    %6565 = vperm.xlu0 %6564, %v5629
    %v6566 = vpop.permute.xlu0 %6565
    %6569 = vset.pattern.permute.xlu0 0
    %6570 = vperm.xlu0 %6569, %v5630
    %v6571 = vpop.permute.xlu0 %6570
    %6574 = vset.pattern.permute.xlu0 0
    %6575 = vperm.xlu0 %6574, %v5631
    %v6576 = vpop.permute.xlu0 %6575
    %6579 = vset.pattern.permute.xlu0 0
    %6580 = vperm.xlu0 %6579, %v5632
    %v6581 = vpop.permute.xlu0 %6580
    %6584 = vset.pattern.permute.xlu0 0
    %6585 = vperm.xlu0 %6584, %v5633
    %v6586 = vpop.permute.xlu0 %6585
    %6589 = vset.pattern.permute.xlu0 0
    %6590 = vperm.xlu0 %6589, %v5634
    %v6591 = vpop.permute.xlu0 %6590
    %6594 = vset.pattern.permute.xlu0 0
    %6595 = vperm.xlu0 %6594, %v5635
    %v6596 = vpop.permute.xlu0 %6595
    %6599 = vset.pattern.permute.xlu0 0
    %6600 = vperm.xlu0 %6599, %v5636
    %v6601 = vpop.permute.xlu0 %6600
    %6604 = vset.pattern.permute.xlu0 0
    %6605 = vperm.xlu0 %6604, %v5637
    %v6606 = vpop.permute.xlu0 %6605
    %6609 = vset.pattern.permute.xlu0 0
    %6610 = vperm.xlu0 %6609, %v5638
    %v6611 = vpop.permute.xlu0 %6610
    %6614 = vset.pattern.permute.xlu0 0
    %6615 = vperm.xlu0 %6614, %v5639
    %v6616 = vpop.permute.xlu0 %6615
    %6619 = vset.pattern.permute.xlu0 0
    %6620 = vperm.xlu0 %6619, %v5640
    %v6621 = vpop.permute.xlu0 %6620
    %6624 = vset.pattern.permute.xlu0 0
    %6625 = vperm.xlu0 %6624, %v5641
    %v6626 = vpop.permute.xlu0 %6625
    %v6628 = vmul.f32 %v6551, %v6532
    %v6629 = vmul.f32 %v6556, %v6533
    %v6630 = vmul.f32 %v6561, %v6534
    %v6631 = vmul.f32 %v6566, %v6535
    %v6632 = vmul.f32 %v6571, %v6536
    %v6633 = vmul.f32 %v6576, %v6537
    %v6634 = vmul.f32 %v6581, %v6538
    %v6635 = vmul.f32 %v6586, %v6539
    %v6636 = vmul.f32 %v6591, %v6540
    %v6637 = vmul.f32 %v6596, %v6541
    %v6638 = vmul.f32 %v6601, %v6542
    %v6639 = vmul.f32 %v6606, %v6543
    %v6640 = vmul.f32 %v6611, %v6544
    %v6641 = vmul.f32 %v6616, %v6545
    %v6642 = vmul.f32 %v6621, %v6546
    %v6643 = vmul.f32 %v6626, %v6547
    %v6644 = vld [vmem:[%s3] sm:$0x1]
    %v6645 = vlaneseq
    %v6646 = vshrl.u32 %v6645, 7
    %v6647 = vsub.s32 0, %v6646
    %v6648 = vrot.slane %v6644, %v6647
    %vm6649 = vcmp.eq.s32.totalorder %v365, %v6648
    %vm6650 = vcmp.eq.s32.totalorder %v366, %v6648
    %v6651 = vsel %vm6649, 1.0, 0.0
    %v6652 = vsel %vm6650, 1.0, 0.0
    %v6653 = vld [vmem:[#allocation10] sm:$0xff]
    %v6654 = vld [vmem:[#allocation10 + $0x8] sm:$0xff]
    %6655 = vmatprep.subr.mxu0 0.0
    %6656 = vmatpush1.msra.mxu0 %v6628
    %6657 = vmatprep.subr.mxu0 0.0
    %6658 = vmatpush1.msra.mxu0 %v6629
    %6659 = vmatprep.subr.mxu0 0.0
    %6660 = vmatpush1.msra.mxu0 %v6630
    %6661 = vmatprep.subr.mxu0 0.0
    %6662 = vmatpush1.msra.mxu0 %v6631
    %6663 = vmatprep.subr.mxu0 0.0
    %6664 = vmatpush1.msra.mxu0 %v6632
    %6665 = vmatprep.subr.mxu0 0.0
    %6666 = vmatpush1.msra.mxu0 %v6633
    %6667 = vmatprep.subr.mxu0 0.0
    %6668 = vmatpush1.msra.mxu0 %v6634
    %6669 = vmatprep.subr.mxu0 0.0
    %6670 = vmatpush1.msra.mxu0 %v6635
    %6671 = vmatprep.subr.mxu0 0.0
    %6672 = vmatpush1.msra.mxu0 %v6636
    %6673 = vmatprep.subr.mxu0 0.0
    %6674 = vmatpush1.msra.mxu0 %v6637
    %6675 = vmatprep.subr.mxu0 0.0
    %6676 = vmatpush1.msra.mxu0 %v6638
    %6677 = vmatprep.subr.mxu0 0.0
    %6678 = vmatpush1.msra.mxu0 %v6639
    %6679 = vmatprep.subr.mxu0 0.0
    %6680 = vmatpush1.msra.mxu0 %v6640
    %6681 = vmatprep.subr.mxu0 0.0
    %6682 = vmatpush1.msra.mxu0 %v6641
    %6683 = vmatprep.subr.mxu0 0.0
    %6684 = vmatpush1.msra.mxu0 %v6642
    %6685 = vmatprep.subr.mxu0 0.0
    %6686 = vmatpush1.msra.mxu0 %v6643
    %6687 = vmatprep.subr.mxu0 0.0
    %6688 = vmatpush1.msra.mxu0 0.0
    %6689 = vmatprep.subr.mxu0 0.0
    %6690 = vmatpush1.msra.mxu0 0.0
    %6691 = vmatprep.subr.mxu0 0.0
    %6692 = vmatpush1.msra.mxu0 0.0
    %6693 = vmatprep.subr.mxu0 0.0
    %6694 = vmatpush1.msra.mxu0 0.0
    %6695 = vmatprep.subr.mxu0 0.0
    %6696 = vmatpush1.msra.mxu0 0.0
    %6697 = vmatprep.subr.mxu0 0.0
    %6698 = vmatpush1.msra.mxu0 0.0
    %6699 = vmatprep.subr.mxu0 0.0
    %6700 = vmatpush1.msra.mxu0 0.0
    %6701 = vmatprep.subr.mxu0 0.0
    %6702 = vmatpush1.msra.mxu0 0.0
    %6703 = vmatprep.subr.mxu0 0.0
    %6704 = vmatpush1.msra.mxu0 0.0
    %6705 = vmatprep.subr.mxu0 0.0
    %6706 = vmatpush1.msra.mxu0 0.0
    %6707 = vmatprep.subr.mxu0 0.0
    %6708 = vmatpush1.msra.mxu0 0.0
    %6709 = vmatprep.subr.mxu0 0.0
    %6710 = vmatpush1.msra.mxu0 0.0
    %6711 = vmatprep.subr.mxu0 0.0
    %6712 = vmatpush1.msra.mxu0 0.0
    %6713 = vmatprep.subr.mxu0 0.0
    %6714 = vmatpush1.msra.mxu0 0.0
    %6715 = vmatprep.subr.mxu0 0.0
    %6716 = vmatpush1.msra.mxu0 0.0
    %6717 = vmatprep.subr.mxu0 0.0
    %6718 = vmatpush1.msra.mxu0 0.0
    %6719 = vmatprep.mubr.f32.mxu0 0.0
    %6720 = vmatmul.mubr.f32.gmra.mrb[0].mxu0 %v6651
    %v6721 = vpop.f32.mrb[0].mxu0
    %v6722 = vadd.f32 0.0, %v6721
    %v6723 = vpop.f32.mrb[0].mxu0
    %6724 = vmatprep.mubr.f32.mxu0 0.0
    %6725 = vmatmul.mubr.f32.gmra.mrb[0].mxu0 %v6652
    %v6726 = vpop.f32.mrb[0].mxu0
    %v6727 = vadd.f32 0.0, %v6726
    %v6728 = vpop.f32.mrb[0].mxu0
    %6729 = vdwg.mxu0
    %v6730 = vadd.f32 %v6653, %v6722
    %v6731 = vadd.f32 %v6654, %v6727
    %6732 = vst [vmem:[#allocation10] sm:$0xff] %v6730
    %6733 = vst [vmem:[#allocation10 + $0x8] sm:$0xff] %v6731
    %v6734 = vld [vmem:[#allocation10] sm:$0xff]
    %v6735 = vld [vmem:[#allocation10 + $0x8] sm:$0xff]
    %v6736 = vmax.f32 %v6734, 0.0
    %v6737 = vmax.f32 %v6735, 0.0
    %6738 = vst [vmem:[#allocation10] sm:$0xff] %v6736
    %6739 = vst [vmem:[#allocation10 + $0x8] sm:$0xff] %v6737
    // Predicated region
    $region42: #{tpu_custom_call.1} parent=1 // pred_check
      _
    $region43: #{tpu_custom_call.1} parent=1 // pred_check_branch
      %6741 = sbr.rel (0) target = $region45
    $region44: #{tpu_custom_call.1} parent=1 // pred_region
      %s6743 = ssub.s32 256, 256
      %6744 = vsyncadd [#allocation9], %s6743
      %s6745 = sshll.u32 [#allocation10], 4
      %s6746 = int_to_ptr.vmem [resolvable:$true] %s6745
      %6751 = dma.vmem_to_hbm [thread:$0]  %s6746, 256, %s9, [#allocation9], 128, 128, 8
    $region45: #{tpu_custom_call.1} parent=1 // pred_fallthru
      _
    // Predicated region
    $region46: #{tpu_custom_call.1} parent=1 // pred_check
      _
    $region47: #{tpu_custom_call.1} parent=1 // pred_check_branch
      %6753 = sbr.rel (0) target = $region49
    $region48: #{tpu_custom_call.1} parent=1 // pred_region
      _
    $region49: #{tpu_custom_call.1} parent=1 // pred_fallthru
      _
    // Predicated region
    $region50: #{tpu_custom_call.1} parent=1 // pred_check
      _
    $region51: #{tpu_custom_call.1} parent=1 // pred_check_branch
      %6755 = sbr.rel (0) target = $region53
    $region52: #{tpu_custom_call.1} parent=1 // pred_region
      %6756 = dma.done [#allocation9], 256
    $region53: #{tpu_custom_call.1} parent=1 // pred_fallthru
      _
    // Predicated region
    $region54: #{tpu_custom_call.1} parent=1 // pred_check
      _
    $region55: #{tpu_custom_call.1} parent=1 // pred_check_branch
      %6758 = sbr.rel (0) target = $region57
    $region56: #{tpu_custom_call.1} parent=1 // pred_region
      _
    $region57: #{tpu_custom_call.1} parent=1 // pred_fallthru
      _
    %6759 = vsyncpa [#allocation8], 1
    %6760 = vsyncpa [#allocation9], 1

</llo_original>
